<compile_context>
chip_gen: v7x
topology: tpu7x:2x2x1
jax: 0.10.0
libtpu: 0.0.40
codegen_flags: <defaults>
</compile_context>

<pallas_src>
import functools

import jax
import jax.numpy as jnp
from jax.experimental import pallas as pl
from jax.experimental.pallas import tpu as pltpu


def _round_up(x, m):
    return ((x + m - 1) // m) * m


def _cdiv(a, b):
    return -(-a // b)


# ----------------------------------------------------------------------------
# Pallas kernel: tiled matmul + bias; f32 accumulation in a VMEM scratch,
# output emitted in out_dtype (bf16 for the ConvTranspose path).
# ----------------------------------------------------------------------------
def _mm_kernel(a_ref, b_ref, bias_ref, o_ref, acc_ref, *, nk):
    k = pl.program_id(1)

    @pl.when(k == 0)
    def _():
        acc_ref[...] = jnp.broadcast_to(bias_ref[...], acc_ref.shape)

    acc_ref[...] += jnp.dot(a_ref[...], b_ref[...],
                            preferred_element_type=jnp.float32)

    @pl.when(k == nk - 1)
    def _():
        o_ref[...] = acc_ref[...].astype(o_ref.dtype)


def matmul_bias(a, b, bias, *, out_dtype=jnp.bfloat16, tm=512, tk=512):
    """out = (a @ b + bias).astype(out_dtype); operands cast to bf16 for the MXU."""
    M, K = a.shape
    Kb, Nc = b.shape
    assert K == Kb
    a = a.astype(jnp.bfloat16)
    b = b.astype(jnp.bfloat16)

    if M <= tm:
        tm_e = _round_up(M, 8)
        Mp = tm_e
    else:
        tm_e = tm
        Mp = _round_up(M, tm)
    if K <= tk:
        tk_e, Kp = K, K
    else:
        tk_e = tk
        Kp = _round_up(K, tk)

    if Mp != M or Kp != K:
        a = jnp.pad(a, ((0, Mp - M), (0, Kp - K)))
    if Kp != K:
        b = jnp.pad(b, ((0, Kp - K), (0, 0)))
    bias2 = bias.reshape(1, Nc).astype(jnp.float32)

    nm, nk = Mp // tm_e, Kp // tk_e

    out = pl.pallas_call(
        functools.partial(_mm_kernel, nk=nk),
        out_shape=jax.ShapeDtypeStruct((Mp, Nc), out_dtype),
        grid_spec=pltpu.PrefetchScalarGridSpec(
            num_scalar_prefetch=0,
            grid=(nm, nk),
            in_specs=[
                pl.BlockSpec((tm_e, tk_e), lambda i, k: (i, k)),
                pl.BlockSpec((tk_e, Nc), lambda i, k: (k, 0)),
                pl.BlockSpec((1, Nc), lambda i, k: (0, 0)),
            ],
            out_specs=pl.BlockSpec((tm_e, Nc), lambda i, k: (i, 0)),
            scratch_shapes=[pltpu.VMEM((tm_e, Nc), jnp.float32)],
        ),
        compiler_params=pltpu.CompilerParams(
            dimension_semantics=("parallel", "arbitrary")),
    )(a, b, bias2)
    return out[:M]


# ----------------------------------------------------------------------------
# Pallas kernel: direct 3x3 conv (stride 1, pad 1), grid = (batch, row_tile),
# with fused per-channel scale/shift (folded BatchNorm) + ReLU.
# Multiple input "sources" (the channel split of cat([x2, x1_up])) are
# contracted in a single pass (split-K), so the concat never hits HBM.
# ----------------------------------------------------------------------------
def _conv3x3_kernel(*refs, n_src, th, W, Wp2):
    o_ref = refs[-1]
    scale = refs[-3][...]           # (1, cp) f32
    shift = refs[-2][...]           # (1, cp) f32
    cp = o_ref.shape[-1]
    M = th * Wp2

    acc = jnp.zeros((th, W, cp), jnp.float32)
    for s in range(n_src):
        main = refs[2 * s][0]       # (th, Wp2, c)  bf16
        halo = refs[2 * s + 1][0]   # (2,  Wp2, c)  bf16  (next 2 rows)
        w_ref = refs[2 * n_src + s]  # (3, 3, c, cp) bf16  (ky, kx, ci, co)
        c = main.shape[-1]

        # (th+2)*Wp2 rows, flattened row-major; Wp2 % 8 == 0 keeps reshapes layout-free.
        rows = jnp.concatenate(
            [main.reshape(M, c), halo.reshape(2 * Wp2, c)], axis=0)
        # dy-shifted windows are 8-aligned sublane slices of `rows`.
        taps = [rows[dy * Wp2: dy * Wp2 + M] for dy in range(3)]

        if c % 128 == 0:
            # Fold dy into K (= 3c): fills the 256-deep MXU on v6e/v7x; the lane
            # concat is 128-aligned here.
            slab = jnp.concatenate(taps, axis=-1)                 # (M, 3c)
            for dx in range(3):
                wk = jnp.concatenate(
                    [w_ref[dy, dx] for dy in range(3)], axis=0)   # (3c, cp)
                y = jnp.dot(slab, wk, preferred_element_type=jnp.float32)
                acc = acc + y.reshape(th, Wp2, cp)[:, dx:dx + W, :]
        else:
            # Channel count not lane-aligned: keep K = c per tap (no misaligned
            # lane concat), accumulate the 3 dy taps in f32 before dx alignment.
            for dx in range(3):
                y = jnp.dot(taps[0], w_ref[0, dx],
                            preferred_element_type=jnp.float32)
                for dy in range(1, 3):
                    y = y + jnp.dot(taps[dy], w_ref[dy, dx],
                                    preferred_element_type=jnp.float32)
                acc = acc + y.reshape(th, Wp2, cp)[:, dx:dx + W, :]

    o_ref[0] = jnp.maximum(acc * scale + shift, 0.0).astype(o_ref.dtype)


def conv3x3_bn_relu(sources, weights, scale, shift, *, out_hw, out_dtype,
                    max_rows=16):
    """Fused 3x3 conv (stride 1, pad 1) + folded-BN scale/shift + ReLU.

    sources: list of (array(N, hs, ws, c_i), (top, left)) placed on an (H, W)
      zero canvas -- this fuses the channel concat and F.pad into the conv.
    weights: list of (3, 3, c_i, Cp) bf16 arrays (ky, kx, ci, co), Cp % 128 == 0.
    scale/shift: (1, Cp) f32.
    Returns (N, H, W, Cp) in out_dtype.
    """
    H, W = out_hw
    n = sources[0][0].shape[0]
    cp = weights[0].shape[-1]
    assert cp % 128 == 0

    nh = _cdiv(H, max_rows)
    th = _round_up(_cdiv(H, nh), 8)      # balanced row tiles, multiple of 8
    hp = nh * th
    wp2 = _round_up(W + 2, 8)            # layout-friendly padded width

    padded, inputs, in_specs = [], [], []
    for arr, (top, left) in sources:
        _, hs, ws, c = arr.shape
        arr = jnp.pad(arr.astype(jnp.bfloat16),
                      ((0, 0),
                       (1 + top, hp + 1 - top - hs),
                       (1 + left, wp2 - 1 - left - ws),
                       (0, 0)))          # -> (n, hp+2, wp2, c), zeros elsewhere
        padded.append(arr)
        inputs.extend([arr, arr])        # same HBM array, two block patterns
        in_specs.append(
            pl.BlockSpec((1, th, wp2, c), lambda b, i: (b, i, 0, 0)))
        in_specs.append(
            pl.BlockSpec((1, 2, wp2, c),
                         lambda b, i: (b, (i + 1) * (th // 2), 0, 0)))
    for wgt in weights:
        in_specs.append(pl.BlockSpec(wgt.shape, lambda b, i: (0, 0, 0, 0)))
    in_specs.append(pl.BlockSpec((1, cp), lambda b, i: (0, 0)))
    in_specs.append(pl.BlockSpec((1, cp), lambda b, i: (0, 0)))

    out = pl.pallas_call(
        functools.partial(_conv3x3_kernel, n_src=len(sources),
                          th=th, W=W, Wp2=wp2),
        out_shape=jax.ShapeDtypeStruct((n, hp, W, cp), out_dtype),
        grid_spec=pltpu.PrefetchScalarGridSpec(
            num_scalar_prefetch=0,
            grid=(n, nh),
            in_specs=in_specs,
            out_specs=pl.BlockSpec((1, th, W, cp), lambda b, i: (b, i, 0, 0)),
        ),
        compiler_params=pltpu.CompilerParams(
            dimension_semantics=("parallel", "parallel")),
    )(*inputs, *weights, scale, shift)
    return out[:, :H]


# ----------------------------------------------------------------------------
# BatchNorm (eval mode) folded into a per-channel scale/shift, padded to the
# lane-dense channel count.
# ----------------------------------------------------------------------------
def fold_bn(bn, conv_bias, cp, eps=1e-5):
    scale = bn["gamma"] * jax.lax.rsqrt(bn["var"] + eps)
    shift = (conv_bias - bn["mean"]) * scale + bn["beta"]
    pad = cp - scale.shape[0]
    scale = jnp.pad(scale, (0, pad)).reshape(1, cp).astype(jnp.float32)
    shift = jnp.pad(shift, (0, pad)).reshape(1, cp).astype(jnp.float32)
    return scale, shift


# ----------------------------------------------------------------------------
# Parameters (deterministic; shapes mirror Up.__init__). Weights are stored
# pre-permuted, channel-padded (lane-dense Cout) and in bf16.
# ----------------------------------------------------------------------------
def init_up_params(key, in_channels, out_channels):
    ks = jax.random.split(key, 6)
    chalf = in_channels // 2
    coutp = _round_up(out_channels, 128)

    def uni(k, shape, fan_in):
        bound = 1.0 / (fan_in ** 0.5)
        return jax.random.uniform(k, shape, jnp.float32, -bound, bound)

    def bn(c):
        return {"gamma": jnp.ones((c,), jnp.float32),
                "beta": jnp.zeros((c,), jnp.float32),
                "mean": jnp.zeros((c,), jnp.float32),
                "var": jnp.ones((c,), jnp.float32)}

    # ConvTranspose2d(Cin, Cin//2, 2, 2): weight as (Cin, 4*chalf), (ky,kx,co) cols.
    up_w = uni(ks[0], (in_channels, 2, 2, chalf), in_channels * 4)
    up_w = up_w.reshape(in_channels, 4 * chalf).astype(jnp.bfloat16)

    # conv1: Conv2d(Cin, Cout, 3, pad=1); Cout padded to coutp (lane-dense);
    # K split into the x2 half and the upsampled-x1 half (fuses the concat).
    w1 = uni(ks[2], (3, 3, in_channels, out_channels), in_channels * 9)
    w1 = jnp.pad(w1, ((0, 0), (0, 0), (0, 0), (0, coutp - out_channels)))
    # conv2: Conv2d(Cout, Cout, 3, pad=1); input and output padded to coutp
    # (zero rows for padded input channels -> conv1's padded lanes are ignored).
    w2 = uni(ks[4], (3, 3, out_channels, out_channels), out_channels * 9)
    w2 = jnp.pad(w2, ((0, 0), (0, 0),
                      (0, coutp - out_channels), (0, coutp - out_channels)))

    return {
        "up_w": up_w,
        "up_b": uni(ks[1], (chalf,), in_channels * 4),
        "c1_wa": w1[:, :, :chalf, :].astype(jnp.bfloat16),   # x2 part of K
        "c1_wb": w1[:, :, chalf:, :].astype(jnp.bfloat16),   # upsampled part of K
        "c1_b": uni(ks[3], (out_channels,), in_channels * 9),
        "bn1": bn(out_channels),
        "c2_w": w2.astype(jnp.bfloat16),
        "c2_b": uni(ks[5], (out_channels,), out_channels * 9),
        "bn2": bn(out_channels),
    }


# ----------------------------------------------------------------------------
# Forward pass (matches Up.forward).
# ----------------------------------------------------------------------------
def up_forward(params, x1_nchw, x2_nchw):
    # NCHW (PyTorch) -> NHWC for the kernels.
    x1 = jnp.transpose(x1_nchw, (0, 2, 3, 1)).astype(jnp.float32)
    x2 = jnp.transpose(x2_nchw, (0, 2, 3, 1)).astype(jnp.float32)

    n, h1, w1, cin = x1.shape
    chalf = cin // 2
    h2, w2 = x2.shape[1], x2.shape[2]
    cout = params["bn2"]["gamma"].shape[0]
    cp = params["c2_w"].shape[-1]

    # --- ConvTranspose2d(cin, cin//2, k=2, s=2): single matmul + pixel shuffle ---
    # out[n, 2i+ky, 2j+kx, co] = b[co] + sum_ci x[n,i,j,ci] * W[ci,ky,kx,co]
    a = x1.reshape(n * h1 * w1, cin)
    bias_cols = jnp.tile(params["up_b"], 4)                     # per (ky,kx) tap
    y = matmul_bias(a, params["up_w"], bias_cols, out_dtype=jnp.bfloat16)
    y = y.reshape(n, h1, w1, 2, 2, chalf)
    y = jnp.transpose(y, (0, 1, 3, 2, 4, 5)).reshape(n, 2 * h1, 2 * w1, chalf)

    # --- F.pad offsets (fused into the first conv's zero padding) ---
    dY, dX = h2 - 2 * h1, w2 - 2 * w1

    # --- DoubleConv: [conv3x3 + BN + ReLU] x 2; channel concat of [x2, x1_up]
    #     fused into conv1 as a split-K contraction ---
    s1, t1 = fold_bn(params["bn1"], params["c1_b"], cp)
    x = conv3x3_bn_relu(
        [(x2, (0, 0)), (y, (dY // 2, dX // 2))],
        [params["c1_wa"], params["c1_wb"]],
        s1, t1, out_hw=(h2, w2), out_dtype=jnp.bfloat16)        # (n, h2, w2, cp)
    s2, t2 = fold_bn(params["bn2"], params["c2_b"], cp)
    x = conv3x3_bn_relu(
        [(x, (0, 0))],
        [params["c2_w"]],
        s2, t2, out_hw=(h2, w2), out_dtype=jnp.float32)         # (n, h2, w2, cp)

    # Drop the lane padding and go back to NCHW.
    return jnp.transpose(x[..., :cout], (0, 3, 1, 2))


if __name__ == "__main__":
    in_channels, out_channels = 128, 64
    batch = 2
    h1 = w1 = 8        # x1 spatial (before the 2x transposed-conv upsample)
    h2 = w2 = 18       # x2 spatial (exercises the F.pad branch: diff = 2)

    key = jax.random.PRNGKey(0)
    k1, k2, kp = jax.random.split(key, 3)
    x1 = jax.random.normal(k1, (batch, in_channels, h1, w1), jnp.float32)
    x2 = jax.random.normal(k2, (batch, in_channels // 2, h2, w2), jnp.float32)
    params = init_up_params(kp, in_channels, out_channels)

    out = jax.jit(up_forward)(params, x1, x2)
    out = jax.block_until_ready(out)
    assert out.shape == (batch, out_channels, h2, w2)
    assert out.dtype == jnp.float32
    print("KERNEL_OK")
</pallas_src>

<mosaic_0001>
module attributes {stable_mosaic.version = 11 : i64} {
  func.func @_mm_kernel(%arg0: i32, %arg1: i32, %arg2: memref<128x128xbf16, #tpu.memory_space<vmem>>, %arg3: memref<128x256xbf16, #tpu.memory_space<vmem>>, %arg4: memref<1x256xf32, #tpu.memory_space<vmem>>, %arg5: memref<128x256xbf16, #tpu.memory_space<vmem>>, %arg6: memref<128x256xf32, #tpu.memory_space<vmem>>) attributes {dimension_semantics = [#tpu.dimension_semantics<parallel>, #tpu.dimension_semantics<arbitrary>], iteration_bounds = array<i64: 1, 1>, scalar_prefetch = 0 : i64, scratch_operands = 1 : i64, tpu.core_type = #tpu.core_type<tc>, window_params = [{transform_indices = @transform_0, window_bounds = array<i64: 128, 128>}, {transform_indices = @transform_1, window_bounds = array<i64: 128, 256>}, {pipeline_mode = #tpu.pipeline_mode<synchronous>, transform_indices = @transform_2, window_bounds = array<i64: 1, 256>}, {transform_indices = @transform_3, window_bounds = array<i64: 128, 256>}]} {
    %c0_i32 = arith.constant 0 : i32
    %0 = arith.cmpi eq, %arg1, %c0_i32 : i32
    %1 = arith.extui %0 : i1 to i32
    %c0_i32_0 = arith.constant 0 : i32
    %2 = arith.cmpi ne, %1, %c0_i32_0 : i32
    scf.if %2 {
      %c0_10 = arith.constant 0 : index
      %c0_11 = arith.constant 0 : index
      %12 = vector.load %arg4[%c0_10, %c0_11] : memref<1x256xf32, #tpu.memory_space<vmem>>, vector<1x256xf32>
      %13 = vector.shape_cast %12 : vector<1x256xf32> to vector<1x256xf32>
      %14 = vector.broadcast %13 : vector<1x256xf32> to vector<128x256xf32>
      %c0_12 = arith.constant 0 : index
      %c0_13 = arith.constant 0 : index
      %15 = vector.load %arg6[%c0_12, %c0_13] : memref<128x256xf32, #tpu.memory_space<vmem>>, vector<128x256xf32>
      tpu.vector_store %arg6[%c0_12, %c0_13], %14 {strides = array<i32>} : memref<128x256xf32, #tpu.memory_space<vmem>>, vector<128x256xf32>,
    } else {
    }
    %c0 = arith.constant 0 : index
    %c0_1 = arith.constant 0 : index
    %3 = vector.load %arg6[%c0, %c0_1] : memref<128x256xf32, #tpu.memory_space<vmem>>, vector<128x256xf32>
    %c0_2 = arith.constant 0 : index
    %c0_3 = arith.constant 0 : index
    %4 = vector.load %arg2[%c0_2, %c0_3] : memref<128x128xbf16, #tpu.memory_space<vmem>>, vector<128x128xbf16>
    %c0_4 = arith.constant 0 : index
    %c0_5 = arith.constant 0 : index
    %5 = vector.load %arg3[%c0_4, %c0_5] : memref<128x256xbf16, #tpu.memory_space<vmem>>, vector<128x256xbf16>
    %cst = arith.constant dense<0.000000e+00> : vector<128x256xf32>
    %6 = tpu.matmul %4, %5, %cst {dimension_numbers = #tpu.dot_dimension_numbers<[1], [0], [0], [1], [0, 0, 1, 1], [], []>} : vector<128x128xbf16>, vector<128x256xbf16>, vector<128x256xf32> -> vector<128x256xf32>
    %7 = arith.addf %3, %6 : vector<128x256xf32>
    %c0_6 = arith.constant 0 : index
    %c0_7 = arith.constant 0 : index
    %8 = vector.load %arg6[%c0_6, %c0_7] : memref<128x256xf32, #tpu.memory_space<vmem>>, vector<128x256xf32>
    tpu.vector_store %arg6[%c0_6, %c0_7], %7 {strides = array<i32>} : memref<128x256xf32, #tpu.memory_space<vmem>>, vector<128x256xf32>,
    %c0_i32_8 = arith.constant 0 : i32
    %9 = arith.cmpi eq, %arg1, %c0_i32_8 : i32
    %10 = arith.extui %9 : i1 to i32
    %c0_i32_9 = arith.constant 0 : i32
    %11 = arith.cmpi ne, %10, %c0_i32_9 : i32
    scf.if %11 {
      %c0_10 = arith.constant 0 : index
      %c0_11 = arith.constant 0 : index
      %12 = vector.load %arg6[%c0_10, %c0_11] : memref<128x256xf32, #tpu.memory_space<vmem>>, vector<128x256xf32>
      %13 = arith.truncf %12 : vector<128x256xf32> to vector<128x256xbf16>
      %c0_12 = arith.constant 0 : index
      %c0_13 = arith.constant 0 : index
      %14 = vector.load %arg5[%c0_12, %c0_13] : memref<128x256xbf16, #tpu.memory_space<vmem>>, vector<128x256xbf16>
      tpu.vector_store %arg5[%c0_12, %c0_13], %13 {strides = array<i32>} : memref<128x256xbf16, #tpu.memory_space<vmem>>, vector<128x256xbf16>,
    } else {
    }
    return
  }
  func.func @transform_0(%arg0: i32, %arg1: i32) -> (i32, i32) {
    %c0_i32 = arith.constant 0 : i32
    return %arg0, %arg1 : i32, i32
  }
  func.func @transform_1(%arg0: i32, %arg1: i32) -> (i32, i32) {
    %c0_i32 = arith.constant 0 : i32
    %c0_i32_0 = arith.constant 0 : i32
    return %arg1, %c0_i32 : i32, i32
  }
  func.func @transform_2(%arg0: i32, %arg1: i32) -> (i32, i32) {
    %c0_i32 = arith.constant 0 : i32
    %c0_i32_0 = arith.constant 0 : i32
    %c0_i32_1 = arith.constant 0 : i32
    return %c0_i32, %c0_i32_0 : i32, i32
  }
  func.func @transform_3(%arg0: i32, %arg1: i32) -> (i32, i32) {
    %c0_i32 = arith.constant 0 : i32
    %c0_i32_0 = arith.constant 0 : i32
    return %arg0, %c0_i32 : i32, i32
  }
}

module attributes {stable_mosaic.version = 11 : i64} {
  func.func @_conv3x3_kernel(%arg0: i32, %arg1: i32, %arg2: memref<1x16x24x64xbf16, #tpu.memory_space<vmem>>, %arg3: memref<1x2x24x64xbf16, #tpu.memory_space<vmem>>, %arg4: memref<1x16x24x64xbf16, #tpu.memory_space<vmem>>, %arg5: memref<1x2x24x64xbf16, #tpu.memory_space<vmem>>, %arg6: memref<3x3x64x128xbf16, #tpu.memory_space<vmem>>, %arg7: memref<3x3x64x128xbf16, #tpu.memory_space<vmem>>, %arg8: memref<1x128xf32, #tpu.memory_space<vmem>>, %arg9: memref<1x128xf32, #tpu.memory_space<vmem>>, %arg10: memref<1x16x18x128xbf16, #tpu.memory_space<vmem>>) attributes {dimension_semantics = [#tpu.dimension_semantics<parallel>, #tpu.dimension_semantics<parallel>], iteration_bounds = array<i64: 2, 2>, scalar_prefetch = 0 : i64, scratch_operands = 0 : i64, tpu.core_type = #tpu.core_type<tc>, window_params = [{transform_indices = @transform_0, window_bounds = array<i64: 1, 16, 24, 64>}, {transform_indices = @transform_1, window_bounds = array<i64: 1, 2, 24, 64>}, {transform_indices = @transform_2, window_bounds = array<i64: 1, 16, 24, 64>}, {transform_indices = @transform_3, window_bounds = array<i64: 1, 2, 24, 64>}, {pipeline_mode = #tpu.pipeline_mode<synchronous>, transform_indices = @transform_4, window_bounds = array<i64: 3, 3, 64, 128>}, {pipeline_mode = #tpu.pipeline_mode<synchronous>, transform_indices = @transform_5, window_bounds = array<i64: 3, 3, 64, 128>}, {pipeline_mode = #tpu.pipeline_mode<synchronous>, transform_indices = @transform_6, window_bounds = array<i64: 1, 128>}, {pipeline_mode = #tpu.pipeline_mode<synchronous>, transform_indices = @transform_7, window_bounds = array<i64: 1, 128>}, {transform_indices = @transform_8, window_bounds = array<i64: 1, 16, 18, 128>}]} {
    %c0 = arith.constant 0 : index
    %c0_0 = arith.constant 0 : index
    %0 = vector.load %arg8[%c0, %c0_0] : memref<1x128xf32, #tpu.memory_space<vmem>>, vector<1x128xf32>
    %c0_1 = arith.constant 0 : index
    %c0_2 = arith.constant 0 : index
    %1 = vector.load %arg9[%c0_1, %c0_2] : memref<1x128xf32, #tpu.memory_space<vmem>>, vector<1x128xf32>
    %cst = arith.constant 0.000000e+00 : f32
    %2 = vector.broadcast %cst : f32 to vector<16x18x128xf32>
    %c0_3 = arith.constant 0 : index
    %c0_4 = arith.constant 0 : index
    %c0_5 = arith.constant 0 : index
    %c0_6 = arith.constant 0 : index
    %3 = vector.load %arg2[%c0_3, %c0_4, %c0_5, %c0_6] : memref<1x16x24x64xbf16, #tpu.memory_space<vmem>>, vector<1x16x24x64xbf16>
    %4 = vector.shape_cast %3 : vector<1x16x24x64xbf16> to vector<16x24x64xbf16>
    %c0_7 = arith.constant 0 : index
    %c0_8 = arith.constant 0 : index
    %c0_9 = arith.constant 0 : index
    %c0_10 = arith.constant 0 : index
    %5 = vector.load %arg3[%c0_7, %c0_8, %c0_9, %c0_10] : memref<1x2x24x64xbf16, #tpu.memory_space<vmem>>, vector<1x2x24x64xbf16>
    %6 = vector.shape_cast %5 : vector<1x2x24x64xbf16> to vector<2x24x64xbf16>
    %7 = vector.shape_cast %4 : vector<16x24x64xbf16> to vector<384x64xbf16>
    %8 = vector.shape_cast %6 : vector<2x24x64xbf16> to vector<48x64xbf16>
    %9 = tpu.concatenate %7, %8 in 0 : vector<384x64xbf16>, vector<48x64xbf16> -> vector<432x64xbf16>
    %10 = vector.extract_strided_slice %9 {offsets = [0, 0], sizes = [384, 64], strides = [1, 1]} : vector<432x64xbf16> to vector<384x64xbf16>
    %11 = vector.extract_strided_slice %9 {offsets = [24, 0], sizes = [384, 64], strides = [1, 1]} : vector<432x64xbf16> to vector<384x64xbf16>
    %12 = vector.extract_strided_slice %9 {offsets = [48, 0], sizes = [384, 64], strides = [1, 1]} : vector<432x64xbf16> to vector<384x64xbf16>
    %c0_11 = arith.constant 0 : index
    %c0_12 = arith.constant 0 : index
    %c0_13 = arith.constant 0 : index
    %c0_14 = arith.constant 0 : index
    %13 = vector.load %arg6[%c0_11, %c0_12, %c0_13, %c0_14] : memref<3x3x64x128xbf16, #tpu.memory_space<vmem>>, vector<1x1x64x128xbf16>
    %14 = vector.shape_cast %13 : vector<1x1x64x128xbf16> to vector<64x128xbf16>
    %cst_15 = arith.constant dense<0.000000e+00> : vector<384x128xf32>
    %15 = tpu.matmul %10, %14, %cst_15 {dimension_numbers = #tpu.dot_dimension_numbers<[1], [0], [0], [1], [0, 0, 1, 1], [], []>} : vector<384x64xbf16>, vector<64x128xbf16>, vector<384x128xf32> -> vector<384x128xf32>
    %c1 = arith.constant 1 : index
    %c0_16 = arith.constant 0 : index
    %c0_17 = arith.constant 0 : index
    %c0_18 = arith.constant 0 : index
    %16 = vector.load %arg6[%c1, %c0_16, %c0_17, %c0_18] : memref<3x3x64x128xbf16, #tpu.memory_space<vmem>>, vector<1x1x64x128xbf16>
    %17 = vector.shape_cast %16 : vector<1x1x64x128xbf16> to vector<64x128xbf16>
    %cst_19 = arith.constant dense<0.000000e+00> : vector<384x128xf32>
    %18 = tpu.matmul %11, %17, %cst_19 {dimension_numbers = #tpu.dot_dimension_numbers<[1], [0], [0], [1], [0, 0, 1, 1], [], []>} : vector<384x64xbf16>, vector<64x128xbf16>, vector<384x128xf32> -> vector<384x128xf32>
    %19 = arith.addf %15, %18 : vector<384x128xf32>
    %c2 = arith.constant 2 : index
    %c0_20 = arith.constant 0 : index
    %c0_21 = arith.constant 0 : index
    %c0_22 = arith.constant 0 : index
    %20 = vector.load %arg6[%c2, %c0_20, %c0_21, %c0_22] : memref<3x3x64x128xbf16, #tpu.memory_space<vmem>>, vector<1x1x64x128xbf16>
    %21 = vector.shape_cast %20 : vector<1x1x64x128xbf16> to vector<64x128xbf16>
    %cst_23 = arith.constant dense<0.000000e+00> : vector<384x128xf32>
    %22 = tpu.matmul %12, %21, %cst_23 {dimension_numbers = #tpu.dot_dimension_numbers<[1], [0], [0], [1], [0, 0, 1, 1], [], []>} : vector<384x64xbf16>, vector<64x128xbf16>, vector<384x128xf32> -> vector<384x128xf32>
    %23 = arith.addf %19, %22 : vector<384x128xf32>
    %24 = vector.shape_cast %23 : vector<384x128xf32> to vector<16x24x128xf32>
    %25 = vector.extract_strided_slice %24 {offsets = [0, 0, 0], sizes = [16, 18, 128], strides = [1, 1, 1]} : vector<16x24x128xf32> to vector<16x18x128xf32>
    %26 = arith.addf %2, %25 : vector<16x18x128xf32>
    %c0_24 = arith.constant 0 : index
    %c1_25 = arith.constant 1 : index
    %c0_26 = arith.constant 0 : index
    %c0_27 = arith.constant 0 : index
    %27 = vector.load %arg6[%c0_24, %c1_25, %c0_26, %c0_27] : memref<3x3x64x128xbf16, #tpu.memory_space<vmem>>, vector<1x1x64x128xbf16>
    %28 = vector.shape_cast %27 : vector<1x1x64x128xbf16> to vector<64x128xbf16>
    %cst_28 = arith.constant dense<0.000000e+00> : vector<384x128xf32>
    %29 = tpu.matmul %10, %28, %cst_28 {dimension_numbers = #tpu.dot_dimension_numbers<[1], [0], [0], [1], [0, 0, 1, 1], [], []>} : vector<384x64xbf16>, vector<64x128xbf16>, vector<384x128xf32> -> vector<384x128xf32>
    %c1_29 = arith.constant 1 : index
    %c1_30 = arith.constant 1 : index
    %c0_31 = arith.constant 0 : index
    %c0_32 = arith.constant 0 : index
    %30 = vector.load %arg6[%c1_29, %c1_30, %c0_31, %c0_32] : memref<3x3x64x128xbf16, #tpu.memory_space<vmem>>, vector<1x1x64x128xbf16>
    %31 = vector.shape_cast %30 : vector<1x1x64x128xbf16> to vector<64x128xbf16>
    %cst_33 = arith.constant dense<0.000000e+00> : vector<384x128xf32>
    %32 = tpu.matmul %11, %31, %cst_33 {dimension_numbers = #tpu.dot_dimension_numbers<[1], [0], [0], [1], [0, 0, 1, 1], [], []>} : vector<384x64xbf16>, vector<64x128xbf16>, vector<384x128xf32> -> vector<384x128xf32>
    %33 = arith.addf %29, %32 : vector<384x128xf32>
    %c2_34 = arith.constant 2 : index
    %c1_35 = arith.constant 1 : index
    %c0_36 = arith.constant 0 : index
    %c0_37 = arith.constant 0 : index
    %34 = vector.load %arg6[%c2_34, %c1_35, %c0_36, %c0_37] : memref<3x3x64x128xbf16, #tpu.memory_space<vmem>>, vector<1x1x64x128xbf16>
    %35 = vector.shape_cast %34 : vector<1x1x64x128xbf16> to vector<64x128xbf16>
    %cst_38 = arith.constant dense<0.000000e+00> : vector<384x128xf32>
    %36 = tpu.matmul %12, %35, %cst_38 {dimension_numbers = #tpu.dot_dimension_numbers<[1], [0], [0], [1], [0, 0, 1, 1], [], []>} : vector<384x64xbf16>, vector<64x128xbf16>, vector<384x128xf32> -> vector<384x128xf32>
    %37 = arith.addf %33, %36 : vector<384x128xf32>
    %38 = vector.shape_cast %37 : vector<384x128xf32> to vector<16x24x128xf32>
    %39 = vector.extract_strided_slice %38 {offsets = [0, 1, 0], sizes = [16, 18, 128], strides = [1, 1, 1]} : vector<16x24x128xf32> to vector<16x18x128xf32>
    %40 = arith.addf %26, %39 : vector<16x18x128xf32>
    %c0_39 = arith.constant 0 : index
    %c2_40 = arith.constant 2 : index
    %c0_41 = arith.constant 0 : index
    %c0_42 = arith.constant 0 : index
    %41 = vector.load %arg6[%c0_39, %c2_40, %c0_41, %c0_42] : memref<3x3x64x128xbf16, #tpu.memory_space<vmem>>, vector<1x1x64x128xbf16>
    %42 = vector.shape_cast %41 : vector<1x1x64x128xbf16> to vector<64x128xbf16>
    %cst_43 = arith.constant dense<0.000000e+00> : vector<384x128xf32>
    %43 = tpu.matmul %10, %42, %cst_43 {dimension_numbers = #tpu.dot_dimension_numbers<[1], [0], [0], [1], [0, 0, 1, 1], [], []>} : vector<384x64xbf16>, vector<64x128xbf16>, vector<384x128xf32> -> vector<384x128xf32>
    %c1_44 = arith.constant 1 : index
    %c2_45 = arith.constant 2 : index
    %c0_46 = arith.constant 0 : index
    %c0_47 = arith.constant 0 : index
    %44 = vector.load %arg6[%c1_44, %c2_45, %c0_46, %c0_47] : memref<3x3x64x128xbf16, #tpu.memory_space<vmem>>, vector<1x1x64x128xbf16>
    %45 = vector.shape_cast %44 : vector<1x1x64x128xbf16> to vector<64x128xbf16>
    %cst_48 = arith.constant dense<0.000000e+00> : vector<384x128xf32>
    %46 = tpu.matmul %11, %45, %cst_48 {dimension_numbers = #tpu.dot_dimension_numbers<[1], [0], [0], [1], [0, 0, 1, 1], [], []>} : vector<384x64xbf16>, vector<64x128xbf16>, vector<384x128xf32> -> vector<384x128xf32>
    %47 = arith.addf %43, %46 : vector<384x128xf32>
    %c2_49 = arith.constant 2 : index
    %c2_50 = arith.constant 2 : index
    %c0_51 = arith.constant 0 : index
    %c0_52 = arith.constant 0 : index
    %48 = vector.load %arg6[%c2_49, %c2_50, %c0_51, %c0_52] : memref<3x3x64x128xbf16, #tpu.memory_space<vmem>>, vector<1x1x64x128xbf16>
    %49 = vector.shape_cast %48 : vector<1x1x64x128xbf16> to vector<64x128xbf16>
    %cst_53 = arith.constant dense<0.000000e+00> : vector<384x128xf32>
    %50 = tpu.matmul %12, %49, %cst_53 {dimension_numbers = #tpu.dot_dimension_numbers<[1], [0], [0], [1], [0, 0, 1, 1], [], []>} : vector<384x64xbf16>, vector<64x128xbf16>, vector<384x128xf32> -> vector<384x128xf32>
    %51 = arith.addf %47, %50 : vector<384x128xf32>
    %52 = vector.shape_cast %51 : vector<384x128xf32> to vector<16x24x128xf32>
    %53 = vector.extract_strided_slice %52 {offsets = [0, 2, 0], sizes = [16, 18, 128], strides = [1, 1, 1]} : vector<16x24x128xf32> to vector<16x18x128xf32>
    %54 = arith.addf %40, %53 : vector<16x18x128xf32>
    %c0_54 = arith.constant 0 : index
    %c0_55 = arith.constant 0 : index
    %c0_56 = arith.constant 0 : index
    %c0_57 = arith.constant 0 : index
    %55 = vector.load %arg4[%c0_54, %c0_55, %c0_56, %c0_57] : memref<1x16x24x64xbf16, #tpu.memory_space<vmem>>, vector<1x16x24x64xbf16>
    %56 = vector.shape_cast %55 : vector<1x16x24x64xbf16> to vector<16x24x64xbf16>
    %c0_58 = arith.constant 0 : index
    %c0_59 = arith.constant 0 : index
    %c0_60 = arith.constant 0 : index
    %c0_61 = arith.constant 0 : index
    %57 = vector.load %arg5[%c0_58, %c0_59, %c0_60, %c0_61] : memref<1x2x24x64xbf16, #tpu.memory_space<vmem>>, vector<1x2x24x64xbf16>
    %58 = vector.shape_cast %57 : vector<1x2x24x64xbf16> to vector<2x24x64xbf16>
    %59 = vector.shape_cast %56 : vector<16x24x64xbf16> to vector<384x64xbf16>
    %60 = vector.shape_cast %58 : vector<2x24x64xbf16> to vector<48x64xbf16>
    %61 = tpu.concatenate %59, %60 in 0 : vector<384x64xbf16>, vector<48x64xbf16> -> vector<432x64xbf16>
    %62 = vector.extract_strided_slice %61 {offsets = [0, 0], sizes = [384, 64], strides = [1, 1]} : vector<432x64xbf16> to vector<384x64xbf16>
    %63 = vector.extract_strided_slice %61 {offsets = [24, 0], sizes = [384, 64], strides = [1, 1]} : vector<432x64xbf16> to vector<384x64xbf16>
    %64 = vector.extract_strided_slice %61 {offsets = [48, 0], sizes = [384, 64], strides = [1, 1]} : vector<432x64xbf16> to vector<384x64xbf16>
    %c0_62 = arith.constant 0 : index
    %c0_63 = arith.constant 0 : index
    %c0_64 = arith.constant 0 : index
    %c0_65 = arith.constant 0 : index
    %65 = vector.load %arg7[%c0_62, %c0_63, %c0_64, %c0_65] : memref<3x3x64x128xbf16, #tpu.memory_space<vmem>>, vector<1x1x64x128xbf16>
    %66 = vector.shape_cast %65 : vector<1x1x64x128xbf16> to vector<64x128xbf16>
    %cst_66 = arith.constant dense<0.000000e+00> : vector<384x128xf32>
    %67 = tpu.matmul %62, %66, %cst_66 {dimension_numbers = #tpu.dot_dimension_numbers<[1], [0], [0], [1], [0, 0, 1, 1], [], []>} : vector<384x64xbf16>, vector<64x128xbf16>, vector<384x128xf32> -> vector<384x128xf32>
    %c1_67 = arith.constant 1 : index
    %c0_68 = arith.constant 0 : index
    %c0_69 = arith.constant 0 : index
    %c0_70 = arith.constant 0 : index
    %68 = vector.load %arg7[%c1_67, %c0_68, %c0_69, %c0_70] : memref<3x3x64x128xbf16, #tpu.memory_space<vmem>>, vector<1x1x64x128xbf16>
    %69 = vector.shape_cast %68 : vector<1x1x64x128xbf16> to vector<64x128xbf16>
    %cst_71 = arith.constant dense<0.000000e+00> : vector<384x128xf32>
    %70 = tpu.matmul %63, %69, %cst_71 {dimension_numbers = #tpu.dot_dimension_numbers<[1], [0], [0], [1], [0, 0, 1, 1], [], []>} : vector<384x64xbf16>, vector<64x128xbf16>, vector<384x128xf32> -> vector<384x128xf32>
    %71 = arith.addf %67, %70 : vector<384x128xf32>
    %c2_72 = arith.constant 2 : index
    %c0_73 = arith.constant 0 : index
    %c0_74 = arith.constant 0 : index
    %c0_75 = arith.constant 0 : index
    %72 = vector.load %arg7[%c2_72, %c0_73, %c0_74, %c0_75] : memref<3x3x64x128xbf16, #tpu.memory_space<vmem>>, vector<1x1x64x128xbf16>
    %73 = vector.shape_cast %72 : vector<1x1x64x128xbf16> to vector<64x128xbf16>
    %cst_76 = arith.constant dense<0.000000e+00> : vector<384x128xf32>
    %74 = tpu.matmul %64, %73, %cst_76 {dimension_numbers = #tpu.dot_dimension_numbers<[1], [0], [0], [1], [0, 0, 1, 1], [], []>} : vector<384x64xbf16>, vector<64x128xbf16>, vector<384x128xf32> -> vector<384x128xf32>
    %75 = arith.addf %71, %74 : vector<384x128xf32>
    %76 = vector.shape_cast %75 : vector<384x128xf32> to vector<16x24x128xf32>
    %77 = vector.extract_strided_slice %76 {offsets = [0, 0, 0], sizes = [16, 18, 128], strides = [1, 1, 1]} : vector<16x24x128xf32> to vector<16x18x128xf32>
    %78 = arith.addf %54, %77 : vector<16x18x128xf32>
    %c0_77 = arith.constant 0 : index
    %c1_78 = arith.constant 1 : index
    %c0_79 = arith.constant 0 : index
    %c0_80 = arith.constant 0 : index
    %79 = vector.load %arg7[%c0_77, %c1_78, %c0_79, %c0_80] : memref<3x3x64x128xbf16, #tpu.memory_space<vmem>>, vector<1x1x64x128xbf16>
    %80 = vector.shape_cast %79 : vector<1x1x64x128xbf16> to vector<64x128xbf16>
    %cst_81 = arith.constant dense<0.000000e+00> : vector<384x128xf32>
    %81 = tpu.matmul %62, %80, %cst_81 {dimension_numbers = #tpu.dot_dimension_numbers<[1], [0], [0], [1], [0, 0, 1, 1], [], []>} : vector<384x64xbf16>, vector<64x128xbf16>, vector<384x128xf32> -> vector<384x128xf32>
    %c1_82 = arith.constant 1 : index
    %c1_83 = arith.constant 1 : index
    %c0_84 = arith.constant 0 : index
    %c0_85 = arith.constant 0 : index
    %82 = vector.load %arg7[%c1_82, %c1_83, %c0_84, %c0_85] : memref<3x3x64x128xbf16, #tpu.memory_space<vmem>>, vector<1x1x64x128xbf16>
    %83 = vector.shape_cast %82 : vector<1x1x64x128xbf16> to vector<64x128xbf16>
    %cst_86 = arith.constant dense<0.000000e+00> : vector<384x128xf32>
    %84 = tpu.matmul %63, %83, %cst_86 {dimension_numbers = #tpu.dot_dimension_numbers<[1], [0], [0], [1], [0, 0, 1, 1], [], []>} : vector<384x64xbf16>, vector<64x128xbf16>, vector<384x128xf32> -> vector<384x128xf32>
    %85 = arith.addf %81, %84 : vector<384x128xf32>
    %c2_87 = arith.constant 2 : index
    %c1_88 = arith.constant 1 : index
    %c0_89 = arith.constant 0 : index
    %c0_90 = arith.constant 0 : index
    %86 = vector.load %arg7[%c2_87, %c1_88, %c0_89, %c0_90] : memref<3x3x64x128xbf16, #tpu.memory_space<vmem>>, vector<1x1x64x128xbf16>
    %87 = vector.shape_cast %86 : vector<1x1x64x128xbf16> to vector<64x128xbf16>
    %cst_91 = arith.constant dense<0.000000e+00> : vector<384x128xf32>
    %88 = tpu.matmul %64, %87, %cst_91 {dimension_numbers = #tpu.dot_dimension_numbers<[1], [0], [0], [1], [0, 0, 1, 1], [], []>} : vector<384x64xbf16>, vector<64x128xbf16>, vector<384x128xf32> -> vector<384x128xf32>
    %89 = arith.addf %85, %88 : vector<384x128xf32>
    %90 = vector.shape_cast %89 : vector<384x128xf32> to vector<16x24x128xf32>
    %91 = vector.extract_strided_slice %90 {offsets = [0, 1, 0], sizes = [16, 18, 128], strides = [1, 1, 1]} : vector<16x24x128xf32> to vector<16x18x128xf32>
    %92 = arith.addf %78, %91 : vector<16x18x128xf32>
    %c0_92 = arith.constant 0 : index
    %c2_93 = arith.constant 2 : index
    %c0_94 = arith.constant 0 : index
    %c0_95 = arith.constant 0 : index
    %93 = vector.load %arg7[%c0_92, %c2_93, %c0_94, %c0_95] : memref<3x3x64x128xbf16, #tpu.memory_space<vmem>>, vector<1x1x64x128xbf16>
    %94 = vector.shape_cast %93 : vector<1x1x64x128xbf16> to vector<64x128xbf16>
    %cst_96 = arith.constant dense<0.000000e+00> : vector<384x128xf32>
    %95 = tpu.matmul %62, %94, %cst_96 {dimension_numbers = #tpu.dot_dimension_numbers<[1], [0], [0], [1], [0, 0, 1, 1], [], []>} : vector<384x64xbf16>, vector<64x128xbf16>, vector<384x128xf32> -> vector<384x128xf32>
    %c1_97 = arith.constant 1 : index
    %c2_98 = arith.constant 2 : index
    %c0_99 = arith.constant 0 : index
    %c0_100 = arith.constant 0 : index
    %96 = vector.load %arg7[%c1_97, %c2_98, %c0_99, %c0_100] : memref<3x3x64x128xbf16, #tpu.memory_space<vmem>>, vector<1x1x64x128xbf16>
    %97 = vector.shape_cast %96 : vector<1x1x64x128xbf16> to vector<64x128xbf16>
    %cst_101 = arith.constant dense<0.000000e+00> : vector<384x128xf32>
    %98 = tpu.matmul %63, %97, %cst_101 {dimension_numbers = #tpu.dot_dimension_numbers<[1], [0], [0], [1], [0, 0, 1, 1], [], []>} : vector<384x64xbf16>, vector<64x128xbf16>, vector<384x128xf32> -> vector<384x128xf32>
    %99 = arith.addf %95, %98 : vector<384x128xf32>
    %c2_102 = arith.constant 2 : index
    %c2_103 = arith.constant 2 : index
    %c0_104 = arith.constant 0 : index
    %c0_105 = arith.constant 0 : index
    %100 = vector.load %arg7[%c2_102, %c2_103, %c0_104, %c0_105] : memref<3x3x64x128xbf16, #tpu.memory_space<vmem>>, vector<1x1x64x128xbf16>
    %101 = vector.shape_cast %100 : vector<1x1x64x128xbf16> to vector<64x128xbf16>
    %cst_106 = arith.constant dense<0.000000e+00> : vector<384x128xf32>
    %102 = tpu.matmul %64, %101, %cst_106 {dimension_numbers = #tpu.dot_dimension_numbers<[1], [0], [0], [1], [0, 0, 1, 1], [], []>} : vector<384x64xbf16>, vector<64x128xbf16>, vector<384x128xf32> -> vector<384x128xf32>
    %103 = arith.addf %99, %102 : vector<384x128xf32>
    %104 = vector.shape_cast %103 : vector<384x128xf32> to vector<16x24x128xf32>
    %105 = vector.extract_strided_slice %104 {offsets = [0, 2, 0], sizes = [16, 18, 128], strides = [1, 1, 1]} : vector<16x24x128xf32> to vector<16x18x128xf32>
    %106 = arith.addf %92, %105 : vector<16x18x128xf32>
    %107 = vector.shape_cast %0 : vector<1x128xf32> to vector<1x1x128xf32>
    %108 = vector.broadcast %107 : vector<1x1x128xf32> to vector<16x18x128xf32>
    %109 = arith.mulf %106, %108 : vector<16x18x128xf32>
    %110 = vector.shape_cast %1 : vector<1x128xf32> to vector<1x1x128xf32>
    %111 = vector.broadcast %110 : vector<1x1x128xf32> to vector<16x18x128xf32>
    %112 = arith.addf %109, %111 : vector<16x18x128xf32>
    %cst_107 = arith.constant 0.000000e+00 : f32
    %113 = vector.broadcast %cst_107 : f32 to vector<16x18x128xf32>
    %114 = arith.maximumf %112, %113 : vector<16x18x128xf32>
    %115 = arith.truncf %114 : vector<16x18x128xf32> to vector<16x18x128xbf16>
    %c0_108 = arith.constant 0 : index
    %c0_109 = arith.constant 0 : index
    %c0_110 = arith.constant 0 : index
    %c0_111 = arith.constant 0 : index
    %116 = vector.load %arg10[%c0_108, %c0_109, %c0_110, %c0_111] : memref<1x16x18x128xbf16, #tpu.memory_space<vmem>>, vector<1x16x18x128xbf16>
    %117 = vector.shape_cast %116 : vector<1x16x18x128xbf16> to vector<16x18x128xbf16>
    %118 = vector.shape_cast %115 : vector<16x18x128xbf16> to vector<1x16x18x128xbf16>
    tpu.vector_store %arg10[%c0_108, %c0_109, %c0_110, %c0_111], %118 {strides = array<i32>} : memref<1x16x18x128xbf16, #tpu.memory_space<vmem>>, vector<1x16x18x128xbf16>,
    return
  }
  func.func @transform_0(%arg0: i32, %arg1: i32) -> (i32, i32, i32, i32) {
    %c0_i32 = arith.constant 0 : i32
    %c0_i32_0 = arith.constant 0 : i32
    %c0_i32_1 = arith.constant 0 : i32
    return %arg0, %arg1, %c0_i32, %c0_i32_0 : i32, i32, i32, i32
  }
  func.func @transform_1(%arg0: i32, %arg1: i32) -> (i32, i32, i32, i32) {
    %c1_i32 = arith.constant 1 : i32
    %0 = arith.addi %arg1, %c1_i32 : i32
    %c8_i32 = arith.constant 8 : i32
    %1 = arith.muli %0, %c8_i32 : i32
    %c0_i32 = arith.constant 0 : i32
    %c0_i32_0 = arith.constant 0 : i32
    %c0_i32_1 = arith.constant 0 : i32
    return %arg0, %1, %c0_i32, %c0_i32_0 : i32, i32, i32, i32
  }
  func.func @transform_2(%arg0: i32, %arg1: i32) -> (i32, i32, i32, i32) {
    %c0_i32 = arith.constant 0 : i32
    %c0_i32_0 = arith.constant 0 : i32
    %c0_i32_1 = arith.constant 0 : i32
    return %arg0, %arg1, %c0_i32, %c0_i32_0 : i32, i32, i32, i32
  }
  func.func @transform_3(%arg0: i32, %arg1: i32) -> (i32, i32, i32, i32) {
    %c1_i32 = arith.constant 1 : i32
    %0 = arith.addi %arg1, %c1_i32 : i32
    %c8_i32 = arith.constant 8 : i32
    %1 = arith.muli %0, %c8_i32 : i32
    %c0_i32 = arith.constant 0 : i32
    %c0_i32_0 = arith.constant 0 : i32
    %c0_i32_1 = arith.constant 0 : i32
    return %arg0, %1, %c0_i32, %c0_i32_0 : i32, i32, i32, i32
  }
  func.func @transform_4(%arg0: i32, %arg1: i32) -> (i32, i32, i32, i32) {
    %c0_i32 = arith.constant 0 : i32
    %c0_i32_0 = arith.constant 0 : i32
    %c0_i32_1 = arith.constant 0 : i32
    %c0_i32_2 = arith.constant 0 : i32
    %c0_i32_3 = arith.constant 0 : i32
    return %c0_i32, %c0_i32_0, %c0_i32_1, %c0_i32_2 : i32, i32, i32, i32
  }
  func.func @transform_5(%arg0: i32, %arg1: i32) -> (i32, i32, i32, i32) {
    %c0_i32 = arith.constant 0 : i32
    %c0_i32_0 = arith.constant 0 : i32
    %c0_i32_1 = arith.constant 0 : i32
    %c0_i32_2 = arith.constant 0 : i32
    %c0_i32_3 = arith.constant 0 : i32
    return %c0_i32, %c0_i32_0, %c0_i32_1, %c0_i32_2 : i32, i32, i32, i32
  }
  func.func @transform_6(%arg0: i32, %arg1: i32) -> (i32, i32) {
    %c0_i32 = arith.constant 0 : i32
    %c0_i32_0 = arith.constant 0 : i32
    %c0_i32_1 = arith.constant 0 : i32
    return %c0_i32, %c0_i32_0 : i32, i32
  }
  func.func @transform_7(%arg0: i32, %arg1: i32) -> (i32, i32) {
    %c0_i32 = arith.constant 0 : i32
    %c0_i32_0 = arith.constant 0 : i32
    %c0_i32_1 = arith.constant 0 : i32
    return %c0_i32, %c0_i32_0 : i32, i32
  }
  func.func @transform_8(%arg0: i32, %arg1: i32) -> (i32, i32, i32, i32) {
    %c0_i32 = arith.constant 0 : i32
    %c0_i32_0 = arith.constant 0 : i32
    %c0_i32_1 = arith.constant 0 : i32
    return %arg0, %arg1, %c0_i32, %c0_i32_0 : i32, i32, i32, i32
  }
}

module attributes {stable_mosaic.version = 11 : i64} {
  func.func @_conv3x3_kernel(%arg0: i32, %arg1: i32, %arg2: memref<1x16x24x128xbf16, #tpu.memory_space<vmem>>, %arg3: memref<1x2x24x128xbf16, #tpu.memory_space<vmem>>, %arg4: memref<3x3x128x128xbf16, #tpu.memory_space<vmem>>, %arg5: memref<1x128xf32, #tpu.memory_space<vmem>>, %arg6: memref<1x128xf32, #tpu.memory_space<vmem>>, %arg7: memref<1x16x18x128xf32, #tpu.memory_space<vmem>>) attributes {dimension_semantics = [#tpu.dimension_semantics<parallel>, #tpu.dimension_semantics<parallel>], iteration_bounds = array<i64: 2, 2>, scalar_prefetch = 0 : i64, scratch_operands = 0 : i64, tpu.core_type = #tpu.core_type<tc>, window_params = [{transform_indices = @transform_0, window_bounds = array<i64: 1, 16, 24, 128>}, {transform_indices = @transform_1, window_bounds = array<i64: 1, 2, 24, 128>}, {pipeline_mode = #tpu.pipeline_mode<synchronous>, transform_indices = @transform_2, window_bounds = array<i64: 3, 3, 128, 128>}, {pipeline_mode = #tpu.pipeline_mode<synchronous>, transform_indices = @transform_3, window_bounds = array<i64: 1, 128>}, {pipeline_mode = #tpu.pipeline_mode<synchronous>, transform_indices = @transform_4, window_bounds = array<i64: 1, 128>}, {transform_indices = @transform_5, window_bounds = array<i64: 1, 16, 18, 128>}]} {
    %c0 = arith.constant 0 : index
    %c0_0 = arith.constant 0 : index
    %0 = vector.load %arg5[%c0, %c0_0] : memref<1x128xf32, #tpu.memory_space<vmem>>, vector<1x128xf32>
    %c0_1 = arith.constant 0 : index
    %c0_2 = arith.constant 0 : index
    %1 = vector.load %arg6[%c0_1, %c0_2] : memref<1x128xf32, #tpu.memory_space<vmem>>, vector<1x128xf32>
    %cst = arith.constant 0.000000e+00 : f32
    %2 = vector.broadcast %cst : f32 to vector<16x18x128xf32>
    %c0_3 = arith.constant 0 : index
    %c0_4 = arith.constant 0 : index
    %c0_5 = arith.constant 0 : index
    %c0_6 = arith.constant 0 : index
    %3 = vector.load %arg2[%c0_3, %c0_4, %c0_5, %c0_6] : memref<1x16x24x128xbf16, #tpu.memory_space<vmem>>, vector<1x16x24x128xbf16>
    %4 = vector.shape_cast %3 : vector<1x16x24x128xbf16> to vector<16x24x128xbf16>
    %c0_7 = arith.constant 0 : index
    %c0_8 = arith.constant 0 : index
    %c0_9 = arith.constant 0 : index
    %c0_10 = arith.constant 0 : index
    %5 = vector.load %arg3[%c0_7, %c0_8, %c0_9, %c0_10] : memref<1x2x24x128xbf16, #tpu.memory_space<vmem>>, vector<1x2x24x128xbf16>
    %6 = vector.shape_cast %5 : vector<1x2x24x128xbf16> to vector<2x24x128xbf16>
    %7 = vector.shape_cast %4 : vector<16x24x128xbf16> to vector<384x128xbf16>
    %8 = vector.shape_cast %6 : vector<2x24x128xbf16> to vector<48x128xbf16>
    %9 = tpu.concatenate %7, %8 in 0 : vector<384x128xbf16>, vector<48x128xbf16> -> vector<432x128xbf16>
    %10 = vector.extract_strided_slice %9 {offsets = [0, 0], sizes = [384, 128], strides = [1, 1]} : vector<432x128xbf16> to vector<384x128xbf16>
    %11 = vector.extract_strided_slice %9 {offsets = [24, 0], sizes = [384, 128], strides = [1, 1]} : vector<432x128xbf16> to vector<384x128xbf16>
    %12 = vector.extract_strided_slice %9 {offsets = [48, 0], sizes = [384, 128], strides = [1, 1]} : vector<432x128xbf16> to vector<384x128xbf16>
    %13 = tpu.concatenate %10, %11, %12 in 1 : vector<384x128xbf16>, vector<384x128xbf16>, vector<384x128xbf16> -> vector<384x384xbf16>
    %c0_11 = arith.constant 0 : index
    %c0_12 = arith.constant 0 : index
    %c0_13 = arith.constant 0 : index
    %c0_14 = arith.constant 0 : index
    %14 = vector.load %arg4[%c0_11, %c0_12, %c0_13, %c0_14] : memref<3x3x128x128xbf16, #tpu.memory_space<vmem>>, vector<1x1x128x128xbf16>
    %15 = vector.shape_cast %14 : vector<1x1x128x128xbf16> to vector<128x128xbf16>
    %c1 = arith.constant 1 : index
    %c0_15 = arith.constant 0 : index
    %c0_16 = arith.constant 0 : index
    %c0_17 = arith.constant 0 : index
    %16 = vector.load %arg4[%c1, %c0_15, %c0_16, %c0_17] : memref<3x3x128x128xbf16, #tpu.memory_space<vmem>>, vector<1x1x128x128xbf16>
    %17 = vector.shape_cast %16 : vector<1x1x128x128xbf16> to vector<128x128xbf16>
    %c2 = arith.constant 2 : index
    %c0_18 = arith.constant 0 : index
    %c0_19 = arith.constant 0 : index
    %c0_20 = arith.constant 0 : index
    %18 = vector.load %arg4[%c2, %c0_18, %c0_19, %c0_20] : memref<3x3x128x128xbf16, #tpu.memory_space<vmem>>, vector<1x1x128x128xbf16>
    %19 = vector.shape_cast %18 : vector<1x1x128x128xbf16> to vector<128x128xbf16>
    %20 = tpu.concatenate %15, %17, %19 in 0 : vector<128x128xbf16>, vector<128x128xbf16>, vector<128x128xbf16> -> vector<384x128xbf16>
    %cst_21 = arith.constant dense<0.000000e+00> : vector<384x128xf32>
    %21 = tpu.matmul %13, %20, %cst_21 {dimension_numbers = #tpu.dot_dimension_numbers<[1], [0], [0], [1], [0, 0, 1, 1], [], []>} : vector<384x384xbf16>, vector<384x128xbf16>, vector<384x128xf32> -> vector<384x128xf32>
    %22 = vector.shape_cast %21 : vector<384x128xf32> to vector<16x24x128xf32>
    %23 = vector.extract_strided_slice %22 {offsets = [0, 0, 0], sizes = [16, 18, 128], strides = [1, 1, 1]} : vector<16x24x128xf32> to vector<16x18x128xf32>
    %24 = arith.addf %2, %23 : vector<16x18x128xf32>
    %c0_22 = arith.constant 0 : index
    %c1_23 = arith.constant 1 : index
    %c0_24 = arith.constant 0 : index
    %c0_25 = arith.constant 0 : index
    %25 = vector.load %arg4[%c0_22, %c1_23, %c0_24, %c0_25] : memref<3x3x128x128xbf16, #tpu.memory_space<vmem>>, vector<1x1x128x128xbf16>
    %26 = vector.shape_cast %25 : vector<1x1x128x128xbf16> to vector<128x128xbf16>
    %c1_26 = arith.constant 1 : index
    %c1_27 = arith.constant 1 : index
    %c0_28 = arith.constant 0 : index
    %c0_29 = arith.constant 0 : index
    %27 = vector.load %arg4[%c1_26, %c1_27, %c0_28, %c0_29] : memref<3x3x128x128xbf16, #tpu.memory_space<vmem>>, vector<1x1x128x128xbf16>
    %28 = vector.shape_cast %27 : vector<1x1x128x128xbf16> to vector<128x128xbf16>
    %c2_30 = arith.constant 2 : index
    %c1_31 = arith.constant 1 : index
    %c0_32 = arith.constant 0 : index
    %c0_33 = arith.constant 0 : index
    %29 = vector.load %arg4[%c2_30, %c1_31, %c0_32, %c0_33] : memref<3x3x128x128xbf16, #tpu.memory_space<vmem>>, vector<1x1x128x128xbf16>
    %30 = vector.shape_cast %29 : vector<1x1x128x128xbf16> to vector<128x128xbf16>
    %31 = tpu.concatenate %26, %28, %30 in 0 : vector<128x128xbf16>, vector<128x128xbf16>, vector<128x128xbf16> -> vector<384x128xbf16>
    %cst_34 = arith.constant dense<0.000000e+00> : vector<384x128xf32>
    %32 = tpu.matmul %13, %31, %cst_34 {dimension_numbers = #tpu.dot_dimension_numbers<[1], [0], [0], [1], [0, 0, 1, 1], [], []>} : vector<384x384xbf16>, vector<384x128xbf16>, vector<384x128xf32> -> vector<384x128xf32>
    %33 = vector.shape_cast %32 : vector<384x128xf32> to vector<16x24x128xf32>
    %34 = vector.extract_strided_slice %33 {offsets = [0, 1, 0], sizes = [16, 18, 128], strides = [1, 1, 1]} : vector<16x24x128xf32> to vector<16x18x128xf32>
    %35 = arith.addf %24, %34 : vector<16x18x128xf32>
    %c0_35 = arith.constant 0 : index
    %c2_36 = arith.constant 2 : index
    %c0_37 = arith.constant 0 : index
    %c0_38 = arith.constant 0 : index
    %36 = vector.load %arg4[%c0_35, %c2_36, %c0_37, %c0_38] : memref<3x3x128x128xbf16, #tpu.memory_space<vmem>>, vector<1x1x128x128xbf16>
    %37 = vector.shape_cast %36 : vector<1x1x128x128xbf16> to vector<128x128xbf16>
    %c1_39 = arith.constant 1 : index
    %c2_40 = arith.constant 2 : index
    %c0_41 = arith.constant 0 : index
    %c0_42 = arith.constant 0 : index
    %38 = vector.load %arg4[%c1_39, %c2_40, %c0_41, %c0_42] : memref<3x3x128x128xbf16, #tpu.memory_space<vmem>>, vector<1x1x128x128xbf16>
    %39 = vector.shape_cast %38 : vector<1x1x128x128xbf16> to vector<128x128xbf16>
    %c2_43 = arith.constant 2 : index
    %c2_44 = arith.constant 2 : index
    %c0_45 = arith.constant 0 : index
    %c0_46 = arith.constant 0 : index
    %40 = vector.load %arg4[%c2_43, %c2_44, %c0_45, %c0_46] : memref<3x3x128x128xbf16, #tpu.memory_space<vmem>>, vector<1x1x128x128xbf16>
    %41 = vector.shape_cast %40 : vector<1x1x128x128xbf16> to vector<128x128xbf16>
    %42 = tpu.concatenate %37, %39, %41 in 0 : vector<128x128xbf16>, vector<128x128xbf16>, vector<128x128xbf16> -> vector<384x128xbf16>
    %cst_47 = arith.constant dense<0.000000e+00> : vector<384x128xf32>
    %43 = tpu.matmul %13, %42, %cst_47 {dimension_numbers = #tpu.dot_dimension_numbers<[1], [0], [0], [1], [0, 0, 1, 1], [], []>} : vector<384x384xbf16>, vector<384x128xbf16>, vector<384x128xf32> -> vector<384x128xf32>
    %44 = vector.shape_cast %43 : vector<384x128xf32> to vector<16x24x128xf32>
    %45 = vector.extract_strided_slice %44 {offsets = [0, 2, 0], sizes = [16, 18, 128], strides = [1, 1, 1]} : vector<16x24x128xf32> to vector<16x18x128xf32>
    %46 = arith.addf %35, %45 : vector<16x18x128xf32>
    %47 = vector.shape_cast %0 : vector<1x128xf32> to vector<1x1x128xf32>
    %48 = vector.broadcast %47 : vector<1x1x128xf32> to vector<16x18x128xf32>
    %49 = arith.mulf %46, %48 : vector<16x18x128xf32>
    %50 = vector.shape_cast %1 : vector<1x128xf32> to vector<1x1x128xf32>
    %51 = vector.broadcast %50 : vector<1x1x128xf32> to vector<16x18x128xf32>
    %52 = arith.addf %49, %51 : vector<16x18x128xf32>
    %cst_48 = arith.constant 0.000000e+00 : f32
    %53 = vector.broadcast %cst_48 : f32 to vector<16x18x128xf32>
    %54 = arith.maximumf %52, %53 : vector<16x18x128xf32>
    %c0_49 = arith.constant 0 : index
    %c0_50 = arith.constant 0 : index
    %c0_51 = arith.constant 0 : index
    %c0_52 = arith.constant 0 : index
    %55 = vector.load %arg7[%c0_49, %c0_50, %c0_51, %c0_52] : memref<1x16x18x128xf32, #tpu.memory_space<vmem>>, vector<1x16x18x128xf32>
    %56 = vector.shape_cast %55 : vector<1x16x18x128xf32> to vector<16x18x128xf32>
    %57 = vector.shape_cast %54 : vector<16x18x128xf32> to vector<1x16x18x128xf32>
    tpu.vector_store %arg7[%c0_49, %c0_50, %c0_51, %c0_52], %57 {strides = array<i32>} : memref<1x16x18x128xf32, #tpu.memory_space<vmem>>, vector<1x16x18x128xf32>,
    return
  }
  func.func @transform_0(%arg0: i32, %arg1: i32) -> (i32, i32, i32, i32) {
    %c0_i32 = arith.constant 0 : i32
    %c0_i32_0 = arith.constant 0 : i32
    %c0_i32_1 = arith.constant 0 : i32
    return %arg0, %arg1, %c0_i32, %c0_i32_0 : i32, i32, i32, i32
  }
  func.func @transform_1(%arg0: i32, %arg1: i32) -> (i32, i32, i32, i32) {
    %c1_i32 = arith.constant 1 : i32
    %0 = arith.addi %arg1, %c1_i32 : i32
    %c8_i32 = arith.constant 8 : i32
    %1 = arith.muli %0, %c8_i32 : i32
    %c0_i32 = arith.constant 0 : i32
    %c0_i32_0 = arith.constant 0 : i32
    %c0_i32_1 = arith.constant 0 : i32
    return %arg0, %1, %c0_i32, %c0_i32_0 : i32, i32, i32, i32
  }
  func.func @transform_2(%arg0: i32, %arg1: i32) -> (i32, i32, i32, i32) {
    %c0_i32 = arith.constant 0 : i32
    %c0_i32_0 = arith.constant 0 : i32
    %c0_i32_1 = arith.constant 0 : i32
    %c0_i32_2 = arith.constant 0 : i32
    %c0_i32_3 = arith.constant 0 : i32
    return %c0_i32, %c0_i32_0, %c0_i32_1, %c0_i32_2 : i32, i32, i32, i32
  }
  func.func @transform_3(%arg0: i32, %arg1: i32) -> (i32, i32) {
    %c0_i32 = arith.constant 0 : i32
    %c0_i32_0 = arith.constant 0 : i32
    %c0_i32_1 = arith.constant 0 : i32
    return %c0_i32, %c0_i32_0 : i32, i32
  }
  func.func @transform_4(%arg0: i32, %arg1: i32) -> (i32, i32) {
    %c0_i32 = arith.constant 0 : i32
    %c0_i32_0 = arith.constant 0 : i32
    %c0_i32_1 = arith.constant 0 : i32
    return %c0_i32, %c0_i32_0 : i32, i32
  }
  func.func @transform_5(%arg0: i32, %arg1: i32) -> (i32, i32, i32, i32) {
    %c0_i32 = arith.constant 0 : i32
    %c0_i32_0 = arith.constant 0 : i32
    %c0_i32_1 = arith.constant 0 : i32
    return %arg0, %arg1, %c0_i32, %c0_i32_0 : i32, i32, i32, i32
  }
}

</mosaic_0001>

<llo_original>
// kernel: tile.8
$region0: #{tile.8}
  #allocation0 [shape = 's32[1]{0}', space=sflag, size = 0x4, scoped, tag = 'scoped memory for tile.8']
  %s0 = inlined_call_operand.vmem [shape: f32[64], index: 0, kind: input, shape index: {}]
  %s1 = inlined_call_operand.vmem [shape: f32[4,64], index: 1, kind: output, shape index: {}]
  // Predicated region
  $region2: #{tile.8} parent=0 // pred_check
    _
  $region3: #{tile.8} parent=0 // pred_check_branch
    %3 = sbr.rel (0) target = $region5
  $region4: #{tile.8} parent=0 // pred_region
    _
  $region5: #{tile.8} parent=0 // pred_fallthru
    _
  %v4 = vld [vmem:[%s0] ss:$0 sm:$0xff]
  %5 = vst [vmem:[%s1] sm:$0xf] %v4

// kernel: tile.9
$region0: #{tile.9}
  %s0 = inlined_call_operand.vmem [shape: f32[4,64], index: 0, kind: input, shape index: {}]
  %s1 = inlined_call_operand.vmem [shape: f32[1,256], index: 1, kind: output, shape index: {}]
  $region1: #{tile.9} parent=0
    #allocation0 [shape = 'u8[8192]{0}', space=vmem, size = 0x2000, scoped, tag = 'scoped mem for output reshape']
    #allocation1 [shape = 'u8[4096]{0}', space=vmem, size = 0x1000, scoped, tag = 'scoped mem for input reshape']
    %s3 = sshllo.u32 0, 4
    %v4 = vld [vmem:[%s0] sm:%s3]
    %5 = vst [vmem:[#allocation1] sm:%s3] %v4
    %s6 = smov 3
    %v7 = vld [vmem:[#allocation1] ss:$2 sm:%s6]
    %vm8 = vcmask 523264
    %9 = vst.msk [vmem:[#allocation0] ss:$8 sm:$0x3] %vm8, %v7
    %s10 = scalar_lea.vmem [#allocation1], 1
    %s11 = smov 3
    %v12 = vld [vmem:[%s10] ss:$2 sm:%s11]
    %13 = vrot.lane.b32.xlu0 %v12, 64
    %v14 = vpop.permute.xlu0 %13
    %vm15 = vcmask 1048064
    %16 = vst.msk [vmem:[#allocation0] ss:$8 sm:$0x3] %vm15, %v14
    %s18 = sshllo.u32 0, 1
    %v20 = vld [vmem:[#allocation0] sm:%s18]
    %s21 = sshllo.u32 0, 1
    %22 = vst [vmem:[%s1] sm:%s21] %v20
    %s23 = scalar_lea.vmem [#allocation0], 8
    %v24 = vld [vmem:[%s23] sm:%s18]
    %s25 = sshllo.u32 0, 1
    %s26 = scalar_lea.vmem %s1, 1
    %27 = vst [vmem:[%s26] sm:%s25] %v24

// kernel: up_forward.3
$region0: #{up_forward.3}
  #allocation0 [shape = 'u32[]', space=smem, size = 0x4, offset = 0x4, fixed_abs, tag = 'smem constant byte address 0x4 - core index']
  #allocation1 [shape = 'u32[144,128]{1,0:T(1,128)}', space=vmem, size = 0x12000, scoped, tag = 'internal scratch']
  #allocation2 [shape = 'f32[128,256]{1,0:T(8,128)}', space=vmem, size = 0x20000, scoped, tag = 'scratch operand']
  %s0 = inlined_call_operand.vmem [shape: bf16[128,128], index: 0, kind: input, shape index: {}]
  %s1 = inlined_call_operand.vmem [shape: bf16[128,256], index: 1, kind: input, shape index: {}]
  %s2 = inlined_call_operand.vmem [shape: f32[1,256], index: 2, kind: input, shape index: {}]
  %s3 = inlined_call_operand.vmem [shape: bf16[128,256], index: 3, kind: output, shape index: {}]
  %s4 = sld [smem:[#allocation0]]
  $region30: #{up_forward.3} parent=0
    _
  %s6 = ssub.s32 1, %s4
  %s7 = scalar_select 0, %s6, %s4
  // Predicated region
  $region2: #{up_forward.3} parent=0 // pred_check
    _
  $region3: #{up_forward.3} parent=0 // pred_check_branch
    %9 = sbr.rel (0) target = $region5
  $region4: #{up_forward.3} parent=0 // pred_region
    _
  $region5: #{up_forward.3} parent=0 // pred_fallthru
    _
  // Predicated region
  $region6: #{up_forward.3} parent=0 // pred_check
    _
  $region7: #{up_forward.3} parent=0 // pred_check_branch
    %11 = sbr.rel (0) target = $region9
  $region8: #{up_forward.3} parent=0 // pred_region
    _
  $region9: #{up_forward.3} parent=0 // pred_fallthru
    _
  // Predicated region
  $region10: #{up_forward.3} parent=0 // pred_check
    _
  $region11: #{up_forward.3} parent=0 // pred_check_branch
    %13 = sbr.rel (0) target = $region13
  $region12: #{up_forward.3} parent=0 // pred_region
    _
  $region13: #{up_forward.3} parent=0 // pred_fallthru
    _
  %p15 = scmp.eq.s32.totalorder 0, 0
  // Predicated region
  $region14: #{up_forward.3} parent=0 // pred_check
    %p16 = pneg %p15
  $region15: #{up_forward.3} parent=0 // pred_check_branch
    %18 = sbr.rel (%p16) target = $region17
  $region16: #{up_forward.3} parent=0 // pred_region
    %v19 = vld [vmem:[%s2] sm:$0x3]
    %v21 = vlaneseq
    %v22 = vshrl.u32 %v21, 7
    %v23 = vsub.s32 0, %v22
    %v24 = vrot.slane %v19, %v23
    %v25 = vlaneseq
    %v26 = vshrl.u32 %v25, 7
    %v27 = vsub.s32 1, %v26
    %v28 = vrot.slane %v19, %v27
    %31 = vst [vmem:[#allocation2] sm:$0xff] %v24
    %32 = vst [vmem:[#allocation2 + $0x8] sm:$0xff] %v28
    %33 = vst [vmem:[#allocation2 + $0x10] sm:$0xff] %v24
    %34 = vst [vmem:[#allocation2 + $0x18] sm:$0xff] %v28
    %35 = vst [vmem:[#allocation2 + $0x20] sm:$0xff] %v24
    %36 = vst [vmem:[#allocation2 + $0x28] sm:$0xff] %v28
    %37 = vst [vmem:[#allocation2 + $0x30] sm:$0xff] %v24
    %38 = vst [vmem:[#allocation2 + $0x38] sm:$0xff] %v28
    %39 = vst [vmem:[#allocation2 + $0x40] sm:$0xff] %v24
    %40 = vst [vmem:[#allocation2 + $0x48] sm:$0xff] %v28
    %41 = vst [vmem:[#allocation2 + $0x50] sm:$0xff] %v24
    %42 = vst [vmem:[#allocation2 + $0x58] sm:$0xff] %v28
    %43 = vst [vmem:[#allocation2 + $0x60] sm:$0xff] %v24
    %44 = vst [vmem:[#allocation2 + $0x68] sm:$0xff] %v28
    %45 = vst [vmem:[#allocation2 + $0x70] sm:$0xff] %v24
    %46 = vst [vmem:[#allocation2 + $0x78] sm:$0xff] %v28
    %47 = vst [vmem:[#allocation2 + $0x80] sm:$0xff] %v24
    %48 = vst [vmem:[#allocation2 + $0x88] sm:$0xff] %v28
    %49 = vst [vmem:[#allocation2 + $0x90] sm:$0xff] %v24
    %50 = vst [vmem:[#allocation2 + $0x98] sm:$0xff] %v28
    %51 = vst [vmem:[#allocation2 + $0xa0] sm:$0xff] %v24
    %52 = vst [vmem:[#allocation2 + $0xa8] sm:$0xff] %v28
    %53 = vst [vmem:[#allocation2 + $0xb0] sm:$0xff] %v24
    %54 = vst [vmem:[#allocation2 + $0xb8] sm:$0xff] %v28
    %55 = vst [vmem:[#allocation2 + $0xc0] sm:$0xff] %v24
    %56 = vst [vmem:[#allocation2 + $0xc8] sm:$0xff] %v28
    %57 = vst [vmem:[#allocation2 + $0xd0] sm:$0xff] %v24
    %58 = vst [vmem:[#allocation2 + $0xd8] sm:$0xff] %v28
    %59 = vst [vmem:[#allocation2 + $0xe0] sm:$0xff] %v24
    %60 = vst [vmem:[#allocation2 + $0xe8] sm:$0xff] %v28
    %61 = vst [vmem:[#allocation2 + $0xf0] sm:$0xff] %v24
    %62 = vst [vmem:[#allocation2 + $0xf8] sm:$0xff] %v28
  $region17: #{up_forward.3} parent=0 // pred_fallthru
    _
  %v63 = vld [vmem:[#allocation2] sm:$0xff]
  %v64 = vld [vmem:[#allocation2 + $0x8] sm:$0xff]
  %v65 = vld [vmem:[#allocation2 + $0x10] sm:$0xff]
  %v66 = vld [vmem:[#allocation2 + $0x18] sm:$0xff]
  %v67 = vld [vmem:[#allocation2 + $0x20] sm:$0xff]
  %v68 = vld [vmem:[#allocation2 + $0x28] sm:$0xff]
  %v69 = vld [vmem:[#allocation2 + $0x30] sm:$0xff]
  %v70 = vld [vmem:[#allocation2 + $0x38] sm:$0xff]
  %v71 = vld [vmem:[#allocation2 + $0x40] sm:$0xff]
  %v72 = vld [vmem:[#allocation2 + $0x48] sm:$0xff]
  %v73 = vld [vmem:[#allocation2 + $0x50] sm:$0xff]
  %v74 = vld [vmem:[#allocation2 + $0x58] sm:$0xff]
  %v75 = vld [vmem:[#allocation2 + $0x60] sm:$0xff]
  %v76 = vld [vmem:[#allocation2 + $0x68] sm:$0xff]
  %v77 = vld [vmem:[#allocation2 + $0x70] sm:$0xff]
  %v78 = vld [vmem:[#allocation2 + $0x78] sm:$0xff]
  %v79 = vld [vmem:[#allocation2 + $0x80] sm:$0xff]
  %v80 = vld [vmem:[#allocation2 + $0x88] sm:$0xff]
  %v81 = vld [vmem:[#allocation2 + $0x90] sm:$0xff]
  %v82 = vld [vmem:[#allocation2 + $0x98] sm:$0xff]
  %v83 = vld [vmem:[#allocation2 + $0xa0] sm:$0xff]
  %v84 = vld [vmem:[#allocation2 + $0xa8] sm:$0xff]
  %v85 = vld [vmem:[#allocation2 + $0xb0] sm:$0xff]
  %v86 = vld [vmem:[#allocation2 + $0xb8] sm:$0xff]
  %v87 = vld [vmem:[#allocation2 + $0xc0] sm:$0xff]
  %v88 = vld [vmem:[#allocation2 + $0xc8] sm:$0xff]
  %v89 = vld [vmem:[#allocation2 + $0xd0] sm:$0xff]
  %v90 = vld [vmem:[#allocation2 + $0xd8] sm:$0xff]
  %v91 = vld [vmem:[#allocation2 + $0xe0] sm:$0xff]
  %v92 = vld [vmem:[#allocation2 + $0xe8] sm:$0xff]
  %v93 = vld [vmem:[#allocation2 + $0xf0] sm:$0xff]
  %v94 = vld [vmem:[#allocation2 + $0xf8] sm:$0xff]
  %v95 = vld [vmem:[%s0] sm:$0xf]
  %v96 = vld [vmem:[%s0 + $0x4] sm:$0xf]
  %v97 = vld [vmem:[%s0 + $0x8] sm:$0xf]
  %v98 = vld [vmem:[%s0 + $0xc] sm:$0xf]
  %v99 = vld [vmem:[%s0 + $0x10] sm:$0xf]
  %v100 = vld [vmem:[%s0 + $0x14] sm:$0xf]
  %v101 = vld [vmem:[%s0 + $0x18] sm:$0xf]
  %v102 = vld [vmem:[%s0 + $0x1c] sm:$0xf]
  %v103 = vld [vmem:[%s0 + $0x20] sm:$0xf]
  %v104 = vld [vmem:[%s0 + $0x24] sm:$0xf]
  %v105 = vld [vmem:[%s0 + $0x28] sm:$0xf]
  %v106 = vld [vmem:[%s0 + $0x2c] sm:$0xf]
  %v107 = vld [vmem:[%s0 + $0x30] sm:$0xf]
  %v108 = vld [vmem:[%s0 + $0x34] sm:$0xf]
  %v109 = vld [vmem:[%s0 + $0x38] sm:$0xf]
  %v110 = vld [vmem:[%s0 + $0x3c] sm:$0xf]
  %v111 = vld [vmem:[%s1] sm:$0xff]
  %v112 = vld [vmem:[%s1 + $0x8] sm:$0xff]
  %v113 = vld [vmem:[%s1 + $0x10] sm:$0xff]
  %v114 = vld [vmem:[%s1 + $0x18] sm:$0xff]
  %v115 = vld [vmem:[%s1 + $0x20] sm:$0xff]
  %v116 = vld [vmem:[%s1 + $0x28] sm:$0xff]
  %v117 = vld [vmem:[%s1 + $0x30] sm:$0xff]
  %v118 = vld [vmem:[%s1 + $0x38] sm:$0xff]
  %v119 = vld [vmem:[%s1 + $0x40] sm:$0xff]
  %v120 = vld [vmem:[%s1 + $0x48] sm:$0xff]
  %v121 = vld [vmem:[%s1 + $0x50] sm:$0xff]
  %v122 = vld [vmem:[%s1 + $0x58] sm:$0xff]
  %v123 = vld [vmem:[%s1 + $0x60] sm:$0xff]
  %v124 = vld [vmem:[%s1 + $0x68] sm:$0xff]
  %v125 = vld [vmem:[%s1 + $0x70] sm:$0xff]
  %v126 = vld [vmem:[%s1 + $0x78] sm:$0xff]
  %v143 = vunpack.c.l.b16 %v95
  %v144 = vunpack.c.l.b16 %v96
  %v145 = vunpack.c.l.b16 %v97
  %v146 = vunpack.c.l.b16 %v98
  %v147 = vunpack.c.l.b16 %v99
  %v148 = vunpack.c.l.b16 %v100
  %v149 = vunpack.c.l.b16 %v101
  %v150 = vunpack.c.l.b16 %v102
  %v151 = vunpack.c.l.b16 %v103
  %v152 = vunpack.c.l.b16 %v104
  %v153 = vunpack.c.l.b16 %v105
  %v154 = vunpack.c.l.b16 %v106
  %v155 = vunpack.c.l.b16 %v107
  %v156 = vunpack.c.l.b16 %v108
  %v157 = vunpack.c.l.b16 %v109
  %v158 = vunpack.c.l.b16 %v110
  %v159 = vpack.c.b16 %v144, %v143
  %v160 = vpack.c.b16 %v146, %v145
  %v161 = vpack.c.b16 %v148, %v147
  %v162 = vpack.c.b16 %v150, %v149
  %v163 = vpack.c.b16 %v152, %v151
  %v164 = vpack.c.b16 %v154, %v153
  %v165 = vpack.c.b16 %v156, %v155
  %v166 = vpack.c.b16 %v158, %v157
  %v191 = vunpack.c.l.b16 %v111
  %v192 = vunpack.c.h.b16 %v111
  %v193 = vunpack.c.l.b16 %v112
  %v194 = vunpack.c.h.b16 %v112
  %v195 = vunpack.c.l.b16 %v113
  %v196 = vunpack.c.h.b16 %v113
  %v197 = vunpack.c.l.b16 %v114
  %v198 = vunpack.c.h.b16 %v114
  %v199 = vunpack.c.l.b16 %v115
  %v200 = vunpack.c.h.b16 %v115
  %v201 = vunpack.c.l.b16 %v116
  %v202 = vunpack.c.h.b16 %v116
  %v203 = vunpack.c.l.b16 %v117
  %v204 = vunpack.c.h.b16 %v117
  %v205 = vunpack.c.l.b16 %v118
  %v206 = vunpack.c.h.b16 %v118
  %v207 = vunpack.c.l.b16 %v119
  %v208 = vunpack.c.h.b16 %v119
  %v209 = vunpack.c.l.b16 %v120
  %v210 = vunpack.c.h.b16 %v120
  %v211 = vunpack.c.l.b16 %v121
  %v212 = vunpack.c.h.b16 %v121
  %v213 = vunpack.c.l.b16 %v122
  %v214 = vunpack.c.h.b16 %v122
  %v215 = vunpack.c.l.b16 %v123
  %v216 = vunpack.c.h.b16 %v123
  %v217 = vunpack.c.l.b16 %v124
  %v218 = vunpack.c.h.b16 %v124
  %v219 = vunpack.c.l.b16 %v125
  %v220 = vunpack.c.h.b16 %v125
  %v221 = vunpack.c.l.b16 %v126
  %v222 = vunpack.c.h.b16 %v126
  %v223 = vpack.c.b16 %v193, %v191
  %v224 = vpack.c.b16 %v194, %v192
  %v225 = vpack.c.b16 %v197, %v195
  %v226 = vpack.c.b16 %v198, %v196
  %v227 = vpack.c.b16 %v201, %v199
  %v228 = vpack.c.b16 %v202, %v200
  %v229 = vpack.c.b16 %v205, %v203
  %v230 = vpack.c.b16 %v206, %v204
  %v231 = vpack.c.b16 %v209, %v207
  %v232 = vpack.c.b16 %v210, %v208
  %v233 = vpack.c.b16 %v213, %v211
  %v234 = vpack.c.b16 %v214, %v212
  %v235 = vpack.c.b16 %v217, %v215
  %v236 = vpack.c.b16 %v218, %v216
  %v237 = vpack.c.b16 %v221, %v219
  %v238 = vpack.c.b16 %v222, %v220
  %255 = vmatprep.subr.bf16.mxu0 %v224
  %256 = vmatpush1.bf16.msra.mxu0 %v223
  %257 = vmatprep.subr.bf16.mxu0 %v226
  %258 = vmatpush1.bf16.msra.mxu0 %v225
  %259 = vmatprep.subr.bf16.mxu0 %v228
  %260 = vmatpush1.bf16.msra.mxu0 %v227
  %261 = vmatprep.subr.bf16.mxu0 %v230
  %262 = vmatpush1.bf16.msra.mxu0 %v229
  %263 = vmatprep.subr.bf16.mxu0 %v232
  %264 = vmatpush1.bf16.msra.mxu0 %v231
  %265 = vmatprep.subr.bf16.mxu0 %v234
  %266 = vmatpush1.bf16.msra.mxu0 %v233
  %267 = vmatprep.subr.bf16.mxu0 %v236
  %268 = vmatpush1.bf16.msra.mxu0 %v235
  %269 = vmatprep.subr.bf16.mxu0 %v238
  %270 = vmatpush1.bf16.msra.mxu0 %v237
  %271 = vmatprep.subr.bf16.mxu0 0
  %272 = vmatpush1.bf16.msra.mxu0 0
  %273 = vmatprep.subr.bf16.mxu0 0
  %274 = vmatpush1.bf16.msra.mxu0 0
  %275 = vmatprep.subr.bf16.mxu0 0
  %276 = vmatpush1.bf16.msra.mxu0 0
  %277 = vmatprep.subr.bf16.mxu0 0
  %278 = vmatpush1.bf16.msra.mxu0 0
  %279 = vmatprep.subr.bf16.mxu0 0
  %280 = vmatpush1.bf16.msra.mxu0 0
  %281 = vmatprep.subr.bf16.mxu0 0
  %282 = vmatpush1.bf16.msra.mxu0 0
  %283 = vmatprep.subr.bf16.mxu0 0
  %284 = vmatpush1.bf16.msra.mxu0 0
  %285 = vmatprep.subr.bf16.mxu0 0
  %286 = vmatpush1.bf16.msra.mxu0 0
  %287 = vmatprep.mubr.bf16.mxu0 0
  %288 = vmatmul.mubr.bf16.gmra.mrb[0].mxu0 %v159
  %v289 = vpop.f32.mrb[0].mxu0
  %v290 = vadd.f32 0.0, %v289
  %v291 = vpop.f32.mrb[0].mxu0
  %v292 = vadd.f32 0.0, %v291
  %v293 = vpop.f32.mrb[0].mxu0
  %v294 = vadd.f32 0.0, %v293
  %v295 = vpop.f32.mrb[0].mxu0
  %v296 = vadd.f32 0.0, %v295
  %297 = vmatprep.mubr.bf16.mxu0 0
  %298 = vmatmul.mubr.bf16.gmra.mrb[0].mxu0 %v160
  %v299 = vpop.f32.mrb[0].mxu0
  %v300 = vadd.f32 0.0, %v299
  %v301 = vpop.f32.mrb[0].mxu0
  %v302 = vadd.f32 0.0, %v301
  %v303 = vpop.f32.mrb[0].mxu0
  %v304 = vadd.f32 0.0, %v303
  %v305 = vpop.f32.mrb[0].mxu0
  %v306 = vadd.f32 0.0, %v305
  %307 = vmatprep.mubr.bf16.mxu0 0
  %308 = vmatmul.mubr.bf16.gmra.mrb[0].mxu0 %v161
  %v309 = vpop.f32.mrb[0].mxu0
  %v310 = vadd.f32 0.0, %v309
  %v311 = vpop.f32.mrb[0].mxu0
  %v312 = vadd.f32 0.0, %v311
  %v313 = vpop.f32.mrb[0].mxu0
  %v314 = vadd.f32 0.0, %v313
  %v315 = vpop.f32.mrb[0].mxu0
  %v316 = vadd.f32 0.0, %v315
  %317 = vmatprep.mubr.bf16.mxu0 0
  %318 = vmatmul.mubr.bf16.gmra.mrb[0].mxu0 %v162
  %v319 = vpop.f32.mrb[0].mxu0
  %v320 = vadd.f32 0.0, %v319
  %v321 = vpop.f32.mrb[0].mxu0
  %v322 = vadd.f32 0.0, %v321
  %v323 = vpop.f32.mrb[0].mxu0
  %v324 = vadd.f32 0.0, %v323
  %v325 = vpop.f32.mrb[0].mxu0
  %v326 = vadd.f32 0.0, %v325
  %327 = vmatprep.mubr.bf16.mxu0 0
  %328 = vmatmul.mubr.bf16.gmra.mrb[0].mxu0 %v163
  %v329 = vpop.f32.mrb[0].mxu0
  %v330 = vadd.f32 0.0, %v329
  %v331 = vpop.f32.mrb[0].mxu0
  %v332 = vadd.f32 0.0, %v331
  %v333 = vpop.f32.mrb[0].mxu0
  %v334 = vadd.f32 0.0, %v333
  %v335 = vpop.f32.mrb[0].mxu0
  %v336 = vadd.f32 0.0, %v335
  %337 = vmatprep.mubr.bf16.mxu0 0
  %338 = vmatmul.mubr.bf16.gmra.mrb[0].mxu0 %v164
  %v339 = vpop.f32.mrb[0].mxu0
  %v340 = vadd.f32 0.0, %v339
  %v341 = vpop.f32.mrb[0].mxu0
  %v342 = vadd.f32 0.0, %v341
  %v343 = vpop.f32.mrb[0].mxu0
  %v344 = vadd.f32 0.0, %v343
  %v345 = vpop.f32.mrb[0].mxu0
  %v346 = vadd.f32 0.0, %v345
  %347 = vmatprep.mubr.bf16.mxu0 0
  %348 = vmatmul.mubr.bf16.gmra.mrb[0].mxu0 %v165
  %v349 = vpop.f32.mrb[0].mxu0
  %v350 = vadd.f32 0.0, %v349
  %v351 = vpop.f32.mrb[0].mxu0
  %v352 = vadd.f32 0.0, %v351
  %v353 = vpop.f32.mrb[0].mxu0
  %v354 = vadd.f32 0.0, %v353
  %v355 = vpop.f32.mrb[0].mxu0
  %v356 = vadd.f32 0.0, %v355
  %357 = vmatprep.mubr.bf16.mxu0 0
  %358 = vmatmul.mubr.bf16.gmra.mrb[0].mxu0 %v166
  %v359 = vpop.f32.mrb[0].mxu0
  %v360 = vadd.f32 0.0, %v359
  %v361 = vpop.f32.mrb[0].mxu0
  %v362 = vadd.f32 0.0, %v361
  %v363 = vpop.f32.mrb[0].mxu0
  %v364 = vadd.f32 0.0, %v363
  %v365 = vpop.f32.mrb[0].mxu0
  %v366 = vadd.f32 0.0, %v365
  %367 = vdwg.mxu0
  %v368 = vadd.f32 %v63, %v290
  %v369 = vadd.f32 %v64, %v292
  %v370 = vadd.f32 %v65, %v294
  %v371 = vadd.f32 %v66, %v296
  %v372 = vadd.f32 %v67, %v300
  %v373 = vadd.f32 %v68, %v302
  %v374 = vadd.f32 %v69, %v304
  %v375 = vadd.f32 %v70, %v306
  %v376 = vadd.f32 %v71, %v310
  %v377 = vadd.f32 %v72, %v312
  %v378 = vadd.f32 %v73, %v314
  %v379 = vadd.f32 %v74, %v316
  %v380 = vadd.f32 %v75, %v320
  %v381 = vadd.f32 %v76, %v322
  %v382 = vadd.f32 %v77, %v324
  %v383 = vadd.f32 %v78, %v326
  %v384 = vadd.f32 %v79, %v330
  %v385 = vadd.f32 %v80, %v332
  %v386 = vadd.f32 %v81, %v334
  %v387 = vadd.f32 %v82, %v336
  %v388 = vadd.f32 %v83, %v340
  %v389 = vadd.f32 %v84, %v342
  %v390 = vadd.f32 %v85, %v344
  %v391 = vadd.f32 %v86, %v346
  %v392 = vadd.f32 %v87, %v350
  %v393 = vadd.f32 %v88, %v352
  %v394 = vadd.f32 %v89, %v354
  %v395 = vadd.f32 %v90, %v356
  %v396 = vadd.f32 %v91, %v360
  %v397 = vadd.f32 %v92, %v362
  %v398 = vadd.f32 %v93, %v364
  %v399 = vadd.f32 %v94, %v366
  %400 = vst [vmem:[#allocation2] sm:$0xff] %v368
  %401 = vst [vmem:[#allocation2 + $0x8] sm:$0xff] %v369
  %402 = vst [vmem:[#allocation2 + $0x10] sm:$0xff] %v370
  %403 = vst [vmem:[#allocation2 + $0x18] sm:$0xff] %v371
  %404 = vst [vmem:[#allocation2 + $0x20] sm:$0xff] %v372
  %405 = vst [vmem:[#allocation2 + $0x28] sm:$0xff] %v373
  %406 = vst [vmem:[#allocation2 + $0x30] sm:$0xff] %v374
  %407 = vst [vmem:[#allocation2 + $0x38] sm:$0xff] %v375
  %408 = vst [vmem:[#allocation2 + $0x40] sm:$0xff] %v376
  %409 = vst [vmem:[#allocation2 + $0x48] sm:$0xff] %v377
  %410 = vst [vmem:[#allocation2 + $0x50] sm:$0xff] %v378
  %411 = vst [vmem:[#allocation2 + $0x58] sm:$0xff] %v379
  %412 = vst [vmem:[#allocation2 + $0x60] sm:$0xff] %v380
  %413 = vst [vmem:[#allocation2 + $0x68] sm:$0xff] %v381
  %414 = vst [vmem:[#allocation2 + $0x70] sm:$0xff] %v382
  %415 = vst [vmem:[#allocation2 + $0x78] sm:$0xff] %v383
  %416 = vst [vmem:[#allocation2 + $0x80] sm:$0xff] %v384
  %417 = vst [vmem:[#allocation2 + $0x88] sm:$0xff] %v385
  %418 = vst [vmem:[#allocation2 + $0x90] sm:$0xff] %v386
  %419 = vst [vmem:[#allocation2 + $0x98] sm:$0xff] %v387
  %420 = vst [vmem:[#allocation2 + $0xa0] sm:$0xff] %v388
  %421 = vst [vmem:[#allocation2 + $0xa8] sm:$0xff] %v389
  %422 = vst [vmem:[#allocation2 + $0xb0] sm:$0xff] %v390
  %423 = vst [vmem:[#allocation2 + $0xb8] sm:$0xff] %v391
  %424 = vst [vmem:[#allocation2 + $0xc0] sm:$0xff] %v392
  %425 = vst [vmem:[#allocation2 + $0xc8] sm:$0xff] %v393
  %426 = vst [vmem:[#allocation2 + $0xd0] sm:$0xff] %v394
  %427 = vst [vmem:[#allocation2 + $0xd8] sm:$0xff] %v395
  %428 = vst [vmem:[#allocation2 + $0xe0] sm:$0xff] %v396
  %429 = vst [vmem:[#allocation2 + $0xe8] sm:$0xff] %v397
  %430 = vst [vmem:[#allocation2 + $0xf0] sm:$0xff] %v398
  %431 = vst [vmem:[#allocation2 + $0xf8] sm:$0xff] %v399
  // Predicated region
  $region18: #{up_forward.3} parent=0 // pred_check
    %p432 = pneg %p15
  $region19: #{up_forward.3} parent=0 // pred_check_branch
    %434 = sbr.rel (%p432) target = $region21
  $region20: #{up_forward.3} parent=0 // pred_region
    %v435 = vld [vmem:[#allocation2] sm:$0xff]
    %v436 = vld [vmem:[#allocation2 + $0x8] sm:$0xff]
    %v437 = vld [vmem:[#allocation2 + $0x10] sm:$0xff]
    %v438 = vld [vmem:[#allocation2 + $0x18] sm:$0xff]
    %v439 = vld [vmem:[#allocation2 + $0x20] sm:$0xff]
    %v440 = vld [vmem:[#allocation2 + $0x28] sm:$0xff]
    %v441 = vld [vmem:[#allocation2 + $0x30] sm:$0xff]
    %v442 = vld [vmem:[#allocation2 + $0x38] sm:$0xff]
    %v443 = vld [vmem:[#allocation2 + $0x40] sm:$0xff]
    %v444 = vld [vmem:[#allocation2 + $0x48] sm:$0xff]
    %v445 = vld [vmem:[#allocation2 + $0x50] sm:$0xff]
    %v446 = vld [vmem:[#allocation2 + $0x58] sm:$0xff]
    %v447 = vld [vmem:[#allocation2 + $0x60] sm:$0xff]
    %v448 = vld [vmem:[#allocation2 + $0x68] sm:$0xff]
    %v449 = vld [vmem:[#allocation2 + $0x70] sm:$0xff]
    %v450 = vld [vmem:[#allocation2 + $0x78] sm:$0xff]
    %v451 = vld [vmem:[#allocation2 + $0x80] sm:$0xff]
    %v452 = vld [vmem:[#allocation2 + $0x88] sm:$0xff]
    %v453 = vld [vmem:[#allocation2 + $0x90] sm:$0xff]
    %v454 = vld [vmem:[#allocation2 + $0x98] sm:$0xff]
    %v455 = vld [vmem:[#allocation2 + $0xa0] sm:$0xff]
    %v456 = vld [vmem:[#allocation2 + $0xa8] sm:$0xff]
    %v457 = vld [vmem:[#allocation2 + $0xb0] sm:$0xff]
    %v458 = vld [vmem:[#allocation2 + $0xb8] sm:$0xff]
    %v459 = vld [vmem:[#allocation2 + $0xc0] sm:$0xff]
    %v460 = vld [vmem:[#allocation2 + $0xc8] sm:$0xff]
    %v461 = vld [vmem:[#allocation2 + $0xd0] sm:$0xff]
    %v462 = vld [vmem:[#allocation2 + $0xd8] sm:$0xff]
    %v463 = vld [vmem:[#allocation2 + $0xe0] sm:$0xff]
    %v464 = vld [vmem:[#allocation2 + $0xe8] sm:$0xff]
    %v465 = vld [vmem:[#allocation2 + $0xf0] sm:$0xff]
    %v466 = vld [vmem:[#allocation2 + $0xf8] sm:$0xff]
    %v467 = vpack.c.bf16 %v437, %v435
    %v468 = vpack.c.bf16 %v438, %v436
    %v469 = vpack.c.bf16 %v441, %v439
    %v470 = vpack.c.bf16 %v442, %v440
    %v471 = vpack.c.bf16 %v445, %v443
    %v472 = vpack.c.bf16 %v446, %v444
    %v473 = vpack.c.bf16 %v449, %v447
    %v474 = vpack.c.bf16 %v450, %v448
    %v475 = vpack.c.bf16 %v453, %v451
    %v476 = vpack.c.bf16 %v454, %v452
    %v477 = vpack.c.bf16 %v457, %v455
    %v478 = vpack.c.bf16 %v458, %v456
    %v479 = vpack.c.bf16 %v461, %v459
    %v480 = vpack.c.bf16 %v462, %v460
    %v481 = vpack.c.bf16 %v465, %v463
    %v482 = vpack.c.bf16 %v466, %v464
    %v499 = vunpack.c.l.b16 %v467
    %v500 = vunpack.c.l.b16 %v468
    %v501 = vunpack.c.h.b16 %v467
    %v502 = vunpack.c.h.b16 %v468
    %v503 = vunpack.c.l.b16 %v469
    %v504 = vunpack.c.l.b16 %v470
    %v505 = vunpack.c.h.b16 %v469
    %v506 = vunpack.c.h.b16 %v470
    %v507 = vunpack.c.l.b16 %v471
    %v508 = vunpack.c.l.b16 %v472
    %v509 = vunpack.c.h.b16 %v471
    %v510 = vunpack.c.h.b16 %v472
    %v511 = vunpack.c.l.b16 %v473
    %v512 = vunpack.c.l.b16 %v474
    %v513 = vunpack.c.h.b16 %v473
    %v514 = vunpack.c.h.b16 %v474
    %v515 = vunpack.c.l.b16 %v475
    %v516 = vunpack.c.l.b16 %v476
    %v517 = vunpack.c.h.b16 %v475
    %v518 = vunpack.c.h.b16 %v476
    %v519 = vunpack.c.l.b16 %v477
    %v520 = vunpack.c.l.b16 %v478
    %v521 = vunpack.c.h.b16 %v477
    %v522 = vunpack.c.h.b16 %v478
    %v523 = vunpack.c.l.b16 %v479
    %v524 = vunpack.c.l.b16 %v480
    %v525 = vunpack.c.h.b16 %v479
    %v526 = vunpack.c.h.b16 %v480
    %v527 = vunpack.c.l.b16 %v481
    %v528 = vunpack.c.l.b16 %v482
    %v529 = vunpack.c.h.b16 %v481
    %v530 = vunpack.c.h.b16 %v482
    %v531 = vpack.c.b16 %v500, %v499
    %v532 = vpack.c.b16 %v502, %v501
    %v533 = vpack.c.b16 %v504, %v503
    %v534 = vpack.c.b16 %v506, %v505
    %v535 = vpack.c.b16 %v508, %v507
    %v536 = vpack.c.b16 %v510, %v509
    %v537 = vpack.c.b16 %v512, %v511
    %v538 = vpack.c.b16 %v514, %v513
    %v539 = vpack.c.b16 %v516, %v515
    %v540 = vpack.c.b16 %v518, %v517
    %v541 = vpack.c.b16 %v520, %v519
    %v542 = vpack.c.b16 %v522, %v521
    %v543 = vpack.c.b16 %v524, %v523
    %v544 = vpack.c.b16 %v526, %v525
    %v545 = vpack.c.b16 %v528, %v527
    %v546 = vpack.c.b16 %v530, %v529
    %563 = vst [vmem:[%s3] sm:$0xff] %v531
    %564 = vst [vmem:[%s3 + $0x8] sm:$0xff] %v532
    %565 = vst [vmem:[%s3 + $0x10] sm:$0xff] %v533
    %566 = vst [vmem:[%s3 + $0x18] sm:$0xff] %v534
    %567 = vst [vmem:[%s3 + $0x20] sm:$0xff] %v535
    %568 = vst [vmem:[%s3 + $0x28] sm:$0xff] %v536
    %569 = vst [vmem:[%s3 + $0x30] sm:$0xff] %v537
    %570 = vst [vmem:[%s3 + $0x38] sm:$0xff] %v538
    %571 = vst [vmem:[%s3 + $0x40] sm:$0xff] %v539
    %572 = vst [vmem:[%s3 + $0x48] sm:$0xff] %v540
    %573 = vst [vmem:[%s3 + $0x50] sm:$0xff] %v541
    %574 = vst [vmem:[%s3 + $0x58] sm:$0xff] %v542
    %575 = vst [vmem:[%s3 + $0x60] sm:$0xff] %v543
    %576 = vst [vmem:[%s3 + $0x68] sm:$0xff] %v544
    %577 = vst [vmem:[%s3 + $0x70] sm:$0xff] %v545
    %578 = vst [vmem:[%s3 + $0x78] sm:$0xff] %v546
  $region21: #{up_forward.3} parent=0 // pred_fallthru
    _
  // Predicated region
  $region22: #{up_forward.3} parent=0 // pred_check
    _
  $region23: #{up_forward.3} parent=0 // pred_check_branch
    %580 = sbr.rel (0) target = $region25
  $region24: #{up_forward.3} parent=0 // pred_region
    _
  $region25: #{up_forward.3} parent=0 // pred_fallthru
    _
  // Predicated region
  $region26: #{up_forward.3} parent=0 // pred_check
    _
  $region27: #{up_forward.3} parent=0 // pred_check_branch
    %582 = sbr.rel (0) target = $region29
  $region28: #{up_forward.3} parent=0 // pred_region
    _
  $region29: #{up_forward.3} parent=0 // pred_fallthru
    _

// kernel: up_forward.5
$region0: #{up_forward.5}
  #allocation0 [shape = 'u32[]', space=smem, size = 0x4, offset = 0x4, fixed_abs, tag = 'smem constant byte address 0x4 - core index']
  #allocation1 [shape = 'u32[144,128]{1,0:T(1,128)}', space=vmem, size = 0x12000, scoped, tag = 'internal scratch']
  %s0 = inlined_call_operand.vmem [shape: bf16[2,34,24,128], index: 0, kind: input, shape index: {}, may-alias: {0,1}]
  %s1 = inlined_call_operand.vmem [shape: bf16[2,34,24,128], index: 1, kind: input, shape index: {}, may-alias: {0,1}]
  %s2 = inlined_call_operand.vmem [shape: bf16[3,3,128,128], index: 2, kind: input, shape index: {}]
  %s3 = inlined_call_operand.vmem [shape: f32[1,128], index: 3, kind: input, shape index: {}]
  %s4 = inlined_call_operand.vmem [shape: f32[1,128], index: 4, kind: input, shape index: {}]
  %s5 = inlined_call_operand.vmem [shape: f32[2,32,18,128], index: 5, kind: output, shape index: {}]
  %s6 = sld [smem:[#allocation0]]
  $region53: #{up_forward.5} parent=0
    _
  %s8 = ssub.s32 1, %s6
  %s9 = scalar_select 0, %s8, %s6
  loop: start=0, step=1, limit=6
  $region2: #{up_forward.5} parent=0 // loop_pre_header
    _
  $region3: #{up_forward.5} parent=0 // loop_header
    %s11 = sphi 0, %s15
    %p12 = scmp.ge.s32.totalorder %s11, 6
    %s18 = sphi 0, %s30
    %s19 = sphi 0, %s26
    %s20 = sphi 0, %s18
    %s21 = sphi 0, %s19
    %s22 = sphi 0, %s20
    %s23 = sphi 0, %s21
    %s35 = sphi 0, %s37
    %s38 = sphi 0, %s35
    %s39 = sphi 0, %s38
    %s55 = sphi 0, %s39
    %s67 = sphi 0, %s69
    %s70 = sphi 0, %s67
    %s71 = sphi 0, %s70
    %s87 = sphi 0, %s71
    %s91 = sphi 0, %s91
    %s93 = sphi 0, %s91
    %s94 = sphi 0, %s93
    %s108 = sphi 0, %s94
    %s112 = sphi 0, %s112
    %s114 = sphi 0, %s112
    %s115 = sphi 0, %s114
    %s129 = sphi 0, %s115
    %s133 = sphi 0, %s133
    %s135 = sphi 0, %s133
    %s136 = sphi 0, %s135
    %s150 = sphi 0, %s136
    %s158 = sphi 0, %s160
    %s161 = sphi 0, %s158
    %s162 = sphi 0, %s161
    %s178 = sphi 0, %s162
  $region4: #{up_forward.5} parent=0 // loop_header_branch
    %14 = sbr.rel (%p12) target = $region8
  $region5: #{up_forward.5} parent=0 // loop_body
    %s16 = ssub.s32 %s11, 1
    %s17 = ssub.s32 %s11, 2
    %s24 = sadd.s32 1, %s19
    %p25 = scmp.ge.s32.totalorder %s24, 2
    %s26 = scalar_select %p25, 0, %s24
    %s27 = sadd.s32 1, %s18
    %s28 = scalar_select %p25, %s27, %s18
    %p29 = scmp.ge.s32.totalorder %s28, 2
    %s30 = scalar_select %p29, 0, %s28
    %s31 = ssub.s32 %s18, %s30
    %s32 = ssub.s32 %s19, %s26
    %s33 = sor.u32 %s31, %s32
    %p34 = scmp.eq.s32.totalorder %s33, 0
    %s36 = sadd.s32 %s35, 1
    %s37 = scalar_select %p34, %s35, %s36
    %p40 = pneg %p34
    %p41 = scmp.eq.s32.totalorder %s11, 3
    %p42 = por %p40, %p41
    %p43 = scmp.ne.s32.totalorder %s35, %s38
    %p44 = scmp.eq.s32.totalorder %s11, 0
    %p45 = por %p43, %p44
    %p46 = scmp.ne.s32.totalorder %s35, %s38
    %p47 = scmp.eq.s32.totalorder %s16, 3
    %p48 = por %p46, %p47
    %p49 = scmp.ne.s32.totalorder %s38, %s39
    %p50 = scmp.eq.s32.totalorder %s16, 0
    %p51 = por %p49, %p50
    %p52 = scmp.ne.s32.totalorder %s38, %s39
    %p53 = scmp.eq.s32.totalorder %s17, 3
    %p54 = por %p52, %p53
    %p56 = scmp.ne.s32.totalorder %s39, %s55
    %p57 = scmp.eq.s32.totalorder %s17, 0
    %p58 = por %p56, %p57
    %s59 = sadd.s32 %s19, 1
    %s60 = smul.u32 %s59, 8
    %s61 = sadd.s32 %s26, 1
    %s62 = smul.u32 %s61, 8
    %s63 = ssub.s32 %s18, %s30
    %s64 = ssub.s32 %s60, %s62
    %s65 = sor.u32 %s63, %s64
    %p66 = scmp.eq.s32.totalorder %s65, 0
    %s68 = sadd.s32 %s67, 1
    %s69 = scalar_select %p66, %s67, %s68
    %p72 = pneg %p66
    %p73 = scmp.eq.s32.totalorder %s11, 3
    %p74 = por %p72, %p73
    %p75 = scmp.ne.s32.totalorder %s67, %s70
    %p76 = scmp.eq.s32.totalorder %s11, 0
    %p77 = por %p75, %p76
    %p78 = scmp.ne.s32.totalorder %s67, %s70
    %p79 = scmp.eq.s32.totalorder %s16, 3
    %p80 = por %p78, %p79
    %p81 = scmp.ne.s32.totalorder %s70, %s71
    %p82 = scmp.eq.s32.totalorder %s16, 0
    %p83 = por %p81, %p82
    %p84 = scmp.ne.s32.totalorder %s70, %s71
    %p85 = scmp.eq.s32.totalorder %s17, 3
    %p86 = por %p84, %p85
    %p88 = scmp.ne.s32.totalorder %s71, %s87
    %p89 = scmp.eq.s32.totalorder %s17, 0
    %p90 = por %p88, %p89
    %s92 = sadd.s32 %s91, 1
    %p95 = scmp.eq.s32.totalorder %s11, 3
    %p96 = scmp.ne.s32.totalorder %s91, %s93
    %p97 = scmp.eq.s32.totalorder %s11, 0
    %p98 = por %p96, %p97
    %p99 = scmp.ne.s32.totalorder %s91, %s93
    %p100 = scmp.eq.s32.totalorder %s16, 3
    %p101 = por %p99, %p100
    %p102 = scmp.ne.s32.totalorder %s93, %s94
    %p103 = scmp.eq.s32.totalorder %s16, 0
    %p104 = por %p102, %p103
    %p105 = scmp.ne.s32.totalorder %s93, %s94
    %p106 = scmp.eq.s32.totalorder %s17, 3
    %p107 = por %p105, %p106
    %p109 = scmp.ne.s32.totalorder %s94, %s108
    %p110 = scmp.eq.s32.totalorder %s17, 0
    %p111 = por %p109, %p110
    %s113 = sadd.s32 %s112, 1
    %p116 = scmp.eq.s32.totalorder %s11, 3
    %p117 = scmp.ne.s32.totalorder %s112, %s114
    %p118 = scmp.eq.s32.totalorder %s11, 0
    %p119 = por %p117, %p118
    %p120 = scmp.ne.s32.totalorder %s112, %s114
    %p121 = scmp.eq.s32.totalorder %s16, 3
    %p122 = por %p120, %p121
    %p123 = scmp.ne.s32.totalorder %s114, %s115
    %p124 = scmp.eq.s32.totalorder %s16, 0
    %p125 = por %p123, %p124
    %p126 = scmp.ne.s32.totalorder %s114, %s115
    %p127 = scmp.eq.s32.totalorder %s17, 3
    %p128 = por %p126, %p127
    %p130 = scmp.ne.s32.totalorder %s115, %s129
    %p131 = scmp.eq.s32.totalorder %s17, 0
    %p132 = por %p130, %p131
    %s134 = sadd.s32 %s133, 1
    %p137 = scmp.eq.s32.totalorder %s11, 3
    %p138 = scmp.ne.s32.totalorder %s133, %s135
    %p139 = scmp.eq.s32.totalorder %s11, 0
    %p140 = por %p138, %p139
    %p141 = scmp.ne.s32.totalorder %s133, %s135
    %p142 = scmp.eq.s32.totalorder %s16, 3
    %p143 = por %p141, %p142
    %p144 = scmp.ne.s32.totalorder %s135, %s136
    %p145 = scmp.eq.s32.totalorder %s16, 0
    %p146 = por %p144, %p145
    %p147 = scmp.ne.s32.totalorder %s135, %s136
    %p148 = scmp.eq.s32.totalorder %s17, 3
    %p149 = por %p147, %p148
    %p151 = scmp.ne.s32.totalorder %s136, %s150
    %p152 = scmp.eq.s32.totalorder %s17, 0
    %p153 = por %p151, %p152
    %s154 = ssub.s32 %s18, %s30
    %s155 = ssub.s32 %s19, %s26
    %s156 = sor.u32 %s154, %s155
    %p157 = scmp.eq.s32.totalorder %s156, 0
    %s159 = sadd.s32 %s158, 1
    %s160 = scalar_select %p157, %s158, %s159
    %p163 = pneg %p157
    %p164 = scmp.eq.s32.totalorder %s11, 3
    %p165 = por %p163, %p164
    %p166 = scmp.ne.s32.totalorder %s158, %s161
    %p167 = scmp.eq.s32.totalorder %s11, 0
    %p168 = por %p166, %p167
    %p169 = scmp.ne.s32.totalorder %s158, %s161
    %p170 = scmp.eq.s32.totalorder %s16, 3
    %p171 = por %p169, %p170
    %p172 = scmp.ne.s32.totalorder %s161, %s162
    %p173 = scmp.eq.s32.totalorder %s16, 0
    %p174 = por %p172, %p173
    %p175 = scmp.ne.s32.totalorder %s161, %s162
    %p176 = scmp.eq.s32.totalorder %s17, 3
    %p177 = por %p175, %p176
    %p179 = scmp.ne.s32.totalorder %s162, %s178
    %p180 = scmp.eq.s32.totalorder %s17, 0
    %p181 = por %p179, %p180
    %p182 = scmp.le.s32.totalorder 1, %s11
    %p183 = scmp.lt.s32.totalorder %s11, 5
    %p184 = pnand %p182, %p183
    %p185 = pneg %p184
    // Predicated region
    $region9: #{up_forward.5} parent=5 // pred_check
      _
    $region10: #{up_forward.5} parent=5 // pred_check_branch
      %187 = sbr.rel (%p184) target = $region12
    $region11: #{up_forward.5} parent=5 // pred_region
      %s188 = ssub.s32 %s11, 1
      // Predicated region
      $region13: #{up_forward.5} parent=11 // pred_check
        %p189 = pneg %p104
      $region14: #{up_forward.5} parent=11 // pred_check_branch
        %191 = sbr.rel (%p189) target = $region16
      $region15: #{up_forward.5} parent=11 // pred_region
        _
      $region16: #{up_forward.5} parent=11 // pred_fallthru
        _
      // Predicated region
      $region17: #{up_forward.5} parent=11 // pred_check
        %p192 = pneg %p125
      $region18: #{up_forward.5} parent=11 // pred_check_branch
        %194 = sbr.rel (%p192) target = $region20
      $region19: #{up_forward.5} parent=11 // pred_region
        _
      $region20: #{up_forward.5} parent=11 // pred_fallthru
        _
      // Predicated region
      $region21: #{up_forward.5} parent=11 // pred_check
        %p195 = pneg %p146
      $region22: #{up_forward.5} parent=11 // pred_check_branch
        %197 = sbr.rel (%p195) target = $region24
      $region23: #{up_forward.5} parent=11 // pred_region
        _
      $region24: #{up_forward.5} parent=11 // pred_fallthru
        _
    $region12: #{up_forward.5} parent=5 // pred_fallthru
      _
    %p198 = scmp.lt.s32.totalorder %s11, 4
    // Predicated region
    $region25: #{up_forward.5} parent=5 // pred_check
      %p199 = pneg %p198
    $region26: #{up_forward.5} parent=5 // pred_check_branch
      %201 = sbr.rel (%p199) target = $region28
    $region27: #{up_forward.5} parent=5 // pred_region
      // Predicated region
      $region29: #{up_forward.5} parent=27 // pred_check
        %p202 = pneg %p45
      $region30: #{up_forward.5} parent=27 // pred_check_branch
        %204 = sbr.rel (%p202) target = $region32
      $region31: #{up_forward.5} parent=27 // pred_region
        %s205 = smul.u32 16, %s19
        %s206 = ssub.s32 34, %s205
        %p207 = scmp.lt.s32.totalorder %s206, 16
        %s208 = scalar_select %p207, %s206, 16
        %s209 = smul.u32 64, %s208
        %s210 = smul.u32 %s209, 3
        %p211 = scmp.lt.s32.totalorder %s18, 1
        %s212 = scalar_select %p211, %s18, 1
        %p213 = scmp.lt.s32.totalorder %s205, 33
        %s214 = scalar_select %p213, %s205, 33
        %s215 = smul.addr %s214, 3
        %s216 = smul.addr %s212, 102
        %s217 = sadd.s32 %s215, %s216
        %s218 = smul.addr %s217, 4
        %s219 = scalar_lea.vmem %s0, %s218
        %s220 = smul.u32 16, %s19
        %s221 = ssub.s32 34, %s220
        %p222 = scmp.lt.s32.totalorder %s221, 16
        %s223 = scalar_select %p222, %s221, 16
        %s224 = smul.u32 64, %s223
        %s225 = smul.u32 %s224, 3
      $region32: #{up_forward.5} parent=27 // pred_fallthru
        _
      // Predicated region
      $region33: #{up_forward.5} parent=27 // pred_check
        %p226 = pneg %p77
      $region34: #{up_forward.5} parent=27 // pred_check_branch
        %228 = sbr.rel (%p226) target = $region36
      $region35: #{up_forward.5} parent=27 // pred_region
        %s229 = sadd.s32 %s19, 1
        %s230 = smul.u32 %s229, 8
        %s231 = smul.u32 2, %s230
        %p232 = scmp.lt.s32.totalorder %s18, 1
        %s233 = scalar_select %p232, %s18, 1
        %p234 = scmp.lt.s32.totalorder %s231, 33
        %s235 = scalar_select %p234, %s231, 33
        %s236 = smul.addr %s235, 3
        %s237 = smul.addr %s233, 102
        %s238 = sadd.s32 %s236, %s237
        %s239 = smul.addr %s238, 4
        %s240 = scalar_lea.vmem %s1, %s239
        %s241 = sadd.s32 %s19, 1
        %s242 = smul.u32 %s241, 8
        %s243 = smul.u32 2, %s242
      $region36: #{up_forward.5} parent=27 // pred_fallthru
        _
    $region28: #{up_forward.5} parent=5 // pred_fallthru
      _
    %p244 = scmp.le.s32.totalorder 1, %s11
    %p245 = scmp.lt.s32.totalorder %s11, 5
    %p246 = pnand %p244, %p245
    %p247 = pneg %p246
    // Predicated region
    $region37: #{up_forward.5} parent=5 // pred_check
      _
    $region38: #{up_forward.5} parent=5 // pred_check_branch
      %249 = sbr.rel (%p246) target = $region40
    $region39: #{up_forward.5} parent=5 // pred_region
      %s250 = ssub.s32 %s11, 1
      %s251 = smul.u32 16, %s21
      %s252 = ssub.s32 34, %s251
      %p253 = scmp.lt.s32.totalorder %s252, 16
      %s254 = scalar_select %p253, %s252, 16
      %s255 = smul.u32 64, %s254
      %s256 = smul.u32 %s255, 3
      %p257 = scmp.lt.s32.totalorder %s20, 1
      %s258 = scalar_select %p257, %s20, 1
      %p259 = scmp.lt.s32.totalorder %s251, 33
      %s260 = scalar_select %p259, %s251, 33
      %s261 = smul.addr %s260, 3
      %s262 = smul.addr %s258, 102
      %s263 = sadd.s32 %s261, %s262
      %s264 = smul.addr %s263, 4
      %s265 = scalar_lea.vmem %s0, %s264
      %p266 = pneg %p51
      %p267 = pneg %p48
      %s268 = sadd.s32 %s21, 1
      %s269 = smul.u32 %s268, 8
      %s270 = smul.u32 2, %s269
      %p271 = scmp.lt.s32.totalorder %s20, 1
      %s272 = scalar_select %p271, %s20, 1
      %p273 = scmp.lt.s32.totalorder %s270, 33
      %s274 = scalar_select %p273, %s270, 33
      %s275 = smul.addr %s274, 3
      %s276 = smul.addr %s272, 102
      %s277 = sadd.s32 %s275, %s276
      %s278 = smul.addr %s277, 4
      %s279 = scalar_lea.vmem %s1, %s278
      %p280 = pneg %p83
      %p281 = pneg %p80
      %p282 = pneg %p104
      %p283 = pneg %p101
      %p284 = pneg %p125
      %p285 = pneg %p122
      %p286 = pneg %p146
      %p287 = pneg %p143
      %p288 = pneg %p174
      %p289 = pneg %p171
      %s290 = smul.u32 16, %s21
      %p291 = scmp.lt.s32.totalorder %s20, 1
      %s292 = scalar_select %p291, %s20, 1
      %p293 = scmp.lt.s32.totalorder %s290, 31
      %s294 = scalar_select %p293, %s290, 31
      %s295 = smul.addr %s294, 3
      %s296 = smul.addr %s292, 96
      %s297 = sadd.s32 %s295, %s296
      %s298 = smul.addr %s297, 8
      %s299 = scalar_lea.vmem %s5, %s298
      %s300 = smul.u32 16, %s21
      %s301 = ssub.s32 34, %s300
      %p302 = scmp.lt.s32.totalorder %s301, 16
      %s303 = scalar_select %p302, %s301, 16
      %s304 = smul.u32 64, %s303
      %s305 = smul.u32 %s304, 3
      %p306 = scmp.lt.s32.totalorder %s20, 1
      %s307 = scalar_select %p306, %s20, 1
      %p308 = scmp.lt.s32.totalorder %s300, 33
      %s309 = scalar_select %p308, %s300, 33
      %s310 = smul.addr %s309, 3
      %s311 = smul.addr %s307, 102
      %s312 = sadd.s32 %s310, %s311
      %s313 = smul.addr %s312, 4
      %s314 = scalar_lea.vmem %s0, %s313
      %s315 = smul.u32 16, %s21
      %s316 = ssub.s32 34, %s315
      %p317 = scmp.lt.s32.totalorder %s316, 16
      %s318 = scalar_select %p317, %s316, 16
      %s319 = smul.u32 64, %s318
      %s320 = smul.u32 %s319, 3
      %s321 = sadd.s32 %s21, 1
      %s322 = smul.u32 %s321, 8
      %s323 = smul.u32 2, %s322
      %p324 = scmp.lt.s32.totalorder %s20, 1
      %s325 = scalar_select %p324, %s20, 1
      %p326 = scmp.lt.s32.totalorder %s323, 33
      %s327 = scalar_select %p326, %s323, 33
      %s328 = smul.addr %s327, 3
      %s329 = smul.addr %s325, 102
      %s330 = sadd.s32 %s328, %s329
      %s331 = smul.addr %s330, 4
      %s332 = scalar_lea.vmem %s1, %s331
      %s333 = sadd.s32 %s21, 1
      %s334 = smul.u32 %s333, 8
      %s335 = smul.u32 2, %s334
      %s336 = smul.u32 16, %s21
      %p337 = scmp.lt.s32.totalorder %s20, 1
      %s338 = scalar_select %p337, %s20, 1
      %p339 = scmp.lt.s32.totalorder %s336, 31
      %s340 = scalar_select %p339, %s336, 31
      %s341 = smul.addr %s340, 3
      %s342 = smul.addr %s338, 96
      %s343 = sadd.s32 %s341, %s342
      %s344 = smul.addr %s343, 8
      %s345 = scalar_lea.vmem %s5, %s344
      %s346 = smul.u32 16, %s21
      %v348 = vld [vmem:[%s3] sm:$0x1]
      %v349 = vld [vmem:[%s4] sm:$0x1]
      %v350 = vld [vmem:[%s314] sm:$0xf]
      %v351 = vld [vmem:[%s314 + $0x4] sm:$0xf]
      %v352 = vld [vmem:[%s314 + $0x8] sm:$0xf]
      %v353 = vld [vmem:[%s314 + $0xc] sm:$0xf]
      %v354 = vld [vmem:[%s314 + $0x10] sm:$0xf]
      %v355 = vld [vmem:[%s314 + $0x14] sm:$0xf]
      %v356 = vld [vmem:[%s314 + $0x18] sm:$0xf]
      %v357 = vld [vmem:[%s314 + $0x1c] sm:$0xf]
      %v358 = vld [vmem:[%s314 + $0x20] sm:$0xf]
      %v359 = vld [vmem:[%s314 + $0x24] sm:$0xf]
      %v360 = vld [vmem:[%s314 + $0x28] sm:$0xf]
      %v361 = vld [vmem:[%s314 + $0x2c] sm:$0xf]
      %v362 = vld [vmem:[%s314 + $0x30] sm:$0xf]
      %v363 = vld [vmem:[%s314 + $0x34] sm:$0xf]
      %v364 = vld [vmem:[%s314 + $0x38] sm:$0xf]
      %v365 = vld [vmem:[%s314 + $0x3c] sm:$0xf]
      %v366 = vld [vmem:[%s314 + $0x40] sm:$0xf]
      %v367 = vld [vmem:[%s314 + $0x44] sm:$0xf]
      %v368 = vld [vmem:[%s314 + $0x48] sm:$0xf]
      %v369 = vld [vmem:[%s314 + $0x4c] sm:$0xf]
      %v370 = vld [vmem:[%s314 + $0x50] sm:$0xf]
      %v371 = vld [vmem:[%s314 + $0x54] sm:$0xf]
      %v372 = vld [vmem:[%s314 + $0x58] sm:$0xf]
      %v373 = vld [vmem:[%s314 + $0x5c] sm:$0xf]
      %v374 = vld [vmem:[%s314 + $0x60] sm:$0xf]
      %v375 = vld [vmem:[%s314 + $0x64] sm:$0xf]
      %v376 = vld [vmem:[%s314 + $0x68] sm:$0xf]
      %v377 = vld [vmem:[%s314 + $0x6c] sm:$0xf]
      %v378 = vld [vmem:[%s314 + $0x70] sm:$0xf]
      %v379 = vld [vmem:[%s314 + $0x74] sm:$0xf]
      %v380 = vld [vmem:[%s314 + $0x78] sm:$0xf]
      %v381 = vld [vmem:[%s314 + $0x7c] sm:$0xf]
      %v382 = vld [vmem:[%s314 + $0x80] sm:$0xf]
      %v383 = vld [vmem:[%s314 + $0x84] sm:$0xf]
      %v384 = vld [vmem:[%s314 + $0x88] sm:$0xf]
      %v385 = vld [vmem:[%s314 + $0x8c] sm:$0xf]
      %v386 = vld [vmem:[%s314 + $0x90] sm:$0xf]
      %v387 = vld [vmem:[%s314 + $0x94] sm:$0xf]
      %v388 = vld [vmem:[%s314 + $0x98] sm:$0xf]
      %v389 = vld [vmem:[%s314 + $0x9c] sm:$0xf]
      %v390 = vld [vmem:[%s314 + $0xa0] sm:$0xf]
      %v391 = vld [vmem:[%s314 + $0xa4] sm:$0xf]
      %v392 = vld [vmem:[%s314 + $0xa8] sm:$0xf]
      %v393 = vld [vmem:[%s314 + $0xac] sm:$0xf]
      %v394 = vld [vmem:[%s314 + $0xb0] sm:$0xf]
      %v395 = vld [vmem:[%s314 + $0xb4] sm:$0xf]
      %v396 = vld [vmem:[%s314 + $0xb8] sm:$0xf]
      %v397 = vld [vmem:[%s314 + $0xbc] sm:$0xf]
      %v398 = vld [vmem:[%s332] sm:$0xf]
      %v399 = vld [vmem:[%s332 + $0x4] sm:$0xf]
      %v400 = vld [vmem:[%s332 + $0x8] sm:$0xf]
      %v401 = vld [vmem:[%s332 + $0xc] sm:$0xf]
      %v402 = vld [vmem:[%s332 + $0x10] sm:$0xf]
      %v403 = vld [vmem:[%s332 + $0x14] sm:$0xf]
      %v452 = vunpack.c.l.b16 %v350
      %v453 = vunpack.c.l.b16 %v351
      %v454 = vunpack.c.l.b16 %v352
      %v455 = vunpack.c.l.b16 %v353
      %v456 = vunpack.c.l.b16 %v354
      %v457 = vunpack.c.l.b16 %v355
      %v458 = vunpack.c.l.b16 %v356
      %v459 = vunpack.c.l.b16 %v357
      %v460 = vunpack.c.l.b16 %v358
      %v461 = vunpack.c.l.b16 %v359
      %v462 = vunpack.c.l.b16 %v360
      %v463 = vunpack.c.l.b16 %v361
      %v464 = vunpack.c.l.b16 %v362
      %v465 = vunpack.c.l.b16 %v363
      %v466 = vunpack.c.l.b16 %v364
      %v467 = vunpack.c.l.b16 %v365
      %v468 = vunpack.c.l.b16 %v366
      %v469 = vunpack.c.l.b16 %v367
      %v470 = vunpack.c.l.b16 %v368
      %v471 = vunpack.c.l.b16 %v369
      %v472 = vunpack.c.l.b16 %v370
      %v473 = vunpack.c.l.b16 %v371
      %v474 = vunpack.c.l.b16 %v372
      %v475 = vunpack.c.l.b16 %v373
      %v476 = vunpack.c.l.b16 %v374
      %v477 = vunpack.c.l.b16 %v375
      %v478 = vunpack.c.l.b16 %v376
      %v479 = vunpack.c.l.b16 %v377
      %v480 = vunpack.c.l.b16 %v378
      %v481 = vunpack.c.l.b16 %v379
      %v482 = vunpack.c.l.b16 %v380
      %v483 = vunpack.c.l.b16 %v381
      %v484 = vunpack.c.l.b16 %v382
      %v485 = vunpack.c.l.b16 %v383
      %v486 = vunpack.c.l.b16 %v384
      %v487 = vunpack.c.l.b16 %v385
      %v488 = vunpack.c.l.b16 %v386
      %v489 = vunpack.c.l.b16 %v387
      %v490 = vunpack.c.l.b16 %v388
      %v491 = vunpack.c.l.b16 %v389
      %v492 = vunpack.c.l.b16 %v390
      %v493 = vunpack.c.l.b16 %v391
      %v494 = vunpack.c.l.b16 %v392
      %v495 = vunpack.c.l.b16 %v393
      %v496 = vunpack.c.l.b16 %v394
      %v497 = vunpack.c.l.b16 %v395
      %v498 = vunpack.c.l.b16 %v396
      %v499 = vunpack.c.l.b16 %v397
      %v500 = vpack.c.b16 %v453, %v452
      %v501 = vpack.c.b16 %v455, %v454
      %v502 = vpack.c.b16 %v457, %v456
      %v503 = vpack.c.b16 %v459, %v458
      %v504 = vpack.c.b16 %v461, %v460
      %v505 = vpack.c.b16 %v463, %v462
      %v506 = vpack.c.b16 %v465, %v464
      %v507 = vpack.c.b16 %v467, %v466
      %v508 = vpack.c.b16 %v469, %v468
      %v509 = vpack.c.b16 %v471, %v470
      %v510 = vpack.c.b16 %v473, %v472
      %v511 = vpack.c.b16 %v475, %v474
      %v512 = vpack.c.b16 %v477, %v476
      %v513 = vpack.c.b16 %v479, %v478
      %v514 = vpack.c.b16 %v481, %v480
      %v515 = vpack.c.b16 %v483, %v482
      %v516 = vpack.c.b16 %v485, %v484
      %v517 = vpack.c.b16 %v487, %v486
      %v518 = vpack.c.b16 %v489, %v488
      %v519 = vpack.c.b16 %v491, %v490
      %v520 = vpack.c.b16 %v493, %v492
      %v521 = vpack.c.b16 %v495, %v494
      %v522 = vpack.c.b16 %v497, %v496
      %v523 = vpack.c.b16 %v499, %v498
      %v554 = vunpack.c.l.b16 %v398
      %v555 = vunpack.c.l.b16 %v399
      %v556 = vunpack.c.l.b16 %v400
      %v557 = vunpack.c.l.b16 %v401
      %v558 = vunpack.c.l.b16 %v402
      %v559 = vunpack.c.l.b16 %v403
      %v560 = vpack.c.b16 %v555, %v554
      %v561 = vpack.c.b16 %v557, %v556
      %v562 = vpack.c.b16 %v559, %v558
      %vm566 = vcmask 1043456
      %v567 = vrot.slane %v501, 4
      %v568 = vrot.slane %v502, 4
      %v569 = vsel %vm566, %v567, %v568
      %v570 = vrot.slane %v503, 4
      %v571 = vsel %vm566, %v568, %v570
      %v572 = vrot.slane %v504, 4
      %v573 = vsel %vm566, %v570, %v572
      %v574 = vrot.slane %v505, 4
      %v575 = vsel %vm566, %v572, %v574
      %v576 = vrot.slane %v506, 4
      %v577 = vsel %vm566, %v574, %v576
      %v578 = vrot.slane %v507, 4
      %v579 = vsel %vm566, %v576, %v578
      %v580 = vrot.slane %v508, 4
      %v581 = vsel %vm566, %v578, %v580
      %v582 = vrot.slane %v509, 4
      %v583 = vsel %vm566, %v580, %v582
      %v584 = vrot.slane %v510, 4
      %v585 = vsel %vm566, %v582, %v584
      %v586 = vrot.slane %v511, 4
      %v587 = vsel %vm566, %v584, %v586
      %v588 = vrot.slane %v512, 4
      %v589 = vsel %vm566, %v586, %v588
      %v590 = vrot.slane %v513, 4
      %v591 = vsel %vm566, %v588, %v590
      %v592 = vrot.slane %v514, 4
      %v593 = vsel %vm566, %v590, %v592
      %v594 = vrot.slane %v515, 4
      %v595 = vsel %vm566, %v592, %v594
      %v596 = vrot.slane %v516, 4
      %v597 = vsel %vm566, %v594, %v596
      %v598 = vrot.slane %v517, 4
      %v599 = vsel %vm566, %v596, %v598
      %v600 = vrot.slane %v518, 4
      %v601 = vsel %vm566, %v598, %v600
      %v602 = vrot.slane %v519, 4
      %v603 = vsel %vm566, %v600, %v602
      %v604 = vrot.slane %v520, 4
      %v605 = vsel %vm566, %v602, %v604
      %v606 = vrot.slane %v521, 4
      %v607 = vsel %vm566, %v604, %v606
      %v608 = vrot.slane %v522, 4
      %v609 = vsel %vm566, %v606, %v608
      %v610 = vrot.slane %v523, 4
      %v611 = vsel %vm566, %v608, %v610
      %v612 = vrot.slane %v560, 4
      %v613 = vsel %vm566, %v610, %v612
      %v614 = vrot.slane %v561, 4
      %v615 = vsel %vm566, %v612, %v614
      %v640 = vld [vmem:[%s2] sm:$0xf]
      %v641 = vld [vmem:[%s2 + $0x4] sm:$0xf]
      %v642 = vld [vmem:[%s2 + $0x8] sm:$0xf]
      %v643 = vld [vmem:[%s2 + $0xc] sm:$0xf]
      %v644 = vld [vmem:[%s2 + $0x10] sm:$0xf]
      %v645 = vld [vmem:[%s2 + $0x14] sm:$0xf]
      %v646 = vld [vmem:[%s2 + $0x18] sm:$0xf]
      %v647 = vld [vmem:[%s2 + $0x1c] sm:$0xf]
      %v648 = vld [vmem:[%s2 + $0x20] sm:$0xf]
      %v649 = vld [vmem:[%s2 + $0x24] sm:$0xf]
      %v650 = vld [vmem:[%s2 + $0x28] sm:$0xf]
      %v651 = vld [vmem:[%s2 + $0x2c] sm:$0xf]
      %v652 = vld [vmem:[%s2 + $0x30] sm:$0xf]
      %v653 = vld [vmem:[%s2 + $0x34] sm:$0xf]
      %v654 = vld [vmem:[%s2 + $0x38] sm:$0xf]
      %v655 = vld [vmem:[%s2 + $0x3c] sm:$0xf]
      %s656 = scalar_lea.vmem %s2, 192
      %v657 = vld [vmem:[%s656] sm:$0xf]
      %v658 = vld [vmem:[%s656 + $0x4] sm:$0xf]
      %v659 = vld [vmem:[%s656 + $0x8] sm:$0xf]
      %v660 = vld [vmem:[%s656 + $0xc] sm:$0xf]
      %v661 = vld [vmem:[%s656 + $0x10] sm:$0xf]
      %v662 = vld [vmem:[%s656 + $0x14] sm:$0xf]
      %v663 = vld [vmem:[%s656 + $0x18] sm:$0xf]
      %v664 = vld [vmem:[%s656 + $0x1c] sm:$0xf]
      %v665 = vld [vmem:[%s656 + $0x20] sm:$0xf]
      %v666 = vld [vmem:[%s656 + $0x24] sm:$0xf]
      %v667 = vld [vmem:[%s656 + $0x28] sm:$0xf]
      %v668 = vld [vmem:[%s656 + $0x2c] sm:$0xf]
      %v669 = vld [vmem:[%s656 + $0x30] sm:$0xf]
      %v670 = vld [vmem:[%s656 + $0x34] sm:$0xf]
      %v671 = vld [vmem:[%s656 + $0x38] sm:$0xf]
      %v672 = vld [vmem:[%s656 + $0x3c] sm:$0xf]
      %s673 = scalar_lea.vmem %s2, 384
      %v674 = vld [vmem:[%s673] sm:$0xf]
      %v675 = vld [vmem:[%s673 + $0x4] sm:$0xf]
      %v676 = vld [vmem:[%s673 + $0x8] sm:$0xf]
      %v677 = vld [vmem:[%s673 + $0xc] sm:$0xf]
      %v678 = vld [vmem:[%s673 + $0x10] sm:$0xf]
      %v679 = vld [vmem:[%s673 + $0x14] sm:$0xf]
      %v680 = vld [vmem:[%s673 + $0x18] sm:$0xf]
      %v681 = vld [vmem:[%s673 + $0x1c] sm:$0xf]
      %v682 = vld [vmem:[%s673 + $0x20] sm:$0xf]
      %v683 = vld [vmem:[%s673 + $0x24] sm:$0xf]
      %v684 = vld [vmem:[%s673 + $0x28] sm:$0xf]
      %v685 = vld [vmem:[%s673 + $0x2c] sm:$0xf]
      %v686 = vld [vmem:[%s673 + $0x30] sm:$0xf]
      %v687 = vld [vmem:[%s673 + $0x34] sm:$0xf]
      %v688 = vld [vmem:[%s673 + $0x38] sm:$0xf]
      %v689 = vld [vmem:[%s673 + $0x3c] sm:$0xf]
      %v706 = vunpack.c.l.b16 %v640
      %v707 = vunpack.c.l.b16 %v641
      %v708 = vunpack.c.l.b16 %v642
      %v709 = vunpack.c.l.b16 %v643
      %v710 = vunpack.c.l.b16 %v644
      %v711 = vunpack.c.l.b16 %v645
      %v712 = vunpack.c.l.b16 %v646
      %v713 = vunpack.c.l.b16 %v647
      %v714 = vunpack.c.l.b16 %v648
      %v715 = vunpack.c.l.b16 %v649
      %v716 = vunpack.c.l.b16 %v650
      %v717 = vunpack.c.l.b16 %v651
      %v718 = vunpack.c.l.b16 %v652
      %v719 = vunpack.c.l.b16 %v653
      %v720 = vunpack.c.l.b16 %v654
      %v721 = vunpack.c.l.b16 %v655
      %v722 = vpack.c.b16 %v707, %v706
      %v723 = vpack.c.b16 %v709, %v708
      %v724 = vpack.c.b16 %v711, %v710
      %v725 = vpack.c.b16 %v713, %v712
      %v726 = vpack.c.b16 %v715, %v714
      %v727 = vpack.c.b16 %v717, %v716
      %v728 = vpack.c.b16 %v719, %v718
      %v729 = vpack.c.b16 %v721, %v720
      %v754 = vunpack.c.l.b16 %v657
      %v755 = vunpack.c.l.b16 %v658
      %v756 = vunpack.c.l.b16 %v659
      %v757 = vunpack.c.l.b16 %v660
      %v758 = vunpack.c.l.b16 %v661
      %v759 = vunpack.c.l.b16 %v662
      %v760 = vunpack.c.l.b16 %v663
      %v761 = vunpack.c.l.b16 %v664
      %v762 = vunpack.c.l.b16 %v665
      %v763 = vunpack.c.l.b16 %v666
      %v764 = vunpack.c.l.b16 %v667
      %v765 = vunpack.c.l.b16 %v668
      %v766 = vunpack.c.l.b16 %v669
      %v767 = vunpack.c.l.b16 %v670
      %v768 = vunpack.c.l.b16 %v671
      %v769 = vunpack.c.l.b16 %v672
      %v770 = vpack.c.b16 %v755, %v754
      %v771 = vpack.c.b16 %v757, %v756
      %v772 = vpack.c.b16 %v759, %v758
      %v773 = vpack.c.b16 %v761, %v760
      %v774 = vpack.c.b16 %v763, %v762
      %v775 = vpack.c.b16 %v765, %v764
      %v776 = vpack.c.b16 %v767, %v766
      %v777 = vpack.c.b16 %v769, %v768
      %v802 = vunpack.c.l.b16 %v674
      %v803 = vunpack.c.l.b16 %v675
      %v804 = vunpack.c.l.b16 %v676
      %v805 = vunpack.c.l.b16 %v677
      %v806 = vunpack.c.l.b16 %v678
      %v807 = vunpack.c.l.b16 %v679
      %v808 = vunpack.c.l.b16 %v680
      %v809 = vunpack.c.l.b16 %v681
      %v810 = vunpack.c.l.b16 %v682
      %v811 = vunpack.c.l.b16 %v683
      %v812 = vunpack.c.l.b16 %v684
      %v813 = vunpack.c.l.b16 %v685
      %v814 = vunpack.c.l.b16 %v686
      %v815 = vunpack.c.l.b16 %v687
      %v816 = vunpack.c.l.b16 %v688
      %v817 = vunpack.c.l.b16 %v689
      %v818 = vpack.c.b16 %v803, %v802
      %v819 = vpack.c.b16 %v805, %v804
      %v820 = vpack.c.b16 %v807, %v806
      %v821 = vpack.c.b16 %v809, %v808
      %v822 = vpack.c.b16 %v811, %v810
      %v823 = vpack.c.b16 %v813, %v812
      %v824 = vpack.c.b16 %v815, %v814
      %v825 = vpack.c.b16 %v817, %v816
      %834 = vmatprep.subr.bf16.mxu0 0
      %835 = vmatpush1.bf16.msra.mxu0 %v722
      %836 = vmatprep.subr.bf16.mxu0 0
      %837 = vmatpush1.bf16.msra.mxu0 %v723
      %838 = vmatprep.subr.bf16.mxu0 0
      %839 = vmatpush1.bf16.msra.mxu0 %v724
      %840 = vmatprep.subr.bf16.mxu0 0
      %841 = vmatpush1.bf16.msra.mxu0 %v725
      %842 = vmatprep.subr.bf16.mxu0 0
      %843 = vmatpush1.bf16.msra.mxu0 %v726
      %844 = vmatprep.subr.bf16.mxu0 0
      %845 = vmatpush1.bf16.msra.mxu0 %v727
      %846 = vmatprep.subr.bf16.mxu0 0
      %847 = vmatpush1.bf16.msra.mxu0 %v728
      %848 = vmatprep.subr.bf16.mxu0 0
      %849 = vmatpush1.bf16.msra.mxu0 %v729
      %850 = vmatprep.subr.bf16.mxu0 0
      %851 = vmatpush1.bf16.msra.mxu0 %v770
      %852 = vmatprep.subr.bf16.mxu0 0
      %853 = vmatpush1.bf16.msra.mxu0 %v771
      %854 = vmatprep.subr.bf16.mxu0 0
      %855 = vmatpush1.bf16.msra.mxu0 %v772
      %856 = vmatprep.subr.bf16.mxu0 0
      %857 = vmatpush1.bf16.msra.mxu0 %v773
      %858 = vmatprep.subr.bf16.mxu0 0
      %859 = vmatpush1.bf16.msra.mxu0 %v774
      %860 = vmatprep.subr.bf16.mxu0 0
      %861 = vmatpush1.bf16.msra.mxu0 %v775
      %862 = vmatprep.subr.bf16.mxu0 0
      %863 = vmatpush1.bf16.msra.mxu0 %v776
      %864 = vmatprep.subr.bf16.mxu0 0
      %865 = vmatpush1.bf16.msra.mxu0 %v777
      %866 = vmatprep.mubr.bf16.mxu0 %v569
      %867 = vmatmul.mubr.bf16.gmra.mrb[0].mxu0 %v500
      %v868 = vpop.f32.mrb[0].mxu0
      %v869 = vadd.f32 0.0, %v868
      %v870 = vpop.f32.mrb[0].mxu0
      %v871 = vpop.f32.mrb[0].mxu0
      %v872 = vadd.f32 0.0, %v871
      %v873 = vpop.f32.mrb[0].mxu0
      %874 = vmatprep.mubr.bf16.mxu0 %v571
      %875 = vmatmul.mubr.bf16.gmra.mrb[0].mxu0 %v501
      %v876 = vpop.f32.mrb[0].mxu0
      %v877 = vadd.f32 0.0, %v876
      %v878 = vpop.f32.mrb[0].mxu0
      %v879 = vpop.f32.mrb[0].mxu0
      %v880 = vadd.f32 0.0, %v879
      %v881 = vpop.f32.mrb[0].mxu0
      %882 = vmatprep.mubr.bf16.mxu0 %v573
      %883 = vmatmul.mubr.bf16.gmra.mrb[0].mxu0 %v502
      %v884 = vpop.f32.mrb[0].mxu0
      %v885 = vadd.f32 0.0, %v884
      %v886 = vpop.f32.mrb[0].mxu0
      %v887 = vpop.f32.mrb[0].mxu0
      %v888 = vadd.f32 0.0, %v887
      %v889 = vpop.f32.mrb[0].mxu0
      %890 = vmatprep.mubr.bf16.mxu0 %v575
      %891 = vmatmul.mubr.bf16.gmra.mrb[0].mxu0 %v503
      %v892 = vpop.f32.mrb[0].mxu0
      %v893 = vadd.f32 0.0, %v892
      %v894 = vpop.f32.mrb[0].mxu0
      %v895 = vpop.f32.mrb[0].mxu0
      %v896 = vadd.f32 0.0, %v895
      %v897 = vpop.f32.mrb[0].mxu0
      %898 = vmatprep.mubr.bf16.mxu0 %v577
      %899 = vmatmul.mubr.bf16.gmra.mrb[0].mxu0 %v504
      %v900 = vpop.f32.mrb[0].mxu0
      %v901 = vadd.f32 0.0, %v900
      %v902 = vpop.f32.mrb[0].mxu0
      %v903 = vpop.f32.mrb[0].mxu0
      %v904 = vadd.f32 0.0, %v903
      %v905 = vpop.f32.mrb[0].mxu0
      %906 = vmatprep.mubr.bf16.mxu0 %v579
      %907 = vmatmul.mubr.bf16.gmra.mrb[0].mxu0 %v505
      %v908 = vpop.f32.mrb[0].mxu0
      %v909 = vadd.f32 0.0, %v908
      %v910 = vpop.f32.mrb[0].mxu0
      %v911 = vpop.f32.mrb[0].mxu0
      %v912 = vadd.f32 0.0, %v911
      %v913 = vpop.f32.mrb[0].mxu0
      %914 = vmatprep.mubr.bf16.mxu0 %v581
      %915 = vmatmul.mubr.bf16.gmra.mrb[0].mxu0 %v506
      %v916 = vpop.f32.mrb[0].mxu0
      %v917 = vadd.f32 0.0, %v916
      %v918 = vpop.f32.mrb[0].mxu0
      %v919 = vpop.f32.mrb[0].mxu0
      %v920 = vadd.f32 0.0, %v919
      %v921 = vpop.f32.mrb[0].mxu0
      %922 = vmatprep.mubr.bf16.mxu0 %v583
      %923 = vmatmul.mubr.bf16.gmra.mrb[0].mxu0 %v507
      %v924 = vpop.f32.mrb[0].mxu0
      %v925 = vadd.f32 0.0, %v924
      %v926 = vpop.f32.mrb[0].mxu0
      %v927 = vpop.f32.mrb[0].mxu0
      %v928 = vadd.f32 0.0, %v927
      %v929 = vpop.f32.mrb[0].mxu0
      %930 = vmatprep.mubr.bf16.mxu0 %v585
      %931 = vmatmul.mubr.bf16.gmra.mrb[0].mxu0 %v508
      %v932 = vpop.f32.mrb[0].mxu0
      %v933 = vadd.f32 0.0, %v932
      %v934 = vpop.f32.mrb[0].mxu0
      %v935 = vpop.f32.mrb[0].mxu0
      %v936 = vadd.f32 0.0, %v935
      %v937 = vpop.f32.mrb[0].mxu0
      %938 = vmatprep.mubr.bf16.mxu0 %v587
      %939 = vmatmul.mubr.bf16.gmra.mrb[0].mxu0 %v509
      %v940 = vpop.f32.mrb[0].mxu0
      %v941 = vadd.f32 0.0, %v940
      %v942 = vpop.f32.mrb[0].mxu0
      %v943 = vpop.f32.mrb[0].mxu0
      %v944 = vadd.f32 0.0, %v943
      %v945 = vpop.f32.mrb[0].mxu0
      %946 = vmatprep.mubr.bf16.mxu0 %v589
      %947 = vmatmul.mubr.bf16.gmra.mrb[0].mxu0 %v510
      %v948 = vpop.f32.mrb[0].mxu0
      %v949 = vadd.f32 0.0, %v948
      %v950 = vpop.f32.mrb[0].mxu0
      %v951 = vpop.f32.mrb[0].mxu0
      %v952 = vadd.f32 0.0, %v951
      %v953 = vpop.f32.mrb[0].mxu0
      %954 = vmatprep.mubr.bf16.mxu0 %v591
      %955 = vmatmul.mubr.bf16.gmra.mrb[0].mxu0 %v511
      %v956 = vpop.f32.mrb[0].mxu0
      %v957 = vadd.f32 0.0, %v956
      %v958 = vpop.f32.mrb[0].mxu0
      %v959 = vpop.f32.mrb[0].mxu0
      %v960 = vadd.f32 0.0, %v959
      %v961 = vpop.f32.mrb[0].mxu0
      %962 = vmatprep.mubr.bf16.mxu0 %v593
      %963 = vmatmul.mubr.bf16.gmra.mrb[0].mxu0 %v512
      %v964 = vpop.f32.mrb[0].mxu0
      %v965 = vadd.f32 0.0, %v964
      %v966 = vpop.f32.mrb[0].mxu0
      %v967 = vpop.f32.mrb[0].mxu0
      %v968 = vadd.f32 0.0, %v967
      %v969 = vpop.f32.mrb[0].mxu0
      %970 = vmatprep.mubr.bf16.mxu0 %v595
      %971 = vmatmul.mubr.bf16.gmra.mrb[0].mxu0 %v513
      %v972 = vpop.f32.mrb[0].mxu0
      %v973 = vadd.f32 0.0, %v972
      %v974 = vpop.f32.mrb[0].mxu0
      %v975 = vpop.f32.mrb[0].mxu0
      %v976 = vadd.f32 0.0, %v975
      %v977 = vpop.f32.mrb[0].mxu0
      %978 = vmatprep.mubr.bf16.mxu0 %v597
      %979 = vmatmul.mubr.bf16.gmra.mrb[0].mxu0 %v514
      %v980 = vpop.f32.mrb[0].mxu0
      %v981 = vadd.f32 0.0, %v980
      %v982 = vpop.f32.mrb[0].mxu0
      %v983 = vpop.f32.mrb[0].mxu0
      %v984 = vadd.f32 0.0, %v983
      %v985 = vpop.f32.mrb[0].mxu0
      %986 = vmatprep.mubr.bf16.mxu0 %v599
      %987 = vmatmul.mubr.bf16.gmra.mrb[0].mxu0 %v515
      %v988 = vpop.f32.mrb[0].mxu0
      %v989 = vadd.f32 0.0, %v988
      %v990 = vpop.f32.mrb[0].mxu0
      %v991 = vpop.f32.mrb[0].mxu0
      %v992 = vadd.f32 0.0, %v991
      %v993 = vpop.f32.mrb[0].mxu0
      %994 = vmatprep.mubr.bf16.mxu0 %v601
      %995 = vmatmul.mubr.bf16.gmra.mrb[0].mxu0 %v516
      %v996 = vpop.f32.mrb[0].mxu0
      %v997 = vadd.f32 0.0, %v996
      %v998 = vpop.f32.mrb[0].mxu0
      %v999 = vpop.f32.mrb[0].mxu0
      %v1000 = vadd.f32 0.0, %v999
      %v1001 = vpop.f32.mrb[0].mxu0
      %1002 = vmatprep.mubr.bf16.mxu0 %v603
      %1003 = vmatmul.mubr.bf16.gmra.mrb[0].mxu0 %v517
      %v1004 = vpop.f32.mrb[0].mxu0
      %v1005 = vadd.f32 0.0, %v1004
      %v1006 = vpop.f32.mrb[0].mxu0
      %v1007 = vpop.f32.mrb[0].mxu0
      %v1008 = vadd.f32 0.0, %v1007
      %v1009 = vpop.f32.mrb[0].mxu0
      %1010 = vmatprep.mubr.bf16.mxu0 %v605
      %1011 = vmatmul.mubr.bf16.gmra.mrb[0].mxu0 %v518
      %v1012 = vpop.f32.mrb[0].mxu0
      %v1013 = vadd.f32 0.0, %v1012
      %v1014 = vpop.f32.mrb[0].mxu0
      %v1015 = vpop.f32.mrb[0].mxu0
      %v1016 = vadd.f32 0.0, %v1015
      %v1017 = vpop.f32.mrb[0].mxu0
      %1018 = vmatprep.mubr.bf16.mxu0 %v607
      %1019 = vmatmul.mubr.bf16.gmra.mrb[0].mxu0 %v519
      %v1020 = vpop.f32.mrb[0].mxu0
      %v1021 = vadd.f32 0.0, %v1020
      %v1022 = vpop.f32.mrb[0].mxu0
      %v1023 = vpop.f32.mrb[0].mxu0
      %v1024 = vadd.f32 0.0, %v1023
      %v1025 = vpop.f32.mrb[0].mxu0
      %1026 = vmatprep.mubr.bf16.mxu0 %v609
      %1027 = vmatmul.mubr.bf16.gmra.mrb[0].mxu0 %v520
      %v1028 = vpop.f32.mrb[0].mxu0
      %v1029 = vadd.f32 0.0, %v1028
      %v1030 = vpop.f32.mrb[0].mxu0
      %v1031 = vpop.f32.mrb[0].mxu0
      %v1032 = vadd.f32 0.0, %v1031
      %v1033 = vpop.f32.mrb[0].mxu0
      %1034 = vmatprep.mubr.bf16.mxu0 %v611
      %1035 = vmatmul.mubr.bf16.gmra.mrb[0].mxu0 %v521
      %v1036 = vpop.f32.mrb[0].mxu0
      %v1037 = vadd.f32 0.0, %v1036
      %v1038 = vpop.f32.mrb[0].mxu0
      %v1039 = vpop.f32.mrb[0].mxu0
      %v1040 = vadd.f32 0.0, %v1039
      %v1041 = vpop.f32.mrb[0].mxu0
      %1042 = vmatprep.mubr.bf16.mxu0 %v613
      %1043 = vmatmul.mubr.bf16.gmra.mrb[0].mxu0 %v522
      %v1044 = vpop.f32.mrb[0].mxu0
      %v1045 = vadd.f32 0.0, %v1044
      %v1046 = vpop.f32.mrb[0].mxu0
      %v1047 = vpop.f32.mrb[0].mxu0
      %v1048 = vadd.f32 0.0, %v1047
      %v1049 = vpop.f32.mrb[0].mxu0
      %1050 = vmatprep.mubr.bf16.mxu0 %v615
      %1051 = vmatmul.mubr.bf16.gmra.mrb[0].mxu0 %v523
      %v1052 = vpop.f32.mrb[0].mxu0
      %v1053 = vadd.f32 0.0, %v1052
      %v1054 = vpop.f32.mrb[0].mxu0
      %v1055 = vpop.f32.mrb[0].mxu0
      %v1056 = vadd.f32 0.0, %v1055
      %v1057 = vpop.f32.mrb[0].mxu0
      %1058 = vdwg.mxu0
      %1059 = vmatprep.subr.bf16.mxu0 0
      %1060 = vmatpush1.bf16.msra.mxu0 %v818
      %1061 = vmatprep.subr.bf16.mxu0 0
      %1062 = vmatpush1.bf16.msra.mxu0 %v819
      %1063 = vmatprep.subr.bf16.mxu0 0
      %1064 = vmatpush1.bf16.msra.mxu0 %v820
      %1065 = vmatprep.subr.bf16.mxu0 0
      %1066 = vmatpush1.bf16.msra.mxu0 %v821
      %1067 = vmatprep.subr.bf16.mxu0 0
      %1068 = vmatpush1.bf16.msra.mxu0 %v822
      %1069 = vmatprep.subr.bf16.mxu0 0
      %1070 = vmatpush1.bf16.msra.mxu0 %v823
      %1071 = vmatprep.subr.bf16.mxu0 0
      %1072 = vmatpush1.bf16.msra.mxu0 %v824
      %1073 = vmatprep.subr.bf16.mxu0 0
      %1074 = vmatpush1.bf16.msra.mxu0 %v825
      %1075 = vmatprep.subr.bf16.mxu0 0
      %1076 = vmatpush1.bf16.msra.mxu0 0
      %1077 = vmatprep.subr.bf16.mxu0 0
      %1078 = vmatpush1.bf16.msra.mxu0 0
      %1079 = vmatprep.subr.bf16.mxu0 0
      %1080 = vmatpush1.bf16.msra.mxu0 0
      %1081 = vmatprep.subr.bf16.mxu0 0
      %1082 = vmatpush1.bf16.msra.mxu0 0
      %1083 = vmatprep.subr.bf16.mxu0 0
      %1084 = vmatpush1.bf16.msra.mxu0 0
      %1085 = vmatprep.subr.bf16.mxu0 0
      %1086 = vmatpush1.bf16.msra.mxu0 0
      %1087 = vmatprep.subr.bf16.mxu0 0
      %1088 = vmatpush1.bf16.msra.mxu0 0
      %1089 = vmatprep.subr.bf16.mxu0 0
      %1090 = vmatpush1.bf16.msra.mxu0 0
      %1091 = vmatprep.mubr.bf16.mxu0 0
      %1092 = vmatmul.mubr.bf16.gmra.mrb[0].mxu0 %v503
      %v1093 = vpop.f32.mrb[0].mxu0
      %v1094 = vadd.f32 %v869, %v1093
      %v1095 = vpop.f32.mrb[0].mxu0
      %v1096 = vpop.f32.mrb[0].mxu0
      %v1097 = vadd.f32 %v872, %v1096
      %v1098 = vpop.f32.mrb[0].mxu0
      %1099 = vmatprep.mubr.bf16.mxu0 0
      %1100 = vmatmul.mubr.bf16.gmra.mrb[0].mxu0 %v504
      %v1101 = vpop.f32.mrb[0].mxu0
      %v1102 = vadd.f32 %v877, %v1101
      %v1103 = vpop.f32.mrb[0].mxu0
      %v1104 = vpop.f32.mrb[0].mxu0
      %v1105 = vadd.f32 %v880, %v1104
      %v1106 = vpop.f32.mrb[0].mxu0
      %1107 = vmatprep.mubr.bf16.mxu0 0
      %1108 = vmatmul.mubr.bf16.gmra.mrb[0].mxu0 %v505
      %v1109 = vpop.f32.mrb[0].mxu0
      %v1110 = vadd.f32 %v885, %v1109
      %v1111 = vpop.f32.mrb[0].mxu0
      %v1112 = vpop.f32.mrb[0].mxu0
      %v1113 = vadd.f32 %v888, %v1112
      %v1114 = vpop.f32.mrb[0].mxu0
      %1115 = vmatprep.mubr.bf16.mxu0 0
      %1116 = vmatmul.mubr.bf16.gmra.mrb[0].mxu0 %v506
      %v1117 = vpop.f32.mrb[0].mxu0
      %v1118 = vadd.f32 %v893, %v1117
      %v1119 = vpop.f32.mrb[0].mxu0
      %v1120 = vpop.f32.mrb[0].mxu0
      %v1121 = vadd.f32 %v896, %v1120
      %v1122 = vpop.f32.mrb[0].mxu0
      %1123 = vmatprep.mubr.bf16.mxu0 0
      %1124 = vmatmul.mubr.bf16.gmra.mrb[0].mxu0 %v507
      %v1125 = vpop.f32.mrb[0].mxu0
      %v1126 = vadd.f32 %v901, %v1125
      %v1127 = vpop.f32.mrb[0].mxu0
      %v1128 = vpop.f32.mrb[0].mxu0
      %v1129 = vadd.f32 %v904, %v1128
      %v1130 = vpop.f32.mrb[0].mxu0
      %1131 = vmatprep.mubr.bf16.mxu0 0
      %1132 = vmatmul.mubr.bf16.gmra.mrb[0].mxu0 %v508
      %v1133 = vpop.f32.mrb[0].mxu0
      %v1134 = vadd.f32 %v909, %v1133
      %v1135 = vpop.f32.mrb[0].mxu0
      %v1136 = vpop.f32.mrb[0].mxu0
      %v1137 = vadd.f32 %v912, %v1136
      %v1138 = vpop.f32.mrb[0].mxu0
      %1139 = vmatprep.mubr.bf16.mxu0 0
      %1140 = vmatmul.mubr.bf16.gmra.mrb[0].mxu0 %v509
      %v1141 = vpop.f32.mrb[0].mxu0
      %v1142 = vadd.f32 %v917, %v1141
      %v1143 = vpop.f32.mrb[0].mxu0
      %v1144 = vpop.f32.mrb[0].mxu0
      %v1145 = vadd.f32 %v920, %v1144
      %v1146 = vpop.f32.mrb[0].mxu0
      %1147 = vmatprep.mubr.bf16.mxu0 0
      %1148 = vmatmul.mubr.bf16.gmra.mrb[0].mxu0 %v510
      %v1149 = vpop.f32.mrb[0].mxu0
      %v1150 = vadd.f32 %v925, %v1149
      %v1151 = vpop.f32.mrb[0].mxu0
      %v1152 = vpop.f32.mrb[0].mxu0
      %v1153 = vadd.f32 %v928, %v1152
      %v1154 = vpop.f32.mrb[0].mxu0
      %1155 = vmatprep.mubr.bf16.mxu0 0
      %1156 = vmatmul.mubr.bf16.gmra.mrb[0].mxu0 %v511
      %v1157 = vpop.f32.mrb[0].mxu0
      %v1158 = vadd.f32 %v933, %v1157
      %v1159 = vpop.f32.mrb[0].mxu0
      %v1160 = vpop.f32.mrb[0].mxu0
      %v1161 = vadd.f32 %v936, %v1160
      %v1162 = vpop.f32.mrb[0].mxu0
      %1163 = vmatprep.mubr.bf16.mxu0 0
      %1164 = vmatmul.mubr.bf16.gmra.mrb[0].mxu0 %v512
      %v1165 = vpop.f32.mrb[0].mxu0
      %v1166 = vadd.f32 %v941, %v1165
      %v1167 = vpop.f32.mrb[0].mxu0
      %v1168 = vpop.f32.mrb[0].mxu0
      %v1169 = vadd.f32 %v944, %v1168
      %v1170 = vpop.f32.mrb[0].mxu0
      %1171 = vmatprep.mubr.bf16.mxu0 0
      %1172 = vmatmul.mubr.bf16.gmra.mrb[0].mxu0 %v513
      %v1173 = vpop.f32.mrb[0].mxu0
      %v1174 = vadd.f32 %v949, %v1173
      %v1175 = vpop.f32.mrb[0].mxu0
      %v1176 = vpop.f32.mrb[0].mxu0
      %v1177 = vadd.f32 %v952, %v1176
      %v1178 = vpop.f32.mrb[0].mxu0
      %1179 = vmatprep.mubr.bf16.mxu0 0
      %1180 = vmatmul.mubr.bf16.gmra.mrb[0].mxu0 %v514
      %v1181 = vpop.f32.mrb[0].mxu0
      %v1182 = vadd.f32 %v957, %v1181
      %v1183 = vpop.f32.mrb[0].mxu0
      %v1184 = vpop.f32.mrb[0].mxu0
      %v1185 = vadd.f32 %v960, %v1184
      %v1186 = vpop.f32.mrb[0].mxu0
      %1187 = vmatprep.mubr.bf16.mxu0 0
      %1188 = vmatmul.mubr.bf16.gmra.mrb[0].mxu0 %v515
      %v1189 = vpop.f32.mrb[0].mxu0
      %v1190 = vadd.f32 %v965, %v1189
      %v1191 = vpop.f32.mrb[0].mxu0
      %v1192 = vpop.f32.mrb[0].mxu0
      %v1193 = vadd.f32 %v968, %v1192
      %v1194 = vpop.f32.mrb[0].mxu0
      %1195 = vmatprep.mubr.bf16.mxu0 0
      %1196 = vmatmul.mubr.bf16.gmra.mrb[0].mxu0 %v516
      %v1197 = vpop.f32.mrb[0].mxu0
      %v1198 = vadd.f32 %v973, %v1197
      %v1199 = vpop.f32.mrb[0].mxu0
      %v1200 = vpop.f32.mrb[0].mxu0
      %v1201 = vadd.f32 %v976, %v1200
      %v1202 = vpop.f32.mrb[0].mxu0
      %1203 = vmatprep.mubr.bf16.mxu0 0
      %1204 = vmatmul.mubr.bf16.gmra.mrb[0].mxu0 %v517
      %v1205 = vpop.f32.mrb[0].mxu0
      %v1206 = vadd.f32 %v981, %v1205
      %v1207 = vpop.f32.mrb[0].mxu0
      %v1208 = vpop.f32.mrb[0].mxu0
      %v1209 = vadd.f32 %v984, %v1208
      %v1210 = vpop.f32.mrb[0].mxu0
      %1211 = vmatprep.mubr.bf16.mxu0 0
      %1212 = vmatmul.mubr.bf16.gmra.mrb[0].mxu0 %v518
      %v1213 = vpop.f32.mrb[0].mxu0
      %v1214 = vadd.f32 %v989, %v1213
      %v1215 = vpop.f32.mrb[0].mxu0
      %v1216 = vpop.f32.mrb[0].mxu0
      %v1217 = vadd.f32 %v992, %v1216
      %v1218 = vpop.f32.mrb[0].mxu0
      %1219 = vmatprep.mubr.bf16.mxu0 0
      %1220 = vmatmul.mubr.bf16.gmra.mrb[0].mxu0 %v519
      %v1221 = vpop.f32.mrb[0].mxu0
      %v1222 = vadd.f32 %v997, %v1221
      %v1223 = vpop.f32.mrb[0].mxu0
      %v1224 = vpop.f32.mrb[0].mxu0
      %v1225 = vadd.f32 %v1000, %v1224
      %v1226 = vpop.f32.mrb[0].mxu0
      %1227 = vmatprep.mubr.bf16.mxu0 0
      %1228 = vmatmul.mubr.bf16.gmra.mrb[0].mxu0 %v520
      %v1229 = vpop.f32.mrb[0].mxu0
      %v1230 = vadd.f32 %v1005, %v1229
      %v1231 = vpop.f32.mrb[0].mxu0
      %v1232 = vpop.f32.mrb[0].mxu0
      %v1233 = vadd.f32 %v1008, %v1232
      %v1234 = vpop.f32.mrb[0].mxu0
      %1235 = vmatprep.mubr.bf16.mxu0 0
      %1236 = vmatmul.mubr.bf16.gmra.mrb[0].mxu0 %v521
      %v1237 = vpop.f32.mrb[0].mxu0
      %v1238 = vadd.f32 %v1013, %v1237
      %v1239 = vpop.f32.mrb[0].mxu0
      %v1240 = vpop.f32.mrb[0].mxu0
      %v1241 = vadd.f32 %v1016, %v1240
      %v1242 = vpop.f32.mrb[0].mxu0
      %1243 = vmatprep.mubr.bf16.mxu0 0
      %1244 = vmatmul.mubr.bf16.gmra.mrb[0].mxu0 %v522
      %v1245 = vpop.f32.mrb[0].mxu0
      %v1246 = vadd.f32 %v1021, %v1245
      %v1247 = vpop.f32.mrb[0].mxu0
      %v1248 = vpop.f32.mrb[0].mxu0
      %v1249 = vadd.f32 %v1024, %v1248
      %v1250 = vpop.f32.mrb[0].mxu0
      %1251 = vmatprep.mubr.bf16.mxu0 0
      %1252 = vmatmul.mubr.bf16.gmra.mrb[0].mxu0 %v523
      %v1253 = vpop.f32.mrb[0].mxu0
      %v1254 = vadd.f32 %v1029, %v1253
      %v1255 = vpop.f32.mrb[0].mxu0
      %v1256 = vpop.f32.mrb[0].mxu0
      %v1257 = vadd.f32 %v1032, %v1256
      %v1258 = vpop.f32.mrb[0].mxu0
      %1259 = vmatprep.mubr.bf16.mxu0 0
      %1260 = vmatmul.mubr.bf16.gmra.mrb[0].mxu0 %v560
      %v1261 = vpop.f32.mrb[0].mxu0
      %v1262 = vadd.f32 %v1037, %v1261
      %v1263 = vpop.f32.mrb[0].mxu0
      %v1264 = vpop.f32.mrb[0].mxu0
      %v1265 = vadd.f32 %v1040, %v1264
      %v1266 = vpop.f32.mrb[0].mxu0
      %1267 = vmatprep.mubr.bf16.mxu0 0
      %1268 = vmatmul.mubr.bf16.gmra.mrb[0].mxu0 %v561
      %v1269 = vpop.f32.mrb[0].mxu0
      %v1270 = vadd.f32 %v1045, %v1269
      %v1271 = vpop.f32.mrb[0].mxu0
      %v1272 = vpop.f32.mrb[0].mxu0
      %v1273 = vadd.f32 %v1048, %v1272
      %v1274 = vpop.f32.mrb[0].mxu0
      %1275 = vmatprep.mubr.bf16.mxu0 0
      %1276 = vmatmul.mubr.bf16.gmra.mrb[0].mxu0 %v562
      %v1277 = vpop.f32.mrb[0].mxu0
      %v1278 = vadd.f32 %v1053, %v1277
      %v1279 = vpop.f32.mrb[0].mxu0
      %v1280 = vpop.f32.mrb[0].mxu0
      %v1281 = vadd.f32 %v1056, %v1280
      %v1282 = vpop.f32.mrb[0].mxu0
      %1283 = vdwg.mxu0
      %v1284 = vadd.f32 %v1094, 0.0
      %v1285 = vadd.f32 %v1097, 0.0
      %v1286 = vadd.f32 %v1102, 0.0
      %v1287 = vadd.f32 %v1105, 0.0
      %v1288 = vadd.f32 %v1110, 0.0
      %v1289 = vadd.f32 %v1113, 0.0
      %v1290 = vadd.f32 %v1118, 0.0
      %v1291 = vadd.f32 %v1121, 0.0
      %v1292 = vadd.f32 %v1126, 0.0
      %v1293 = vadd.f32 %v1129, 0.0
      %v1294 = vadd.f32 %v1134, 0.0
      %v1295 = vadd.f32 %v1137, 0.0
      %v1296 = vadd.f32 %v1142, 0.0
      %v1297 = vadd.f32 %v1145, 0.0
      %v1298 = vadd.f32 %v1150, 0.0
      %v1299 = vadd.f32 %v1153, 0.0
      %v1300 = vadd.f32 %v1158, 0.0
      %v1301 = vadd.f32 %v1161, 0.0
      %v1302 = vadd.f32 %v1166, 0.0
      %v1303 = vadd.f32 %v1169, 0.0
      %v1304 = vadd.f32 %v1174, 0.0
      %v1305 = vadd.f32 %v1177, 0.0
      %v1306 = vadd.f32 %v1182, 0.0
      %v1307 = vadd.f32 %v1185, 0.0
      %v1308 = vadd.f32 %v1190, 0.0
      %v1309 = vadd.f32 %v1193, 0.0
      %v1310 = vadd.f32 %v1198, 0.0
      %v1311 = vadd.f32 %v1201, 0.0
      %v1312 = vadd.f32 %v1206, 0.0
      %v1313 = vadd.f32 %v1209, 0.0
      %v1314 = vadd.f32 %v1214, 0.0
      %v1315 = vadd.f32 %v1217, 0.0
      %v1316 = vadd.f32 %v1222, 0.0
      %v1317 = vadd.f32 %v1225, 0.0
      %v1318 = vadd.f32 %v1230, 0.0
      %v1319 = vadd.f32 %v1233, 0.0
      %v1320 = vadd.f32 %v1238, 0.0
      %v1321 = vadd.f32 %v1241, 0.0
      %v1322 = vadd.f32 %v1246, 0.0
      %v1323 = vadd.f32 %v1249, 0.0
      %v1324 = vadd.f32 %v1254, 0.0
      %v1325 = vadd.f32 %v1257, 0.0
      %v1326 = vadd.f32 %v1262, 0.0
      %v1327 = vadd.f32 %v1265, 0.0
      %v1328 = vadd.f32 %v1270, 0.0
      %v1329 = vadd.f32 %v1273, 0.0
      %v1330 = vadd.f32 %v1278, 0.0
      %v1331 = vadd.f32 %v1281, 0.0
      %s1332 = scalar_lea.vmem %s2, 64
      %v1333 = vld [vmem:[%s1332] sm:$0xf]
      %v1334 = vld [vmem:[%s1332 + $0x4] sm:$0xf]
      %v1335 = vld [vmem:[%s1332 + $0x8] sm:$0xf]
      %v1336 = vld [vmem:[%s1332 + $0xc] sm:$0xf]
      %v1337 = vld [vmem:[%s1332 + $0x10] sm:$0xf]
      %v1338 = vld [vmem:[%s1332 + $0x14] sm:$0xf]
      %v1339 = vld [vmem:[%s1332 + $0x18] sm:$0xf]
      %v1340 = vld [vmem:[%s1332 + $0x1c] sm:$0xf]
      %v1341 = vld [vmem:[%s1332 + $0x20] sm:$0xf]
      %v1342 = vld [vmem:[%s1332 + $0x24] sm:$0xf]
      %v1343 = vld [vmem:[%s1332 + $0x28] sm:$0xf]
      %v1344 = vld [vmem:[%s1332 + $0x2c] sm:$0xf]
      %v1345 = vld [vmem:[%s1332 + $0x30] sm:$0xf]
      %v1346 = vld [vmem:[%s1332 + $0x34] sm:$0xf]
      %v1347 = vld [vmem:[%s1332 + $0x38] sm:$0xf]
      %v1348 = vld [vmem:[%s1332 + $0x3c] sm:$0xf]
      %s1349 = scalar_lea.vmem %s2, 256
      %v1350 = vld [vmem:[%s1349] sm:$0xf]
      %v1351 = vld [vmem:[%s1349 + $0x4] sm:$0xf]
      %v1352 = vld [vmem:[%s1349 + $0x8] sm:$0xf]
      %v1353 = vld [vmem:[%s1349 + $0xc] sm:$0xf]
      %v1354 = vld [vmem:[%s1349 + $0x10] sm:$0xf]
      %v1355 = vld [vmem:[%s1349 + $0x14] sm:$0xf]
      %v1356 = vld [vmem:[%s1349 + $0x18] sm:$0xf]
      %v1357 = vld [vmem:[%s1349 + $0x1c] sm:$0xf]
      %v1358 = vld [vmem:[%s1349 + $0x20] sm:$0xf]
      %v1359 = vld [vmem:[%s1349 + $0x24] sm:$0xf]
      %v1360 = vld [vmem:[%s1349 + $0x28] sm:$0xf]
      %v1361 = vld [vmem:[%s1349 + $0x2c] sm:$0xf]
      %v1362 = vld [vmem:[%s1349 + $0x30] sm:$0xf]
      %v1363 = vld [vmem:[%s1349 + $0x34] sm:$0xf]
      %v1364 = vld [vmem:[%s1349 + $0x38] sm:$0xf]
      %v1365 = vld [vmem:[%s1349 + $0x3c] sm:$0xf]
      %s1366 = scalar_lea.vmem %s2, 448
      %v1367 = vld [vmem:[%s1366] sm:$0xf]
      %v1368 = vld [vmem:[%s1366 + $0x4] sm:$0xf]
      %v1369 = vld [vmem:[%s1366 + $0x8] sm:$0xf]
      %v1370 = vld [vmem:[%s1366 + $0xc] sm:$0xf]
      %v1371 = vld [vmem:[%s1366 + $0x10] sm:$0xf]
      %v1372 = vld [vmem:[%s1366 + $0x14] sm:$0xf]
      %v1373 = vld [vmem:[%s1366 + $0x18] sm:$0xf]
      %v1374 = vld [vmem:[%s1366 + $0x1c] sm:$0xf]
      %v1375 = vld [vmem:[%s1366 + $0x20] sm:$0xf]
      %v1376 = vld [vmem:[%s1366 + $0x24] sm:$0xf]
      %v1377 = vld [vmem:[%s1366 + $0x28] sm:$0xf]
      %v1378 = vld [vmem:[%s1366 + $0x2c] sm:$0xf]
      %v1379 = vld [vmem:[%s1366 + $0x30] sm:$0xf]
      %v1380 = vld [vmem:[%s1366 + $0x34] sm:$0xf]
      %v1381 = vld [vmem:[%s1366 + $0x38] sm:$0xf]
      %v1382 = vld [vmem:[%s1366 + $0x3c] sm:$0xf]
      %v1399 = vunpack.c.l.b16 %v1333
      %v1400 = vunpack.c.l.b16 %v1334
      %v1401 = vunpack.c.l.b16 %v1335
      %v1402 = vunpack.c.l.b16 %v1336
      %v1403 = vunpack.c.l.b16 %v1337
      %v1404 = vunpack.c.l.b16 %v1338
      %v1405 = vunpack.c.l.b16 %v1339
      %v1406 = vunpack.c.l.b16 %v1340
      %v1407 = vunpack.c.l.b16 %v1341
      %v1408 = vunpack.c.l.b16 %v1342
      %v1409 = vunpack.c.l.b16 %v1343
      %v1410 = vunpack.c.l.b16 %v1344
      %v1411 = vunpack.c.l.b16 %v1345
      %v1412 = vunpack.c.l.b16 %v1346
      %v1413 = vunpack.c.l.b16 %v1347
      %v1414 = vunpack.c.l.b16 %v1348
      %v1415 = vpack.c.b16 %v1400, %v1399
      %v1416 = vpack.c.b16 %v1402, %v1401
      %v1417 = vpack.c.b16 %v1404, %v1403
      %v1418 = vpack.c.b16 %v1406, %v1405
      %v1419 = vpack.c.b16 %v1408, %v1407
      %v1420 = vpack.c.b16 %v1410, %v1409
      %v1421 = vpack.c.b16 %v1412, %v1411
      %v1422 = vpack.c.b16 %v1414, %v1413
      %v1447 = vunpack.c.l.b16 %v1350
      %v1448 = vunpack.c.l.b16 %v1351
      %v1449 = vunpack.c.l.b16 %v1352
      %v1450 = vunpack.c.l.b16 %v1353
      %v1451 = vunpack.c.l.b16 %v1354
      %v1452 = vunpack.c.l.b16 %v1355
      %v1453 = vunpack.c.l.b16 %v1356
      %v1454 = vunpack.c.l.b16 %v1357
      %v1455 = vunpack.c.l.b16 %v1358
      %v1456 = vunpack.c.l.b16 %v1359
      %v1457 = vunpack.c.l.b16 %v1360
      %v1458 = vunpack.c.l.b16 %v1361
      %v1459 = vunpack.c.l.b16 %v1362
      %v1460 = vunpack.c.l.b16 %v1363
      %v1461 = vunpack.c.l.b16 %v1364
      %v1462 = vunpack.c.l.b16 %v1365
      %v1463 = vpack.c.b16 %v1448, %v1447
      %v1464 = vpack.c.b16 %v1450, %v1449
      %v1465 = vpack.c.b16 %v1452, %v1451
      %v1466 = vpack.c.b16 %v1454, %v1453
      %v1467 = vpack.c.b16 %v1456, %v1455
      %v1468 = vpack.c.b16 %v1458, %v1457
      %v1469 = vpack.c.b16 %v1460, %v1459
      %v1470 = vpack.c.b16 %v1462, %v1461
      %v1495 = vunpack.c.l.b16 %v1367
      %v1496 = vunpack.c.l.b16 %v1368
      %v1497 = vunpack.c.l.b16 %v1369
      %v1498 = vunpack.c.l.b16 %v1370
      %v1499 = vunpack.c.l.b16 %v1371
      %v1500 = vunpack.c.l.b16 %v1372
      %v1501 = vunpack.c.l.b16 %v1373
      %v1502 = vunpack.c.l.b16 %v1374
      %v1503 = vunpack.c.l.b16 %v1375
      %v1504 = vunpack.c.l.b16 %v1376
      %v1505 = vunpack.c.l.b16 %v1377
      %v1506 = vunpack.c.l.b16 %v1378
      %v1507 = vunpack.c.l.b16 %v1379
      %v1508 = vunpack.c.l.b16 %v1380
      %v1509 = vunpack.c.l.b16 %v1381
      %v1510 = vunpack.c.l.b16 %v1382
      %v1511 = vpack.c.b16 %v1496, %v1495
      %v1512 = vpack.c.b16 %v1498, %v1497
      %v1513 = vpack.c.b16 %v1500, %v1499
      %v1514 = vpack.c.b16 %v1502, %v1501
      %v1515 = vpack.c.b16 %v1504, %v1503
      %v1516 = vpack.c.b16 %v1506, %v1505
      %v1517 = vpack.c.b16 %v1508, %v1507
      %v1518 = vpack.c.b16 %v1510, %v1509
      %1527 = vmatprep.subr.bf16.mxu0 0
      %1528 = vmatpush1.bf16.msra.mxu0 %v1415
      %1529 = vmatprep.subr.bf16.mxu0 0
      %1530 = vmatpush1.bf16.msra.mxu0 %v1416
      %1531 = vmatprep.subr.bf16.mxu0 0
      %1532 = vmatpush1.bf16.msra.mxu0 %v1417
      %1533 = vmatprep.subr.bf16.mxu0 0
      %1534 = vmatpush1.bf16.msra.mxu0 %v1418
      %1535 = vmatprep.subr.bf16.mxu0 0
      %1536 = vmatpush1.bf16.msra.mxu0 %v1419
      %1537 = vmatprep.subr.bf16.mxu0 0
      %1538 = vmatpush1.bf16.msra.mxu0 %v1420
      %1539 = vmatprep.subr.bf16.mxu0 0
      %1540 = vmatpush1.bf16.msra.mxu0 %v1421
      %1541 = vmatprep.subr.bf16.mxu0 0
      %1542 = vmatpush1.bf16.msra.mxu0 %v1422
      %1543 = vmatprep.subr.bf16.mxu0 0
      %1544 = vmatpush1.bf16.msra.mxu0 %v1463
      %1545 = vmatprep.subr.bf16.mxu0 0
      %1546 = vmatpush1.bf16.msra.mxu0 %v1464
      %1547 = vmatprep.subr.bf16.mxu0 0
      %1548 = vmatpush1.bf16.msra.mxu0 %v1465
      %1549 = vmatprep.subr.bf16.mxu0 0
      %1550 = vmatpush1.bf16.msra.mxu0 %v1466
      %1551 = vmatprep.subr.bf16.mxu0 0
      %1552 = vmatpush1.bf16.msra.mxu0 %v1467
      %1553 = vmatprep.subr.bf16.mxu0 0
      %1554 = vmatpush1.bf16.msra.mxu0 %v1468
      %1555 = vmatprep.subr.bf16.mxu0 0
      %1556 = vmatpush1.bf16.msra.mxu0 %v1469
      %1557 = vmatprep.subr.bf16.mxu0 0
      %1558 = vmatpush1.bf16.msra.mxu0 %v1470
      %1559 = vmatprep.mubr.bf16.mxu0 %v569
      %1560 = vmatmul.mubr.bf16.gmra.mrb[0].mxu0 %v500
      %v1561 = vpop.f32.mrb[0].mxu0
      %v1562 = vadd.f32 0.0, %v1561
      %v1563 = vpop.f32.mrb[0].mxu0
      %v1564 = vpop.f32.mrb[0].mxu0
      %v1565 = vadd.f32 0.0, %v1564
      %v1566 = vpop.f32.mrb[0].mxu0
      %1567 = vmatprep.mubr.bf16.mxu0 %v571
      %1568 = vmatmul.mubr.bf16.gmra.mrb[0].mxu0 %v501
      %v1569 = vpop.f32.mrb[0].mxu0
      %v1570 = vadd.f32 0.0, %v1569
      %v1571 = vpop.f32.mrb[0].mxu0
      %v1572 = vpop.f32.mrb[0].mxu0
      %v1573 = vadd.f32 0.0, %v1572
      %v1574 = vpop.f32.mrb[0].mxu0
      %1575 = vmatprep.mubr.bf16.mxu0 %v573
      %1576 = vmatmul.mubr.bf16.gmra.mrb[0].mxu0 %v502
      %v1577 = vpop.f32.mrb[0].mxu0
      %v1578 = vadd.f32 0.0, %v1577
      %v1579 = vpop.f32.mrb[0].mxu0
      %v1580 = vpop.f32.mrb[0].mxu0
      %v1581 = vadd.f32 0.0, %v1580
      %v1582 = vpop.f32.mrb[0].mxu0
      %1583 = vmatprep.mubr.bf16.mxu0 %v575
      %1584 = vmatmul.mubr.bf16.gmra.mrb[0].mxu0 %v503
      %v1585 = vpop.f32.mrb[0].mxu0
      %v1586 = vadd.f32 0.0, %v1585
      %v1587 = vpop.f32.mrb[0].mxu0
      %v1588 = vpop.f32.mrb[0].mxu0
      %v1589 = vadd.f32 0.0, %v1588
      %v1590 = vpop.f32.mrb[0].mxu0
      %1591 = vmatprep.mubr.bf16.mxu0 %v577
      %1592 = vmatmul.mubr.bf16.gmra.mrb[0].mxu0 %v504
      %v1593 = vpop.f32.mrb[0].mxu0
      %v1594 = vadd.f32 0.0, %v1593
      %v1595 = vpop.f32.mrb[0].mxu0
      %v1596 = vpop.f32.mrb[0].mxu0
      %v1597 = vadd.f32 0.0, %v1596
      %v1598 = vpop.f32.mrb[0].mxu0
      %1599 = vmatprep.mubr.bf16.mxu0 %v579
      %1600 = vmatmul.mubr.bf16.gmra.mrb[0].mxu0 %v505
      %v1601 = vpop.f32.mrb[0].mxu0
      %v1602 = vadd.f32 0.0, %v1601
      %v1603 = vpop.f32.mrb[0].mxu0
      %v1604 = vpop.f32.mrb[0].mxu0
      %v1605 = vadd.f32 0.0, %v1604
      %v1606 = vpop.f32.mrb[0].mxu0
      %1607 = vmatprep.mubr.bf16.mxu0 %v581
      %1608 = vmatmul.mubr.bf16.gmra.mrb[0].mxu0 %v506
      %v1609 = vpop.f32.mrb[0].mxu0
      %v1610 = vadd.f32 0.0, %v1609
      %v1611 = vpop.f32.mrb[0].mxu0
      %v1612 = vpop.f32.mrb[0].mxu0
      %v1613 = vadd.f32 0.0, %v1612
      %v1614 = vpop.f32.mrb[0].mxu0
      %1615 = vmatprep.mubr.bf16.mxu0 %v583
      %1616 = vmatmul.mubr.bf16.gmra.mrb[0].mxu0 %v507
      %v1617 = vpop.f32.mrb[0].mxu0
      %v1618 = vadd.f32 0.0, %v1617
      %v1619 = vpop.f32.mrb[0].mxu0
      %v1620 = vpop.f32.mrb[0].mxu0
      %v1621 = vadd.f32 0.0, %v1620
      %v1622 = vpop.f32.mrb[0].mxu0
      %1623 = vmatprep.mubr.bf16.mxu0 %v585
      %1624 = vmatmul.mubr.bf16.gmra.mrb[0].mxu0 %v508
      %v1625 = vpop.f32.mrb[0].mxu0
      %v1626 = vadd.f32 0.0, %v1625
      %v1627 = vpop.f32.mrb[0].mxu0
      %v1628 = vpop.f32.mrb[0].mxu0
      %v1629 = vadd.f32 0.0, %v1628
      %v1630 = vpop.f32.mrb[0].mxu0
      %1631 = vmatprep.mubr.bf16.mxu0 %v587
      %1632 = vmatmul.mubr.bf16.gmra.mrb[0].mxu0 %v509
      %v1633 = vpop.f32.mrb[0].mxu0
      %v1634 = vadd.f32 0.0, %v1633
      %v1635 = vpop.f32.mrb[0].mxu0
      %v1636 = vpop.f32.mrb[0].mxu0
      %v1637 = vadd.f32 0.0, %v1636
      %v1638 = vpop.f32.mrb[0].mxu0
      %1639 = vmatprep.mubr.bf16.mxu0 %v589
      %1640 = vmatmul.mubr.bf16.gmra.mrb[0].mxu0 %v510
      %v1641 = vpop.f32.mrb[0].mxu0
      %v1642 = vadd.f32 0.0, %v1641
      %v1643 = vpop.f32.mrb[0].mxu0
      %v1644 = vpop.f32.mrb[0].mxu0
      %v1645 = vadd.f32 0.0, %v1644
      %v1646 = vpop.f32.mrb[0].mxu0
      %1647 = vmatprep.mubr.bf16.mxu0 %v591
      %1648 = vmatmul.mubr.bf16.gmra.mrb[0].mxu0 %v511
      %v1649 = vpop.f32.mrb[0].mxu0
      %v1650 = vadd.f32 0.0, %v1649
      %v1651 = vpop.f32.mrb[0].mxu0
      %v1652 = vpop.f32.mrb[0].mxu0
      %v1653 = vadd.f32 0.0, %v1652
      %v1654 = vpop.f32.mrb[0].mxu0
      %1655 = vmatprep.mubr.bf16.mxu0 %v593
      %1656 = vmatmul.mubr.bf16.gmra.mrb[0].mxu0 %v512
      %v1657 = vpop.f32.mrb[0].mxu0
      %v1658 = vadd.f32 0.0, %v1657
      %v1659 = vpop.f32.mrb[0].mxu0
      %v1660 = vpop.f32.mrb[0].mxu0
      %v1661 = vadd.f32 0.0, %v1660
      %v1662 = vpop.f32.mrb[0].mxu0
      %1663 = vmatprep.mubr.bf16.mxu0 %v595
      %1664 = vmatmul.mubr.bf16.gmra.mrb[0].mxu0 %v513
      %v1665 = vpop.f32.mrb[0].mxu0
      %v1666 = vadd.f32 0.0, %v1665
      %v1667 = vpop.f32.mrb[0].mxu0
      %v1668 = vpop.f32.mrb[0].mxu0
      %v1669 = vadd.f32 0.0, %v1668
      %v1670 = vpop.f32.mrb[0].mxu0
      %1671 = vmatprep.mubr.bf16.mxu0 %v597
      %1672 = vmatmul.mubr.bf16.gmra.mrb[0].mxu0 %v514
      %v1673 = vpop.f32.mrb[0].mxu0
      %v1674 = vadd.f32 0.0, %v1673
      %v1675 = vpop.f32.mrb[0].mxu0
      %v1676 = vpop.f32.mrb[0].mxu0
      %v1677 = vadd.f32 0.0, %v1676
      %v1678 = vpop.f32.mrb[0].mxu0
      %1679 = vmatprep.mubr.bf16.mxu0 %v599
      %1680 = vmatmul.mubr.bf16.gmra.mrb[0].mxu0 %v515
      %v1681 = vpop.f32.mrb[0].mxu0
      %v1682 = vadd.f32 0.0, %v1681
      %v1683 = vpop.f32.mrb[0].mxu0
      %v1684 = vpop.f32.mrb[0].mxu0
      %v1685 = vadd.f32 0.0, %v1684
      %v1686 = vpop.f32.mrb[0].mxu0
      %1687 = vmatprep.mubr.bf16.mxu0 %v601
      %1688 = vmatmul.mubr.bf16.gmra.mrb[0].mxu0 %v516
      %v1689 = vpop.f32.mrb[0].mxu0
      %v1690 = vadd.f32 0.0, %v1689
      %v1691 = vpop.f32.mrb[0].mxu0
      %v1692 = vpop.f32.mrb[0].mxu0
      %v1693 = vadd.f32 0.0, %v1692
      %v1694 = vpop.f32.mrb[0].mxu0
      %1695 = vmatprep.mubr.bf16.mxu0 %v603
      %1696 = vmatmul.mubr.bf16.gmra.mrb[0].mxu0 %v517
      %v1697 = vpop.f32.mrb[0].mxu0
      %v1698 = vadd.f32 0.0, %v1697
      %v1699 = vpop.f32.mrb[0].mxu0
      %v1700 = vpop.f32.mrb[0].mxu0
      %v1701 = vadd.f32 0.0, %v1700
      %v1702 = vpop.f32.mrb[0].mxu0
      %1703 = vmatprep.mubr.bf16.mxu0 %v605
      %1704 = vmatmul.mubr.bf16.gmra.mrb[0].mxu0 %v518
      %v1705 = vpop.f32.mrb[0].mxu0
      %v1706 = vadd.f32 0.0, %v1705
      %v1707 = vpop.f32.mrb[0].mxu0
      %v1708 = vpop.f32.mrb[0].mxu0
      %v1709 = vadd.f32 0.0, %v1708
      %v1710 = vpop.f32.mrb[0].mxu0
      %1711 = vmatprep.mubr.bf16.mxu0 %v607
      %1712 = vmatmul.mubr.bf16.gmra.mrb[0].mxu0 %v519
      %v1713 = vpop.f32.mrb[0].mxu0
      %v1714 = vadd.f32 0.0, %v1713
      %v1715 = vpop.f32.mrb[0].mxu0
      %v1716 = vpop.f32.mrb[0].mxu0
      %v1717 = vadd.f32 0.0, %v1716
      %v1718 = vpop.f32.mrb[0].mxu0
      %1719 = vmatprep.mubr.bf16.mxu0 %v609
      %1720 = vmatmul.mubr.bf16.gmra.mrb[0].mxu0 %v520
      %v1721 = vpop.f32.mrb[0].mxu0
      %v1722 = vadd.f32 0.0, %v1721
      %v1723 = vpop.f32.mrb[0].mxu0
      %v1724 = vpop.f32.mrb[0].mxu0
      %v1725 = vadd.f32 0.0, %v1724
      %v1726 = vpop.f32.mrb[0].mxu0
      %1727 = vmatprep.mubr.bf16.mxu0 %v611
      %1728 = vmatmul.mubr.bf16.gmra.mrb[0].mxu0 %v521
      %v1729 = vpop.f32.mrb[0].mxu0
      %v1730 = vadd.f32 0.0, %v1729
      %v1731 = vpop.f32.mrb[0].mxu0
      %v1732 = vpop.f32.mrb[0].mxu0
      %v1733 = vadd.f32 0.0, %v1732
      %v1734 = vpop.f32.mrb[0].mxu0
      %1735 = vmatprep.mubr.bf16.mxu0 %v613
      %1736 = vmatmul.mubr.bf16.gmra.mrb[0].mxu0 %v522
      %v1737 = vpop.f32.mrb[0].mxu0
      %v1738 = vadd.f32 0.0, %v1737
      %v1739 = vpop.f32.mrb[0].mxu0
      %v1740 = vpop.f32.mrb[0].mxu0
      %v1741 = vadd.f32 0.0, %v1740
      %v1742 = vpop.f32.mrb[0].mxu0
      %1743 = vmatprep.mubr.bf16.mxu0 %v615
      %1744 = vmatmul.mubr.bf16.gmra.mrb[0].mxu0 %v523
      %v1745 = vpop.f32.mrb[0].mxu0
      %v1746 = vadd.f32 0.0, %v1745
      %v1747 = vpop.f32.mrb[0].mxu0
      %v1748 = vpop.f32.mrb[0].mxu0
      %v1749 = vadd.f32 0.0, %v1748
      %v1750 = vpop.f32.mrb[0].mxu0
      %1751 = vdwg.mxu0
      %1752 = vmatprep.subr.bf16.mxu0 0
      %1753 = vmatpush1.bf16.msra.mxu0 %v1511
      %1754 = vmatprep.subr.bf16.mxu0 0
      %1755 = vmatpush1.bf16.msra.mxu0 %v1512
      %1756 = vmatprep.subr.bf16.mxu0 0
      %1757 = vmatpush1.bf16.msra.mxu0 %v1513
      %1758 = vmatprep.subr.bf16.mxu0 0
      %1759 = vmatpush1.bf16.msra.mxu0 %v1514
      %1760 = vmatprep.subr.bf16.mxu0 0
      %1761 = vmatpush1.bf16.msra.mxu0 %v1515
      %1762 = vmatprep.subr.bf16.mxu0 0
      %1763 = vmatpush1.bf16.msra.mxu0 %v1516
      %1764 = vmatprep.subr.bf16.mxu0 0
      %1765 = vmatpush1.bf16.msra.mxu0 %v1517
      %1766 = vmatprep.subr.bf16.mxu0 0
      %1767 = vmatpush1.bf16.msra.mxu0 %v1518
      %1768 = vmatprep.subr.bf16.mxu0 0
      %1769 = vmatpush1.bf16.msra.mxu0 0
      %1770 = vmatprep.subr.bf16.mxu0 0
      %1771 = vmatpush1.bf16.msra.mxu0 0
      %1772 = vmatprep.subr.bf16.mxu0 0
      %1773 = vmatpush1.bf16.msra.mxu0 0
      %1774 = vmatprep.subr.bf16.mxu0 0
      %1775 = vmatpush1.bf16.msra.mxu0 0
      %1776 = vmatprep.subr.bf16.mxu0 0
      %1777 = vmatpush1.bf16.msra.mxu0 0
      %1778 = vmatprep.subr.bf16.mxu0 0
      %1779 = vmatpush1.bf16.msra.mxu0 0
      %1780 = vmatprep.subr.bf16.mxu0 0
      %1781 = vmatpush1.bf16.msra.mxu0 0
      %1782 = vmatprep.subr.bf16.mxu0 0
      %1783 = vmatpush1.bf16.msra.mxu0 0
      %1784 = vmatprep.mubr.bf16.mxu0 0
      %1785 = vmatmul.mubr.bf16.gmra.mrb[0].mxu0 %v503
      %v1786 = vpop.f32.mrb[0].mxu0
      %v1787 = vadd.f32 %v1562, %v1786
      %v1788 = vpop.f32.mrb[0].mxu0
      %v1789 = vpop.f32.mrb[0].mxu0
      %v1790 = vadd.f32 %v1565, %v1789
      %v1791 = vpop.f32.mrb[0].mxu0
      %1792 = vmatprep.mubr.bf16.mxu0 0
      %1793 = vmatmul.mubr.bf16.gmra.mrb[0].mxu0 %v504
      %v1794 = vpop.f32.mrb[0].mxu0
      %v1795 = vadd.f32 %v1570, %v1794
      %v1796 = vpop.f32.mrb[0].mxu0
      %v1797 = vpop.f32.mrb[0].mxu0
      %v1798 = vadd.f32 %v1573, %v1797
      %v1799 = vpop.f32.mrb[0].mxu0
      %1800 = vmatprep.mubr.bf16.mxu0 0
      %1801 = vmatmul.mubr.bf16.gmra.mrb[0].mxu0 %v505
      %v1802 = vpop.f32.mrb[0].mxu0
      %v1803 = vadd.f32 %v1578, %v1802
      %v1804 = vpop.f32.mrb[0].mxu0
      %v1805 = vpop.f32.mrb[0].mxu0
      %v1806 = vadd.f32 %v1581, %v1805
      %v1807 = vpop.f32.mrb[0].mxu0
      %1808 = vmatprep.mubr.bf16.mxu0 0
      %1809 = vmatmul.mubr.bf16.gmra.mrb[0].mxu0 %v506
      %v1810 = vpop.f32.mrb[0].mxu0
      %v1811 = vadd.f32 %v1586, %v1810
      %v1812 = vpop.f32.mrb[0].mxu0
      %v1813 = vpop.f32.mrb[0].mxu0
      %v1814 = vadd.f32 %v1589, %v1813
      %v1815 = vpop.f32.mrb[0].mxu0
      %1816 = vmatprep.mubr.bf16.mxu0 0
      %1817 = vmatmul.mubr.bf16.gmra.mrb[0].mxu0 %v507
      %v1818 = vpop.f32.mrb[0].mxu0
      %v1819 = vadd.f32 %v1594, %v1818
      %v1820 = vpop.f32.mrb[0].mxu0
      %v1821 = vpop.f32.mrb[0].mxu0
      %v1822 = vadd.f32 %v1597, %v1821
      %v1823 = vpop.f32.mrb[0].mxu0
      %1824 = vmatprep.mubr.bf16.mxu0 0
      %1825 = vmatmul.mubr.bf16.gmra.mrb[0].mxu0 %v508
      %v1826 = vpop.f32.mrb[0].mxu0
      %v1827 = vadd.f32 %v1602, %v1826
      %v1828 = vpop.f32.mrb[0].mxu0
      %v1829 = vpop.f32.mrb[0].mxu0
      %v1830 = vadd.f32 %v1605, %v1829
      %v1831 = vpop.f32.mrb[0].mxu0
      %1832 = vmatprep.mubr.bf16.mxu0 0
      %1833 = vmatmul.mubr.bf16.gmra.mrb[0].mxu0 %v509
      %v1834 = vpop.f32.mrb[0].mxu0
      %v1835 = vadd.f32 %v1610, %v1834
      %v1836 = vpop.f32.mrb[0].mxu0
      %v1837 = vpop.f32.mrb[0].mxu0
      %v1838 = vadd.f32 %v1613, %v1837
      %v1839 = vpop.f32.mrb[0].mxu0
      %1840 = vmatprep.mubr.bf16.mxu0 0
      %1841 = vmatmul.mubr.bf16.gmra.mrb[0].mxu0 %v510
      %v1842 = vpop.f32.mrb[0].mxu0
      %v1843 = vadd.f32 %v1618, %v1842
      %v1844 = vpop.f32.mrb[0].mxu0
      %v1845 = vpop.f32.mrb[0].mxu0
      %v1846 = vadd.f32 %v1621, %v1845
      %v1847 = vpop.f32.mrb[0].mxu0
      %1848 = vmatprep.mubr.bf16.mxu0 0
      %1849 = vmatmul.mubr.bf16.gmra.mrb[0].mxu0 %v511
      %v1850 = vpop.f32.mrb[0].mxu0
      %v1851 = vadd.f32 %v1626, %v1850
      %v1852 = vpop.f32.mrb[0].mxu0
      %v1853 = vpop.f32.mrb[0].mxu0
      %v1854 = vadd.f32 %v1629, %v1853
      %v1855 = vpop.f32.mrb[0].mxu0
      %1856 = vmatprep.mubr.bf16.mxu0 0
      %1857 = vmatmul.mubr.bf16.gmra.mrb[0].mxu0 %v512
      %v1858 = vpop.f32.mrb[0].mxu0
      %v1859 = vadd.f32 %v1634, %v1858
      %v1860 = vpop.f32.mrb[0].mxu0
      %v1861 = vpop.f32.mrb[0].mxu0
      %v1862 = vadd.f32 %v1637, %v1861
      %v1863 = vpop.f32.mrb[0].mxu0
      %1864 = vmatprep.mubr.bf16.mxu0 0
      %1865 = vmatmul.mubr.bf16.gmra.mrb[0].mxu0 %v513
      %v1866 = vpop.f32.mrb[0].mxu0
      %v1867 = vadd.f32 %v1642, %v1866
      %v1868 = vpop.f32.mrb[0].mxu0
      %v1869 = vpop.f32.mrb[0].mxu0
      %v1870 = vadd.f32 %v1645, %v1869
      %v1871 = vpop.f32.mrb[0].mxu0
      %1872 = vmatprep.mubr.bf16.mxu0 0
      %1873 = vmatmul.mubr.bf16.gmra.mrb[0].mxu0 %v514
      %v1874 = vpop.f32.mrb[0].mxu0
      %v1875 = vadd.f32 %v1650, %v1874
      %v1876 = vpop.f32.mrb[0].mxu0
      %v1877 = vpop.f32.mrb[0].mxu0
      %v1878 = vadd.f32 %v1653, %v1877
      %v1879 = vpop.f32.mrb[0].mxu0
      %1880 = vmatprep.mubr.bf16.mxu0 0
      %1881 = vmatmul.mubr.bf16.gmra.mrb[0].mxu0 %v515
      %v1882 = vpop.f32.mrb[0].mxu0
      %v1883 = vadd.f32 %v1658, %v1882
      %v1884 = vpop.f32.mrb[0].mxu0
      %v1885 = vpop.f32.mrb[0].mxu0
      %v1886 = vadd.f32 %v1661, %v1885
      %v1887 = vpop.f32.mrb[0].mxu0
      %1888 = vmatprep.mubr.bf16.mxu0 0
      %1889 = vmatmul.mubr.bf16.gmra.mrb[0].mxu0 %v516
      %v1890 = vpop.f32.mrb[0].mxu0
      %v1891 = vadd.f32 %v1666, %v1890
      %v1892 = vpop.f32.mrb[0].mxu0
      %v1893 = vpop.f32.mrb[0].mxu0
      %v1894 = vadd.f32 %v1669, %v1893
      %v1895 = vpop.f32.mrb[0].mxu0
      %1896 = vmatprep.mubr.bf16.mxu0 0
      %1897 = vmatmul.mubr.bf16.gmra.mrb[0].mxu0 %v517
      %v1898 = vpop.f32.mrb[0].mxu0
      %v1899 = vadd.f32 %v1674, %v1898
      %v1900 = vpop.f32.mrb[0].mxu0
      %v1901 = vpop.f32.mrb[0].mxu0
      %v1902 = vadd.f32 %v1677, %v1901
      %v1903 = vpop.f32.mrb[0].mxu0
      %1904 = vmatprep.mubr.bf16.mxu0 0
      %1905 = vmatmul.mubr.bf16.gmra.mrb[0].mxu0 %v518
      %v1906 = vpop.f32.mrb[0].mxu0
      %v1907 = vadd.f32 %v1682, %v1906
      %v1908 = vpop.f32.mrb[0].mxu0
      %v1909 = vpop.f32.mrb[0].mxu0
      %v1910 = vadd.f32 %v1685, %v1909
      %v1911 = vpop.f32.mrb[0].mxu0
      %1912 = vmatprep.mubr.bf16.mxu0 0
      %1913 = vmatmul.mubr.bf16.gmra.mrb[0].mxu0 %v519
      %v1914 = vpop.f32.mrb[0].mxu0
      %v1915 = vadd.f32 %v1690, %v1914
      %v1916 = vpop.f32.mrb[0].mxu0
      %v1917 = vpop.f32.mrb[0].mxu0
      %v1918 = vadd.f32 %v1693, %v1917
      %v1919 = vpop.f32.mrb[0].mxu0
      %1920 = vmatprep.mubr.bf16.mxu0 0
      %1921 = vmatmul.mubr.bf16.gmra.mrb[0].mxu0 %v520
      %v1922 = vpop.f32.mrb[0].mxu0
      %v1923 = vadd.f32 %v1698, %v1922
      %v1924 = vpop.f32.mrb[0].mxu0
      %v1925 = vpop.f32.mrb[0].mxu0
      %v1926 = vadd.f32 %v1701, %v1925
      %v1927 = vpop.f32.mrb[0].mxu0
      %1928 = vmatprep.mubr.bf16.mxu0 0
      %1929 = vmatmul.mubr.bf16.gmra.mrb[0].mxu0 %v521
      %v1930 = vpop.f32.mrb[0].mxu0
      %v1931 = vadd.f32 %v1706, %v1930
      %v1932 = vpop.f32.mrb[0].mxu0
      %v1933 = vpop.f32.mrb[0].mxu0
      %v1934 = vadd.f32 %v1709, %v1933
      %v1935 = vpop.f32.mrb[0].mxu0
      %1936 = vmatprep.mubr.bf16.mxu0 0
      %1937 = vmatmul.mubr.bf16.gmra.mrb[0].mxu0 %v522
      %v1938 = vpop.f32.mrb[0].mxu0
      %v1939 = vadd.f32 %v1714, %v1938
      %v1940 = vpop.f32.mrb[0].mxu0
      %v1941 = vpop.f32.mrb[0].mxu0
      %v1942 = vadd.f32 %v1717, %v1941
      %v1943 = vpop.f32.mrb[0].mxu0
      %1944 = vmatprep.mubr.bf16.mxu0 0
      %1945 = vmatmul.mubr.bf16.gmra.mrb[0].mxu0 %v523
      %v1946 = vpop.f32.mrb[0].mxu0
      %v1947 = vadd.f32 %v1722, %v1946
      %v1948 = vpop.f32.mrb[0].mxu0
      %v1949 = vpop.f32.mrb[0].mxu0
      %v1950 = vadd.f32 %v1725, %v1949
      %v1951 = vpop.f32.mrb[0].mxu0
      %1952 = vmatprep.mubr.bf16.mxu0 0
      %1953 = vmatmul.mubr.bf16.gmra.mrb[0].mxu0 %v560
      %v1954 = vpop.f32.mrb[0].mxu0
      %v1955 = vadd.f32 %v1730, %v1954
      %v1956 = vpop.f32.mrb[0].mxu0
      %v1957 = vpop.f32.mrb[0].mxu0
      %v1958 = vadd.f32 %v1733, %v1957
      %v1959 = vpop.f32.mrb[0].mxu0
      %1960 = vmatprep.mubr.bf16.mxu0 0
      %1961 = vmatmul.mubr.bf16.gmra.mrb[0].mxu0 %v561
      %v1962 = vpop.f32.mrb[0].mxu0
      %v1963 = vadd.f32 %v1738, %v1962
      %v1964 = vpop.f32.mrb[0].mxu0
      %v1965 = vpop.f32.mrb[0].mxu0
      %v1966 = vadd.f32 %v1741, %v1965
      %v1967 = vpop.f32.mrb[0].mxu0
      %1968 = vmatprep.mubr.bf16.mxu0 0
      %1969 = vmatmul.mubr.bf16.gmra.mrb[0].mxu0 %v562
      %v1970 = vpop.f32.mrb[0].mxu0
      %v1971 = vadd.f32 %v1746, %v1970
      %v1972 = vpop.f32.mrb[0].mxu0
      %v1973 = vpop.f32.mrb[0].mxu0
      %v1974 = vadd.f32 %v1749, %v1973
      %v1975 = vpop.f32.mrb[0].mxu0
      %1976 = vdwg.mxu0
      %vm2025 = vcmask 1046528
      %v2026 = vrot.slane %v1787, 1
      %v2027 = vrot.slane %v1790, 1
      %v2028 = vsel %vm2025, %v2026, %v2027
      %v2029 = vrot.slane %v1795, 1
      %v2030 = vsel %vm2025, %v2027, %v2029
      %v2031 = vrot.slane %v1798, 1
      %v2032 = vrot.slane %v1803, 1
      %v2033 = vsel %vm2025, %v2031, %v2032
      %v2034 = vrot.slane %v1806, 1
      %v2035 = vsel %vm2025, %v2032, %v2034
      %v2036 = vrot.slane %v1811, 1
      %v2037 = vrot.slane %v1814, 1
      %v2038 = vsel %vm2025, %v2036, %v2037
      %v2039 = vrot.slane %v1819, 1
      %v2040 = vsel %vm2025, %v2037, %v2039
      %v2041 = vrot.slane %v1822, 1
      %v2042 = vrot.slane %v1827, 1
      %v2043 = vsel %vm2025, %v2041, %v2042
      %v2044 = vrot.slane %v1830, 1
      %v2045 = vsel %vm2025, %v2042, %v2044
      %v2046 = vrot.slane %v1835, 1
      %v2047 = vrot.slane %v1838, 1
      %v2048 = vsel %vm2025, %v2046, %v2047
      %v2049 = vrot.slane %v1843, 1
      %v2050 = vsel %vm2025, %v2047, %v2049
      %v2051 = vrot.slane %v1846, 1
      %v2052 = vrot.slane %v1851, 1
      %v2053 = vsel %vm2025, %v2051, %v2052
      %v2054 = vrot.slane %v1854, 1
      %v2055 = vsel %vm2025, %v2052, %v2054
      %v2056 = vrot.slane %v1859, 1
      %v2057 = vrot.slane %v1862, 1
      %v2058 = vsel %vm2025, %v2056, %v2057
      %v2059 = vrot.slane %v1867, 1
      %v2060 = vsel %vm2025, %v2057, %v2059
      %v2061 = vrot.slane %v1870, 1
      %v2062 = vrot.slane %v1875, 1
      %v2063 = vsel %vm2025, %v2061, %v2062
      %v2064 = vrot.slane %v1878, 1
      %v2065 = vsel %vm2025, %v2062, %v2064
      %v2066 = vrot.slane %v1883, 1
      %v2067 = vrot.slane %v1886, 1
      %v2068 = vsel %vm2025, %v2066, %v2067
      %v2069 = vrot.slane %v1891, 1
      %v2070 = vsel %vm2025, %v2067, %v2069
      %v2071 = vrot.slane %v1894, 1
      %v2072 = vrot.slane %v1899, 1
      %v2073 = vsel %vm2025, %v2071, %v2072
      %v2074 = vrot.slane %v1902, 1
      %v2075 = vsel %vm2025, %v2072, %v2074
      %v2076 = vrot.slane %v1907, 1
      %v2077 = vrot.slane %v1910, 1
      %v2078 = vsel %vm2025, %v2076, %v2077
      %v2079 = vrot.slane %v1915, 1
      %v2080 = vsel %vm2025, %v2077, %v2079
      %v2081 = vrot.slane %v1918, 1
      %v2082 = vrot.slane %v1923, 1
      %v2083 = vsel %vm2025, %v2081, %v2082
      %v2084 = vrot.slane %v1926, 1
      %v2085 = vsel %vm2025, %v2082, %v2084
      %v2086 = vrot.slane %v1931, 1
      %v2087 = vrot.slane %v1934, 1
      %v2088 = vsel %vm2025, %v2086, %v2087
      %v2089 = vrot.slane %v1939, 1
      %v2090 = vsel %vm2025, %v2087, %v2089
      %v2091 = vrot.slane %v1942, 1
      %v2092 = vrot.slane %v1947, 1
      %v2093 = vsel %vm2025, %v2091, %v2092
      %v2094 = vrot.slane %v1950, 1
      %v2095 = vsel %vm2025, %v2092, %v2094
      %v2096 = vrot.slane %v1955, 1
      %v2097 = vrot.slane %v1958, 1
      %v2098 = vsel %vm2025, %v2096, %v2097
      %v2099 = vrot.slane %v1963, 1
      %v2100 = vsel %vm2025, %v2097, %v2099
      %v2101 = vrot.slane %v1966, 1
      %v2102 = vrot.slane %v1971, 1
      %v2103 = vsel %vm2025, %v2101, %v2102
      %v2104 = vrot.slane %v1974, 1
      %v2105 = vsel %vm2025, %v2102, %v2104
      %v2154 = vadd.f32 %v1284, %v2028
      %v2155 = vadd.f32 %v1285, %v2030
      %v2156 = vadd.f32 %v1286, %v2029
      %v2157 = vadd.f32 %v1287, %v2033
      %v2158 = vadd.f32 %v1288, %v2035
      %v2159 = vadd.f32 %v1289, %v2034
      %v2160 = vadd.f32 %v1290, %v2038
      %v2161 = vadd.f32 %v1291, %v2040
      %v2162 = vadd.f32 %v1292, %v2039
      %v2163 = vadd.f32 %v1293, %v2043
      %v2164 = vadd.f32 %v1294, %v2045
      %v2165 = vadd.f32 %v1295, %v2044
      %v2166 = vadd.f32 %v1296, %v2048
      %v2167 = vadd.f32 %v1297, %v2050
      %v2168 = vadd.f32 %v1298, %v2049
      %v2169 = vadd.f32 %v1299, %v2053
      %v2170 = vadd.f32 %v1300, %v2055
      %v2171 = vadd.f32 %v1301, %v2054
      %v2172 = vadd.f32 %v1302, %v2058
      %v2173 = vadd.f32 %v1303, %v2060
      %v2174 = vadd.f32 %v1304, %v2059
      %v2175 = vadd.f32 %v1305, %v2063
      %v2176 = vadd.f32 %v1306, %v2065
      %v2177 = vadd.f32 %v1307, %v2064
      %v2178 = vadd.f32 %v1308, %v2068
      %v2179 = vadd.f32 %v1309, %v2070
      %v2180 = vadd.f32 %v1310, %v2069
      %v2181 = vadd.f32 %v1311, %v2073
      %v2182 = vadd.f32 %v1312, %v2075
      %v2183 = vadd.f32 %v1313, %v2074
      %v2184 = vadd.f32 %v1314, %v2078
      %v2185 = vadd.f32 %v1315, %v2080
      %v2186 = vadd.f32 %v1316, %v2079
      %v2187 = vadd.f32 %v1317, %v2083
      %v2188 = vadd.f32 %v1318, %v2085
      %v2189 = vadd.f32 %v1319, %v2084
      %v2190 = vadd.f32 %v1320, %v2088
      %v2191 = vadd.f32 %v1321, %v2090
      %v2192 = vadd.f32 %v1322, %v2089
      %v2193 = vadd.f32 %v1323, %v2093
      %v2194 = vadd.f32 %v1324, %v2095
      %v2195 = vadd.f32 %v1325, %v2094
      %v2196 = vadd.f32 %v1326, %v2098
      %v2197 = vadd.f32 %v1327, %v2100
      %v2198 = vadd.f32 %v1328, %v2099
      %v2199 = vadd.f32 %v1329, %v2103
      %v2200 = vadd.f32 %v1330, %v2105
      %v2201 = vadd.f32 %v1331, %v2104
      %s2202 = scalar_lea.vmem %s2, 128
      %v2203 = vld [vmem:[%s2202] sm:$0xf]
      %v2204 = vld [vmem:[%s2202 + $0x4] sm:$0xf]
      %v2205 = vld [vmem:[%s2202 + $0x8] sm:$0xf]
      %v2206 = vld [vmem:[%s2202 + $0xc] sm:$0xf]
      %v2207 = vld [vmem:[%s2202 + $0x10] sm:$0xf]
      %v2208 = vld [vmem:[%s2202 + $0x14] sm:$0xf]
      %v2209 = vld [vmem:[%s2202 + $0x18] sm:$0xf]
      %v2210 = vld [vmem:[%s2202 + $0x1c] sm:$0xf]
      %v2211 = vld [vmem:[%s2202 + $0x20] sm:$0xf]
      %v2212 = vld [vmem:[%s2202 + $0x24] sm:$0xf]
      %v2213 = vld [vmem:[%s2202 + $0x28] sm:$0xf]
      %v2214 = vld [vmem:[%s2202 + $0x2c] sm:$0xf]
      %v2215 = vld [vmem:[%s2202 + $0x30] sm:$0xf]
      %v2216 = vld [vmem:[%s2202 + $0x34] sm:$0xf]
      %v2217 = vld [vmem:[%s2202 + $0x38] sm:$0xf]
      %v2218 = vld [vmem:[%s2202 + $0x3c] sm:$0xf]
      %s2219 = scalar_lea.vmem %s2, 320
      %v2220 = vld [vmem:[%s2219] sm:$0xf]
      %v2221 = vld [vmem:[%s2219 + $0x4] sm:$0xf]
      %v2222 = vld [vmem:[%s2219 + $0x8] sm:$0xf]
      %v2223 = vld [vmem:[%s2219 + $0xc] sm:$0xf]
      %v2224 = vld [vmem:[%s2219 + $0x10] sm:$0xf]
      %v2225 = vld [vmem:[%s2219 + $0x14] sm:$0xf]
      %v2226 = vld [vmem:[%s2219 + $0x18] sm:$0xf]
      %v2227 = vld [vmem:[%s2219 + $0x1c] sm:$0xf]
      %v2228 = vld [vmem:[%s2219 + $0x20] sm:$0xf]
      %v2229 = vld [vmem:[%s2219 + $0x24] sm:$0xf]
      %v2230 = vld [vmem:[%s2219 + $0x28] sm:$0xf]
      %v2231 = vld [vmem:[%s2219 + $0x2c] sm:$0xf]
      %v2232 = vld [vmem:[%s2219 + $0x30] sm:$0xf]
      %v2233 = vld [vmem:[%s2219 + $0x34] sm:$0xf]
      %v2234 = vld [vmem:[%s2219 + $0x38] sm:$0xf]
      %v2235 = vld [vmem:[%s2219 + $0x3c] sm:$0xf]
      %s2236 = scalar_lea.vmem %s2, 512
      %v2237 = vld [vmem:[%s2236] sm:$0xf]
      %v2238 = vld [vmem:[%s2236 + $0x4] sm:$0xf]
      %v2239 = vld [vmem:[%s2236 + $0x8] sm:$0xf]
      %v2240 = vld [vmem:[%s2236 + $0xc] sm:$0xf]
      %v2241 = vld [vmem:[%s2236 + $0x10] sm:$0xf]
      %v2242 = vld [vmem:[%s2236 + $0x14] sm:$0xf]
      %v2243 = vld [vmem:[%s2236 + $0x18] sm:$0xf]
      %v2244 = vld [vmem:[%s2236 + $0x1c] sm:$0xf]
      %v2245 = vld [vmem:[%s2236 + $0x20] sm:$0xf]
      %v2246 = vld [vmem:[%s2236 + $0x24] sm:$0xf]
      %v2247 = vld [vmem:[%s2236 + $0x28] sm:$0xf]
      %v2248 = vld [vmem:[%s2236 + $0x2c] sm:$0xf]
      %v2249 = vld [vmem:[%s2236 + $0x30] sm:$0xf]
      %v2250 = vld [vmem:[%s2236 + $0x34] sm:$0xf]
      %v2251 = vld [vmem:[%s2236 + $0x38] sm:$0xf]
      %v2252 = vld [vmem:[%s2236 + $0x3c] sm:$0xf]
      %v2269 = vunpack.c.l.b16 %v2203
      %v2270 = vunpack.c.l.b16 %v2204
      %v2271 = vunpack.c.l.b16 %v2205
      %v2272 = vunpack.c.l.b16 %v2206
      %v2273 = vunpack.c.l.b16 %v2207
      %v2274 = vunpack.c.l.b16 %v2208
      %v2275 = vunpack.c.l.b16 %v2209
      %v2276 = vunpack.c.l.b16 %v2210
      %v2277 = vunpack.c.l.b16 %v2211
      %v2278 = vunpack.c.l.b16 %v2212
      %v2279 = vunpack.c.l.b16 %v2213
      %v2280 = vunpack.c.l.b16 %v2214
      %v2281 = vunpack.c.l.b16 %v2215
      %v2282 = vunpack.c.l.b16 %v2216
      %v2283 = vunpack.c.l.b16 %v2217
      %v2284 = vunpack.c.l.b16 %v2218
      %v2285 = vpack.c.b16 %v2270, %v2269
      %v2286 = vpack.c.b16 %v2272, %v2271
      %v2287 = vpack.c.b16 %v2274, %v2273
      %v2288 = vpack.c.b16 %v2276, %v2275
      %v2289 = vpack.c.b16 %v2278, %v2277
      %v2290 = vpack.c.b16 %v2280, %v2279
      %v2291 = vpack.c.b16 %v2282, %v2281
      %v2292 = vpack.c.b16 %v2284, %v2283
      %v2317 = vunpack.c.l.b16 %v2220
      %v2318 = vunpack.c.l.b16 %v2221
      %v2319 = vunpack.c.l.b16 %v2222
      %v2320 = vunpack.c.l.b16 %v2223
      %v2321 = vunpack.c.l.b16 %v2224
      %v2322 = vunpack.c.l.b16 %v2225
      %v2323 = vunpack.c.l.b16 %v2226
      %v2324 = vunpack.c.l.b16 %v2227
      %v2325 = vunpack.c.l.b16 %v2228
      %v2326 = vunpack.c.l.b16 %v2229
      %v2327 = vunpack.c.l.b16 %v2230
      %v2328 = vunpack.c.l.b16 %v2231
      %v2329 = vunpack.c.l.b16 %v2232
      %v2330 = vunpack.c.l.b16 %v2233
      %v2331 = vunpack.c.l.b16 %v2234
      %v2332 = vunpack.c.l.b16 %v2235
      %v2333 = vpack.c.b16 %v2318, %v2317
      %v2334 = vpack.c.b16 %v2320, %v2319
      %v2335 = vpack.c.b16 %v2322, %v2321
      %v2336 = vpack.c.b16 %v2324, %v2323
      %v2337 = vpack.c.b16 %v2326, %v2325
      %v2338 = vpack.c.b16 %v2328, %v2327
      %v2339 = vpack.c.b16 %v2330, %v2329
      %v2340 = vpack.c.b16 %v2332, %v2331
      %v2365 = vunpack.c.l.b16 %v2237
      %v2366 = vunpack.c.l.b16 %v2238
      %v2367 = vunpack.c.l.b16 %v2239
      %v2368 = vunpack.c.l.b16 %v2240
      %v2369 = vunpack.c.l.b16 %v2241
      %v2370 = vunpack.c.l.b16 %v2242
      %v2371 = vunpack.c.l.b16 %v2243
      %v2372 = vunpack.c.l.b16 %v2244
      %v2373 = vunpack.c.l.b16 %v2245
      %v2374 = vunpack.c.l.b16 %v2246
      %v2375 = vunpack.c.l.b16 %v2247
      %v2376 = vunpack.c.l.b16 %v2248
      %v2377 = vunpack.c.l.b16 %v2249
      %v2378 = vunpack.c.l.b16 %v2250
      %v2379 = vunpack.c.l.b16 %v2251
      %v2380 = vunpack.c.l.b16 %v2252
      %v2381 = vpack.c.b16 %v2366, %v2365
      %v2382 = vpack.c.b16 %v2368, %v2367
      %v2383 = vpack.c.b16 %v2370, %v2369
      %v2384 = vpack.c.b16 %v2372, %v2371
      %v2385 = vpack.c.b16 %v2374, %v2373
      %v2386 = vpack.c.b16 %v2376, %v2375
      %v2387 = vpack.c.b16 %v2378, %v2377
      %v2388 = vpack.c.b16 %v2380, %v2379
      %2397 = vmatprep.subr.bf16.mxu0 0
      %2398 = vmatpush1.bf16.msra.mxu0 %v2285
      %2399 = vmatprep.subr.bf16.mxu0 0
      %2400 = vmatpush1.bf16.msra.mxu0 %v2286
      %2401 = vmatprep.subr.bf16.mxu0 0
      %2402 = vmatpush1.bf16.msra.mxu0 %v2287
      %2403 = vmatprep.subr.bf16.mxu0 0
      %2404 = vmatpush1.bf16.msra.mxu0 %v2288
      %2405 = vmatprep.subr.bf16.mxu0 0
      %2406 = vmatpush1.bf16.msra.mxu0 %v2289
      %2407 = vmatprep.subr.bf16.mxu0 0
      %2408 = vmatpush1.bf16.msra.mxu0 %v2290
      %2409 = vmatprep.subr.bf16.mxu0 0
      %2410 = vmatpush1.bf16.msra.mxu0 %v2291
      %2411 = vmatprep.subr.bf16.mxu0 0
      %2412 = vmatpush1.bf16.msra.mxu0 %v2292
      %2413 = vmatprep.subr.bf16.mxu0 0
      %2414 = vmatpush1.bf16.msra.mxu0 %v2333
      %2415 = vmatprep.subr.bf16.mxu0 0
      %2416 = vmatpush1.bf16.msra.mxu0 %v2334
      %2417 = vmatprep.subr.bf16.mxu0 0
      %2418 = vmatpush1.bf16.msra.mxu0 %v2335
      %2419 = vmatprep.subr.bf16.mxu0 0
      %2420 = vmatpush1.bf16.msra.mxu0 %v2336
      %2421 = vmatprep.subr.bf16.mxu0 0
      %2422 = vmatpush1.bf16.msra.mxu0 %v2337
      %2423 = vmatprep.subr.bf16.mxu0 0
      %2424 = vmatpush1.bf16.msra.mxu0 %v2338
      %2425 = vmatprep.subr.bf16.mxu0 0
      %2426 = vmatpush1.bf16.msra.mxu0 %v2339
      %2427 = vmatprep.subr.bf16.mxu0 0
      %2428 = vmatpush1.bf16.msra.mxu0 %v2340
      %2429 = vmatprep.mubr.bf16.mxu0 %v569
      %2430 = vmatmul.mubr.bf16.gmra.mrb[0].mxu0 %v500
      %v2431 = vpop.f32.mrb[0].mxu0
      %v2432 = vadd.f32 0.0, %v2431
      %v2433 = vpop.f32.mrb[0].mxu0
      %v2434 = vpop.f32.mrb[0].mxu0
      %v2435 = vadd.f32 0.0, %v2434
      %v2436 = vpop.f32.mrb[0].mxu0
      %2437 = vmatprep.mubr.bf16.mxu0 %v571
      %2438 = vmatmul.mubr.bf16.gmra.mrb[0].mxu0 %v501
      %v2439 = vpop.f32.mrb[0].mxu0
      %v2440 = vadd.f32 0.0, %v2439
      %v2441 = vpop.f32.mrb[0].mxu0
      %v2442 = vpop.f32.mrb[0].mxu0
      %v2443 = vadd.f32 0.0, %v2442
      %v2444 = vpop.f32.mrb[0].mxu0
      %2445 = vmatprep.mubr.bf16.mxu0 %v573
      %2446 = vmatmul.mubr.bf16.gmra.mrb[0].mxu0 %v502
      %v2447 = vpop.f32.mrb[0].mxu0
      %v2448 = vadd.f32 0.0, %v2447
      %v2449 = vpop.f32.mrb[0].mxu0
      %v2450 = vpop.f32.mrb[0].mxu0
      %v2451 = vadd.f32 0.0, %v2450
      %v2452 = vpop.f32.mrb[0].mxu0
      %2453 = vmatprep.mubr.bf16.mxu0 %v575
      %2454 = vmatmul.mubr.bf16.gmra.mrb[0].mxu0 %v503
      %v2455 = vpop.f32.mrb[0].mxu0
      %v2456 = vadd.f32 0.0, %v2455
      %v2457 = vpop.f32.mrb[0].mxu0
      %v2458 = vpop.f32.mrb[0].mxu0
      %v2459 = vadd.f32 0.0, %v2458
      %v2460 = vpop.f32.mrb[0].mxu0
      %2461 = vmatprep.mubr.bf16.mxu0 %v577
      %2462 = vmatmul.mubr.bf16.gmra.mrb[0].mxu0 %v504
      %v2463 = vpop.f32.mrb[0].mxu0
      %v2464 = vadd.f32 0.0, %v2463
      %v2465 = vpop.f32.mrb[0].mxu0
      %v2466 = vpop.f32.mrb[0].mxu0
      %v2467 = vadd.f32 0.0, %v2466
      %v2468 = vpop.f32.mrb[0].mxu0
      %2469 = vmatprep.mubr.bf16.mxu0 %v579
      %2470 = vmatmul.mubr.bf16.gmra.mrb[0].mxu0 %v505
      %v2471 = vpop.f32.mrb[0].mxu0
      %v2472 = vadd.f32 0.0, %v2471
      %v2473 = vpop.f32.mrb[0].mxu0
      %v2474 = vpop.f32.mrb[0].mxu0
      %v2475 = vadd.f32 0.0, %v2474
      %v2476 = vpop.f32.mrb[0].mxu0
      %2477 = vmatprep.mubr.bf16.mxu0 %v581
      %2478 = vmatmul.mubr.bf16.gmra.mrb[0].mxu0 %v506
      %v2479 = vpop.f32.mrb[0].mxu0
      %v2480 = vadd.f32 0.0, %v2479
      %v2481 = vpop.f32.mrb[0].mxu0
      %v2482 = vpop.f32.mrb[0].mxu0
      %v2483 = vadd.f32 0.0, %v2482
      %v2484 = vpop.f32.mrb[0].mxu0
      %2485 = vmatprep.mubr.bf16.mxu0 %v583
      %2486 = vmatmul.mubr.bf16.gmra.mrb[0].mxu0 %v507
      %v2487 = vpop.f32.mrb[0].mxu0
      %v2488 = vadd.f32 0.0, %v2487
      %v2489 = vpop.f32.mrb[0].mxu0
      %v2490 = vpop.f32.mrb[0].mxu0
      %v2491 = vadd.f32 0.0, %v2490
      %v2492 = vpop.f32.mrb[0].mxu0
      %2493 = vmatprep.mubr.bf16.mxu0 %v585
      %2494 = vmatmul.mubr.bf16.gmra.mrb[0].mxu0 %v508
      %v2495 = vpop.f32.mrb[0].mxu0
      %v2496 = vadd.f32 0.0, %v2495
      %v2497 = vpop.f32.mrb[0].mxu0
      %v2498 = vpop.f32.mrb[0].mxu0
      %v2499 = vadd.f32 0.0, %v2498
      %v2500 = vpop.f32.mrb[0].mxu0
      %2501 = vmatprep.mubr.bf16.mxu0 %v587
      %2502 = vmatmul.mubr.bf16.gmra.mrb[0].mxu0 %v509
      %v2503 = vpop.f32.mrb[0].mxu0
      %v2504 = vadd.f32 0.0, %v2503
      %v2505 = vpop.f32.mrb[0].mxu0
      %v2506 = vpop.f32.mrb[0].mxu0
      %v2507 = vadd.f32 0.0, %v2506
      %v2508 = vpop.f32.mrb[0].mxu0
      %2509 = vmatprep.mubr.bf16.mxu0 %v589
      %2510 = vmatmul.mubr.bf16.gmra.mrb[0].mxu0 %v510
      %v2511 = vpop.f32.mrb[0].mxu0
      %v2512 = vadd.f32 0.0, %v2511
      %v2513 = vpop.f32.mrb[0].mxu0
      %v2514 = vpop.f32.mrb[0].mxu0
      %v2515 = vadd.f32 0.0, %v2514
      %v2516 = vpop.f32.mrb[0].mxu0
      %2517 = vmatprep.mubr.bf16.mxu0 %v591
      %2518 = vmatmul.mubr.bf16.gmra.mrb[0].mxu0 %v511
      %v2519 = vpop.f32.mrb[0].mxu0
      %v2520 = vadd.f32 0.0, %v2519
      %v2521 = vpop.f32.mrb[0].mxu0
      %v2522 = vpop.f32.mrb[0].mxu0
      %v2523 = vadd.f32 0.0, %v2522
      %v2524 = vpop.f32.mrb[0].mxu0
      %2525 = vmatprep.mubr.bf16.mxu0 %v593
      %2526 = vmatmul.mubr.bf16.gmra.mrb[0].mxu0 %v512
      %v2527 = vpop.f32.mrb[0].mxu0
      %v2528 = vadd.f32 0.0, %v2527
      %v2529 = vpop.f32.mrb[0].mxu0
      %v2530 = vpop.f32.mrb[0].mxu0
      %v2531 = vadd.f32 0.0, %v2530
      %v2532 = vpop.f32.mrb[0].mxu0
      %2533 = vmatprep.mubr.bf16.mxu0 %v595
      %2534 = vmatmul.mubr.bf16.gmra.mrb[0].mxu0 %v513
      %v2535 = vpop.f32.mrb[0].mxu0
      %v2536 = vadd.f32 0.0, %v2535
      %v2537 = vpop.f32.mrb[0].mxu0
      %v2538 = vpop.f32.mrb[0].mxu0
      %v2539 = vadd.f32 0.0, %v2538
      %v2540 = vpop.f32.mrb[0].mxu0
      %2541 = vmatprep.mubr.bf16.mxu0 %v597
      %2542 = vmatmul.mubr.bf16.gmra.mrb[0].mxu0 %v514
      %v2543 = vpop.f32.mrb[0].mxu0
      %v2544 = vadd.f32 0.0, %v2543
      %v2545 = vpop.f32.mrb[0].mxu0
      %v2546 = vpop.f32.mrb[0].mxu0
      %v2547 = vadd.f32 0.0, %v2546
      %v2548 = vpop.f32.mrb[0].mxu0
      %2549 = vmatprep.mubr.bf16.mxu0 %v599
      %2550 = vmatmul.mubr.bf16.gmra.mrb[0].mxu0 %v515
      %v2551 = vpop.f32.mrb[0].mxu0
      %v2552 = vadd.f32 0.0, %v2551
      %v2553 = vpop.f32.mrb[0].mxu0
      %v2554 = vpop.f32.mrb[0].mxu0
      %v2555 = vadd.f32 0.0, %v2554
      %v2556 = vpop.f32.mrb[0].mxu0
      %2557 = vmatprep.mubr.bf16.mxu0 %v601
      %2558 = vmatmul.mubr.bf16.gmra.mrb[0].mxu0 %v516
      %v2559 = vpop.f32.mrb[0].mxu0
      %v2560 = vadd.f32 0.0, %v2559
      %v2561 = vpop.f32.mrb[0].mxu0
      %v2562 = vpop.f32.mrb[0].mxu0
      %v2563 = vadd.f32 0.0, %v2562
      %v2564 = vpop.f32.mrb[0].mxu0
      %2565 = vmatprep.mubr.bf16.mxu0 %v603
      %2566 = vmatmul.mubr.bf16.gmra.mrb[0].mxu0 %v517
      %v2567 = vpop.f32.mrb[0].mxu0
      %v2568 = vadd.f32 0.0, %v2567
      %v2569 = vpop.f32.mrb[0].mxu0
      %v2570 = vpop.f32.mrb[0].mxu0
      %v2571 = vadd.f32 0.0, %v2570
      %v2572 = vpop.f32.mrb[0].mxu0
      %2573 = vmatprep.mubr.bf16.mxu0 %v605
      %2574 = vmatmul.mubr.bf16.gmra.mrb[0].mxu0 %v518
      %v2575 = vpop.f32.mrb[0].mxu0
      %v2576 = vadd.f32 0.0, %v2575
      %v2577 = vpop.f32.mrb[0].mxu0
      %v2578 = vpop.f32.mrb[0].mxu0
      %v2579 = vadd.f32 0.0, %v2578
      %v2580 = vpop.f32.mrb[0].mxu0
      %2581 = vmatprep.mubr.bf16.mxu0 %v607
      %2582 = vmatmul.mubr.bf16.gmra.mrb[0].mxu0 %v519
      %v2583 = vpop.f32.mrb[0].mxu0
      %v2584 = vadd.f32 0.0, %v2583
      %v2585 = vpop.f32.mrb[0].mxu0
      %v2586 = vpop.f32.mrb[0].mxu0
      %v2587 = vadd.f32 0.0, %v2586
      %v2588 = vpop.f32.mrb[0].mxu0
      %2589 = vmatprep.mubr.bf16.mxu0 %v609
      %2590 = vmatmul.mubr.bf16.gmra.mrb[0].mxu0 %v520
      %v2591 = vpop.f32.mrb[0].mxu0
      %v2592 = vadd.f32 0.0, %v2591
      %v2593 = vpop.f32.mrb[0].mxu0
      %v2594 = vpop.f32.mrb[0].mxu0
      %v2595 = vadd.f32 0.0, %v2594
      %v2596 = vpop.f32.mrb[0].mxu0
      %2597 = vmatprep.mubr.bf16.mxu0 %v611
      %2598 = vmatmul.mubr.bf16.gmra.mrb[0].mxu0 %v521
      %v2599 = vpop.f32.mrb[0].mxu0
      %v2600 = vadd.f32 0.0, %v2599
      %v2601 = vpop.f32.mrb[0].mxu0
      %v2602 = vpop.f32.mrb[0].mxu0
      %v2603 = vadd.f32 0.0, %v2602
      %v2604 = vpop.f32.mrb[0].mxu0
      %2605 = vmatprep.mubr.bf16.mxu0 %v613
      %2606 = vmatmul.mubr.bf16.gmra.mrb[0].mxu0 %v522
      %v2607 = vpop.f32.mrb[0].mxu0
      %v2608 = vadd.f32 0.0, %v2607
      %v2609 = vpop.f32.mrb[0].mxu0
      %v2610 = vpop.f32.mrb[0].mxu0
      %v2611 = vadd.f32 0.0, %v2610
      %v2612 = vpop.f32.mrb[0].mxu0
      %2613 = vmatprep.mubr.bf16.mxu0 %v615
      %2614 = vmatmul.mubr.bf16.gmra.mrb[0].mxu0 %v523
      %v2615 = vpop.f32.mrb[0].mxu0
      %v2616 = vadd.f32 0.0, %v2615
      %v2617 = vpop.f32.mrb[0].mxu0
      %v2618 = vpop.f32.mrb[0].mxu0
      %v2619 = vadd.f32 0.0, %v2618
      %v2620 = vpop.f32.mrb[0].mxu0
      %2621 = vdwg.mxu0
      %2622 = vmatprep.subr.bf16.mxu0 0
      %2623 = vmatpush1.bf16.msra.mxu0 %v2381
      %2624 = vmatprep.subr.bf16.mxu0 0
      %2625 = vmatpush1.bf16.msra.mxu0 %v2382
      %2626 = vmatprep.subr.bf16.mxu0 0
      %2627 = vmatpush1.bf16.msra.mxu0 %v2383
      %2628 = vmatprep.subr.bf16.mxu0 0
      %2629 = vmatpush1.bf16.msra.mxu0 %v2384
      %2630 = vmatprep.subr.bf16.mxu0 0
      %2631 = vmatpush1.bf16.msra.mxu0 %v2385
      %2632 = vmatprep.subr.bf16.mxu0 0
      %2633 = vmatpush1.bf16.msra.mxu0 %v2386
      %2634 = vmatprep.subr.bf16.mxu0 0
      %2635 = vmatpush1.bf16.msra.mxu0 %v2387
      %2636 = vmatprep.subr.bf16.mxu0 0
      %2637 = vmatpush1.bf16.msra.mxu0 %v2388
      %2638 = vmatprep.subr.bf16.mxu0 0
      %2639 = vmatpush1.bf16.msra.mxu0 0
      %2640 = vmatprep.subr.bf16.mxu0 0
      %2641 = vmatpush1.bf16.msra.mxu0 0
      %2642 = vmatprep.subr.bf16.mxu0 0
      %2643 = vmatpush1.bf16.msra.mxu0 0
      %2644 = vmatprep.subr.bf16.mxu0 0
      %2645 = vmatpush1.bf16.msra.mxu0 0
      %2646 = vmatprep.subr.bf16.mxu0 0
      %2647 = vmatpush1.bf16.msra.mxu0 0
      %2648 = vmatprep.subr.bf16.mxu0 0
      %2649 = vmatpush1.bf16.msra.mxu0 0
      %2650 = vmatprep.subr.bf16.mxu0 0
      %2651 = vmatpush1.bf16.msra.mxu0 0
      %2652 = vmatprep.subr.bf16.mxu0 0
      %2653 = vmatpush1.bf16.msra.mxu0 0
      %2654 = vmatprep.mubr.bf16.mxu0 0
      %2655 = vmatmul.mubr.bf16.gmra.mrb[0].mxu0 %v503
      %v2656 = vpop.f32.mrb[0].mxu0
      %v2657 = vadd.f32 %v2432, %v2656
      %v2658 = vpop.f32.mrb[0].mxu0
      %v2659 = vpop.f32.mrb[0].mxu0
      %v2660 = vadd.f32 %v2435, %v2659
      %v2661 = vpop.f32.mrb[0].mxu0
      %2662 = vmatprep.mubr.bf16.mxu0 0
      %2663 = vmatmul.mubr.bf16.gmra.mrb[0].mxu0 %v504
      %v2664 = vpop.f32.mrb[0].mxu0
      %v2665 = vadd.f32 %v2440, %v2664
      %v2666 = vpop.f32.mrb[0].mxu0
      %v2667 = vpop.f32.mrb[0].mxu0
      %v2668 = vadd.f32 %v2443, %v2667
      %v2669 = vpop.f32.mrb[0].mxu0
      %2670 = vmatprep.mubr.bf16.mxu0 0
      %2671 = vmatmul.mubr.bf16.gmra.mrb[0].mxu0 %v505
      %v2672 = vpop.f32.mrb[0].mxu0
      %v2673 = vadd.f32 %v2448, %v2672
      %v2674 = vpop.f32.mrb[0].mxu0
      %v2675 = vpop.f32.mrb[0].mxu0
      %v2676 = vadd.f32 %v2451, %v2675
      %v2677 = vpop.f32.mrb[0].mxu0
      %2678 = vmatprep.mubr.bf16.mxu0 0
      %2679 = vmatmul.mubr.bf16.gmra.mrb[0].mxu0 %v506
      %v2680 = vpop.f32.mrb[0].mxu0
      %v2681 = vadd.f32 %v2456, %v2680
      %v2682 = vpop.f32.mrb[0].mxu0
      %v2683 = vpop.f32.mrb[0].mxu0
      %v2684 = vadd.f32 %v2459, %v2683
      %v2685 = vpop.f32.mrb[0].mxu0
      %2686 = vmatprep.mubr.bf16.mxu0 0
      %2687 = vmatmul.mubr.bf16.gmra.mrb[0].mxu0 %v507
      %v2688 = vpop.f32.mrb[0].mxu0
      %v2689 = vadd.f32 %v2464, %v2688
      %v2690 = vpop.f32.mrb[0].mxu0
      %v2691 = vpop.f32.mrb[0].mxu0
      %v2692 = vadd.f32 %v2467, %v2691
      %v2693 = vpop.f32.mrb[0].mxu0
      %2694 = vmatprep.mubr.bf16.mxu0 0
      %2695 = vmatmul.mubr.bf16.gmra.mrb[0].mxu0 %v508
      %v2696 = vpop.f32.mrb[0].mxu0
      %v2697 = vadd.f32 %v2472, %v2696
      %v2698 = vpop.f32.mrb[0].mxu0
      %v2699 = vpop.f32.mrb[0].mxu0
      %v2700 = vadd.f32 %v2475, %v2699
      %v2701 = vpop.f32.mrb[0].mxu0
      %2702 = vmatprep.mubr.bf16.mxu0 0
      %2703 = vmatmul.mubr.bf16.gmra.mrb[0].mxu0 %v509
      %v2704 = vpop.f32.mrb[0].mxu0
      %v2705 = vadd.f32 %v2480, %v2704
      %v2706 = vpop.f32.mrb[0].mxu0
      %v2707 = vpop.f32.mrb[0].mxu0
      %v2708 = vadd.f32 %v2483, %v2707
      %v2709 = vpop.f32.mrb[0].mxu0
      %2710 = vmatprep.mubr.bf16.mxu0 0
      %2711 = vmatmul.mubr.bf16.gmra.mrb[0].mxu0 %v510
      %v2712 = vpop.f32.mrb[0].mxu0
      %v2713 = vadd.f32 %v2488, %v2712
      %v2714 = vpop.f32.mrb[0].mxu0
      %v2715 = vpop.f32.mrb[0].mxu0
      %v2716 = vadd.f32 %v2491, %v2715
      %v2717 = vpop.f32.mrb[0].mxu0
      %2718 = vmatprep.mubr.bf16.mxu0 0
      %2719 = vmatmul.mubr.bf16.gmra.mrb[0].mxu0 %v511
      %v2720 = vpop.f32.mrb[0].mxu0
      %v2721 = vadd.f32 %v2496, %v2720
      %v2722 = vpop.f32.mrb[0].mxu0
      %v2723 = vpop.f32.mrb[0].mxu0
      %v2724 = vadd.f32 %v2499, %v2723
      %v2725 = vpop.f32.mrb[0].mxu0
      %2726 = vmatprep.mubr.bf16.mxu0 0
      %2727 = vmatmul.mubr.bf16.gmra.mrb[0].mxu0 %v512
      %v2728 = vpop.f32.mrb[0].mxu0
      %v2729 = vadd.f32 %v2504, %v2728
      %v2730 = vpop.f32.mrb[0].mxu0
      %v2731 = vpop.f32.mrb[0].mxu0
      %v2732 = vadd.f32 %v2507, %v2731
      %v2733 = vpop.f32.mrb[0].mxu0
      %2734 = vmatprep.mubr.bf16.mxu0 0
      %2735 = vmatmul.mubr.bf16.gmra.mrb[0].mxu0 %v513
      %v2736 = vpop.f32.mrb[0].mxu0
      %v2737 = vadd.f32 %v2512, %v2736
      %v2738 = vpop.f32.mrb[0].mxu0
      %v2739 = vpop.f32.mrb[0].mxu0
      %v2740 = vadd.f32 %v2515, %v2739
      %v2741 = vpop.f32.mrb[0].mxu0
      %2742 = vmatprep.mubr.bf16.mxu0 0
      %2743 = vmatmul.mubr.bf16.gmra.mrb[0].mxu0 %v514
      %v2744 = vpop.f32.mrb[0].mxu0
      %v2745 = vadd.f32 %v2520, %v2744
      %v2746 = vpop.f32.mrb[0].mxu0
      %v2747 = vpop.f32.mrb[0].mxu0
      %v2748 = vadd.f32 %v2523, %v2747
      %v2749 = vpop.f32.mrb[0].mxu0
      %2750 = vmatprep.mubr.bf16.mxu0 0
      %2751 = vmatmul.mubr.bf16.gmra.mrb[0].mxu0 %v515
      %v2752 = vpop.f32.mrb[0].mxu0
      %v2753 = vadd.f32 %v2528, %v2752
      %v2754 = vpop.f32.mrb[0].mxu0
      %v2755 = vpop.f32.mrb[0].mxu0
      %v2756 = vadd.f32 %v2531, %v2755
      %v2757 = vpop.f32.mrb[0].mxu0
      %2758 = vmatprep.mubr.bf16.mxu0 0
      %2759 = vmatmul.mubr.bf16.gmra.mrb[0].mxu0 %v516
      %v2760 = vpop.f32.mrb[0].mxu0
      %v2761 = vadd.f32 %v2536, %v2760
      %v2762 = vpop.f32.mrb[0].mxu0
      %v2763 = vpop.f32.mrb[0].mxu0
      %v2764 = vadd.f32 %v2539, %v2763
      %v2765 = vpop.f32.mrb[0].mxu0
      %2766 = vmatprep.mubr.bf16.mxu0 0
      %2767 = vmatmul.mubr.bf16.gmra.mrb[0].mxu0 %v517
      %v2768 = vpop.f32.mrb[0].mxu0
      %v2769 = vadd.f32 %v2544, %v2768
      %v2770 = vpop.f32.mrb[0].mxu0
      %v2771 = vpop.f32.mrb[0].mxu0
      %v2772 = vadd.f32 %v2547, %v2771
      %v2773 = vpop.f32.mrb[0].mxu0
      %2774 = vmatprep.mubr.bf16.mxu0 0
      %2775 = vmatmul.mubr.bf16.gmra.mrb[0].mxu0 %v518
      %v2776 = vpop.f32.mrb[0].mxu0
      %v2777 = vadd.f32 %v2552, %v2776
      %v2778 = vpop.f32.mrb[0].mxu0
      %v2779 = vpop.f32.mrb[0].mxu0
      %v2780 = vadd.f32 %v2555, %v2779
      %v2781 = vpop.f32.mrb[0].mxu0
      %2782 = vmatprep.mubr.bf16.mxu0 0
      %2783 = vmatmul.mubr.bf16.gmra.mrb[0].mxu0 %v519
      %v2784 = vpop.f32.mrb[0].mxu0
      %v2785 = vadd.f32 %v2560, %v2784
      %v2786 = vpop.f32.mrb[0].mxu0
      %v2787 = vpop.f32.mrb[0].mxu0
      %v2788 = vadd.f32 %v2563, %v2787
      %v2789 = vpop.f32.mrb[0].mxu0
      %2790 = vmatprep.mubr.bf16.mxu0 0
      %2791 = vmatmul.mubr.bf16.gmra.mrb[0].mxu0 %v520
      %v2792 = vpop.f32.mrb[0].mxu0
      %v2793 = vadd.f32 %v2568, %v2792
      %v2794 = vpop.f32.mrb[0].mxu0
      %v2795 = vpop.f32.mrb[0].mxu0
      %v2796 = vadd.f32 %v2571, %v2795
      %v2797 = vpop.f32.mrb[0].mxu0
      %2798 = vmatprep.mubr.bf16.mxu0 0
      %2799 = vmatmul.mubr.bf16.gmra.mrb[0].mxu0 %v521
      %v2800 = vpop.f32.mrb[0].mxu0
      %v2801 = vadd.f32 %v2576, %v2800
      %v2802 = vpop.f32.mrb[0].mxu0
      %v2803 = vpop.f32.mrb[0].mxu0
      %v2804 = vadd.f32 %v2579, %v2803
      %v2805 = vpop.f32.mrb[0].mxu0
      %2806 = vmatprep.mubr.bf16.mxu0 0
      %2807 = vmatmul.mubr.bf16.gmra.mrb[0].mxu0 %v522
      %v2808 = vpop.f32.mrb[0].mxu0
      %v2809 = vadd.f32 %v2584, %v2808
      %v2810 = vpop.f32.mrb[0].mxu0
      %v2811 = vpop.f32.mrb[0].mxu0
      %v2812 = vadd.f32 %v2587, %v2811
      %v2813 = vpop.f32.mrb[0].mxu0
      %2814 = vmatprep.mubr.bf16.mxu0 0
      %2815 = vmatmul.mubr.bf16.gmra.mrb[0].mxu0 %v523
      %v2816 = vpop.f32.mrb[0].mxu0
      %v2817 = vadd.f32 %v2592, %v2816
      %v2818 = vpop.f32.mrb[0].mxu0
      %v2819 = vpop.f32.mrb[0].mxu0
      %v2820 = vadd.f32 %v2595, %v2819
      %v2821 = vpop.f32.mrb[0].mxu0
      %2822 = vmatprep.mubr.bf16.mxu0 0
      %2823 = vmatmul.mubr.bf16.gmra.mrb[0].mxu0 %v560
      %v2824 = vpop.f32.mrb[0].mxu0
      %v2825 = vadd.f32 %v2600, %v2824
      %v2826 = vpop.f32.mrb[0].mxu0
      %v2827 = vpop.f32.mrb[0].mxu0
      %v2828 = vadd.f32 %v2603, %v2827
      %v2829 = vpop.f32.mrb[0].mxu0
      %2830 = vmatprep.mubr.bf16.mxu0 0
      %2831 = vmatmul.mubr.bf16.gmra.mrb[0].mxu0 %v561
      %v2832 = vpop.f32.mrb[0].mxu0
      %v2833 = vadd.f32 %v2608, %v2832
      %v2834 = vpop.f32.mrb[0].mxu0
      %v2835 = vpop.f32.mrb[0].mxu0
      %v2836 = vadd.f32 %v2611, %v2835
      %v2837 = vpop.f32.mrb[0].mxu0
      %2838 = vmatprep.mubr.bf16.mxu0 0
      %2839 = vmatmul.mubr.bf16.gmra.mrb[0].mxu0 %v562
      %v2840 = vpop.f32.mrb[0].mxu0
      %v2841 = vadd.f32 %v2616, %v2840
      %v2842 = vpop.f32.mrb[0].mxu0
      %v2843 = vpop.f32.mrb[0].mxu0
      %v2844 = vadd.f32 %v2619, %v2843
      %v2845 = vpop.f32.mrb[0].mxu0
      %2846 = vdwg.mxu0
      %vm2895 = vcmask 1045504
      %v2896 = vrot.slane %v2657, 2
      %v2897 = vrot.slane %v2660, 2
      %v2898 = vsel %vm2895, %v2896, %v2897
      %v2899 = vrot.slane %v2665, 2
      %v2900 = vsel %vm2895, %v2897, %v2899
      %v2901 = vrot.slane %v2668, 2
      %v2902 = vrot.slane %v2673, 2
      %v2903 = vsel %vm2895, %v2901, %v2902
      %v2904 = vrot.slane %v2676, 2
      %v2905 = vsel %vm2895, %v2902, %v2904
      %v2906 = vrot.slane %v2681, 2
      %v2907 = vrot.slane %v2684, 2
      %v2908 = vsel %vm2895, %v2906, %v2907
      %v2909 = vrot.slane %v2689, 2
      %v2910 = vsel %vm2895, %v2907, %v2909
      %v2911 = vrot.slane %v2692, 2
      %v2912 = vrot.slane %v2697, 2
      %v2913 = vsel %vm2895, %v2911, %v2912
      %v2914 = vrot.slane %v2700, 2
      %v2915 = vsel %vm2895, %v2912, %v2914
      %v2916 = vrot.slane %v2705, 2
      %v2917 = vrot.slane %v2708, 2
      %v2918 = vsel %vm2895, %v2916, %v2917
      %v2919 = vrot.slane %v2713, 2
      %v2920 = vsel %vm2895, %v2917, %v2919
      %v2921 = vrot.slane %v2716, 2
      %v2922 = vrot.slane %v2721, 2
      %v2923 = vsel %vm2895, %v2921, %v2922
      %v2924 = vrot.slane %v2724, 2
      %v2925 = vsel %vm2895, %v2922, %v2924
      %v2926 = vrot.slane %v2729, 2
      %v2927 = vrot.slane %v2732, 2
      %v2928 = vsel %vm2895, %v2926, %v2927
      %v2929 = vrot.slane %v2737, 2
      %v2930 = vsel %vm2895, %v2927, %v2929
      %v2931 = vrot.slane %v2740, 2
      %v2932 = vrot.slane %v2745, 2
      %v2933 = vsel %vm2895, %v2931, %v2932
      %v2934 = vrot.slane %v2748, 2
      %v2935 = vsel %vm2895, %v2932, %v2934
      %v2936 = vrot.slane %v2753, 2
      %v2937 = vrot.slane %v2756, 2
      %v2938 = vsel %vm2895, %v2936, %v2937
      %v2939 = vrot.slane %v2761, 2
      %v2940 = vsel %vm2895, %v2937, %v2939
      %v2941 = vrot.slane %v2764, 2
      %v2942 = vrot.slane %v2769, 2
      %v2943 = vsel %vm2895, %v2941, %v2942
      %v2944 = vrot.slane %v2772, 2
      %v2945 = vsel %vm2895, %v2942, %v2944
      %v2946 = vrot.slane %v2777, 2
      %v2947 = vrot.slane %v2780, 2
      %v2948 = vsel %vm2895, %v2946, %v2947
      %v2949 = vrot.slane %v2785, 2
      %v2950 = vsel %vm2895, %v2947, %v2949
      %v2951 = vrot.slane %v2788, 2
      %v2952 = vrot.slane %v2793, 2
      %v2953 = vsel %vm2895, %v2951, %v2952
      %v2954 = vrot.slane %v2796, 2
      %v2955 = vsel %vm2895, %v2952, %v2954
      %v2956 = vrot.slane %v2801, 2
      %v2957 = vrot.slane %v2804, 2
      %v2958 = vsel %vm2895, %v2956, %v2957
      %v2959 = vrot.slane %v2809, 2
      %v2960 = vsel %vm2895, %v2957, %v2959
      %v2961 = vrot.slane %v2812, 2
      %v2962 = vrot.slane %v2817, 2
      %v2963 = vsel %vm2895, %v2961, %v2962
      %v2964 = vrot.slane %v2820, 2
      %v2965 = vsel %vm2895, %v2962, %v2964
      %v2966 = vrot.slane %v2825, 2
      %v2967 = vrot.slane %v2828, 2
      %v2968 = vsel %vm2895, %v2966, %v2967
      %v2969 = vrot.slane %v2833, 2
      %v2970 = vsel %vm2895, %v2967, %v2969
      %v2971 = vrot.slane %v2836, 2
      %v2972 = vrot.slane %v2841, 2
      %v2973 = vsel %vm2895, %v2971, %v2972
      %v2974 = vrot.slane %v2844, 2
      %v2975 = vsel %vm2895, %v2972, %v2974
      %v3024 = vadd.f32 %v2154, %v2898
      %v3025 = vadd.f32 %v2155, %v2900
      %v3026 = vadd.f32 %v2156, %v2899
      %v3027 = vadd.f32 %v2157, %v2903
      %v3028 = vadd.f32 %v2158, %v2905
      %v3029 = vadd.f32 %v2159, %v2904
      %v3030 = vadd.f32 %v2160, %v2908
      %v3031 = vadd.f32 %v2161, %v2910
      %v3032 = vadd.f32 %v2162, %v2909
      %v3033 = vadd.f32 %v2163, %v2913
      %v3034 = vadd.f32 %v2164, %v2915
      %v3035 = vadd.f32 %v2165, %v2914
      %v3036 = vadd.f32 %v2166, %v2918
      %v3037 = vadd.f32 %v2167, %v2920
      %v3038 = vadd.f32 %v2168, %v2919
      %v3039 = vadd.f32 %v2169, %v2923
      %v3040 = vadd.f32 %v2170, %v2925
      %v3041 = vadd.f32 %v2171, %v2924
      %v3042 = vadd.f32 %v2172, %v2928
      %v3043 = vadd.f32 %v2173, %v2930
      %v3044 = vadd.f32 %v2174, %v2929
      %v3045 = vadd.f32 %v2175, %v2933
      %v3046 = vadd.f32 %v2176, %v2935
      %v3047 = vadd.f32 %v2177, %v2934
      %v3048 = vadd.f32 %v2178, %v2938
      %v3049 = vadd.f32 %v2179, %v2940
      %v3050 = vadd.f32 %v2180, %v2939
      %v3051 = vadd.f32 %v2181, %v2943
      %v3052 = vadd.f32 %v2182, %v2945
      %v3053 = vadd.f32 %v2183, %v2944
      %v3054 = vadd.f32 %v2184, %v2948
      %v3055 = vadd.f32 %v2185, %v2950
      %v3056 = vadd.f32 %v2186, %v2949
      %v3057 = vadd.f32 %v2187, %v2953
      %v3058 = vadd.f32 %v2188, %v2955
      %v3059 = vadd.f32 %v2189, %v2954
      %v3060 = vadd.f32 %v2190, %v2958
      %v3061 = vadd.f32 %v2191, %v2960
      %v3062 = vadd.f32 %v2192, %v2959
      %v3063 = vadd.f32 %v2193, %v2963
      %v3064 = vadd.f32 %v2194, %v2965
      %v3065 = vadd.f32 %v2195, %v2964
      %v3066 = vadd.f32 %v2196, %v2968
      %v3067 = vadd.f32 %v2197, %v2970
      %v3068 = vadd.f32 %v2198, %v2969
      %v3069 = vadd.f32 %v2199, %v2973
      %v3070 = vadd.f32 %v2200, %v2975
      %v3071 = vadd.f32 %v2201, %v2974
      %v3073 = vlaneseq
      %v3074 = vshrl.u32 %v3073, 7
      %v3075 = vsub.s32 0, %v3074
      %v3076 = vrot.slane %v348, %v3075
      %v3078 = vmul.f32 %v3024, %v3076
      %v3079 = vmul.f32 %v3025, %v3076
      %v3080 = vmul.f32 %v3026, %v3076
      %v3081 = vmul.f32 %v3027, %v3076
      %v3082 = vmul.f32 %v3028, %v3076
      %v3083 = vmul.f32 %v3029, %v3076
      %v3084 = vmul.f32 %v3030, %v3076
      %v3085 = vmul.f32 %v3031, %v3076
      %v3086 = vmul.f32 %v3032, %v3076
      %v3087 = vmul.f32 %v3033, %v3076
      %v3088 = vmul.f32 %v3034, %v3076
      %v3089 = vmul.f32 %v3035, %v3076
      %v3090 = vmul.f32 %v3036, %v3076
      %v3091 = vmul.f32 %v3037, %v3076
      %v3092 = vmul.f32 %v3038, %v3076
      %v3093 = vmul.f32 %v3039, %v3076
      %v3094 = vmul.f32 %v3040, %v3076
      %v3095 = vmul.f32 %v3041, %v3076
      %v3096 = vmul.f32 %v3042, %v3076
      %v3097 = vmul.f32 %v3043, %v3076
      %v3098 = vmul.f32 %v3044, %v3076
      %v3099 = vmul.f32 %v3045, %v3076
      %v3100 = vmul.f32 %v3046, %v3076
      %v3101 = vmul.f32 %v3047, %v3076
      %v3102 = vmul.f32 %v3048, %v3076
      %v3103 = vmul.f32 %v3049, %v3076
      %v3104 = vmul.f32 %v3050, %v3076
      %v3105 = vmul.f32 %v3051, %v3076
      %v3106 = vmul.f32 %v3052, %v3076
      %v3107 = vmul.f32 %v3053, %v3076
      %v3108 = vmul.f32 %v3054, %v3076
      %v3109 = vmul.f32 %v3055, %v3076
      %v3110 = vmul.f32 %v3056, %v3076
      %v3111 = vmul.f32 %v3057, %v3076
      %v3112 = vmul.f32 %v3058, %v3076
      %v3113 = vmul.f32 %v3059, %v3076
      %v3114 = vmul.f32 %v3060, %v3076
      %v3115 = vmul.f32 %v3061, %v3076
      %v3116 = vmul.f32 %v3062, %v3076
      %v3117 = vmul.f32 %v3063, %v3076
      %v3118 = vmul.f32 %v3064, %v3076
      %v3119 = vmul.f32 %v3065, %v3076
      %v3120 = vmul.f32 %v3066, %v3076
      %v3121 = vmul.f32 %v3067, %v3076
      %v3122 = vmul.f32 %v3068, %v3076
      %v3123 = vmul.f32 %v3069, %v3076
      %v3124 = vmul.f32 %v3070, %v3076
      %v3125 = vmul.f32 %v3071, %v3076
      %v3127 = vlaneseq
      %v3128 = vshrl.u32 %v3127, 7
      %v3129 = vsub.s32 0, %v3128
      %v3130 = vrot.slane %v349, %v3129
      %v3132 = vadd.f32 %v3078, %v3130
      %v3133 = vadd.f32 %v3079, %v3130
      %v3134 = vadd.f32 %v3080, %v3130
      %v3135 = vadd.f32 %v3081, %v3130
      %v3136 = vadd.f32 %v3082, %v3130
      %v3137 = vadd.f32 %v3083, %v3130
      %v3138 = vadd.f32 %v3084, %v3130
      %v3139 = vadd.f32 %v3085, %v3130
      %v3140 = vadd.f32 %v3086, %v3130
      %v3141 = vadd.f32 %v3087, %v3130
      %v3142 = vadd.f32 %v3088, %v3130
      %v3143 = vadd.f32 %v3089, %v3130
      %v3144 = vadd.f32 %v3090, %v3130
      %v3145 = vadd.f32 %v3091, %v3130
      %v3146 = vadd.f32 %v3092, %v3130
      %v3147 = vadd.f32 %v3093, %v3130
      %v3148 = vadd.f32 %v3094, %v3130
      %v3149 = vadd.f32 %v3095, %v3130
      %v3150 = vadd.f32 %v3096, %v3130
      %v3151 = vadd.f32 %v3097, %v3130
      %v3152 = vadd.f32 %v3098, %v3130
      %v3153 = vadd.f32 %v3099, %v3130
      %v3154 = vadd.f32 %v3100, %v3130
      %v3155 = vadd.f32 %v3101, %v3130
      %v3156 = vadd.f32 %v3102, %v3130
      %v3157 = vadd.f32 %v3103, %v3130
      %v3158 = vadd.f32 %v3104, %v3130
      %v3159 = vadd.f32 %v3105, %v3130
      %v3160 = vadd.f32 %v3106, %v3130
      %v3161 = vadd.f32 %v3107, %v3130
      %v3162 = vadd.f32 %v3108, %v3130
      %v3163 = vadd.f32 %v3109, %v3130
      %v3164 = vadd.f32 %v3110, %v3130
      %v3165 = vadd.f32 %v3111, %v3130
      %v3166 = vadd.f32 %v3112, %v3130
      %v3167 = vadd.f32 %v3113, %v3130
      %v3168 = vadd.f32 %v3114, %v3130
      %v3169 = vadd.f32 %v3115, %v3130
      %v3170 = vadd.f32 %v3116, %v3130
      %v3171 = vadd.f32 %v3117, %v3130
      %v3172 = vadd.f32 %v3118, %v3130
      %v3173 = vadd.f32 %v3119, %v3130
      %v3174 = vadd.f32 %v3120, %v3130
      %v3175 = vadd.f32 %v3121, %v3130
      %v3176 = vadd.f32 %v3122, %v3130
      %v3177 = vadd.f32 %v3123, %v3130
      %v3178 = vadd.f32 %v3124, %v3130
      %v3179 = vadd.f32 %v3125, %v3130
      %v3180 = vmax.f32 %v3132, 0.0
      %v3181 = vmax.f32 %v3133, 0.0
      %v3182 = vmax.f32 %v3134, 0.0
      %v3183 = vmax.f32 %v3135, 0.0
      %v3184 = vmax.f32 %v3136, 0.0
      %v3185 = vmax.f32 %v3137, 0.0
      %v3186 = vmax.f32 %v3138, 0.0
      %v3187 = vmax.f32 %v3139, 0.0
      %v3188 = vmax.f32 %v3140, 0.0
      %v3189 = vmax.f32 %v3141, 0.0
      %v3190 = vmax.f32 %v3142, 0.0
      %v3191 = vmax.f32 %v3143, 0.0
      %v3192 = vmax.f32 %v3144, 0.0
      %v3193 = vmax.f32 %v3145, 0.0
      %v3194 = vmax.f32 %v3146, 0.0
      %v3195 = vmax.f32 %v3147, 0.0
      %v3196 = vmax.f32 %v3148, 0.0
      %v3197 = vmax.f32 %v3149, 0.0
      %v3198 = vmax.f32 %v3150, 0.0
      %v3199 = vmax.f32 %v3151, 0.0
      %v3200 = vmax.f32 %v3152, 0.0
      %v3201 = vmax.f32 %v3153, 0.0
      %v3202 = vmax.f32 %v3154, 0.0
      %v3203 = vmax.f32 %v3155, 0.0
      %v3204 = vmax.f32 %v3156, 0.0
      %v3205 = vmax.f32 %v3157, 0.0
      %v3206 = vmax.f32 %v3158, 0.0
      %v3207 = vmax.f32 %v3159, 0.0
      %v3208 = vmax.f32 %v3160, 0.0
      %v3209 = vmax.f32 %v3161, 0.0
      %v3210 = vmax.f32 %v3162, 0.0
      %v3211 = vmax.f32 %v3163, 0.0
      %v3212 = vmax.f32 %v3164, 0.0
      %v3213 = vmax.f32 %v3165, 0.0
      %v3214 = vmax.f32 %v3166, 0.0
      %v3215 = vmax.f32 %v3167, 0.0
      %v3216 = vmax.f32 %v3168, 0.0
      %v3217 = vmax.f32 %v3169, 0.0
      %v3218 = vmax.f32 %v3170, 0.0
      %v3219 = vmax.f32 %v3171, 0.0
      %v3220 = vmax.f32 %v3172, 0.0
      %v3221 = vmax.f32 %v3173, 0.0
      %v3222 = vmax.f32 %v3174, 0.0
      %v3223 = vmax.f32 %v3175, 0.0
      %v3224 = vmax.f32 %v3176, 0.0
      %v3225 = vmax.f32 %v3177, 0.0
      %v3226 = vmax.f32 %v3178, 0.0
      %v3227 = vmax.f32 %v3179, 0.0
      %3228 = vst [vmem:[%s345] sm:$0xff] %v3180
      %3229 = vst [vmem:[%s345 + $0x8] sm:$0xff] %v3181
      %3230 = vst [vmem:[%s345 + $0x10] sm:$0x3] %v3182
      %3231 = vst [vmem:[%s345 + $0x18] sm:$0xff] %v3183
      %3232 = vst [vmem:[%s345 + $0x20] sm:$0xff] %v3184
      %3233 = vst [vmem:[%s345 + $0x28] sm:$0x3] %v3185
      %3234 = vst [vmem:[%s345 + $0x30] sm:$0xff] %v3186
      %3235 = vst [vmem:[%s345 + $0x38] sm:$0xff] %v3187
      %3236 = vst [vmem:[%s345 + $0x40] sm:$0x3] %v3188
      %3237 = vst [vmem:[%s345 + $0x48] sm:$0xff] %v3189
      %3238 = vst [vmem:[%s345 + $0x50] sm:$0xff] %v3190
      %3239 = vst [vmem:[%s345 + $0x58] sm:$0x3] %v3191
      %3240 = vst [vmem:[%s345 + $0x60] sm:$0xff] %v3192
      %3241 = vst [vmem:[%s345 + $0x68] sm:$0xff] %v3193
      %3242 = vst [vmem:[%s345 + $0x70] sm:$0x3] %v3194
      %3243 = vst [vmem:[%s345 + $0x78] sm:$0xff] %v3195
      %3244 = vst [vmem:[%s345 + $0x80] sm:$0xff] %v3196
      %3245 = vst [vmem:[%s345 + $0x88] sm:$0x3] %v3197
      %3246 = vst [vmem:[%s345 + $0x90] sm:$0xff] %v3198
      %3247 = vst [vmem:[%s345 + $0x98] sm:$0xff] %v3199
      %3248 = vst [vmem:[%s345 + $0xa0] sm:$0x3] %v3200
      %3249 = vst [vmem:[%s345 + $0xa8] sm:$0xff] %v3201
      %3250 = vst [vmem:[%s345 + $0xb0] sm:$0xff] %v3202
      %3251 = vst [vmem:[%s345 + $0xb8] sm:$0x3] %v3203
      %3252 = vst [vmem:[%s345 + $0xc0] sm:$0xff] %v3204
      %3253 = vst [vmem:[%s345 + $0xc8] sm:$0xff] %v3205
      %3254 = vst [vmem:[%s345 + $0xd0] sm:$0x3] %v3206
      %3255 = vst [vmem:[%s345 + $0xd8] sm:$0xff] %v3207
      %3256 = vst [vmem:[%s345 + $0xe0] sm:$0xff] %v3208
      %3257 = vst [vmem:[%s345 + $0xe8] sm:$0x3] %v3209
      %3258 = vst [vmem:[%s345 + $0xf0] sm:$0xff] %v3210
      %3259 = vst [vmem:[%s345 + $0xf8] sm:$0xff] %v3211
      %3260 = vst [vmem:[%s345 + $0x100] sm:$0x3] %v3212
      %3261 = vst [vmem:[%s345 + $0x108] sm:$0xff] %v3213
      %3262 = vst [vmem:[%s345 + $0x110] sm:$0xff] %v3214
      %3263 = vst [vmem:[%s345 + $0x118] sm:$0x3] %v3215
      %3264 = vst [vmem:[%s345 + $0x120] sm:$0xff] %v3216
      %3265 = vst [vmem:[%s345 + $0x128] sm:$0xff] %v3217
      %3266 = vst [vmem:[%s345 + $0x130] sm:$0x3] %v3218
      %3267 = vst [vmem:[%s345 + $0x138] sm:$0xff] %v3219
      %3268 = vst [vmem:[%s345 + $0x140] sm:$0xff] %v3220
      %3269 = vst [vmem:[%s345 + $0x148] sm:$0x3] %v3221
      %3270 = vst [vmem:[%s345 + $0x150] sm:$0xff] %v3222
      %3271 = vst [vmem:[%s345 + $0x158] sm:$0xff] %v3223
      %3272 = vst [vmem:[%s345 + $0x160] sm:$0x3] %v3224
      %3273 = vst [vmem:[%s345 + $0x168] sm:$0xff] %v3225
      %3274 = vst [vmem:[%s345 + $0x170] sm:$0xff] %v3226
      %3275 = vst [vmem:[%s345 + $0x178] sm:$0x3] %v3227
      %s3276 = smul.u32 16, %s21
      %p3277 = scmp.lt.s32.totalorder %s20, 1
      %s3278 = scalar_select %p3277, %s20, 1
      %p3279 = scmp.lt.s32.totalorder %s3276, 31
      %s3280 = scalar_select %p3279, %s3276, 31
      %s3281 = smul.addr %s3280, 3
      %s3282 = smul.addr %s3278, 96
      %s3283 = sadd.s32 %s3281, %s3282
      %s3284 = smul.addr %s3283, 8
      %s3285 = scalar_lea.vmem %s5, %s3284
      // Predicated region
      $region41: #{up_forward.5} parent=39 // pred_check
        %p3286 = pneg %p171
      $region42: #{up_forward.5} parent=39 // pred_check_branch
        %3288 = sbr.rel (%p3286) target = $region44
      $region43: #{up_forward.5} parent=39 // pred_region
        %s3289 = smul.u32 16, %s21
      $region44: #{up_forward.5} parent=39 // pred_fallthru
        _
    $region40: #{up_forward.5} parent=5 // pred_fallthru
      _
    %p3290 = scmp.le.s32.totalorder 2, %s11
    // Predicated region
    $region45: #{up_forward.5} parent=5 // pred_check
      %p3291 = pneg %p3290
    $region46: #{up_forward.5} parent=5 // pred_check_branch
      %3293 = sbr.rel (%p3291) target = $region48
    $region47: #{up_forward.5} parent=5 // pred_region
      %s3294 = ssub.s32 %s11, 2
      // Predicated region
      $region49: #{up_forward.5} parent=47 // pred_check
        %p3295 = pneg %p177
      $region50: #{up_forward.5} parent=47 // pred_check_branch
        %3297 = sbr.rel (%p3295) target = $region52
      $region51: #{up_forward.5} parent=47 // pred_region
        %s3298 = smul.u32 16, %s23
        %p3299 = scmp.lt.s32.totalorder %s22, 1
        %s3300 = scalar_select %p3299, %s22, 1
        %p3301 = scmp.lt.s32.totalorder %s3298, 31
        %s3302 = scalar_select %p3301, %s3298, 31
        %s3303 = smul.addr %s3302, 3
        %s3304 = smul.addr %s3300, 96
        %s3305 = sadd.s32 %s3303, %s3304
        %s3306 = smul.addr %s3305, 8
        %s3307 = scalar_lea.vmem %s5, %s3306
      $region52: #{up_forward.5} parent=47 // pred_fallthru
        _
    $region48: #{up_forward.5} parent=5 // pred_fallthru
      _
  $region6: #{up_forward.5} parent=0 // loop_footer
    %s15 = sadd.s32 1, %s11
  $region7: #{up_forward.5} parent=0 // loop_footer_branch
    %10 = sbr.rel target = $region3
  $region8: #{up_forward.5} parent=0 // loop_exit
    _

// kernel: up_forward.4
$region0: #{up_forward.4}
  #allocation0 [shape = 'u32[]', space=smem, size = 0x4, offset = 0x4, fixed_abs, tag = 'smem constant byte address 0x4 - core index']
  #allocation1 [shape = 'u32[144,128]{1,0:T(1,128)}', space=vmem, size = 0x12000, scoped, tag = 'internal scratch']
  %s0 = inlined_call_operand.vmem [shape: bf16[2,34,24,64], index: 0, kind: input, shape index: {}, may-alias: {0,1}]
  %s1 = inlined_call_operand.vmem [shape: bf16[2,34,24,64], index: 1, kind: input, shape index: {}, may-alias: {0,1}]
  %s2 = inlined_call_operand.vmem [shape: bf16[2,34,24,64], index: 2, kind: input, shape index: {}, may-alias: {2,3}]
  %s3 = inlined_call_operand.vmem [shape: bf16[2,34,24,64], index: 3, kind: input, shape index: {}, may-alias: {2,3}]
  %s4 = inlined_call_operand.vmem [shape: bf16[3,3,64,128], index: 4, kind: input, shape index: {}]
  %s5 = inlined_call_operand.vmem [shape: bf16[3,3,64,128], index: 5, kind: input, shape index: {}]
  %s6 = inlined_call_operand.vmem [shape: f32[1,128], index: 6, kind: input, shape index: {}]
  %s7 = inlined_call_operand.vmem [shape: f32[1,128], index: 7, kind: input, shape index: {}]
  %s8 = inlined_call_operand.vmem [shape: bf16[2,32,18,128], index: 8, kind: output, shape index: {}]
  %s9 = sld [smem:[#allocation0]]
  $region65: #{up_forward.4} parent=0
    _
  %s11 = ssub.s32 1, %s9
  %s12 = scalar_select 0, %s11, %s9
  loop: start=0, step=1, limit=6
  $region2: #{up_forward.4} parent=0 // loop_pre_header
    _
  $region3: #{up_forward.4} parent=0 // loop_header
    %s14 = sphi 0, %s18
    %p15 = scmp.ge.s32.totalorder %s14, 6
    %s21 = sphi 0, %s33
    %s22 = sphi 0, %s29
    %s23 = sphi 0, %s21
    %s24 = sphi 0, %s22
    %s25 = sphi 0, %s23
    %s26 = sphi 0, %s24
    %s38 = sphi 0, %s40
    %s41 = sphi 0, %s38
    %s42 = sphi 0, %s41
    %s58 = sphi 0, %s42
    %s70 = sphi 0, %s72
    %s73 = sphi 0, %s70
    %s74 = sphi 0, %s73
    %s90 = sphi 0, %s74
    %s98 = sphi 0, %s100
    %s101 = sphi 0, %s98
    %s102 = sphi 0, %s101
    %s118 = sphi 0, %s102
    %s130 = sphi 0, %s132
    %s133 = sphi 0, %s130
    %s134 = sphi 0, %s133
    %s150 = sphi 0, %s134
    %s154 = sphi 0, %s154
    %s156 = sphi 0, %s154
    %s157 = sphi 0, %s156
    %s171 = sphi 0, %s157
    %s175 = sphi 0, %s175
    %s177 = sphi 0, %s175
    %s178 = sphi 0, %s177
    %s192 = sphi 0, %s178
    %s196 = sphi 0, %s196
    %s198 = sphi 0, %s196
    %s199 = sphi 0, %s198
    %s213 = sphi 0, %s199
    %s217 = sphi 0, %s217
    %s219 = sphi 0, %s217
    %s220 = sphi 0, %s219
    %s234 = sphi 0, %s220
    %s242 = sphi 0, %s244
    %s245 = sphi 0, %s242
    %s246 = sphi 0, %s245
    %s262 = sphi 0, %s246
  $region4: #{up_forward.4} parent=0 // loop_header_branch
    %17 = sbr.rel (%p15) target = $region8
  $region5: #{up_forward.4} parent=0 // loop_body
    %s19 = ssub.s32 %s14, 1
    %s20 = ssub.s32 %s14, 2
    %s27 = sadd.s32 1, %s22
    %p28 = scmp.ge.s32.totalorder %s27, 2
    %s29 = scalar_select %p28, 0, %s27
    %s30 = sadd.s32 1, %s21
    %s31 = scalar_select %p28, %s30, %s21
    %p32 = scmp.ge.s32.totalorder %s31, 2
    %s33 = scalar_select %p32, 0, %s31
    %s34 = ssub.s32 %s21, %s33
    %s35 = ssub.s32 %s22, %s29
    %s36 = sor.u32 %s34, %s35
    %p37 = scmp.eq.s32.totalorder %s36, 0
    %s39 = sadd.s32 %s38, 1
    %s40 = scalar_select %p37, %s38, %s39
    %p43 = pneg %p37
    %p44 = scmp.eq.s32.totalorder %s14, 3
    %p45 = por %p43, %p44
    %p46 = scmp.ne.s32.totalorder %s38, %s41
    %p47 = scmp.eq.s32.totalorder %s14, 0
    %p48 = por %p46, %p47
    %p49 = scmp.ne.s32.totalorder %s38, %s41
    %p50 = scmp.eq.s32.totalorder %s19, 3
    %p51 = por %p49, %p50
    %p52 = scmp.ne.s32.totalorder %s41, %s42
    %p53 = scmp.eq.s32.totalorder %s19, 0
    %p54 = por %p52, %p53
    %p55 = scmp.ne.s32.totalorder %s41, %s42
    %p56 = scmp.eq.s32.totalorder %s20, 3
    %p57 = por %p55, %p56
    %p59 = scmp.ne.s32.totalorder %s42, %s58
    %p60 = scmp.eq.s32.totalorder %s20, 0
    %p61 = por %p59, %p60
    %s62 = sadd.s32 %s22, 1
    %s63 = smul.u32 %s62, 8
    %s64 = sadd.s32 %s29, 1
    %s65 = smul.u32 %s64, 8
    %s66 = ssub.s32 %s21, %s33
    %s67 = ssub.s32 %s63, %s65
    %s68 = sor.u32 %s66, %s67
    %p69 = scmp.eq.s32.totalorder %s68, 0
    %s71 = sadd.s32 %s70, 1
    %s72 = scalar_select %p69, %s70, %s71
    %p75 = pneg %p69
    %p76 = scmp.eq.s32.totalorder %s14, 3
    %p77 = por %p75, %p76
    %p78 = scmp.ne.s32.totalorder %s70, %s73
    %p79 = scmp.eq.s32.totalorder %s14, 0
    %p80 = por %p78, %p79
    %p81 = scmp.ne.s32.totalorder %s70, %s73
    %p82 = scmp.eq.s32.totalorder %s19, 3
    %p83 = por %p81, %p82
    %p84 = scmp.ne.s32.totalorder %s73, %s74
    %p85 = scmp.eq.s32.totalorder %s19, 0
    %p86 = por %p84, %p85
    %p87 = scmp.ne.s32.totalorder %s73, %s74
    %p88 = scmp.eq.s32.totalorder %s20, 3
    %p89 = por %p87, %p88
    %p91 = scmp.ne.s32.totalorder %s74, %s90
    %p92 = scmp.eq.s32.totalorder %s20, 0
    %p93 = por %p91, %p92
    %s94 = ssub.s32 %s21, %s33
    %s95 = ssub.s32 %s22, %s29
    %s96 = sor.u32 %s94, %s95
    %p97 = scmp.eq.s32.totalorder %s96, 0
    %s99 = sadd.s32 %s98, 1
    %s100 = scalar_select %p97, %s98, %s99
    %p103 = pneg %p97
    %p104 = scmp.eq.s32.totalorder %s14, 3
    %p105 = por %p103, %p104
    %p106 = scmp.ne.s32.totalorder %s98, %s101
    %p107 = scmp.eq.s32.totalorder %s14, 0
    %p108 = por %p106, %p107
    %p109 = scmp.ne.s32.totalorder %s98, %s101
    %p110 = scmp.eq.s32.totalorder %s19, 3
    %p111 = por %p109, %p110
    %p112 = scmp.ne.s32.totalorder %s101, %s102
    %p113 = scmp.eq.s32.totalorder %s19, 0
    %p114 = por %p112, %p113
    %p115 = scmp.ne.s32.totalorder %s101, %s102
    %p116 = scmp.eq.s32.totalorder %s20, 3
    %p117 = por %p115, %p116
    %p119 = scmp.ne.s32.totalorder %s102, %s118
    %p120 = scmp.eq.s32.totalorder %s20, 0
    %p121 = por %p119, %p120
    %s122 = sadd.s32 %s22, 1
    %s123 = smul.u32 %s122, 8
    %s124 = sadd.s32 %s29, 1
    %s125 = smul.u32 %s124, 8
    %s126 = ssub.s32 %s21, %s33
    %s127 = ssub.s32 %s123, %s125
    %s128 = sor.u32 %s126, %s127
    %p129 = scmp.eq.s32.totalorder %s128, 0
    %s131 = sadd.s32 %s130, 1
    %s132 = scalar_select %p129, %s130, %s131
    %p135 = pneg %p129
    %p136 = scmp.eq.s32.totalorder %s14, 3
    %p137 = por %p135, %p136
    %p138 = scmp.ne.s32.totalorder %s130, %s133
    %p139 = scmp.eq.s32.totalorder %s14, 0
    %p140 = por %p138, %p139
    %p141 = scmp.ne.s32.totalorder %s130, %s133
    %p142 = scmp.eq.s32.totalorder %s19, 3
    %p143 = por %p141, %p142
    %p144 = scmp.ne.s32.totalorder %s133, %s134
    %p145 = scmp.eq.s32.totalorder %s19, 0
    %p146 = por %p144, %p145
    %p147 = scmp.ne.s32.totalorder %s133, %s134
    %p148 = scmp.eq.s32.totalorder %s20, 3
    %p149 = por %p147, %p148
    %p151 = scmp.ne.s32.totalorder %s134, %s150
    %p152 = scmp.eq.s32.totalorder %s20, 0
    %p153 = por %p151, %p152
    %s155 = sadd.s32 %s154, 1
    %p158 = scmp.eq.s32.totalorder %s14, 3
    %p159 = scmp.ne.s32.totalorder %s154, %s156
    %p160 = scmp.eq.s32.totalorder %s14, 0
    %p161 = por %p159, %p160
    %p162 = scmp.ne.s32.totalorder %s154, %s156
    %p163 = scmp.eq.s32.totalorder %s19, 3
    %p164 = por %p162, %p163
    %p165 = scmp.ne.s32.totalorder %s156, %s157
    %p166 = scmp.eq.s32.totalorder %s19, 0
    %p167 = por %p165, %p166
    %p168 = scmp.ne.s32.totalorder %s156, %s157
    %p169 = scmp.eq.s32.totalorder %s20, 3
    %p170 = por %p168, %p169
    %p172 = scmp.ne.s32.totalorder %s157, %s171
    %p173 = scmp.eq.s32.totalorder %s20, 0
    %p174 = por %p172, %p173
    %s176 = sadd.s32 %s175, 1
    %p179 = scmp.eq.s32.totalorder %s14, 3
    %p180 = scmp.ne.s32.totalorder %s175, %s177
    %p181 = scmp.eq.s32.totalorder %s14, 0
    %p182 = por %p180, %p181
    %p183 = scmp.ne.s32.totalorder %s175, %s177
    %p184 = scmp.eq.s32.totalorder %s19, 3
    %p185 = por %p183, %p184
    %p186 = scmp.ne.s32.totalorder %s177, %s178
    %p187 = scmp.eq.s32.totalorder %s19, 0
    %p188 = por %p186, %p187
    %p189 = scmp.ne.s32.totalorder %s177, %s178
    %p190 = scmp.eq.s32.totalorder %s20, 3
    %p191 = por %p189, %p190
    %p193 = scmp.ne.s32.totalorder %s178, %s192
    %p194 = scmp.eq.s32.totalorder %s20, 0
    %p195 = por %p193, %p194
    %s197 = sadd.s32 %s196, 1
    %p200 = scmp.eq.s32.totalorder %s14, 3
    %p201 = scmp.ne.s32.totalorder %s196, %s198
    %p202 = scmp.eq.s32.totalorder %s14, 0
    %p203 = por %p201, %p202
    %p204 = scmp.ne.s32.totalorder %s196, %s198
    %p205 = scmp.eq.s32.totalorder %s19, 3
    %p206 = por %p204, %p205
    %p207 = scmp.ne.s32.totalorder %s198, %s199
    %p208 = scmp.eq.s32.totalorder %s19, 0
    %p209 = por %p207, %p208
    %p210 = scmp.ne.s32.totalorder %s198, %s199
    %p211 = scmp.eq.s32.totalorder %s20, 3
    %p212 = por %p210, %p211
    %p214 = scmp.ne.s32.totalorder %s199, %s213
    %p215 = scmp.eq.s32.totalorder %s20, 0
    %p216 = por %p214, %p215
    %s218 = sadd.s32 %s217, 1
    %p221 = scmp.eq.s32.totalorder %s14, 3
    %p222 = scmp.ne.s32.totalorder %s217, %s219
    %p223 = scmp.eq.s32.totalorder %s14, 0
    %p224 = por %p222, %p223
    %p225 = scmp.ne.s32.totalorder %s217, %s219
    %p226 = scmp.eq.s32.totalorder %s19, 3
    %p227 = por %p225, %p226
    %p228 = scmp.ne.s32.totalorder %s219, %s220
    %p229 = scmp.eq.s32.totalorder %s19, 0
    %p230 = por %p228, %p229
    %p231 = scmp.ne.s32.totalorder %s219, %s220
    %p232 = scmp.eq.s32.totalorder %s20, 3
    %p233 = por %p231, %p232
    %p235 = scmp.ne.s32.totalorder %s220, %s234
    %p236 = scmp.eq.s32.totalorder %s20, 0
    %p237 = por %p235, %p236
    %s238 = ssub.s32 %s21, %s33
    %s239 = ssub.s32 %s22, %s29
    %s240 = sor.u32 %s238, %s239
    %p241 = scmp.eq.s32.totalorder %s240, 0
    %s243 = sadd.s32 %s242, 1
    %s244 = scalar_select %p241, %s242, %s243
    %p247 = pneg %p241
    %p248 = scmp.eq.s32.totalorder %s14, 3
    %p249 = por %p247, %p248
    %p250 = scmp.ne.s32.totalorder %s242, %s245
    %p251 = scmp.eq.s32.totalorder %s14, 0
    %p252 = por %p250, %p251
    %p253 = scmp.ne.s32.totalorder %s242, %s245
    %p254 = scmp.eq.s32.totalorder %s19, 3
    %p255 = por %p253, %p254
    %p256 = scmp.ne.s32.totalorder %s245, %s246
    %p257 = scmp.eq.s32.totalorder %s19, 0
    %p258 = por %p256, %p257
    %p259 = scmp.ne.s32.totalorder %s245, %s246
    %p260 = scmp.eq.s32.totalorder %s20, 3
    %p261 = por %p259, %p260
    %p263 = scmp.ne.s32.totalorder %s246, %s262
    %p264 = scmp.eq.s32.totalorder %s20, 0
    %p265 = por %p263, %p264
    %p266 = scmp.le.s32.totalorder 1, %s14
    %p267 = scmp.lt.s32.totalorder %s14, 5
    %p268 = pnand %p266, %p267
    %p269 = pneg %p268
    // Predicated region
    $region9: #{up_forward.4} parent=5 // pred_check
      _
    $region10: #{up_forward.4} parent=5 // pred_check_branch
      %271 = sbr.rel (%p268) target = $region12
    $region11: #{up_forward.4} parent=5 // pred_region
      %s272 = ssub.s32 %s14, 1
      // Predicated region
      $region13: #{up_forward.4} parent=11 // pred_check
        %p273 = pneg %p167
      $region14: #{up_forward.4} parent=11 // pred_check_branch
        %275 = sbr.rel (%p273) target = $region16
      $region15: #{up_forward.4} parent=11 // pred_region
        _
      $region16: #{up_forward.4} parent=11 // pred_fallthru
        _
      // Predicated region
      $region17: #{up_forward.4} parent=11 // pred_check
        %p276 = pneg %p188
      $region18: #{up_forward.4} parent=11 // pred_check_branch
        %278 = sbr.rel (%p276) target = $region20
      $region19: #{up_forward.4} parent=11 // pred_region
        _
      $region20: #{up_forward.4} parent=11 // pred_fallthru
        _
      // Predicated region
      $region21: #{up_forward.4} parent=11 // pred_check
        %p279 = pneg %p209
      $region22: #{up_forward.4} parent=11 // pred_check_branch
        %281 = sbr.rel (%p279) target = $region24
      $region23: #{up_forward.4} parent=11 // pred_region
        _
      $region24: #{up_forward.4} parent=11 // pred_fallthru
        _
      // Predicated region
      $region25: #{up_forward.4} parent=11 // pred_check
        %p282 = pneg %p230
      $region26: #{up_forward.4} parent=11 // pred_check_branch
        %284 = sbr.rel (%p282) target = $region28
      $region27: #{up_forward.4} parent=11 // pred_region
        _
      $region28: #{up_forward.4} parent=11 // pred_fallthru
        _
    $region12: #{up_forward.4} parent=5 // pred_fallthru
      _
    %p285 = scmp.lt.s32.totalorder %s14, 4
    // Predicated region
    $region29: #{up_forward.4} parent=5 // pred_check
      %p286 = pneg %p285
    $region30: #{up_forward.4} parent=5 // pred_check_branch
      %288 = sbr.rel (%p286) target = $region32
    $region31: #{up_forward.4} parent=5 // pred_region
      // Predicated region
      $region33: #{up_forward.4} parent=31 // pred_check
        %p289 = pneg %p48
      $region34: #{up_forward.4} parent=31 // pred_check_branch
        %291 = sbr.rel (%p289) target = $region36
      $region35: #{up_forward.4} parent=31 // pred_region
        %s292 = smul.u32 16, %s22
        %s293 = ssub.s32 34, %s292
        %p294 = scmp.lt.s32.totalorder %s293, 16
        %s295 = scalar_select %p294, %s293, 16
        %s296 = smul.u32 64, %s295
        %s297 = smul.u32 %s296, 3
        %p298 = scmp.lt.s32.totalorder %s21, 1
        %s299 = scalar_select %p298, %s21, 1
        %p300 = scmp.lt.s32.totalorder %s292, 33
        %s301 = scalar_select %p300, %s292, 33
        %s302 = smul.addr %s301, 3
        %s303 = smul.addr %s299, 102
        %s304 = sadd.s32 %s302, %s303
        %s305 = smul.addr %s304, 4
        %s306 = scalar_lea.vmem %s0, %s305
        %s307 = smul.u32 16, %s22
        %s308 = ssub.s32 34, %s307
        %p309 = scmp.lt.s32.totalorder %s308, 16
        %s310 = scalar_select %p309, %s308, 16
        %s311 = smul.u32 64, %s310
        %s312 = smul.u32 %s311, 3
      $region36: #{up_forward.4} parent=31 // pred_fallthru
        _
      // Predicated region
      $region37: #{up_forward.4} parent=31 // pred_check
        %p313 = pneg %p80
      $region38: #{up_forward.4} parent=31 // pred_check_branch
        %315 = sbr.rel (%p313) target = $region40
      $region39: #{up_forward.4} parent=31 // pred_region
        %s316 = sadd.s32 %s22, 1
        %s317 = smul.u32 %s316, 8
        %s318 = smul.u32 2, %s317
        %p319 = scmp.lt.s32.totalorder %s21, 1
        %s320 = scalar_select %p319, %s21, 1
        %p321 = scmp.lt.s32.totalorder %s318, 33
        %s322 = scalar_select %p321, %s318, 33
        %s323 = smul.addr %s322, 3
        %s324 = smul.addr %s320, 102
        %s325 = sadd.s32 %s323, %s324
        %s326 = smul.addr %s325, 4
        %s327 = scalar_lea.vmem %s1, %s326
        %s328 = sadd.s32 %s22, 1
        %s329 = smul.u32 %s328, 8
        %s330 = smul.u32 2, %s329
      $region40: #{up_forward.4} parent=31 // pred_fallthru
        _
      // Predicated region
      $region41: #{up_forward.4} parent=31 // pred_check
        %p331 = pneg %p108
      $region42: #{up_forward.4} parent=31 // pred_check_branch
        %333 = sbr.rel (%p331) target = $region44
      $region43: #{up_forward.4} parent=31 // pred_region
        %s334 = smul.u32 16, %s22
        %s335 = ssub.s32 34, %s334
        %p336 = scmp.lt.s32.totalorder %s335, 16
        %s337 = scalar_select %p336, %s335, 16
        %s338 = smul.u32 64, %s337
        %s339 = smul.u32 %s338, 3
        %p340 = scmp.lt.s32.totalorder %s21, 1
        %s341 = scalar_select %p340, %s21, 1
        %p342 = scmp.lt.s32.totalorder %s334, 33
        %s343 = scalar_select %p342, %s334, 33
        %s344 = smul.addr %s343, 3
        %s345 = smul.addr %s341, 102
        %s346 = sadd.s32 %s344, %s345
        %s347 = smul.addr %s346, 4
        %s348 = scalar_lea.vmem %s2, %s347
        %s349 = smul.u32 16, %s22
        %s350 = ssub.s32 34, %s349
        %p351 = scmp.lt.s32.totalorder %s350, 16
        %s352 = scalar_select %p351, %s350, 16
        %s353 = smul.u32 64, %s352
        %s354 = smul.u32 %s353, 3
      $region44: #{up_forward.4} parent=31 // pred_fallthru
        _
      // Predicated region
      $region45: #{up_forward.4} parent=31 // pred_check
        %p355 = pneg %p140
      $region46: #{up_forward.4} parent=31 // pred_check_branch
        %357 = sbr.rel (%p355) target = $region48
      $region47: #{up_forward.4} parent=31 // pred_region
        %s358 = sadd.s32 %s22, 1
        %s359 = smul.u32 %s358, 8
        %s360 = smul.u32 2, %s359
        %p361 = scmp.lt.s32.totalorder %s21, 1
        %s362 = scalar_select %p361, %s21, 1
        %p363 = scmp.lt.s32.totalorder %s360, 33
        %s364 = scalar_select %p363, %s360, 33
        %s365 = smul.addr %s364, 3
        %s366 = smul.addr %s362, 102
        %s367 = sadd.s32 %s365, %s366
        %s368 = smul.addr %s367, 4
        %s369 = scalar_lea.vmem %s3, %s368
        %s370 = sadd.s32 %s22, 1
        %s371 = smul.u32 %s370, 8
        %s372 = smul.u32 2, %s371
      $region48: #{up_forward.4} parent=31 // pred_fallthru
        _
    $region32: #{up_forward.4} parent=5 // pred_fallthru
      _
    %p373 = scmp.le.s32.totalorder 1, %s14
    %p374 = scmp.lt.s32.totalorder %s14, 5
    %p375 = pnand %p373, %p374
    %p376 = pneg %p375
    // Predicated region
    $region49: #{up_forward.4} parent=5 // pred_check
      _
    $region50: #{up_forward.4} parent=5 // pred_check_branch
      %378 = sbr.rel (%p375) target = $region52
    $region51: #{up_forward.4} parent=5 // pred_region
      %s379 = ssub.s32 %s14, 1
      %s380 = smul.u32 16, %s24
      %s381 = ssub.s32 34, %s380
      %p382 = scmp.lt.s32.totalorder %s381, 16
      %s383 = scalar_select %p382, %s381, 16
      %s384 = smul.u32 64, %s383
      %s385 = smul.u32 %s384, 3
      %p386 = scmp.lt.s32.totalorder %s23, 1
      %s387 = scalar_select %p386, %s23, 1
      %p388 = scmp.lt.s32.totalorder %s380, 33
      %s389 = scalar_select %p388, %s380, 33
      %s390 = smul.addr %s389, 3
      %s391 = smul.addr %s387, 102
      %s392 = sadd.s32 %s390, %s391
      %s393 = smul.addr %s392, 4
      %s394 = scalar_lea.vmem %s0, %s393
      %p395 = pneg %p54
      %p396 = pneg %p51
      %s397 = sadd.s32 %s24, 1
      %s398 = smul.u32 %s397, 8
      %s399 = smul.u32 2, %s398
      %p400 = scmp.lt.s32.totalorder %s23, 1
      %s401 = scalar_select %p400, %s23, 1
      %p402 = scmp.lt.s32.totalorder %s399, 33
      %s403 = scalar_select %p402, %s399, 33
      %s404 = smul.addr %s403, 3
      %s405 = smul.addr %s401, 102
      %s406 = sadd.s32 %s404, %s405
      %s407 = smul.addr %s406, 4
      %s408 = scalar_lea.vmem %s1, %s407
      %p409 = pneg %p86
      %p410 = pneg %p83
      %s411 = smul.u32 16, %s24
      %s412 = ssub.s32 34, %s411
      %p413 = scmp.lt.s32.totalorder %s412, 16
      %s414 = scalar_select %p413, %s412, 16
      %s415 = smul.u32 64, %s414
      %s416 = smul.u32 %s415, 3
      %p417 = scmp.lt.s32.totalorder %s23, 1
      %s418 = scalar_select %p417, %s23, 1
      %p419 = scmp.lt.s32.totalorder %s411, 33
      %s420 = scalar_select %p419, %s411, 33
      %s421 = smul.addr %s420, 3
      %s422 = smul.addr %s418, 102
      %s423 = sadd.s32 %s421, %s422
      %s424 = smul.addr %s423, 4
      %s425 = scalar_lea.vmem %s2, %s424
      %p426 = pneg %p114
      %p427 = pneg %p111
      %s428 = sadd.s32 %s24, 1
      %s429 = smul.u32 %s428, 8
      %s430 = smul.u32 2, %s429
      %p431 = scmp.lt.s32.totalorder %s23, 1
      %s432 = scalar_select %p431, %s23, 1
      %p433 = scmp.lt.s32.totalorder %s430, 33
      %s434 = scalar_select %p433, %s430, 33
      %s435 = smul.addr %s434, 3
      %s436 = smul.addr %s432, 102
      %s437 = sadd.s32 %s435, %s436
      %s438 = smul.addr %s437, 4
      %s439 = scalar_lea.vmem %s3, %s438
      %p440 = pneg %p146
      %p441 = pneg %p143
      %p442 = pneg %p167
      %p443 = pneg %p164
      %p444 = pneg %p188
      %p445 = pneg %p185
      %p446 = pneg %p209
      %p447 = pneg %p206
      %p448 = pneg %p230
      %p449 = pneg %p227
      %p450 = pneg %p258
      %p451 = pneg %p255
      %s452 = smul.u32 16, %s24
      %p453 = scmp.lt.s32.totalorder %s23, 1
      %s454 = scalar_select %p453, %s23, 1
      %p455 = scmp.lt.s32.totalorder %s452, 31
      %s456 = scalar_select %p455, %s452, 31
      %s457 = smul.addr %s456, 3
      %s458 = smul.addr %s454, 96
      %s459 = sadd.s32 %s457, %s458
      %s460 = smul.addr %s459, 4
      %s461 = scalar_lea.vmem %s8, %s460
      %s462 = smul.u32 16, %s24
      %s463 = ssub.s32 34, %s462
      %p464 = scmp.lt.s32.totalorder %s463, 16
      %s465 = scalar_select %p464, %s463, 16
      %s466 = smul.u32 64, %s465
      %s467 = smul.u32 %s466, 3
      %p468 = scmp.lt.s32.totalorder %s23, 1
      %s469 = scalar_select %p468, %s23, 1
      %p470 = scmp.lt.s32.totalorder %s462, 33
      %s471 = scalar_select %p470, %s462, 33
      %s472 = smul.addr %s471, 3
      %s473 = smul.addr %s469, 102
      %s474 = sadd.s32 %s472, %s473
      %s475 = smul.addr %s474, 4
      %s476 = scalar_lea.vmem %s0, %s475
      %s477 = smul.u32 16, %s24
      %s478 = ssub.s32 34, %s477
      %p479 = scmp.lt.s32.totalorder %s478, 16
      %s480 = scalar_select %p479, %s478, 16
      %s481 = smul.u32 64, %s480
      %s482 = smul.u32 %s481, 3
      %s483 = sadd.s32 %s24, 1
      %s484 = smul.u32 %s483, 8
      %s485 = smul.u32 2, %s484
      %p486 = scmp.lt.s32.totalorder %s23, 1
      %s487 = scalar_select %p486, %s23, 1
      %p488 = scmp.lt.s32.totalorder %s485, 33
      %s489 = scalar_select %p488, %s485, 33
      %s490 = smul.addr %s489, 3
      %s491 = smul.addr %s487, 102
      %s492 = sadd.s32 %s490, %s491
      %s493 = smul.addr %s492, 4
      %s494 = scalar_lea.vmem %s1, %s493
      %s495 = sadd.s32 %s24, 1
      %s496 = smul.u32 %s495, 8
      %s497 = smul.u32 2, %s496
      %s498 = smul.u32 16, %s24
      %s499 = ssub.s32 34, %s498
      %p500 = scmp.lt.s32.totalorder %s499, 16
      %s501 = scalar_select %p500, %s499, 16
      %s502 = smul.u32 64, %s501
      %s503 = smul.u32 %s502, 3
      %p504 = scmp.lt.s32.totalorder %s23, 1
      %s505 = scalar_select %p504, %s23, 1
      %p506 = scmp.lt.s32.totalorder %s498, 33
      %s507 = scalar_select %p506, %s498, 33
      %s508 = smul.addr %s507, 3
      %s509 = smul.addr %s505, 102
      %s510 = sadd.s32 %s508, %s509
      %s511 = smul.addr %s510, 4
      %s512 = scalar_lea.vmem %s2, %s511
      %s513 = smul.u32 16, %s24
      %s514 = ssub.s32 34, %s513
      %p515 = scmp.lt.s32.totalorder %s514, 16
      %s516 = scalar_select %p515, %s514, 16
      %s517 = smul.u32 64, %s516
      %s518 = smul.u32 %s517, 3
      %s519 = sadd.s32 %s24, 1
      %s520 = smul.u32 %s519, 8
      %s521 = smul.u32 2, %s520
      %p522 = scmp.lt.s32.totalorder %s23, 1
      %s523 = scalar_select %p522, %s23, 1
      %p524 = scmp.lt.s32.totalorder %s521, 33
      %s525 = scalar_select %p524, %s521, 33
      %s526 = smul.addr %s525, 3
      %s527 = smul.addr %s523, 102
      %s528 = sadd.s32 %s526, %s527
      %s529 = smul.addr %s528, 4
      %s530 = scalar_lea.vmem %s3, %s529
      %s531 = sadd.s32 %s24, 1
      %s532 = smul.u32 %s531, 8
      %s533 = smul.u32 2, %s532
      %s534 = smul.u32 16, %s24
      %p535 = scmp.lt.s32.totalorder %s23, 1
      %s536 = scalar_select %p535, %s23, 1
      %p537 = scmp.lt.s32.totalorder %s534, 31
      %s538 = scalar_select %p537, %s534, 31
      %s539 = smul.addr %s538, 3
      %s540 = smul.addr %s536, 96
      %s541 = sadd.s32 %s539, %s540
      %s542 = smul.addr %s541, 4
      %s543 = scalar_lea.vmem %s8, %s542
      %s544 = smul.u32 16, %s24
      %v546 = vld [vmem:[%s6] sm:$0x1]
      %v547 = vld [vmem:[%s7] sm:$0x1]
      %v548 = vld [vmem:[%s476] sm:$0xf]
      %v549 = vld [vmem:[%s476 + $0x4] sm:$0xf]
      %v550 = vld [vmem:[%s476 + $0x8] sm:$0xf]
      %v551 = vld [vmem:[%s476 + $0xc] sm:$0xf]
      %v552 = vld [vmem:[%s476 + $0x10] sm:$0xf]
      %v553 = vld [vmem:[%s476 + $0x14] sm:$0xf]
      %v554 = vld [vmem:[%s476 + $0x18] sm:$0xf]
      %v555 = vld [vmem:[%s476 + $0x1c] sm:$0xf]
      %v556 = vld [vmem:[%s476 + $0x20] sm:$0xf]
      %v557 = vld [vmem:[%s476 + $0x24] sm:$0xf]
      %v558 = vld [vmem:[%s476 + $0x28] sm:$0xf]
      %v559 = vld [vmem:[%s476 + $0x2c] sm:$0xf]
      %v560 = vld [vmem:[%s476 + $0x30] sm:$0xf]
      %v561 = vld [vmem:[%s476 + $0x34] sm:$0xf]
      %v562 = vld [vmem:[%s476 + $0x38] sm:$0xf]
      %v563 = vld [vmem:[%s476 + $0x3c] sm:$0xf]
      %v564 = vld [vmem:[%s476 + $0x40] sm:$0xf]
      %v565 = vld [vmem:[%s476 + $0x44] sm:$0xf]
      %v566 = vld [vmem:[%s476 + $0x48] sm:$0xf]
      %v567 = vld [vmem:[%s476 + $0x4c] sm:$0xf]
      %v568 = vld [vmem:[%s476 + $0x50] sm:$0xf]
      %v569 = vld [vmem:[%s476 + $0x54] sm:$0xf]
      %v570 = vld [vmem:[%s476 + $0x58] sm:$0xf]
      %v571 = vld [vmem:[%s476 + $0x5c] sm:$0xf]
      %v572 = vld [vmem:[%s476 + $0x60] sm:$0xf]
      %v573 = vld [vmem:[%s476 + $0x64] sm:$0xf]
      %v574 = vld [vmem:[%s476 + $0x68] sm:$0xf]
      %v575 = vld [vmem:[%s476 + $0x6c] sm:$0xf]
      %v576 = vld [vmem:[%s476 + $0x70] sm:$0xf]
      %v577 = vld [vmem:[%s476 + $0x74] sm:$0xf]
      %v578 = vld [vmem:[%s476 + $0x78] sm:$0xf]
      %v579 = vld [vmem:[%s476 + $0x7c] sm:$0xf]
      %v580 = vld [vmem:[%s476 + $0x80] sm:$0xf]
      %v581 = vld [vmem:[%s476 + $0x84] sm:$0xf]
      %v582 = vld [vmem:[%s476 + $0x88] sm:$0xf]
      %v583 = vld [vmem:[%s476 + $0x8c] sm:$0xf]
      %v584 = vld [vmem:[%s476 + $0x90] sm:$0xf]
      %v585 = vld [vmem:[%s476 + $0x94] sm:$0xf]
      %v586 = vld [vmem:[%s476 + $0x98] sm:$0xf]
      %v587 = vld [vmem:[%s476 + $0x9c] sm:$0xf]
      %v588 = vld [vmem:[%s476 + $0xa0] sm:$0xf]
      %v589 = vld [vmem:[%s476 + $0xa4] sm:$0xf]
      %v590 = vld [vmem:[%s476 + $0xa8] sm:$0xf]
      %v591 = vld [vmem:[%s476 + $0xac] sm:$0xf]
      %v592 = vld [vmem:[%s476 + $0xb0] sm:$0xf]
      %v593 = vld [vmem:[%s476 + $0xb4] sm:$0xf]
      %v594 = vld [vmem:[%s476 + $0xb8] sm:$0xf]
      %v595 = vld [vmem:[%s476 + $0xbc] sm:$0xf]
      %v596 = vld [vmem:[%s494] sm:$0xf]
      %v597 = vld [vmem:[%s494 + $0x4] sm:$0xf]
      %v598 = vld [vmem:[%s494 + $0x8] sm:$0xf]
      %v599 = vld [vmem:[%s494 + $0xc] sm:$0xf]
      %v600 = vld [vmem:[%s494 + $0x10] sm:$0xf]
      %v601 = vld [vmem:[%s494 + $0x14] sm:$0xf]
      %v650 = vunpack.c.l.b16 %v548
      %v651 = vunpack.c.l.b16 %v549
      %v652 = vunpack.c.l.b16 %v550
      %v653 = vunpack.c.l.b16 %v551
      %v654 = vunpack.c.l.b16 %v552
      %v655 = vunpack.c.l.b16 %v553
      %v656 = vunpack.c.l.b16 %v554
      %v657 = vunpack.c.l.b16 %v555
      %v658 = vunpack.c.l.b16 %v556
      %v659 = vunpack.c.l.b16 %v557
      %v660 = vunpack.c.l.b16 %v558
      %v661 = vunpack.c.l.b16 %v559
      %v662 = vunpack.c.l.b16 %v560
      %v663 = vunpack.c.l.b16 %v561
      %v664 = vunpack.c.l.b16 %v562
      %v665 = vunpack.c.l.b16 %v563
      %v666 = vunpack.c.l.b16 %v564
      %v667 = vunpack.c.l.b16 %v565
      %v668 = vunpack.c.l.b16 %v566
      %v669 = vunpack.c.l.b16 %v567
      %v670 = vunpack.c.l.b16 %v568
      %v671 = vunpack.c.l.b16 %v569
      %v672 = vunpack.c.l.b16 %v570
      %v673 = vunpack.c.l.b16 %v571
      %v674 = vunpack.c.l.b16 %v572
      %v675 = vunpack.c.l.b16 %v573
      %v676 = vunpack.c.l.b16 %v574
      %v677 = vunpack.c.l.b16 %v575
      %v678 = vunpack.c.l.b16 %v576
      %v679 = vunpack.c.l.b16 %v577
      %v680 = vunpack.c.l.b16 %v578
      %v681 = vunpack.c.l.b16 %v579
      %v682 = vunpack.c.l.b16 %v580
      %v683 = vunpack.c.l.b16 %v581
      %v684 = vunpack.c.l.b16 %v582
      %v685 = vunpack.c.l.b16 %v583
      %v686 = vunpack.c.l.b16 %v584
      %v687 = vunpack.c.l.b16 %v585
      %v688 = vunpack.c.l.b16 %v586
      %v689 = vunpack.c.l.b16 %v587
      %v690 = vunpack.c.l.b16 %v588
      %v691 = vunpack.c.l.b16 %v589
      %v692 = vunpack.c.l.b16 %v590
      %v693 = vunpack.c.l.b16 %v591
      %v694 = vunpack.c.l.b16 %v592
      %v695 = vunpack.c.l.b16 %v593
      %v696 = vunpack.c.l.b16 %v594
      %v697 = vunpack.c.l.b16 %v595
      %v698 = vpack.c.b16 %v651, %v650
      %v699 = vpack.c.b16 %v653, %v652
      %v700 = vpack.c.b16 %v655, %v654
      %v701 = vpack.c.b16 %v657, %v656
      %v702 = vpack.c.b16 %v659, %v658
      %v703 = vpack.c.b16 %v661, %v660
      %v704 = vpack.c.b16 %v663, %v662
      %v705 = vpack.c.b16 %v665, %v664
      %v706 = vpack.c.b16 %v667, %v666
      %v707 = vpack.c.b16 %v669, %v668
      %v708 = vpack.c.b16 %v671, %v670
      %v709 = vpack.c.b16 %v673, %v672
      %v710 = vpack.c.b16 %v675, %v674
      %v711 = vpack.c.b16 %v677, %v676
      %v712 = vpack.c.b16 %v679, %v678
      %v713 = vpack.c.b16 %v681, %v680
      %v714 = vpack.c.b16 %v683, %v682
      %v715 = vpack.c.b16 %v685, %v684
      %v716 = vpack.c.b16 %v687, %v686
      %v717 = vpack.c.b16 %v689, %v688
      %v718 = vpack.c.b16 %v691, %v690
      %v719 = vpack.c.b16 %v693, %v692
      %v720 = vpack.c.b16 %v695, %v694
      %v721 = vpack.c.b16 %v697, %v696
      %v728 = vunpack.c.l.b16 %v596
      %v729 = vunpack.c.l.b16 %v597
      %v730 = vunpack.c.l.b16 %v598
      %v731 = vunpack.c.l.b16 %v599
      %v732 = vunpack.c.l.b16 %v600
      %v733 = vunpack.c.l.b16 %v601
      %v734 = vpack.c.b16 %v729, %v728
      %v735 = vpack.c.b16 %v731, %v730
      %v736 = vpack.c.b16 %v733, %v732
      %v737 = vld [vmem:[%s4] sm:$0xf]
      %v738 = vld [vmem:[%s4 + $0x4] sm:$0xf]
      %v739 = vld [vmem:[%s4 + $0x8] sm:$0xf]
      %v740 = vld [vmem:[%s4 + $0xc] sm:$0xf]
      %v741 = vld [vmem:[%s4 + $0x10] sm:$0xf]
      %v742 = vld [vmem:[%s4 + $0x14] sm:$0xf]
      %v743 = vld [vmem:[%s4 + $0x18] sm:$0xf]
      %v744 = vld [vmem:[%s4 + $0x1c] sm:$0xf]
      %s745 = scalar_lea.vmem %s4, 96
      %v746 = vld [vmem:[%s745] sm:$0xf]
      %v747 = vld [vmem:[%s745 + $0x4] sm:$0xf]
      %v748 = vld [vmem:[%s745 + $0x8] sm:$0xf]
      %v749 = vld [vmem:[%s745 + $0xc] sm:$0xf]
      %v750 = vld [vmem:[%s745 + $0x10] sm:$0xf]
      %v751 = vld [vmem:[%s745 + $0x14] sm:$0xf]
      %v752 = vld [vmem:[%s745 + $0x18] sm:$0xf]
      %v753 = vld [vmem:[%s745 + $0x1c] sm:$0xf]
      %vm754 = vcmask 1043456
      %v755 = vrot.slane %v699, 4
      %v756 = vrot.slane %v700, 4
      %v757 = vsel %vm754, %v755, %v756
      %v758 = vrot.slane %v701, 4
      %v759 = vsel %vm754, %v756, %v758
      %v760 = vrot.slane %v702, 4
      %v761 = vsel %vm754, %v758, %v760
      %v762 = vrot.slane %v703, 4
      %v763 = vsel %vm754, %v760, %v762
      %v764 = vrot.slane %v704, 4
      %v765 = vsel %vm754, %v762, %v764
      %v766 = vrot.slane %v705, 4
      %v767 = vsel %vm754, %v764, %v766
      %v768 = vrot.slane %v706, 4
      %v769 = vsel %vm754, %v766, %v768
      %v770 = vrot.slane %v707, 4
      %v771 = vsel %vm754, %v768, %v770
      %v772 = vrot.slane %v708, 4
      %v773 = vsel %vm754, %v770, %v772
      %v774 = vrot.slane %v709, 4
      %v775 = vsel %vm754, %v772, %v774
      %v776 = vrot.slane %v710, 4
      %v777 = vsel %vm754, %v774, %v776
      %v778 = vrot.slane %v711, 4
      %v779 = vsel %vm754, %v776, %v778
      %v780 = vrot.slane %v712, 4
      %v781 = vsel %vm754, %v778, %v780
      %v782 = vrot.slane %v713, 4
      %v783 = vsel %vm754, %v780, %v782
      %v784 = vrot.slane %v714, 4
      %v785 = vsel %vm754, %v782, %v784
      %v786 = vrot.slane %v715, 4
      %v787 = vsel %vm754, %v784, %v786
      %v788 = vrot.slane %v716, 4
      %v789 = vsel %vm754, %v786, %v788
      %v790 = vrot.slane %v717, 4
      %v791 = vsel %vm754, %v788, %v790
      %v792 = vrot.slane %v718, 4
      %v793 = vsel %vm754, %v790, %v792
      %v794 = vrot.slane %v719, 4
      %v795 = vsel %vm754, %v792, %v794
      %v796 = vrot.slane %v720, 4
      %v797 = vsel %vm754, %v794, %v796
      %v798 = vrot.slane %v721, 4
      %v799 = vsel %vm754, %v796, %v798
      %v800 = vrot.slane %v734, 4
      %v801 = vsel %vm754, %v798, %v800
      %v802 = vrot.slane %v735, 4
      %v803 = vsel %vm754, %v800, %v802
      %v812 = vunpack.c.l.b16 %v746
      %v813 = vunpack.c.l.b16 %v747
      %v814 = vunpack.c.l.b16 %v748
      %v815 = vunpack.c.l.b16 %v749
      %v816 = vunpack.c.l.b16 %v750
      %v817 = vunpack.c.l.b16 %v751
      %v818 = vunpack.c.l.b16 %v752
      %v819 = vunpack.c.l.b16 %v753
      %v820 = vpack.c.b16 %v813, %v812
      %v821 = vpack.c.b16 %v815, %v814
      %v822 = vpack.c.b16 %v817, %v816
      %v823 = vpack.c.b16 %v819, %v818
      %vm828 = vcmask 523264
      %v830 = vsel %vm828, %v757, 0
      %v833 = vsel %vm828, %v759, 0
      %v836 = vsel %vm828, %v761, 0
      %v839 = vsel %vm828, %v763, 0
      %v842 = vsel %vm828, %v765, 0
      %v845 = vsel %vm828, %v767, 0
      %v848 = vsel %vm828, %v769, 0
      %v851 = vsel %vm828, %v771, 0
      %v854 = vsel %vm828, %v773, 0
      %v857 = vsel %vm828, %v775, 0
      %v860 = vsel %vm828, %v777, 0
      %v863 = vsel %vm828, %v779, 0
      %v866 = vsel %vm828, %v781, 0
      %v869 = vsel %vm828, %v783, 0
      %v872 = vsel %vm828, %v785, 0
      %v875 = vsel %vm828, %v787, 0
      %v878 = vsel %vm828, %v789, 0
      %v881 = vsel %vm828, %v791, 0
      %v884 = vsel %vm828, %v793, 0
      %v887 = vsel %vm828, %v795, 0
      %v890 = vsel %vm828, %v797, 0
      %v893 = vsel %vm828, %v799, 0
      %v896 = vsel %vm828, %v801, 0
      %v899 = vsel %vm828, %v803, 0
      %901 = vmatprep.subr.bf16.mxu0 0
      %902 = vmatpush1.bf16.msra.mxu0 %v820
      %903 = vmatprep.subr.bf16.mxu0 0
      %904 = vmatpush1.bf16.msra.mxu0 %v821
      %905 = vmatprep.subr.bf16.mxu0 0
      %906 = vmatpush1.bf16.msra.mxu0 %v822
      %907 = vmatprep.subr.bf16.mxu0 0
      %908 = vmatpush1.bf16.msra.mxu0 %v823
      %909 = vmatprep.subr.bf16.mxu0 0
      %910 = vmatpush1.bf16.msra.mxu0 0
      %911 = vmatprep.subr.bf16.mxu0 0
      %912 = vmatpush1.bf16.msra.mxu0 0
      %913 = vmatprep.subr.bf16.mxu0 0
      %914 = vmatpush1.bf16.msra.mxu0 0
      %915 = vmatprep.subr.bf16.mxu0 0
      %916 = vmatpush1.bf16.msra.mxu0 0
      %917 = vmatprep.subr.bf16.mxu0 0
      %918 = vmatpush1.bf16.msra.mxu0 0
      %919 = vmatprep.subr.bf16.mxu0 0
      %920 = vmatpush1.bf16.msra.mxu0 0
      %921 = vmatprep.subr.bf16.mxu0 0
      %922 = vmatpush1.bf16.msra.mxu0 0
      %923 = vmatprep.subr.bf16.mxu0 0
      %924 = vmatpush1.bf16.msra.mxu0 0
      %925 = vmatprep.subr.bf16.mxu0 0
      %926 = vmatpush1.bf16.msra.mxu0 0
      %927 = vmatprep.subr.bf16.mxu0 0
      %928 = vmatpush1.bf16.msra.mxu0 0
      %929 = vmatprep.subr.bf16.mxu0 0
      %930 = vmatpush1.bf16.msra.mxu0 0
      %931 = vmatprep.subr.bf16.mxu0 0
      %932 = vmatpush1.bf16.msra.mxu0 0
      %933 = vmatprep.mubr.bf16.mxu0 0
      %934 = vmatmul.mubr.bf16.gmra.mrb[0].mxu0 %v830
      %v935 = vpop.f32.mrb[0].mxu0
      %v936 = vadd.f32 0.0, %v935
      %v937 = vpop.f32.mrb[0].mxu0
      %v938 = vpop.f32.mrb[0].mxu0
      %v939 = vadd.f32 0.0, %v938
      %v940 = vpop.f32.mrb[0].mxu0
      %941 = vmatprep.mubr.bf16.mxu0 0
      %942 = vmatmul.mubr.bf16.gmra.mrb[0].mxu0 %v833
      %v943 = vpop.f32.mrb[0].mxu0
      %v944 = vadd.f32 0.0, %v943
      %v945 = vpop.f32.mrb[0].mxu0
      %v946 = vpop.f32.mrb[0].mxu0
      %v947 = vadd.f32 0.0, %v946
      %v948 = vpop.f32.mrb[0].mxu0
      %949 = vmatprep.mubr.bf16.mxu0 0
      %950 = vmatmul.mubr.bf16.gmra.mrb[0].mxu0 %v836
      %v951 = vpop.f32.mrb[0].mxu0
      %v952 = vadd.f32 0.0, %v951
      %v953 = vpop.f32.mrb[0].mxu0
      %v954 = vpop.f32.mrb[0].mxu0
      %v955 = vadd.f32 0.0, %v954
      %v956 = vpop.f32.mrb[0].mxu0
      %957 = vmatprep.mubr.bf16.mxu0 0
      %958 = vmatmul.mubr.bf16.gmra.mrb[0].mxu0 %v839
      %v959 = vpop.f32.mrb[0].mxu0
      %v960 = vadd.f32 0.0, %v959
      %v961 = vpop.f32.mrb[0].mxu0
      %v962 = vpop.f32.mrb[0].mxu0
      %v963 = vadd.f32 0.0, %v962
      %v964 = vpop.f32.mrb[0].mxu0
      %965 = vmatprep.mubr.bf16.mxu0 0
      %966 = vmatmul.mubr.bf16.gmra.mrb[0].mxu0 %v842
      %v967 = vpop.f32.mrb[0].mxu0
      %v968 = vadd.f32 0.0, %v967
      %v969 = vpop.f32.mrb[0].mxu0
      %v970 = vpop.f32.mrb[0].mxu0
      %v971 = vadd.f32 0.0, %v970
      %v972 = vpop.f32.mrb[0].mxu0
      %973 = vmatprep.mubr.bf16.mxu0 0
      %974 = vmatmul.mubr.bf16.gmra.mrb[0].mxu0 %v845
      %v975 = vpop.f32.mrb[0].mxu0
      %v976 = vadd.f32 0.0, %v975
      %v977 = vpop.f32.mrb[0].mxu0
      %v978 = vpop.f32.mrb[0].mxu0
      %v979 = vadd.f32 0.0, %v978
      %v980 = vpop.f32.mrb[0].mxu0
      %981 = vmatprep.mubr.bf16.mxu0 0
      %982 = vmatmul.mubr.bf16.gmra.mrb[0].mxu0 %v848
      %v983 = vpop.f32.mrb[0].mxu0
      %v984 = vadd.f32 0.0, %v983
      %v985 = vpop.f32.mrb[0].mxu0
      %v986 = vpop.f32.mrb[0].mxu0
      %v987 = vadd.f32 0.0, %v986
      %v988 = vpop.f32.mrb[0].mxu0
      %989 = vmatprep.mubr.bf16.mxu0 0
      %990 = vmatmul.mubr.bf16.gmra.mrb[0].mxu0 %v851
      %v991 = vpop.f32.mrb[0].mxu0
      %v992 = vadd.f32 0.0, %v991
      %v993 = vpop.f32.mrb[0].mxu0
      %v994 = vpop.f32.mrb[0].mxu0
      %v995 = vadd.f32 0.0, %v994
      %v996 = vpop.f32.mrb[0].mxu0
      %997 = vmatprep.mubr.bf16.mxu0 0
      %998 = vmatmul.mubr.bf16.gmra.mrb[0].mxu0 %v854
      %v999 = vpop.f32.mrb[0].mxu0
      %v1000 = vadd.f32 0.0, %v999
      %v1001 = vpop.f32.mrb[0].mxu0
      %v1002 = vpop.f32.mrb[0].mxu0
      %v1003 = vadd.f32 0.0, %v1002
      %v1004 = vpop.f32.mrb[0].mxu0
      %1005 = vmatprep.mubr.bf16.mxu0 0
      %1006 = vmatmul.mubr.bf16.gmra.mrb[0].mxu0 %v857
      %v1007 = vpop.f32.mrb[0].mxu0
      %v1008 = vadd.f32 0.0, %v1007
      %v1009 = vpop.f32.mrb[0].mxu0
      %v1010 = vpop.f32.mrb[0].mxu0
      %v1011 = vadd.f32 0.0, %v1010
      %v1012 = vpop.f32.mrb[0].mxu0
      %1013 = vmatprep.mubr.bf16.mxu0 0
      %1014 = vmatmul.mubr.bf16.gmra.mrb[0].mxu0 %v860
      %v1015 = vpop.f32.mrb[0].mxu0
      %v1016 = vadd.f32 0.0, %v1015
      %v1017 = vpop.f32.mrb[0].mxu0
      %v1018 = vpop.f32.mrb[0].mxu0
      %v1019 = vadd.f32 0.0, %v1018
      %v1020 = vpop.f32.mrb[0].mxu0
      %1021 = vmatprep.mubr.bf16.mxu0 0
      %1022 = vmatmul.mubr.bf16.gmra.mrb[0].mxu0 %v863
      %v1023 = vpop.f32.mrb[0].mxu0
      %v1024 = vadd.f32 0.0, %v1023
      %v1025 = vpop.f32.mrb[0].mxu0
      %v1026 = vpop.f32.mrb[0].mxu0
      %v1027 = vadd.f32 0.0, %v1026
      %v1028 = vpop.f32.mrb[0].mxu0
      %1029 = vmatprep.mubr.bf16.mxu0 0
      %1030 = vmatmul.mubr.bf16.gmra.mrb[0].mxu0 %v866
      %v1031 = vpop.f32.mrb[0].mxu0
      %v1032 = vadd.f32 0.0, %v1031
      %v1033 = vpop.f32.mrb[0].mxu0
      %v1034 = vpop.f32.mrb[0].mxu0
      %v1035 = vadd.f32 0.0, %v1034
      %v1036 = vpop.f32.mrb[0].mxu0
      %1037 = vmatprep.mubr.bf16.mxu0 0
      %1038 = vmatmul.mubr.bf16.gmra.mrb[0].mxu0 %v869
      %v1039 = vpop.f32.mrb[0].mxu0
      %v1040 = vadd.f32 0.0, %v1039
      %v1041 = vpop.f32.mrb[0].mxu0
      %v1042 = vpop.f32.mrb[0].mxu0
      %v1043 = vadd.f32 0.0, %v1042
      %v1044 = vpop.f32.mrb[0].mxu0
      %1045 = vmatprep.mubr.bf16.mxu0 0
      %1046 = vmatmul.mubr.bf16.gmra.mrb[0].mxu0 %v872
      %v1047 = vpop.f32.mrb[0].mxu0
      %v1048 = vadd.f32 0.0, %v1047
      %v1049 = vpop.f32.mrb[0].mxu0
      %v1050 = vpop.f32.mrb[0].mxu0
      %v1051 = vadd.f32 0.0, %v1050
      %v1052 = vpop.f32.mrb[0].mxu0
      %1053 = vmatprep.mubr.bf16.mxu0 0
      %1054 = vmatmul.mubr.bf16.gmra.mrb[0].mxu0 %v875
      %v1055 = vpop.f32.mrb[0].mxu0
      %v1056 = vadd.f32 0.0, %v1055
      %v1057 = vpop.f32.mrb[0].mxu0
      %v1058 = vpop.f32.mrb[0].mxu0
      %v1059 = vadd.f32 0.0, %v1058
      %v1060 = vpop.f32.mrb[0].mxu0
      %1061 = vmatprep.mubr.bf16.mxu0 0
      %1062 = vmatmul.mubr.bf16.gmra.mrb[0].mxu0 %v878
      %v1063 = vpop.f32.mrb[0].mxu0
      %v1064 = vadd.f32 0.0, %v1063
      %v1065 = vpop.f32.mrb[0].mxu0
      %v1066 = vpop.f32.mrb[0].mxu0
      %v1067 = vadd.f32 0.0, %v1066
      %v1068 = vpop.f32.mrb[0].mxu0
      %1069 = vmatprep.mubr.bf16.mxu0 0
      %1070 = vmatmul.mubr.bf16.gmra.mrb[0].mxu0 %v881
      %v1071 = vpop.f32.mrb[0].mxu0
      %v1072 = vadd.f32 0.0, %v1071
      %v1073 = vpop.f32.mrb[0].mxu0
      %v1074 = vpop.f32.mrb[0].mxu0
      %v1075 = vadd.f32 0.0, %v1074
      %v1076 = vpop.f32.mrb[0].mxu0
      %1077 = vmatprep.mubr.bf16.mxu0 0
      %1078 = vmatmul.mubr.bf16.gmra.mrb[0].mxu0 %v884
      %v1079 = vpop.f32.mrb[0].mxu0
      %v1080 = vadd.f32 0.0, %v1079
      %v1081 = vpop.f32.mrb[0].mxu0
      %v1082 = vpop.f32.mrb[0].mxu0
      %v1083 = vadd.f32 0.0, %v1082
      %v1084 = vpop.f32.mrb[0].mxu0
      %1085 = vmatprep.mubr.bf16.mxu0 0
      %1086 = vmatmul.mubr.bf16.gmra.mrb[0].mxu0 %v887
      %v1087 = vpop.f32.mrb[0].mxu0
      %v1088 = vadd.f32 0.0, %v1087
      %v1089 = vpop.f32.mrb[0].mxu0
      %v1090 = vpop.f32.mrb[0].mxu0
      %v1091 = vadd.f32 0.0, %v1090
      %v1092 = vpop.f32.mrb[0].mxu0
      %1093 = vmatprep.mubr.bf16.mxu0 0
      %1094 = vmatmul.mubr.bf16.gmra.mrb[0].mxu0 %v890
      %v1095 = vpop.f32.mrb[0].mxu0
      %v1096 = vadd.f32 0.0, %v1095
      %v1097 = vpop.f32.mrb[0].mxu0
      %v1098 = vpop.f32.mrb[0].mxu0
      %v1099 = vadd.f32 0.0, %v1098
      %v1100 = vpop.f32.mrb[0].mxu0
      %1101 = vmatprep.mubr.bf16.mxu0 0
      %1102 = vmatmul.mubr.bf16.gmra.mrb[0].mxu0 %v893
      %v1103 = vpop.f32.mrb[0].mxu0
      %v1104 = vadd.f32 0.0, %v1103
      %v1105 = vpop.f32.mrb[0].mxu0
      %v1106 = vpop.f32.mrb[0].mxu0
      %v1107 = vadd.f32 0.0, %v1106
      %v1108 = vpop.f32.mrb[0].mxu0
      %1109 = vmatprep.mubr.bf16.mxu0 0
      %1110 = vmatmul.mubr.bf16.gmra.mrb[0].mxu0 %v896
      %v1111 = vpop.f32.mrb[0].mxu0
      %v1112 = vadd.f32 0.0, %v1111
      %v1113 = vpop.f32.mrb[0].mxu0
      %v1114 = vpop.f32.mrb[0].mxu0
      %v1115 = vadd.f32 0.0, %v1114
      %v1116 = vpop.f32.mrb[0].mxu0
      %1117 = vmatprep.mubr.bf16.mxu0 0
      %1118 = vmatmul.mubr.bf16.gmra.mrb[0].mxu0 %v899
      %v1119 = vpop.f32.mrb[0].mxu0
      %v1120 = vadd.f32 0.0, %v1119
      %v1121 = vpop.f32.mrb[0].mxu0
      %v1122 = vpop.f32.mrb[0].mxu0
      %v1123 = vadd.f32 0.0, %v1122
      %v1124 = vpop.f32.mrb[0].mxu0
      %1125 = vdwg.mxu0
      %v1134 = vunpack.c.l.b16 %v737
      %v1135 = vunpack.c.l.b16 %v738
      %v1136 = vunpack.c.l.b16 %v739
      %v1137 = vunpack.c.l.b16 %v740
      %v1138 = vunpack.c.l.b16 %v741
      %v1139 = vunpack.c.l.b16 %v742
      %v1140 = vunpack.c.l.b16 %v743
      %v1141 = vunpack.c.l.b16 %v744
      %v1142 = vpack.c.b16 %v1135, %v1134
      %v1143 = vpack.c.b16 %v1137, %v1136
      %v1144 = vpack.c.b16 %v1139, %v1138
      %v1145 = vpack.c.b16 %v1141, %v1140
      %v1151 = vsel %vm828, %v698, 0
      %v1154 = vsel %vm828, %v699, 0
      %v1157 = vsel %vm828, %v700, 0
      %v1160 = vsel %vm828, %v701, 0
      %v1163 = vsel %vm828, %v702, 0
      %v1166 = vsel %vm828, %v703, 0
      %v1169 = vsel %vm828, %v704, 0
      %v1172 = vsel %vm828, %v705, 0
      %v1175 = vsel %vm828, %v706, 0
      %v1178 = vsel %vm828, %v707, 0
      %v1181 = vsel %vm828, %v708, 0
      %v1184 = vsel %vm828, %v709, 0
      %v1187 = vsel %vm828, %v710, 0
      %v1190 = vsel %vm828, %v711, 0
      %v1193 = vsel %vm828, %v712, 0
      %v1196 = vsel %vm828, %v713, 0
      %v1199 = vsel %vm828, %v714, 0
      %v1202 = vsel %vm828, %v715, 0
      %v1205 = vsel %vm828, %v716, 0
      %v1208 = vsel %vm828, %v717, 0
      %v1211 = vsel %vm828, %v718, 0
      %v1214 = vsel %vm828, %v719, 0
      %v1217 = vsel %vm828, %v720, 0
      %v1220 = vsel %vm828, %v721, 0
      %1222 = vmatprep.subr.bf16.mxu0 0
      %1223 = vmatpush1.bf16.msra.mxu0 %v1142
      %1224 = vmatprep.subr.bf16.mxu0 0
      %1225 = vmatpush1.bf16.msra.mxu0 %v1143
      %1226 = vmatprep.subr.bf16.mxu0 0
      %1227 = vmatpush1.bf16.msra.mxu0 %v1144
      %1228 = vmatprep.subr.bf16.mxu0 0
      %1229 = vmatpush1.bf16.msra.mxu0 %v1145
      %1230 = vmatprep.subr.bf16.mxu0 0
      %1231 = vmatpush1.bf16.msra.mxu0 0
      %1232 = vmatprep.subr.bf16.mxu0 0
      %1233 = vmatpush1.bf16.msra.mxu0 0
      %1234 = vmatprep.subr.bf16.mxu0 0
      %1235 = vmatpush1.bf16.msra.mxu0 0
      %1236 = vmatprep.subr.bf16.mxu0 0
      %1237 = vmatpush1.bf16.msra.mxu0 0
      %1238 = vmatprep.subr.bf16.mxu0 0
      %1239 = vmatpush1.bf16.msra.mxu0 0
      %1240 = vmatprep.subr.bf16.mxu0 0
      %1241 = vmatpush1.bf16.msra.mxu0 0
      %1242 = vmatprep.subr.bf16.mxu0 0
      %1243 = vmatpush1.bf16.msra.mxu0 0
      %1244 = vmatprep.subr.bf16.mxu0 0
      %1245 = vmatpush1.bf16.msra.mxu0 0
      %1246 = vmatprep.subr.bf16.mxu0 0
      %1247 = vmatpush1.bf16.msra.mxu0 0
      %1248 = vmatprep.subr.bf16.mxu0 0
      %1249 = vmatpush1.bf16.msra.mxu0 0
      %1250 = vmatprep.subr.bf16.mxu0 0
      %1251 = vmatpush1.bf16.msra.mxu0 0
      %1252 = vmatprep.subr.bf16.mxu0 0
      %1253 = vmatpush1.bf16.msra.mxu0 0
      %1254 = vmatprep.mubr.bf16.mxu0 0
      %1255 = vmatmul.mubr.bf16.gmra.mrb[0].mxu0 %v1151
      %v1256 = vpop.f32.mrb[0].mxu0
      %v1257 = vadd.f32 %v936, %v1256
      %v1258 = vpop.f32.mrb[0].mxu0
      %v1259 = vpop.f32.mrb[0].mxu0
      %v1260 = vadd.f32 %v939, %v1259
      %v1261 = vpop.f32.mrb[0].mxu0
      %1262 = vmatprep.mubr.bf16.mxu0 0
      %1263 = vmatmul.mubr.bf16.gmra.mrb[0].mxu0 %v1154
      %v1264 = vpop.f32.mrb[0].mxu0
      %v1265 = vadd.f32 %v944, %v1264
      %v1266 = vpop.f32.mrb[0].mxu0
      %v1267 = vpop.f32.mrb[0].mxu0
      %v1268 = vadd.f32 %v947, %v1267
      %v1269 = vpop.f32.mrb[0].mxu0
      %1270 = vmatprep.mubr.bf16.mxu0 0
      %1271 = vmatmul.mubr.bf16.gmra.mrb[0].mxu0 %v1157
      %v1272 = vpop.f32.mrb[0].mxu0
      %v1273 = vadd.f32 %v952, %v1272
      %v1274 = vpop.f32.mrb[0].mxu0
      %v1275 = vpop.f32.mrb[0].mxu0
      %v1276 = vadd.f32 %v955, %v1275
      %v1277 = vpop.f32.mrb[0].mxu0
      %1278 = vmatprep.mubr.bf16.mxu0 0
      %1279 = vmatmul.mubr.bf16.gmra.mrb[0].mxu0 %v1160
      %v1280 = vpop.f32.mrb[0].mxu0
      %v1281 = vadd.f32 %v960, %v1280
      %v1282 = vpop.f32.mrb[0].mxu0
      %v1283 = vpop.f32.mrb[0].mxu0
      %v1284 = vadd.f32 %v963, %v1283
      %v1285 = vpop.f32.mrb[0].mxu0
      %1286 = vmatprep.mubr.bf16.mxu0 0
      %1287 = vmatmul.mubr.bf16.gmra.mrb[0].mxu0 %v1163
      %v1288 = vpop.f32.mrb[0].mxu0
      %v1289 = vadd.f32 %v968, %v1288
      %v1290 = vpop.f32.mrb[0].mxu0
      %v1291 = vpop.f32.mrb[0].mxu0
      %v1292 = vadd.f32 %v971, %v1291
      %v1293 = vpop.f32.mrb[0].mxu0
      %1294 = vmatprep.mubr.bf16.mxu0 0
      %1295 = vmatmul.mubr.bf16.gmra.mrb[0].mxu0 %v1166
      %v1296 = vpop.f32.mrb[0].mxu0
      %v1297 = vadd.f32 %v976, %v1296
      %v1298 = vpop.f32.mrb[0].mxu0
      %v1299 = vpop.f32.mrb[0].mxu0
      %v1300 = vadd.f32 %v979, %v1299
      %v1301 = vpop.f32.mrb[0].mxu0
      %1302 = vmatprep.mubr.bf16.mxu0 0
      %1303 = vmatmul.mubr.bf16.gmra.mrb[0].mxu0 %v1169
      %v1304 = vpop.f32.mrb[0].mxu0
      %v1305 = vadd.f32 %v984, %v1304
      %v1306 = vpop.f32.mrb[0].mxu0
      %v1307 = vpop.f32.mrb[0].mxu0
      %v1308 = vadd.f32 %v987, %v1307
      %v1309 = vpop.f32.mrb[0].mxu0
      %1310 = vmatprep.mubr.bf16.mxu0 0
      %1311 = vmatmul.mubr.bf16.gmra.mrb[0].mxu0 %v1172
      %v1312 = vpop.f32.mrb[0].mxu0
      %v1313 = vadd.f32 %v992, %v1312
      %v1314 = vpop.f32.mrb[0].mxu0
      %v1315 = vpop.f32.mrb[0].mxu0
      %v1316 = vadd.f32 %v995, %v1315
      %v1317 = vpop.f32.mrb[0].mxu0
      %1318 = vmatprep.mubr.bf16.mxu0 0
      %1319 = vmatmul.mubr.bf16.gmra.mrb[0].mxu0 %v1175
      %v1320 = vpop.f32.mrb[0].mxu0
      %v1321 = vadd.f32 %v1000, %v1320
      %v1322 = vpop.f32.mrb[0].mxu0
      %v1323 = vpop.f32.mrb[0].mxu0
      %v1324 = vadd.f32 %v1003, %v1323
      %v1325 = vpop.f32.mrb[0].mxu0
      %1326 = vmatprep.mubr.bf16.mxu0 0
      %1327 = vmatmul.mubr.bf16.gmra.mrb[0].mxu0 %v1178
      %v1328 = vpop.f32.mrb[0].mxu0
      %v1329 = vadd.f32 %v1008, %v1328
      %v1330 = vpop.f32.mrb[0].mxu0
      %v1331 = vpop.f32.mrb[0].mxu0
      %v1332 = vadd.f32 %v1011, %v1331
      %v1333 = vpop.f32.mrb[0].mxu0
      %1334 = vmatprep.mubr.bf16.mxu0 0
      %1335 = vmatmul.mubr.bf16.gmra.mrb[0].mxu0 %v1181
      %v1336 = vpop.f32.mrb[0].mxu0
      %v1337 = vadd.f32 %v1016, %v1336
      %v1338 = vpop.f32.mrb[0].mxu0
      %v1339 = vpop.f32.mrb[0].mxu0
      %v1340 = vadd.f32 %v1019, %v1339
      %v1341 = vpop.f32.mrb[0].mxu0
      %1342 = vmatprep.mubr.bf16.mxu0 0
      %1343 = vmatmul.mubr.bf16.gmra.mrb[0].mxu0 %v1184
      %v1344 = vpop.f32.mrb[0].mxu0
      %v1345 = vadd.f32 %v1024, %v1344
      %v1346 = vpop.f32.mrb[0].mxu0
      %v1347 = vpop.f32.mrb[0].mxu0
      %v1348 = vadd.f32 %v1027, %v1347
      %v1349 = vpop.f32.mrb[0].mxu0
      %1350 = vmatprep.mubr.bf16.mxu0 0
      %1351 = vmatmul.mubr.bf16.gmra.mrb[0].mxu0 %v1187
      %v1352 = vpop.f32.mrb[0].mxu0
      %v1353 = vadd.f32 %v1032, %v1352
      %v1354 = vpop.f32.mrb[0].mxu0
      %v1355 = vpop.f32.mrb[0].mxu0
      %v1356 = vadd.f32 %v1035, %v1355
      %v1357 = vpop.f32.mrb[0].mxu0
      %1358 = vmatprep.mubr.bf16.mxu0 0
      %1359 = vmatmul.mubr.bf16.gmra.mrb[0].mxu0 %v1190
      %v1360 = vpop.f32.mrb[0].mxu0
      %v1361 = vadd.f32 %v1040, %v1360
      %v1362 = vpop.f32.mrb[0].mxu0
      %v1363 = vpop.f32.mrb[0].mxu0
      %v1364 = vadd.f32 %v1043, %v1363
      %v1365 = vpop.f32.mrb[0].mxu0
      %1366 = vmatprep.mubr.bf16.mxu0 0
      %1367 = vmatmul.mubr.bf16.gmra.mrb[0].mxu0 %v1193
      %v1368 = vpop.f32.mrb[0].mxu0
      %v1369 = vadd.f32 %v1048, %v1368
      %v1370 = vpop.f32.mrb[0].mxu0
      %v1371 = vpop.f32.mrb[0].mxu0
      %v1372 = vadd.f32 %v1051, %v1371
      %v1373 = vpop.f32.mrb[0].mxu0
      %1374 = vmatprep.mubr.bf16.mxu0 0
      %1375 = vmatmul.mubr.bf16.gmra.mrb[0].mxu0 %v1196
      %v1376 = vpop.f32.mrb[0].mxu0
      %v1377 = vadd.f32 %v1056, %v1376
      %v1378 = vpop.f32.mrb[0].mxu0
      %v1379 = vpop.f32.mrb[0].mxu0
      %v1380 = vadd.f32 %v1059, %v1379
      %v1381 = vpop.f32.mrb[0].mxu0
      %1382 = vmatprep.mubr.bf16.mxu0 0
      %1383 = vmatmul.mubr.bf16.gmra.mrb[0].mxu0 %v1199
      %v1384 = vpop.f32.mrb[0].mxu0
      %v1385 = vadd.f32 %v1064, %v1384
      %v1386 = vpop.f32.mrb[0].mxu0
      %v1387 = vpop.f32.mrb[0].mxu0
      %v1388 = vadd.f32 %v1067, %v1387
      %v1389 = vpop.f32.mrb[0].mxu0
      %1390 = vmatprep.mubr.bf16.mxu0 0
      %1391 = vmatmul.mubr.bf16.gmra.mrb[0].mxu0 %v1202
      %v1392 = vpop.f32.mrb[0].mxu0
      %v1393 = vadd.f32 %v1072, %v1392
      %v1394 = vpop.f32.mrb[0].mxu0
      %v1395 = vpop.f32.mrb[0].mxu0
      %v1396 = vadd.f32 %v1075, %v1395
      %v1397 = vpop.f32.mrb[0].mxu0
      %1398 = vmatprep.mubr.bf16.mxu0 0
      %1399 = vmatmul.mubr.bf16.gmra.mrb[0].mxu0 %v1205
      %v1400 = vpop.f32.mrb[0].mxu0
      %v1401 = vadd.f32 %v1080, %v1400
      %v1402 = vpop.f32.mrb[0].mxu0
      %v1403 = vpop.f32.mrb[0].mxu0
      %v1404 = vadd.f32 %v1083, %v1403
      %v1405 = vpop.f32.mrb[0].mxu0
      %1406 = vmatprep.mubr.bf16.mxu0 0
      %1407 = vmatmul.mubr.bf16.gmra.mrb[0].mxu0 %v1208
      %v1408 = vpop.f32.mrb[0].mxu0
      %v1409 = vadd.f32 %v1088, %v1408
      %v1410 = vpop.f32.mrb[0].mxu0
      %v1411 = vpop.f32.mrb[0].mxu0
      %v1412 = vadd.f32 %v1091, %v1411
      %v1413 = vpop.f32.mrb[0].mxu0
      %1414 = vmatprep.mubr.bf16.mxu0 0
      %1415 = vmatmul.mubr.bf16.gmra.mrb[0].mxu0 %v1211
      %v1416 = vpop.f32.mrb[0].mxu0
      %v1417 = vadd.f32 %v1096, %v1416
      %v1418 = vpop.f32.mrb[0].mxu0
      %v1419 = vpop.f32.mrb[0].mxu0
      %v1420 = vadd.f32 %v1099, %v1419
      %v1421 = vpop.f32.mrb[0].mxu0
      %1422 = vmatprep.mubr.bf16.mxu0 0
      %1423 = vmatmul.mubr.bf16.gmra.mrb[0].mxu0 %v1214
      %v1424 = vpop.f32.mrb[0].mxu0
      %v1425 = vadd.f32 %v1104, %v1424
      %v1426 = vpop.f32.mrb[0].mxu0
      %v1427 = vpop.f32.mrb[0].mxu0
      %v1428 = vadd.f32 %v1107, %v1427
      %v1429 = vpop.f32.mrb[0].mxu0
      %1430 = vmatprep.mubr.bf16.mxu0 0
      %1431 = vmatmul.mubr.bf16.gmra.mrb[0].mxu0 %v1217
      %v1432 = vpop.f32.mrb[0].mxu0
      %v1433 = vadd.f32 %v1112, %v1432
      %v1434 = vpop.f32.mrb[0].mxu0
      %v1435 = vpop.f32.mrb[0].mxu0
      %v1436 = vadd.f32 %v1115, %v1435
      %v1437 = vpop.f32.mrb[0].mxu0
      %1438 = vmatprep.mubr.bf16.mxu0 0
      %1439 = vmatmul.mubr.bf16.gmra.mrb[0].mxu0 %v1220
      %v1440 = vpop.f32.mrb[0].mxu0
      %v1441 = vadd.f32 %v1120, %v1440
      %v1442 = vpop.f32.mrb[0].mxu0
      %v1443 = vpop.f32.mrb[0].mxu0
      %v1444 = vadd.f32 %v1123, %v1443
      %v1445 = vpop.f32.mrb[0].mxu0
      %1446 = vdwg.mxu0
      %s1447 = scalar_lea.vmem %s4, 192
      %v1448 = vld [vmem:[%s1447] sm:$0xf]
      %v1449 = vld [vmem:[%s1447 + $0x4] sm:$0xf]
      %v1450 = vld [vmem:[%s1447 + $0x8] sm:$0xf]
      %v1451 = vld [vmem:[%s1447 + $0xc] sm:$0xf]
      %v1452 = vld [vmem:[%s1447 + $0x10] sm:$0xf]
      %v1453 = vld [vmem:[%s1447 + $0x14] sm:$0xf]
      %v1454 = vld [vmem:[%s1447 + $0x18] sm:$0xf]
      %v1455 = vld [vmem:[%s1447 + $0x1c] sm:$0xf]
      %v1464 = vunpack.c.l.b16 %v1448
      %v1465 = vunpack.c.l.b16 %v1449
      %v1466 = vunpack.c.l.b16 %v1450
      %v1467 = vunpack.c.l.b16 %v1451
      %v1468 = vunpack.c.l.b16 %v1452
      %v1469 = vunpack.c.l.b16 %v1453
      %v1470 = vunpack.c.l.b16 %v1454
      %v1471 = vunpack.c.l.b16 %v1455
      %v1472 = vpack.c.b16 %v1465, %v1464
      %v1473 = vpack.c.b16 %v1467, %v1466
      %v1474 = vpack.c.b16 %v1469, %v1468
      %v1475 = vpack.c.b16 %v1471, %v1470
      %v1481 = vsel %vm828, %v734, 0
      %v1484 = vsel %vm828, %v735, 0
      %v1487 = vsel %vm828, %v736, 0
      %1489 = vmatprep.subr.bf16.mxu0 0
      %1490 = vmatpush1.bf16.msra.mxu0 %v1472
      %1491 = vmatprep.subr.bf16.mxu0 0
      %1492 = vmatpush1.bf16.msra.mxu0 %v1473
      %1493 = vmatprep.subr.bf16.mxu0 0
      %1494 = vmatpush1.bf16.msra.mxu0 %v1474
      %1495 = vmatprep.subr.bf16.mxu0 0
      %1496 = vmatpush1.bf16.msra.mxu0 %v1475
      %1497 = vmatprep.subr.bf16.mxu0 0
      %1498 = vmatpush1.bf16.msra.mxu0 0
      %1499 = vmatprep.subr.bf16.mxu0 0
      %1500 = vmatpush1.bf16.msra.mxu0 0
      %1501 = vmatprep.subr.bf16.mxu0 0
      %1502 = vmatpush1.bf16.msra.mxu0 0
      %1503 = vmatprep.subr.bf16.mxu0 0
      %1504 = vmatpush1.bf16.msra.mxu0 0
      %1505 = vmatprep.subr.bf16.mxu0 0
      %1506 = vmatpush1.bf16.msra.mxu0 0
      %1507 = vmatprep.subr.bf16.mxu0 0
      %1508 = vmatpush1.bf16.msra.mxu0 0
      %1509 = vmatprep.subr.bf16.mxu0 0
      %1510 = vmatpush1.bf16.msra.mxu0 0
      %1511 = vmatprep.subr.bf16.mxu0 0
      %1512 = vmatpush1.bf16.msra.mxu0 0
      %1513 = vmatprep.subr.bf16.mxu0 0
      %1514 = vmatpush1.bf16.msra.mxu0 0
      %1515 = vmatprep.subr.bf16.mxu0 0
      %1516 = vmatpush1.bf16.msra.mxu0 0
      %1517 = vmatprep.subr.bf16.mxu0 0
      %1518 = vmatpush1.bf16.msra.mxu0 0
      %1519 = vmatprep.subr.bf16.mxu0 0
      %1520 = vmatpush1.bf16.msra.mxu0 0
      %1521 = vmatprep.mubr.bf16.mxu0 0
      %1522 = vmatmul.mubr.bf16.gmra.mrb[0].mxu0 %v1160
      %v1523 = vpop.f32.mrb[0].mxu0
      %v1524 = vadd.f32 0.0, %v1523
      %v1525 = vpop.f32.mrb[0].mxu0
      %v1526 = vpop.f32.mrb[0].mxu0
      %v1527 = vadd.f32 0.0, %v1526
      %v1528 = vpop.f32.mrb[0].mxu0
      %1529 = vmatprep.mubr.bf16.mxu0 0
      %1530 = vmatmul.mubr.bf16.gmra.mrb[0].mxu0 %v1163
      %v1531 = vpop.f32.mrb[0].mxu0
      %v1532 = vadd.f32 0.0, %v1531
      %v1533 = vpop.f32.mrb[0].mxu0
      %v1534 = vpop.f32.mrb[0].mxu0
      %v1535 = vadd.f32 0.0, %v1534
      %v1536 = vpop.f32.mrb[0].mxu0
      %1537 = vmatprep.mubr.bf16.mxu0 0
      %1538 = vmatmul.mubr.bf16.gmra.mrb[0].mxu0 %v1166
      %v1539 = vpop.f32.mrb[0].mxu0
      %v1540 = vadd.f32 0.0, %v1539
      %v1541 = vpop.f32.mrb[0].mxu0
      %v1542 = vpop.f32.mrb[0].mxu0
      %v1543 = vadd.f32 0.0, %v1542
      %v1544 = vpop.f32.mrb[0].mxu0
      %1545 = vmatprep.mubr.bf16.mxu0 0
      %1546 = vmatmul.mubr.bf16.gmra.mrb[0].mxu0 %v1169
      %v1547 = vpop.f32.mrb[0].mxu0
      %v1548 = vadd.f32 0.0, %v1547
      %v1549 = vpop.f32.mrb[0].mxu0
      %v1550 = vpop.f32.mrb[0].mxu0
      %v1551 = vadd.f32 0.0, %v1550
      %v1552 = vpop.f32.mrb[0].mxu0
      %1553 = vmatprep.mubr.bf16.mxu0 0
      %1554 = vmatmul.mubr.bf16.gmra.mrb[0].mxu0 %v1172
      %v1555 = vpop.f32.mrb[0].mxu0
      %v1556 = vadd.f32 0.0, %v1555
      %v1557 = vpop.f32.mrb[0].mxu0
      %v1558 = vpop.f32.mrb[0].mxu0
      %v1559 = vadd.f32 0.0, %v1558
      %v1560 = vpop.f32.mrb[0].mxu0
      %1561 = vmatprep.mubr.bf16.mxu0 0
      %1562 = vmatmul.mubr.bf16.gmra.mrb[0].mxu0 %v1175
      %v1563 = vpop.f32.mrb[0].mxu0
      %v1564 = vadd.f32 0.0, %v1563
      %v1565 = vpop.f32.mrb[0].mxu0
      %v1566 = vpop.f32.mrb[0].mxu0
      %v1567 = vadd.f32 0.0, %v1566
      %v1568 = vpop.f32.mrb[0].mxu0
      %1569 = vmatprep.mubr.bf16.mxu0 0
      %1570 = vmatmul.mubr.bf16.gmra.mrb[0].mxu0 %v1178
      %v1571 = vpop.f32.mrb[0].mxu0
      %v1572 = vadd.f32 0.0, %v1571
      %v1573 = vpop.f32.mrb[0].mxu0
      %v1574 = vpop.f32.mrb[0].mxu0
      %v1575 = vadd.f32 0.0, %v1574
      %v1576 = vpop.f32.mrb[0].mxu0
      %1577 = vmatprep.mubr.bf16.mxu0 0
      %1578 = vmatmul.mubr.bf16.gmra.mrb[0].mxu0 %v1181
      %v1579 = vpop.f32.mrb[0].mxu0
      %v1580 = vadd.f32 0.0, %v1579
      %v1581 = vpop.f32.mrb[0].mxu0
      %v1582 = vpop.f32.mrb[0].mxu0
      %v1583 = vadd.f32 0.0, %v1582
      %v1584 = vpop.f32.mrb[0].mxu0
      %1585 = vmatprep.mubr.bf16.mxu0 0
      %1586 = vmatmul.mubr.bf16.gmra.mrb[0].mxu0 %v1184
      %v1587 = vpop.f32.mrb[0].mxu0
      %v1588 = vadd.f32 0.0, %v1587
      %v1589 = vpop.f32.mrb[0].mxu0
      %v1590 = vpop.f32.mrb[0].mxu0
      %v1591 = vadd.f32 0.0, %v1590
      %v1592 = vpop.f32.mrb[0].mxu0
      %1593 = vmatprep.mubr.bf16.mxu0 0
      %1594 = vmatmul.mubr.bf16.gmra.mrb[0].mxu0 %v1187
      %v1595 = vpop.f32.mrb[0].mxu0
      %v1596 = vadd.f32 0.0, %v1595
      %v1597 = vpop.f32.mrb[0].mxu0
      %v1598 = vpop.f32.mrb[0].mxu0
      %v1599 = vadd.f32 0.0, %v1598
      %v1600 = vpop.f32.mrb[0].mxu0
      %1601 = vmatprep.mubr.bf16.mxu0 0
      %1602 = vmatmul.mubr.bf16.gmra.mrb[0].mxu0 %v1190
      %v1603 = vpop.f32.mrb[0].mxu0
      %v1604 = vadd.f32 0.0, %v1603
      %v1605 = vpop.f32.mrb[0].mxu0
      %v1606 = vpop.f32.mrb[0].mxu0
      %v1607 = vadd.f32 0.0, %v1606
      %v1608 = vpop.f32.mrb[0].mxu0
      %1609 = vmatprep.mubr.bf16.mxu0 0
      %1610 = vmatmul.mubr.bf16.gmra.mrb[0].mxu0 %v1193
      %v1611 = vpop.f32.mrb[0].mxu0
      %v1612 = vadd.f32 0.0, %v1611
      %v1613 = vpop.f32.mrb[0].mxu0
      %v1614 = vpop.f32.mrb[0].mxu0
      %v1615 = vadd.f32 0.0, %v1614
      %v1616 = vpop.f32.mrb[0].mxu0
      %1617 = vmatprep.mubr.bf16.mxu0 0
      %1618 = vmatmul.mubr.bf16.gmra.mrb[0].mxu0 %v1196
      %v1619 = vpop.f32.mrb[0].mxu0
      %v1620 = vadd.f32 0.0, %v1619
      %v1621 = vpop.f32.mrb[0].mxu0
      %v1622 = vpop.f32.mrb[0].mxu0
      %v1623 = vadd.f32 0.0, %v1622
      %v1624 = vpop.f32.mrb[0].mxu0
      %1625 = vmatprep.mubr.bf16.mxu0 0
      %1626 = vmatmul.mubr.bf16.gmra.mrb[0].mxu0 %v1199
      %v1627 = vpop.f32.mrb[0].mxu0
      %v1628 = vadd.f32 0.0, %v1627
      %v1629 = vpop.f32.mrb[0].mxu0
      %v1630 = vpop.f32.mrb[0].mxu0
      %v1631 = vadd.f32 0.0, %v1630
      %v1632 = vpop.f32.mrb[0].mxu0
      %1633 = vmatprep.mubr.bf16.mxu0 0
      %1634 = vmatmul.mubr.bf16.gmra.mrb[0].mxu0 %v1202
      %v1635 = vpop.f32.mrb[0].mxu0
      %v1636 = vadd.f32 0.0, %v1635
      %v1637 = vpop.f32.mrb[0].mxu0
      %v1638 = vpop.f32.mrb[0].mxu0
      %v1639 = vadd.f32 0.0, %v1638
      %v1640 = vpop.f32.mrb[0].mxu0
      %1641 = vmatprep.mubr.bf16.mxu0 0
      %1642 = vmatmul.mubr.bf16.gmra.mrb[0].mxu0 %v1205
      %v1643 = vpop.f32.mrb[0].mxu0
      %v1644 = vadd.f32 0.0, %v1643
      %v1645 = vpop.f32.mrb[0].mxu0
      %v1646 = vpop.f32.mrb[0].mxu0
      %v1647 = vadd.f32 0.0, %v1646
      %v1648 = vpop.f32.mrb[0].mxu0
      %1649 = vmatprep.mubr.bf16.mxu0 0
      %1650 = vmatmul.mubr.bf16.gmra.mrb[0].mxu0 %v1208
      %v1651 = vpop.f32.mrb[0].mxu0
      %v1652 = vadd.f32 0.0, %v1651
      %v1653 = vpop.f32.mrb[0].mxu0
      %v1654 = vpop.f32.mrb[0].mxu0
      %v1655 = vadd.f32 0.0, %v1654
      %v1656 = vpop.f32.mrb[0].mxu0
      %1657 = vmatprep.mubr.bf16.mxu0 0
      %1658 = vmatmul.mubr.bf16.gmra.mrb[0].mxu0 %v1211
      %v1659 = vpop.f32.mrb[0].mxu0
      %v1660 = vadd.f32 0.0, %v1659
      %v1661 = vpop.f32.mrb[0].mxu0
      %v1662 = vpop.f32.mrb[0].mxu0
      %v1663 = vadd.f32 0.0, %v1662
      %v1664 = vpop.f32.mrb[0].mxu0
      %1665 = vmatprep.mubr.bf16.mxu0 0
      %1666 = vmatmul.mubr.bf16.gmra.mrb[0].mxu0 %v1214
      %v1667 = vpop.f32.mrb[0].mxu0
      %v1668 = vadd.f32 0.0, %v1667
      %v1669 = vpop.f32.mrb[0].mxu0
      %v1670 = vpop.f32.mrb[0].mxu0
      %v1671 = vadd.f32 0.0, %v1670
      %v1672 = vpop.f32.mrb[0].mxu0
      %1673 = vmatprep.mubr.bf16.mxu0 0
      %1674 = vmatmul.mubr.bf16.gmra.mrb[0].mxu0 %v1217
      %v1675 = vpop.f32.mrb[0].mxu0
      %v1676 = vadd.f32 0.0, %v1675
      %v1677 = vpop.f32.mrb[0].mxu0
      %v1678 = vpop.f32.mrb[0].mxu0
      %v1679 = vadd.f32 0.0, %v1678
      %v1680 = vpop.f32.mrb[0].mxu0
      %1681 = vmatprep.mubr.bf16.mxu0 0
      %1682 = vmatmul.mubr.bf16.gmra.mrb[0].mxu0 %v1220
      %v1683 = vpop.f32.mrb[0].mxu0
      %v1684 = vadd.f32 0.0, %v1683
      %v1685 = vpop.f32.mrb[0].mxu0
      %v1686 = vpop.f32.mrb[0].mxu0
      %v1687 = vadd.f32 0.0, %v1686
      %v1688 = vpop.f32.mrb[0].mxu0
      %1689 = vmatprep.mubr.bf16.mxu0 0
      %1690 = vmatmul.mubr.bf16.gmra.mrb[0].mxu0 %v1481
      %v1691 = vpop.f32.mrb[0].mxu0
      %v1692 = vadd.f32 0.0, %v1691
      %v1693 = vpop.f32.mrb[0].mxu0
      %v1694 = vpop.f32.mrb[0].mxu0
      %v1695 = vadd.f32 0.0, %v1694
      %v1696 = vpop.f32.mrb[0].mxu0
      %1697 = vmatprep.mubr.bf16.mxu0 0
      %1698 = vmatmul.mubr.bf16.gmra.mrb[0].mxu0 %v1484
      %v1699 = vpop.f32.mrb[0].mxu0
      %v1700 = vadd.f32 0.0, %v1699
      %v1701 = vpop.f32.mrb[0].mxu0
      %v1702 = vpop.f32.mrb[0].mxu0
      %v1703 = vadd.f32 0.0, %v1702
      %v1704 = vpop.f32.mrb[0].mxu0
      %1705 = vmatprep.mubr.bf16.mxu0 0
      %1706 = vmatmul.mubr.bf16.gmra.mrb[0].mxu0 %v1487
      %v1707 = vpop.f32.mrb[0].mxu0
      %v1708 = vadd.f32 0.0, %v1707
      %v1709 = vpop.f32.mrb[0].mxu0
      %v1710 = vpop.f32.mrb[0].mxu0
      %v1711 = vadd.f32 0.0, %v1710
      %v1712 = vpop.f32.mrb[0].mxu0
      %1713 = vdwg.mxu0
      %v1714 = vadd.f32 %v1257, %v1524
      %v1715 = vadd.f32 %v1260, %v1527
      %v1716 = vadd.f32 %v1265, %v1532
      %v1717 = vadd.f32 %v1268, %v1535
      %v1718 = vadd.f32 %v1273, %v1540
      %v1719 = vadd.f32 %v1276, %v1543
      %v1720 = vadd.f32 %v1281, %v1548
      %v1721 = vadd.f32 %v1284, %v1551
      %v1722 = vadd.f32 %v1289, %v1556
      %v1723 = vadd.f32 %v1292, %v1559
      %v1724 = vadd.f32 %v1297, %v1564
      %v1725 = vadd.f32 %v1300, %v1567
      %v1726 = vadd.f32 %v1305, %v1572
      %v1727 = vadd.f32 %v1308, %v1575
      %v1728 = vadd.f32 %v1313, %v1580
      %v1729 = vadd.f32 %v1316, %v1583
      %v1730 = vadd.f32 %v1321, %v1588
      %v1731 = vadd.f32 %v1324, %v1591
      %v1732 = vadd.f32 %v1329, %v1596
      %v1733 = vadd.f32 %v1332, %v1599
      %v1734 = vadd.f32 %v1337, %v1604
      %v1735 = vadd.f32 %v1340, %v1607
      %v1736 = vadd.f32 %v1345, %v1612
      %v1737 = vadd.f32 %v1348, %v1615
      %v1738 = vadd.f32 %v1353, %v1620
      %v1739 = vadd.f32 %v1356, %v1623
      %v1740 = vadd.f32 %v1361, %v1628
      %v1741 = vadd.f32 %v1364, %v1631
      %v1742 = vadd.f32 %v1369, %v1636
      %v1743 = vadd.f32 %v1372, %v1639
      %v1744 = vadd.f32 %v1377, %v1644
      %v1745 = vadd.f32 %v1380, %v1647
      %v1746 = vadd.f32 %v1385, %v1652
      %v1747 = vadd.f32 %v1388, %v1655
      %v1748 = vadd.f32 %v1393, %v1660
      %v1749 = vadd.f32 %v1396, %v1663
      %v1750 = vadd.f32 %v1401, %v1668
      %v1751 = vadd.f32 %v1404, %v1671
      %v1752 = vadd.f32 %v1409, %v1676
      %v1753 = vadd.f32 %v1412, %v1679
      %v1754 = vadd.f32 %v1417, %v1684
      %v1755 = vadd.f32 %v1420, %v1687
      %v1756 = vadd.f32 %v1425, %v1692
      %v1757 = vadd.f32 %v1428, %v1695
      %v1758 = vadd.f32 %v1433, %v1700
      %v1759 = vadd.f32 %v1436, %v1703
      %v1760 = vadd.f32 %v1441, %v1708
      %v1761 = vadd.f32 %v1444, %v1711
      %v1762 = vadd.f32 %v1714, 0.0
      %v1763 = vadd.f32 %v1715, 0.0
      %v1764 = vadd.f32 %v1716, 0.0
      %v1765 = vadd.f32 %v1717, 0.0
      %v1766 = vadd.f32 %v1718, 0.0
      %v1767 = vadd.f32 %v1719, 0.0
      %v1768 = vadd.f32 %v1720, 0.0
      %v1769 = vadd.f32 %v1721, 0.0
      %v1770 = vadd.f32 %v1722, 0.0
      %v1771 = vadd.f32 %v1723, 0.0
      %v1772 = vadd.f32 %v1724, 0.0
      %v1773 = vadd.f32 %v1725, 0.0
      %v1774 = vadd.f32 %v1726, 0.0
      %v1775 = vadd.f32 %v1727, 0.0
      %v1776 = vadd.f32 %v1728, 0.0
      %v1777 = vadd.f32 %v1729, 0.0
      %v1778 = vadd.f32 %v1730, 0.0
      %v1779 = vadd.f32 %v1731, 0.0
      %v1780 = vadd.f32 %v1732, 0.0
      %v1781 = vadd.f32 %v1733, 0.0
      %v1782 = vadd.f32 %v1734, 0.0
      %v1783 = vadd.f32 %v1735, 0.0
      %v1784 = vadd.f32 %v1736, 0.0
      %v1785 = vadd.f32 %v1737, 0.0
      %v1786 = vadd.f32 %v1738, 0.0
      %v1787 = vadd.f32 %v1739, 0.0
      %v1788 = vadd.f32 %v1740, 0.0
      %v1789 = vadd.f32 %v1741, 0.0
      %v1790 = vadd.f32 %v1742, 0.0
      %v1791 = vadd.f32 %v1743, 0.0
      %v1792 = vadd.f32 %v1744, 0.0
      %v1793 = vadd.f32 %v1745, 0.0
      %v1794 = vadd.f32 %v1746, 0.0
      %v1795 = vadd.f32 %v1747, 0.0
      %v1796 = vadd.f32 %v1748, 0.0
      %v1797 = vadd.f32 %v1749, 0.0
      %v1798 = vadd.f32 %v1750, 0.0
      %v1799 = vadd.f32 %v1751, 0.0
      %v1800 = vadd.f32 %v1752, 0.0
      %v1801 = vadd.f32 %v1753, 0.0
      %v1802 = vadd.f32 %v1754, 0.0
      %v1803 = vadd.f32 %v1755, 0.0
      %v1804 = vadd.f32 %v1756, 0.0
      %v1805 = vadd.f32 %v1757, 0.0
      %v1806 = vadd.f32 %v1758, 0.0
      %v1807 = vadd.f32 %v1759, 0.0
      %v1808 = vadd.f32 %v1760, 0.0
      %v1809 = vadd.f32 %v1761, 0.0
      %s1810 = scalar_lea.vmem %s4, 32
      %v1811 = vld [vmem:[%s1810] sm:$0xf]
      %v1812 = vld [vmem:[%s1810 + $0x4] sm:$0xf]
      %v1813 = vld [vmem:[%s1810 + $0x8] sm:$0xf]
      %v1814 = vld [vmem:[%s1810 + $0xc] sm:$0xf]
      %v1815 = vld [vmem:[%s1810 + $0x10] sm:$0xf]
      %v1816 = vld [vmem:[%s1810 + $0x14] sm:$0xf]
      %v1817 = vld [vmem:[%s1810 + $0x18] sm:$0xf]
      %v1818 = vld [vmem:[%s1810 + $0x1c] sm:$0xf]
      %s1819 = scalar_lea.vmem %s4, 128
      %v1820 = vld [vmem:[%s1819] sm:$0xf]
      %v1821 = vld [vmem:[%s1819 + $0x4] sm:$0xf]
      %v1822 = vld [vmem:[%s1819 + $0x8] sm:$0xf]
      %v1823 = vld [vmem:[%s1819 + $0xc] sm:$0xf]
      %v1824 = vld [vmem:[%s1819 + $0x10] sm:$0xf]
      %v1825 = vld [vmem:[%s1819 + $0x14] sm:$0xf]
      %v1826 = vld [vmem:[%s1819 + $0x18] sm:$0xf]
      %v1827 = vld [vmem:[%s1819 + $0x1c] sm:$0xf]
      %v1836 = vunpack.c.l.b16 %v1820
      %v1837 = vunpack.c.l.b16 %v1821
      %v1838 = vunpack.c.l.b16 %v1822
      %v1839 = vunpack.c.l.b16 %v1823
      %v1840 = vunpack.c.l.b16 %v1824
      %v1841 = vunpack.c.l.b16 %v1825
      %v1842 = vunpack.c.l.b16 %v1826
      %v1843 = vunpack.c.l.b16 %v1827
      %v1844 = vpack.c.b16 %v1837, %v1836
      %v1845 = vpack.c.b16 %v1839, %v1838
      %v1846 = vpack.c.b16 %v1841, %v1840
      %v1847 = vpack.c.b16 %v1843, %v1842
      %1852 = vmatprep.subr.bf16.mxu0 0
      %1853 = vmatpush1.bf16.msra.mxu0 %v1844
      %1854 = vmatprep.subr.bf16.mxu0 0
      %1855 = vmatpush1.bf16.msra.mxu0 %v1845
      %1856 = vmatprep.subr.bf16.mxu0 0
      %1857 = vmatpush1.bf16.msra.mxu0 %v1846
      %1858 = vmatprep.subr.bf16.mxu0 0
      %1859 = vmatpush1.bf16.msra.mxu0 %v1847
      %1860 = vmatprep.subr.bf16.mxu0 0
      %1861 = vmatpush1.bf16.msra.mxu0 0
      %1862 = vmatprep.subr.bf16.mxu0 0
      %1863 = vmatpush1.bf16.msra.mxu0 0
      %1864 = vmatprep.subr.bf16.mxu0 0
      %1865 = vmatpush1.bf16.msra.mxu0 0
      %1866 = vmatprep.subr.bf16.mxu0 0
      %1867 = vmatpush1.bf16.msra.mxu0 0
      %1868 = vmatprep.subr.bf16.mxu0 0
      %1869 = vmatpush1.bf16.msra.mxu0 0
      %1870 = vmatprep.subr.bf16.mxu0 0
      %1871 = vmatpush1.bf16.msra.mxu0 0
      %1872 = vmatprep.subr.bf16.mxu0 0
      %1873 = vmatpush1.bf16.msra.mxu0 0
      %1874 = vmatprep.subr.bf16.mxu0 0
      %1875 = vmatpush1.bf16.msra.mxu0 0
      %1876 = vmatprep.subr.bf16.mxu0 0
      %1877 = vmatpush1.bf16.msra.mxu0 0
      %1878 = vmatprep.subr.bf16.mxu0 0
      %1879 = vmatpush1.bf16.msra.mxu0 0
      %1880 = vmatprep.subr.bf16.mxu0 0
      %1881 = vmatpush1.bf16.msra.mxu0 0
      %1882 = vmatprep.subr.bf16.mxu0 0
      %1883 = vmatpush1.bf16.msra.mxu0 0
      %1884 = vmatprep.mubr.bf16.mxu0 0
      %1885 = vmatmul.mubr.bf16.gmra.mrb[0].mxu0 %v830
      %v1886 = vpop.f32.mrb[0].mxu0
      %v1887 = vadd.f32 0.0, %v1886
      %v1888 = vpop.f32.mrb[0].mxu0
      %v1889 = vpop.f32.mrb[0].mxu0
      %v1890 = vadd.f32 0.0, %v1889
      %v1891 = vpop.f32.mrb[0].mxu0
      %1892 = vmatprep.mubr.bf16.mxu0 0
      %1893 = vmatmul.mubr.bf16.gmra.mrb[0].mxu0 %v833
      %v1894 = vpop.f32.mrb[0].mxu0
      %v1895 = vadd.f32 0.0, %v1894
      %v1896 = vpop.f32.mrb[0].mxu0
      %v1897 = vpop.f32.mrb[0].mxu0
      %v1898 = vadd.f32 0.0, %v1897
      %v1899 = vpop.f32.mrb[0].mxu0
      %1900 = vmatprep.mubr.bf16.mxu0 0
      %1901 = vmatmul.mubr.bf16.gmra.mrb[0].mxu0 %v836
      %v1902 = vpop.f32.mrb[0].mxu0
      %v1903 = vadd.f32 0.0, %v1902
      %v1904 = vpop.f32.mrb[0].mxu0
      %v1905 = vpop.f32.mrb[0].mxu0
      %v1906 = vadd.f32 0.0, %v1905
      %v1907 = vpop.f32.mrb[0].mxu0
      %1908 = vmatprep.mubr.bf16.mxu0 0
      %1909 = vmatmul.mubr.bf16.gmra.mrb[0].mxu0 %v839
      %v1910 = vpop.f32.mrb[0].mxu0
      %v1911 = vadd.f32 0.0, %v1910
      %v1912 = vpop.f32.mrb[0].mxu0
      %v1913 = vpop.f32.mrb[0].mxu0
      %v1914 = vadd.f32 0.0, %v1913
      %v1915 = vpop.f32.mrb[0].mxu0
      %1916 = vmatprep.mubr.bf16.mxu0 0
      %1917 = vmatmul.mubr.bf16.gmra.mrb[0].mxu0 %v842
      %v1918 = vpop.f32.mrb[0].mxu0
      %v1919 = vadd.f32 0.0, %v1918
      %v1920 = vpop.f32.mrb[0].mxu0
      %v1921 = vpop.f32.mrb[0].mxu0
      %v1922 = vadd.f32 0.0, %v1921
      %v1923 = vpop.f32.mrb[0].mxu0
      %1924 = vmatprep.mubr.bf16.mxu0 0
      %1925 = vmatmul.mubr.bf16.gmra.mrb[0].mxu0 %v845
      %v1926 = vpop.f32.mrb[0].mxu0
      %v1927 = vadd.f32 0.0, %v1926
      %v1928 = vpop.f32.mrb[0].mxu0
      %v1929 = vpop.f32.mrb[0].mxu0
      %v1930 = vadd.f32 0.0, %v1929
      %v1931 = vpop.f32.mrb[0].mxu0
      %1932 = vmatprep.mubr.bf16.mxu0 0
      %1933 = vmatmul.mubr.bf16.gmra.mrb[0].mxu0 %v848
      %v1934 = vpop.f32.mrb[0].mxu0
      %v1935 = vadd.f32 0.0, %v1934
      %v1936 = vpop.f32.mrb[0].mxu0
      %v1937 = vpop.f32.mrb[0].mxu0
      %v1938 = vadd.f32 0.0, %v1937
      %v1939 = vpop.f32.mrb[0].mxu0
      %1940 = vmatprep.mubr.bf16.mxu0 0
      %1941 = vmatmul.mubr.bf16.gmra.mrb[0].mxu0 %v851
      %v1942 = vpop.f32.mrb[0].mxu0
      %v1943 = vadd.f32 0.0, %v1942
      %v1944 = vpop.f32.mrb[0].mxu0
      %v1945 = vpop.f32.mrb[0].mxu0
      %v1946 = vadd.f32 0.0, %v1945
      %v1947 = vpop.f32.mrb[0].mxu0
      %1948 = vmatprep.mubr.bf16.mxu0 0
      %1949 = vmatmul.mubr.bf16.gmra.mrb[0].mxu0 %v854
      %v1950 = vpop.f32.mrb[0].mxu0
      %v1951 = vadd.f32 0.0, %v1950
      %v1952 = vpop.f32.mrb[0].mxu0
      %v1953 = vpop.f32.mrb[0].mxu0
      %v1954 = vadd.f32 0.0, %v1953
      %v1955 = vpop.f32.mrb[0].mxu0
      %1956 = vmatprep.mubr.bf16.mxu0 0
      %1957 = vmatmul.mubr.bf16.gmra.mrb[0].mxu0 %v857
      %v1958 = vpop.f32.mrb[0].mxu0
      %v1959 = vadd.f32 0.0, %v1958
      %v1960 = vpop.f32.mrb[0].mxu0
      %v1961 = vpop.f32.mrb[0].mxu0
      %v1962 = vadd.f32 0.0, %v1961
      %v1963 = vpop.f32.mrb[0].mxu0
      %1964 = vmatprep.mubr.bf16.mxu0 0
      %1965 = vmatmul.mubr.bf16.gmra.mrb[0].mxu0 %v860
      %v1966 = vpop.f32.mrb[0].mxu0
      %v1967 = vadd.f32 0.0, %v1966
      %v1968 = vpop.f32.mrb[0].mxu0
      %v1969 = vpop.f32.mrb[0].mxu0
      %v1970 = vadd.f32 0.0, %v1969
      %v1971 = vpop.f32.mrb[0].mxu0
      %1972 = vmatprep.mubr.bf16.mxu0 0
      %1973 = vmatmul.mubr.bf16.gmra.mrb[0].mxu0 %v863
      %v1974 = vpop.f32.mrb[0].mxu0
      %v1975 = vadd.f32 0.0, %v1974
      %v1976 = vpop.f32.mrb[0].mxu0
      %v1977 = vpop.f32.mrb[0].mxu0
      %v1978 = vadd.f32 0.0, %v1977
      %v1979 = vpop.f32.mrb[0].mxu0
      %1980 = vmatprep.mubr.bf16.mxu0 0
      %1981 = vmatmul.mubr.bf16.gmra.mrb[0].mxu0 %v866
      %v1982 = vpop.f32.mrb[0].mxu0
      %v1983 = vadd.f32 0.0, %v1982
      %v1984 = vpop.f32.mrb[0].mxu0
      %v1985 = vpop.f32.mrb[0].mxu0
      %v1986 = vadd.f32 0.0, %v1985
      %v1987 = vpop.f32.mrb[0].mxu0
      %1988 = vmatprep.mubr.bf16.mxu0 0
      %1989 = vmatmul.mubr.bf16.gmra.mrb[0].mxu0 %v869
      %v1990 = vpop.f32.mrb[0].mxu0
      %v1991 = vadd.f32 0.0, %v1990
      %v1992 = vpop.f32.mrb[0].mxu0
      %v1993 = vpop.f32.mrb[0].mxu0
      %v1994 = vadd.f32 0.0, %v1993
      %v1995 = vpop.f32.mrb[0].mxu0
      %1996 = vmatprep.mubr.bf16.mxu0 0
      %1997 = vmatmul.mubr.bf16.gmra.mrb[0].mxu0 %v872
      %v1998 = vpop.f32.mrb[0].mxu0
      %v1999 = vadd.f32 0.0, %v1998
      %v2000 = vpop.f32.mrb[0].mxu0
      %v2001 = vpop.f32.mrb[0].mxu0
      %v2002 = vadd.f32 0.0, %v2001
      %v2003 = vpop.f32.mrb[0].mxu0
      %2004 = vmatprep.mubr.bf16.mxu0 0
      %2005 = vmatmul.mubr.bf16.gmra.mrb[0].mxu0 %v875
      %v2006 = vpop.f32.mrb[0].mxu0
      %v2007 = vadd.f32 0.0, %v2006
      %v2008 = vpop.f32.mrb[0].mxu0
      %v2009 = vpop.f32.mrb[0].mxu0
      %v2010 = vadd.f32 0.0, %v2009
      %v2011 = vpop.f32.mrb[0].mxu0
      %2012 = vmatprep.mubr.bf16.mxu0 0
      %2013 = vmatmul.mubr.bf16.gmra.mrb[0].mxu0 %v878
      %v2014 = vpop.f32.mrb[0].mxu0
      %v2015 = vadd.f32 0.0, %v2014
      %v2016 = vpop.f32.mrb[0].mxu0
      %v2017 = vpop.f32.mrb[0].mxu0
      %v2018 = vadd.f32 0.0, %v2017
      %v2019 = vpop.f32.mrb[0].mxu0
      %2020 = vmatprep.mubr.bf16.mxu0 0
      %2021 = vmatmul.mubr.bf16.gmra.mrb[0].mxu0 %v881
      %v2022 = vpop.f32.mrb[0].mxu0
      %v2023 = vadd.f32 0.0, %v2022
      %v2024 = vpop.f32.mrb[0].mxu0
      %v2025 = vpop.f32.mrb[0].mxu0
      %v2026 = vadd.f32 0.0, %v2025
      %v2027 = vpop.f32.mrb[0].mxu0
      %2028 = vmatprep.mubr.bf16.mxu0 0
      %2029 = vmatmul.mubr.bf16.gmra.mrb[0].mxu0 %v884
      %v2030 = vpop.f32.mrb[0].mxu0
      %v2031 = vadd.f32 0.0, %v2030
      %v2032 = vpop.f32.mrb[0].mxu0
      %v2033 = vpop.f32.mrb[0].mxu0
      %v2034 = vadd.f32 0.0, %v2033
      %v2035 = vpop.f32.mrb[0].mxu0
      %2036 = vmatprep.mubr.bf16.mxu0 0
      %2037 = vmatmul.mubr.bf16.gmra.mrb[0].mxu0 %v887
      %v2038 = vpop.f32.mrb[0].mxu0
      %v2039 = vadd.f32 0.0, %v2038
      %v2040 = vpop.f32.mrb[0].mxu0
      %v2041 = vpop.f32.mrb[0].mxu0
      %v2042 = vadd.f32 0.0, %v2041
      %v2043 = vpop.f32.mrb[0].mxu0
      %2044 = vmatprep.mubr.bf16.mxu0 0
      %2045 = vmatmul.mubr.bf16.gmra.mrb[0].mxu0 %v890
      %v2046 = vpop.f32.mrb[0].mxu0
      %v2047 = vadd.f32 0.0, %v2046
      %v2048 = vpop.f32.mrb[0].mxu0
      %v2049 = vpop.f32.mrb[0].mxu0
      %v2050 = vadd.f32 0.0, %v2049
      %v2051 = vpop.f32.mrb[0].mxu0
      %2052 = vmatprep.mubr.bf16.mxu0 0
      %2053 = vmatmul.mubr.bf16.gmra.mrb[0].mxu0 %v893
      %v2054 = vpop.f32.mrb[0].mxu0
      %v2055 = vadd.f32 0.0, %v2054
      %v2056 = vpop.f32.mrb[0].mxu0
      %v2057 = vpop.f32.mrb[0].mxu0
      %v2058 = vadd.f32 0.0, %v2057
      %v2059 = vpop.f32.mrb[0].mxu0
      %2060 = vmatprep.mubr.bf16.mxu0 0
      %2061 = vmatmul.mubr.bf16.gmra.mrb[0].mxu0 %v896
      %v2062 = vpop.f32.mrb[0].mxu0
      %v2063 = vadd.f32 0.0, %v2062
      %v2064 = vpop.f32.mrb[0].mxu0
      %v2065 = vpop.f32.mrb[0].mxu0
      %v2066 = vadd.f32 0.0, %v2065
      %v2067 = vpop.f32.mrb[0].mxu0
      %2068 = vmatprep.mubr.bf16.mxu0 0
      %2069 = vmatmul.mubr.bf16.gmra.mrb[0].mxu0 %v899
      %v2070 = vpop.f32.mrb[0].mxu0
      %v2071 = vadd.f32 0.0, %v2070
      %v2072 = vpop.f32.mrb[0].mxu0
      %v2073 = vpop.f32.mrb[0].mxu0
      %v2074 = vadd.f32 0.0, %v2073
      %v2075 = vpop.f32.mrb[0].mxu0
      %2076 = vdwg.mxu0
      %v2085 = vunpack.c.l.b16 %v1811
      %v2086 = vunpack.c.l.b16 %v1812
      %v2087 = vunpack.c.l.b16 %v1813
      %v2088 = vunpack.c.l.b16 %v1814
      %v2089 = vunpack.c.l.b16 %v1815
      %v2090 = vunpack.c.l.b16 %v1816
      %v2091 = vunpack.c.l.b16 %v1817
      %v2092 = vunpack.c.l.b16 %v1818
      %v2093 = vpack.c.b16 %v2086, %v2085
      %v2094 = vpack.c.b16 %v2088, %v2087
      %v2095 = vpack.c.b16 %v2090, %v2089
      %v2096 = vpack.c.b16 %v2092, %v2091
      %2101 = vmatprep.subr.bf16.mxu0 0
      %2102 = vmatpush1.bf16.msra.mxu0 %v2093
      %2103 = vmatprep.subr.bf16.mxu0 0
      %2104 = vmatpush1.bf16.msra.mxu0 %v2094
      %2105 = vmatprep.subr.bf16.mxu0 0
      %2106 = vmatpush1.bf16.msra.mxu0 %v2095
      %2107 = vmatprep.subr.bf16.mxu0 0
      %2108 = vmatpush1.bf16.msra.mxu0 %v2096
      %2109 = vmatprep.subr.bf16.mxu0 0
      %2110 = vmatpush1.bf16.msra.mxu0 0
      %2111 = vmatprep.subr.bf16.mxu0 0
      %2112 = vmatpush1.bf16.msra.mxu0 0
      %2113 = vmatprep.subr.bf16.mxu0 0
      %2114 = vmatpush1.bf16.msra.mxu0 0
      %2115 = vmatprep.subr.bf16.mxu0 0
      %2116 = vmatpush1.bf16.msra.mxu0 0
      %2117 = vmatprep.subr.bf16.mxu0 0
      %2118 = vmatpush1.bf16.msra.mxu0 0
      %2119 = vmatprep.subr.bf16.mxu0 0
      %2120 = vmatpush1.bf16.msra.mxu0 0
      %2121 = vmatprep.subr.bf16.mxu0 0
      %2122 = vmatpush1.bf16.msra.mxu0 0
      %2123 = vmatprep.subr.bf16.mxu0 0
      %2124 = vmatpush1.bf16.msra.mxu0 0
      %2125 = vmatprep.subr.bf16.mxu0 0
      %2126 = vmatpush1.bf16.msra.mxu0 0
      %2127 = vmatprep.subr.bf16.mxu0 0
      %2128 = vmatpush1.bf16.msra.mxu0 0
      %2129 = vmatprep.subr.bf16.mxu0 0
      %2130 = vmatpush1.bf16.msra.mxu0 0
      %2131 = vmatprep.subr.bf16.mxu0 0
      %2132 = vmatpush1.bf16.msra.mxu0 0
      %2133 = vmatprep.mubr.bf16.mxu0 0
      %2134 = vmatmul.mubr.bf16.gmra.mrb[0].mxu0 %v1151
      %v2135 = vpop.f32.mrb[0].mxu0
      %v2136 = vadd.f32 %v1887, %v2135
      %v2137 = vpop.f32.mrb[0].mxu0
      %v2138 = vpop.f32.mrb[0].mxu0
      %v2139 = vadd.f32 %v1890, %v2138
      %v2140 = vpop.f32.mrb[0].mxu0
      %2141 = vmatprep.mubr.bf16.mxu0 0
      %2142 = vmatmul.mubr.bf16.gmra.mrb[0].mxu0 %v1154
      %v2143 = vpop.f32.mrb[0].mxu0
      %v2144 = vadd.f32 %v1895, %v2143
      %v2145 = vpop.f32.mrb[0].mxu0
      %v2146 = vpop.f32.mrb[0].mxu0
      %v2147 = vadd.f32 %v1898, %v2146
      %v2148 = vpop.f32.mrb[0].mxu0
      %2149 = vmatprep.mubr.bf16.mxu0 0
      %2150 = vmatmul.mubr.bf16.gmra.mrb[0].mxu0 %v1157
      %v2151 = vpop.f32.mrb[0].mxu0
      %v2152 = vadd.f32 %v1903, %v2151
      %v2153 = vpop.f32.mrb[0].mxu0
      %v2154 = vpop.f32.mrb[0].mxu0
      %v2155 = vadd.f32 %v1906, %v2154
      %v2156 = vpop.f32.mrb[0].mxu0
      %2157 = vmatprep.mubr.bf16.mxu0 0
      %2158 = vmatmul.mubr.bf16.gmra.mrb[0].mxu0 %v1160
      %v2159 = vpop.f32.mrb[0].mxu0
      %v2160 = vadd.f32 %v1911, %v2159
      %v2161 = vpop.f32.mrb[0].mxu0
      %v2162 = vpop.f32.mrb[0].mxu0
      %v2163 = vadd.f32 %v1914, %v2162
      %v2164 = vpop.f32.mrb[0].mxu0
      %2165 = vmatprep.mubr.bf16.mxu0 0
      %2166 = vmatmul.mubr.bf16.gmra.mrb[0].mxu0 %v1163
      %v2167 = vpop.f32.mrb[0].mxu0
      %v2168 = vadd.f32 %v1919, %v2167
      %v2169 = vpop.f32.mrb[0].mxu0
      %v2170 = vpop.f32.mrb[0].mxu0
      %v2171 = vadd.f32 %v1922, %v2170
      %v2172 = vpop.f32.mrb[0].mxu0
      %2173 = vmatprep.mubr.bf16.mxu0 0
      %2174 = vmatmul.mubr.bf16.gmra.mrb[0].mxu0 %v1166
      %v2175 = vpop.f32.mrb[0].mxu0
      %v2176 = vadd.f32 %v1927, %v2175
      %v2177 = vpop.f32.mrb[0].mxu0
      %v2178 = vpop.f32.mrb[0].mxu0
      %v2179 = vadd.f32 %v1930, %v2178
      %v2180 = vpop.f32.mrb[0].mxu0
      %2181 = vmatprep.mubr.bf16.mxu0 0
      %2182 = vmatmul.mubr.bf16.gmra.mrb[0].mxu0 %v1169
      %v2183 = vpop.f32.mrb[0].mxu0
      %v2184 = vadd.f32 %v1935, %v2183
      %v2185 = vpop.f32.mrb[0].mxu0
      %v2186 = vpop.f32.mrb[0].mxu0
      %v2187 = vadd.f32 %v1938, %v2186
      %v2188 = vpop.f32.mrb[0].mxu0
      %2189 = vmatprep.mubr.bf16.mxu0 0
      %2190 = vmatmul.mubr.bf16.gmra.mrb[0].mxu0 %v1172
      %v2191 = vpop.f32.mrb[0].mxu0
      %v2192 = vadd.f32 %v1943, %v2191
      %v2193 = vpop.f32.mrb[0].mxu0
      %v2194 = vpop.f32.mrb[0].mxu0
      %v2195 = vadd.f32 %v1946, %v2194
      %v2196 = vpop.f32.mrb[0].mxu0
      %2197 = vmatprep.mubr.bf16.mxu0 0
      %2198 = vmatmul.mubr.bf16.gmra.mrb[0].mxu0 %v1175
      %v2199 = vpop.f32.mrb[0].mxu0
      %v2200 = vadd.f32 %v1951, %v2199
      %v2201 = vpop.f32.mrb[0].mxu0
      %v2202 = vpop.f32.mrb[0].mxu0
      %v2203 = vadd.f32 %v1954, %v2202
      %v2204 = vpop.f32.mrb[0].mxu0
      %2205 = vmatprep.mubr.bf16.mxu0 0
      %2206 = vmatmul.mubr.bf16.gmra.mrb[0].mxu0 %v1178
      %v2207 = vpop.f32.mrb[0].mxu0
      %v2208 = vadd.f32 %v1959, %v2207
      %v2209 = vpop.f32.mrb[0].mxu0
      %v2210 = vpop.f32.mrb[0].mxu0
      %v2211 = vadd.f32 %v1962, %v2210
      %v2212 = vpop.f32.mrb[0].mxu0
      %2213 = vmatprep.mubr.bf16.mxu0 0
      %2214 = vmatmul.mubr.bf16.gmra.mrb[0].mxu0 %v1181
      %v2215 = vpop.f32.mrb[0].mxu0
      %v2216 = vadd.f32 %v1967, %v2215
      %v2217 = vpop.f32.mrb[0].mxu0
      %v2218 = vpop.f32.mrb[0].mxu0
      %v2219 = vadd.f32 %v1970, %v2218
      %v2220 = vpop.f32.mrb[0].mxu0
      %2221 = vmatprep.mubr.bf16.mxu0 0
      %2222 = vmatmul.mubr.bf16.gmra.mrb[0].mxu0 %v1184
      %v2223 = vpop.f32.mrb[0].mxu0
      %v2224 = vadd.f32 %v1975, %v2223
      %v2225 = vpop.f32.mrb[0].mxu0
      %v2226 = vpop.f32.mrb[0].mxu0
      %v2227 = vadd.f32 %v1978, %v2226
      %v2228 = vpop.f32.mrb[0].mxu0
      %2229 = vmatprep.mubr.bf16.mxu0 0
      %2230 = vmatmul.mubr.bf16.gmra.mrb[0].mxu0 %v1187
      %v2231 = vpop.f32.mrb[0].mxu0
      %v2232 = vadd.f32 %v1983, %v2231
      %v2233 = vpop.f32.mrb[0].mxu0
      %v2234 = vpop.f32.mrb[0].mxu0
      %v2235 = vadd.f32 %v1986, %v2234
      %v2236 = vpop.f32.mrb[0].mxu0
      %2237 = vmatprep.mubr.bf16.mxu0 0
      %2238 = vmatmul.mubr.bf16.gmra.mrb[0].mxu0 %v1190
      %v2239 = vpop.f32.mrb[0].mxu0
      %v2240 = vadd.f32 %v1991, %v2239
      %v2241 = vpop.f32.mrb[0].mxu0
      %v2242 = vpop.f32.mrb[0].mxu0
      %v2243 = vadd.f32 %v1994, %v2242
      %v2244 = vpop.f32.mrb[0].mxu0
      %2245 = vmatprep.mubr.bf16.mxu0 0
      %2246 = vmatmul.mubr.bf16.gmra.mrb[0].mxu0 %v1193
      %v2247 = vpop.f32.mrb[0].mxu0
      %v2248 = vadd.f32 %v1999, %v2247
      %v2249 = vpop.f32.mrb[0].mxu0
      %v2250 = vpop.f32.mrb[0].mxu0
      %v2251 = vadd.f32 %v2002, %v2250
      %v2252 = vpop.f32.mrb[0].mxu0
      %2253 = vmatprep.mubr.bf16.mxu0 0
      %2254 = vmatmul.mubr.bf16.gmra.mrb[0].mxu0 %v1196
      %v2255 = vpop.f32.mrb[0].mxu0
      %v2256 = vadd.f32 %v2007, %v2255
      %v2257 = vpop.f32.mrb[0].mxu0
      %v2258 = vpop.f32.mrb[0].mxu0
      %v2259 = vadd.f32 %v2010, %v2258
      %v2260 = vpop.f32.mrb[0].mxu0
      %2261 = vmatprep.mubr.bf16.mxu0 0
      %2262 = vmatmul.mubr.bf16.gmra.mrb[0].mxu0 %v1199
      %v2263 = vpop.f32.mrb[0].mxu0
      %v2264 = vadd.f32 %v2015, %v2263
      %v2265 = vpop.f32.mrb[0].mxu0
      %v2266 = vpop.f32.mrb[0].mxu0
      %v2267 = vadd.f32 %v2018, %v2266
      %v2268 = vpop.f32.mrb[0].mxu0
      %2269 = vmatprep.mubr.bf16.mxu0 0
      %2270 = vmatmul.mubr.bf16.gmra.mrb[0].mxu0 %v1202
      %v2271 = vpop.f32.mrb[0].mxu0
      %v2272 = vadd.f32 %v2023, %v2271
      %v2273 = vpop.f32.mrb[0].mxu0
      %v2274 = vpop.f32.mrb[0].mxu0
      %v2275 = vadd.f32 %v2026, %v2274
      %v2276 = vpop.f32.mrb[0].mxu0
      %2277 = vmatprep.mubr.bf16.mxu0 0
      %2278 = vmatmul.mubr.bf16.gmra.mrb[0].mxu0 %v1205
      %v2279 = vpop.f32.mrb[0].mxu0
      %v2280 = vadd.f32 %v2031, %v2279
      %v2281 = vpop.f32.mrb[0].mxu0
      %v2282 = vpop.f32.mrb[0].mxu0
      %v2283 = vadd.f32 %v2034, %v2282
      %v2284 = vpop.f32.mrb[0].mxu0
      %2285 = vmatprep.mubr.bf16.mxu0 0
      %2286 = vmatmul.mubr.bf16.gmra.mrb[0].mxu0 %v1208
      %v2287 = vpop.f32.mrb[0].mxu0
      %v2288 = vadd.f32 %v2039, %v2287
      %v2289 = vpop.f32.mrb[0].mxu0
      %v2290 = vpop.f32.mrb[0].mxu0
      %v2291 = vadd.f32 %v2042, %v2290
      %v2292 = vpop.f32.mrb[0].mxu0
      %2293 = vmatprep.mubr.bf16.mxu0 0
      %2294 = vmatmul.mubr.bf16.gmra.mrb[0].mxu0 %v1211
      %v2295 = vpop.f32.mrb[0].mxu0
      %v2296 = vadd.f32 %v2047, %v2295
      %v2297 = vpop.f32.mrb[0].mxu0
      %v2298 = vpop.f32.mrb[0].mxu0
      %v2299 = vadd.f32 %v2050, %v2298
      %v2300 = vpop.f32.mrb[0].mxu0
      %2301 = vmatprep.mubr.bf16.mxu0 0
      %2302 = vmatmul.mubr.bf16.gmra.mrb[0].mxu0 %v1214
      %v2303 = vpop.f32.mrb[0].mxu0
      %v2304 = vadd.f32 %v2055, %v2303
      %v2305 = vpop.f32.mrb[0].mxu0
      %v2306 = vpop.f32.mrb[0].mxu0
      %v2307 = vadd.f32 %v2058, %v2306
      %v2308 = vpop.f32.mrb[0].mxu0
      %2309 = vmatprep.mubr.bf16.mxu0 0
      %2310 = vmatmul.mubr.bf16.gmra.mrb[0].mxu0 %v1217
      %v2311 = vpop.f32.mrb[0].mxu0
      %v2312 = vadd.f32 %v2063, %v2311
      %v2313 = vpop.f32.mrb[0].mxu0
      %v2314 = vpop.f32.mrb[0].mxu0
      %v2315 = vadd.f32 %v2066, %v2314
      %v2316 = vpop.f32.mrb[0].mxu0
      %2317 = vmatprep.mubr.bf16.mxu0 0
      %2318 = vmatmul.mubr.bf16.gmra.mrb[0].mxu0 %v1220
      %v2319 = vpop.f32.mrb[0].mxu0
      %v2320 = vadd.f32 %v2071, %v2319
      %v2321 = vpop.f32.mrb[0].mxu0
      %v2322 = vpop.f32.mrb[0].mxu0
      %v2323 = vadd.f32 %v2074, %v2322
      %v2324 = vpop.f32.mrb[0].mxu0
      %2325 = vdwg.mxu0
      %s2326 = scalar_lea.vmem %s4, 224
      %v2327 = vld [vmem:[%s2326] sm:$0xf]
      %v2328 = vld [vmem:[%s2326 + $0x4] sm:$0xf]
      %v2329 = vld [vmem:[%s2326 + $0x8] sm:$0xf]
      %v2330 = vld [vmem:[%s2326 + $0xc] sm:$0xf]
      %v2331 = vld [vmem:[%s2326 + $0x10] sm:$0xf]
      %v2332 = vld [vmem:[%s2326 + $0x14] sm:$0xf]
      %v2333 = vld [vmem:[%s2326 + $0x18] sm:$0xf]
      %v2334 = vld [vmem:[%s2326 + $0x1c] sm:$0xf]
      %v2343 = vunpack.c.l.b16 %v2327
      %v2344 = vunpack.c.l.b16 %v2328
      %v2345 = vunpack.c.l.b16 %v2329
      %v2346 = vunpack.c.l.b16 %v2330
      %v2347 = vunpack.c.l.b16 %v2331
      %v2348 = vunpack.c.l.b16 %v2332
      %v2349 = vunpack.c.l.b16 %v2333
      %v2350 = vunpack.c.l.b16 %v2334
      %v2351 = vpack.c.b16 %v2344, %v2343
      %v2352 = vpack.c.b16 %v2346, %v2345
      %v2353 = vpack.c.b16 %v2348, %v2347
      %v2354 = vpack.c.b16 %v2350, %v2349
      %2359 = vmatprep.subr.bf16.mxu0 0
      %2360 = vmatpush1.bf16.msra.mxu0 %v2351
      %2361 = vmatprep.subr.bf16.mxu0 0
      %2362 = vmatpush1.bf16.msra.mxu0 %v2352
      %2363 = vmatprep.subr.bf16.mxu0 0
      %2364 = vmatpush1.bf16.msra.mxu0 %v2353
      %2365 = vmatprep.subr.bf16.mxu0 0
      %2366 = vmatpush1.bf16.msra.mxu0 %v2354
      %2367 = vmatprep.subr.bf16.mxu0 0
      %2368 = vmatpush1.bf16.msra.mxu0 0
      %2369 = vmatprep.subr.bf16.mxu0 0
      %2370 = vmatpush1.bf16.msra.mxu0 0
      %2371 = vmatprep.subr.bf16.mxu0 0
      %2372 = vmatpush1.bf16.msra.mxu0 0
      %2373 = vmatprep.subr.bf16.mxu0 0
      %2374 = vmatpush1.bf16.msra.mxu0 0
      %2375 = vmatprep.subr.bf16.mxu0 0
      %2376 = vmatpush1.bf16.msra.mxu0 0
      %2377 = vmatprep.subr.bf16.mxu0 0
      %2378 = vmatpush1.bf16.msra.mxu0 0
      %2379 = vmatprep.subr.bf16.mxu0 0
      %2380 = vmatpush1.bf16.msra.mxu0 0
      %2381 = vmatprep.subr.bf16.mxu0 0
      %2382 = vmatpush1.bf16.msra.mxu0 0
      %2383 = vmatprep.subr.bf16.mxu0 0
      %2384 = vmatpush1.bf16.msra.mxu0 0
      %2385 = vmatprep.subr.bf16.mxu0 0
      %2386 = vmatpush1.bf16.msra.mxu0 0
      %2387 = vmatprep.subr.bf16.mxu0 0
      %2388 = vmatpush1.bf16.msra.mxu0 0
      %2389 = vmatprep.subr.bf16.mxu0 0
      %2390 = vmatpush1.bf16.msra.mxu0 0
      %2391 = vmatprep.mubr.bf16.mxu0 0
      %2392 = vmatmul.mubr.bf16.gmra.mrb[0].mxu0 %v1160
      %v2393 = vpop.f32.mrb[0].mxu0
      %v2394 = vadd.f32 0.0, %v2393
      %v2395 = vpop.f32.mrb[0].mxu0
      %v2396 = vpop.f32.mrb[0].mxu0
      %v2397 = vadd.f32 0.0, %v2396
      %v2398 = vpop.f32.mrb[0].mxu0
      %2399 = vmatprep.mubr.bf16.mxu0 0
      %2400 = vmatmul.mubr.bf16.gmra.mrb[0].mxu0 %v1163
      %v2401 = vpop.f32.mrb[0].mxu0
      %v2402 = vadd.f32 0.0, %v2401
      %v2403 = vpop.f32.mrb[0].mxu0
      %v2404 = vpop.f32.mrb[0].mxu0
      %v2405 = vadd.f32 0.0, %v2404
      %v2406 = vpop.f32.mrb[0].mxu0
      %2407 = vmatprep.mubr.bf16.mxu0 0
      %2408 = vmatmul.mubr.bf16.gmra.mrb[0].mxu0 %v1166
      %v2409 = vpop.f32.mrb[0].mxu0
      %v2410 = vadd.f32 0.0, %v2409
      %v2411 = vpop.f32.mrb[0].mxu0
      %v2412 = vpop.f32.mrb[0].mxu0
      %v2413 = vadd.f32 0.0, %v2412
      %v2414 = vpop.f32.mrb[0].mxu0
      %2415 = vmatprep.mubr.bf16.mxu0 0
      %2416 = vmatmul.mubr.bf16.gmra.mrb[0].mxu0 %v1169
      %v2417 = vpop.f32.mrb[0].mxu0
      %v2418 = vadd.f32 0.0, %v2417
      %v2419 = vpop.f32.mrb[0].mxu0
      %v2420 = vpop.f32.mrb[0].mxu0
      %v2421 = vadd.f32 0.0, %v2420
      %v2422 = vpop.f32.mrb[0].mxu0
      %2423 = vmatprep.mubr.bf16.mxu0 0
      %2424 = vmatmul.mubr.bf16.gmra.mrb[0].mxu0 %v1172
      %v2425 = vpop.f32.mrb[0].mxu0
      %v2426 = vadd.f32 0.0, %v2425
      %v2427 = vpop.f32.mrb[0].mxu0
      %v2428 = vpop.f32.mrb[0].mxu0
      %v2429 = vadd.f32 0.0, %v2428
      %v2430 = vpop.f32.mrb[0].mxu0
      %2431 = vmatprep.mubr.bf16.mxu0 0
      %2432 = vmatmul.mubr.bf16.gmra.mrb[0].mxu0 %v1175
      %v2433 = vpop.f32.mrb[0].mxu0
      %v2434 = vadd.f32 0.0, %v2433
      %v2435 = vpop.f32.mrb[0].mxu0
      %v2436 = vpop.f32.mrb[0].mxu0
      %v2437 = vadd.f32 0.0, %v2436
      %v2438 = vpop.f32.mrb[0].mxu0
      %2439 = vmatprep.mubr.bf16.mxu0 0
      %2440 = vmatmul.mubr.bf16.gmra.mrb[0].mxu0 %v1178
      %v2441 = vpop.f32.mrb[0].mxu0
      %v2442 = vadd.f32 0.0, %v2441
      %v2443 = vpop.f32.mrb[0].mxu0
      %v2444 = vpop.f32.mrb[0].mxu0
      %v2445 = vadd.f32 0.0, %v2444
      %v2446 = vpop.f32.mrb[0].mxu0
      %2447 = vmatprep.mubr.bf16.mxu0 0
      %2448 = vmatmul.mubr.bf16.gmra.mrb[0].mxu0 %v1181
      %v2449 = vpop.f32.mrb[0].mxu0
      %v2450 = vadd.f32 0.0, %v2449
      %v2451 = vpop.f32.mrb[0].mxu0
      %v2452 = vpop.f32.mrb[0].mxu0
      %v2453 = vadd.f32 0.0, %v2452
      %v2454 = vpop.f32.mrb[0].mxu0
      %2455 = vmatprep.mubr.bf16.mxu0 0
      %2456 = vmatmul.mubr.bf16.gmra.mrb[0].mxu0 %v1184
      %v2457 = vpop.f32.mrb[0].mxu0
      %v2458 = vadd.f32 0.0, %v2457
      %v2459 = vpop.f32.mrb[0].mxu0
      %v2460 = vpop.f32.mrb[0].mxu0
      %v2461 = vadd.f32 0.0, %v2460
      %v2462 = vpop.f32.mrb[0].mxu0
      %2463 = vmatprep.mubr.bf16.mxu0 0
      %2464 = vmatmul.mubr.bf16.gmra.mrb[0].mxu0 %v1187
      %v2465 = vpop.f32.mrb[0].mxu0
      %v2466 = vadd.f32 0.0, %v2465
      %v2467 = vpop.f32.mrb[0].mxu0
      %v2468 = vpop.f32.mrb[0].mxu0
      %v2469 = vadd.f32 0.0, %v2468
      %v2470 = vpop.f32.mrb[0].mxu0
      %2471 = vmatprep.mubr.bf16.mxu0 0
      %2472 = vmatmul.mubr.bf16.gmra.mrb[0].mxu0 %v1190
      %v2473 = vpop.f32.mrb[0].mxu0
      %v2474 = vadd.f32 0.0, %v2473
      %v2475 = vpop.f32.mrb[0].mxu0
      %v2476 = vpop.f32.mrb[0].mxu0
      %v2477 = vadd.f32 0.0, %v2476
      %v2478 = vpop.f32.mrb[0].mxu0
      %2479 = vmatprep.mubr.bf16.mxu0 0
      %2480 = vmatmul.mubr.bf16.gmra.mrb[0].mxu0 %v1193
      %v2481 = vpop.f32.mrb[0].mxu0
      %v2482 = vadd.f32 0.0, %v2481
      %v2483 = vpop.f32.mrb[0].mxu0
      %v2484 = vpop.f32.mrb[0].mxu0
      %v2485 = vadd.f32 0.0, %v2484
      %v2486 = vpop.f32.mrb[0].mxu0
      %2487 = vmatprep.mubr.bf16.mxu0 0
      %2488 = vmatmul.mubr.bf16.gmra.mrb[0].mxu0 %v1196
      %v2489 = vpop.f32.mrb[0].mxu0
      %v2490 = vadd.f32 0.0, %v2489
      %v2491 = vpop.f32.mrb[0].mxu0
      %v2492 = vpop.f32.mrb[0].mxu0
      %v2493 = vadd.f32 0.0, %v2492
      %v2494 = vpop.f32.mrb[0].mxu0
      %2495 = vmatprep.mubr.bf16.mxu0 0
      %2496 = vmatmul.mubr.bf16.gmra.mrb[0].mxu0 %v1199
      %v2497 = vpop.f32.mrb[0].mxu0
      %v2498 = vadd.f32 0.0, %v2497
      %v2499 = vpop.f32.mrb[0].mxu0
      %v2500 = vpop.f32.mrb[0].mxu0
      %v2501 = vadd.f32 0.0, %v2500
      %v2502 = vpop.f32.mrb[0].mxu0
      %2503 = vmatprep.mubr.bf16.mxu0 0
      %2504 = vmatmul.mubr.bf16.gmra.mrb[0].mxu0 %v1202
      %v2505 = vpop.f32.mrb[0].mxu0
      %v2506 = vadd.f32 0.0, %v2505
      %v2507 = vpop.f32.mrb[0].mxu0
      %v2508 = vpop.f32.mrb[0].mxu0
      %v2509 = vadd.f32 0.0, %v2508
      %v2510 = vpop.f32.mrb[0].mxu0
      %2511 = vmatprep.mubr.bf16.mxu0 0
      %2512 = vmatmul.mubr.bf16.gmra.mrb[0].mxu0 %v1205
      %v2513 = vpop.f32.mrb[0].mxu0
      %v2514 = vadd.f32 0.0, %v2513
      %v2515 = vpop.f32.mrb[0].mxu0
      %v2516 = vpop.f32.mrb[0].mxu0
      %v2517 = vadd.f32 0.0, %v2516
      %v2518 = vpop.f32.mrb[0].mxu0
      %2519 = vmatprep.mubr.bf16.mxu0 0
      %2520 = vmatmul.mubr.bf16.gmra.mrb[0].mxu0 %v1208
      %v2521 = vpop.f32.mrb[0].mxu0
      %v2522 = vadd.f32 0.0, %v2521
      %v2523 = vpop.f32.mrb[0].mxu0
      %v2524 = vpop.f32.mrb[0].mxu0
      %v2525 = vadd.f32 0.0, %v2524
      %v2526 = vpop.f32.mrb[0].mxu0
      %2527 = vmatprep.mubr.bf16.mxu0 0
      %2528 = vmatmul.mubr.bf16.gmra.mrb[0].mxu0 %v1211
      %v2529 = vpop.f32.mrb[0].mxu0
      %v2530 = vadd.f32 0.0, %v2529
      %v2531 = vpop.f32.mrb[0].mxu0
      %v2532 = vpop.f32.mrb[0].mxu0
      %v2533 = vadd.f32 0.0, %v2532
      %v2534 = vpop.f32.mrb[0].mxu0
      %2535 = vmatprep.mubr.bf16.mxu0 0
      %2536 = vmatmul.mubr.bf16.gmra.mrb[0].mxu0 %v1214
      %v2537 = vpop.f32.mrb[0].mxu0
      %v2538 = vadd.f32 0.0, %v2537
      %v2539 = vpop.f32.mrb[0].mxu0
      %v2540 = vpop.f32.mrb[0].mxu0
      %v2541 = vadd.f32 0.0, %v2540
      %v2542 = vpop.f32.mrb[0].mxu0
      %2543 = vmatprep.mubr.bf16.mxu0 0
      %2544 = vmatmul.mubr.bf16.gmra.mrb[0].mxu0 %v1217
      %v2545 = vpop.f32.mrb[0].mxu0
      %v2546 = vadd.f32 0.0, %v2545
      %v2547 = vpop.f32.mrb[0].mxu0
      %v2548 = vpop.f32.mrb[0].mxu0
      %v2549 = vadd.f32 0.0, %v2548
      %v2550 = vpop.f32.mrb[0].mxu0
      %2551 = vmatprep.mubr.bf16.mxu0 0
      %2552 = vmatmul.mubr.bf16.gmra.mrb[0].mxu0 %v1220
      %v2553 = vpop.f32.mrb[0].mxu0
      %v2554 = vadd.f32 0.0, %v2553
      %v2555 = vpop.f32.mrb[0].mxu0
      %v2556 = vpop.f32.mrb[0].mxu0
      %v2557 = vadd.f32 0.0, %v2556
      %v2558 = vpop.f32.mrb[0].mxu0
      %2559 = vmatprep.mubr.bf16.mxu0 0
      %2560 = vmatmul.mubr.bf16.gmra.mrb[0].mxu0 %v1481
      %v2561 = vpop.f32.mrb[0].mxu0
      %v2562 = vadd.f32 0.0, %v2561
      %v2563 = vpop.f32.mrb[0].mxu0
      %v2564 = vpop.f32.mrb[0].mxu0
      %v2565 = vadd.f32 0.0, %v2564
      %v2566 = vpop.f32.mrb[0].mxu0
      %2567 = vmatprep.mubr.bf16.mxu0 0
      %2568 = vmatmul.mubr.bf16.gmra.mrb[0].mxu0 %v1484
      %v2569 = vpop.f32.mrb[0].mxu0
      %v2570 = vadd.f32 0.0, %v2569
      %v2571 = vpop.f32.mrb[0].mxu0
      %v2572 = vpop.f32.mrb[0].mxu0
      %v2573 = vadd.f32 0.0, %v2572
      %v2574 = vpop.f32.mrb[0].mxu0
      %2575 = vmatprep.mubr.bf16.mxu0 0
      %2576 = vmatmul.mubr.bf16.gmra.mrb[0].mxu0 %v1487
      %v2577 = vpop.f32.mrb[0].mxu0
      %v2578 = vadd.f32 0.0, %v2577
      %v2579 = vpop.f32.mrb[0].mxu0
      %v2580 = vpop.f32.mrb[0].mxu0
      %v2581 = vadd.f32 0.0, %v2580
      %v2582 = vpop.f32.mrb[0].mxu0
      %2583 = vdwg.mxu0
      %v2584 = vadd.f32 %v2136, %v2394
      %v2585 = vadd.f32 %v2139, %v2397
      %v2586 = vadd.f32 %v2144, %v2402
      %v2587 = vadd.f32 %v2147, %v2405
      %v2588 = vadd.f32 %v2152, %v2410
      %v2589 = vadd.f32 %v2155, %v2413
      %v2590 = vadd.f32 %v2160, %v2418
      %v2591 = vadd.f32 %v2163, %v2421
      %v2592 = vadd.f32 %v2168, %v2426
      %v2593 = vadd.f32 %v2171, %v2429
      %v2594 = vadd.f32 %v2176, %v2434
      %v2595 = vadd.f32 %v2179, %v2437
      %v2596 = vadd.f32 %v2184, %v2442
      %v2597 = vadd.f32 %v2187, %v2445
      %v2598 = vadd.f32 %v2192, %v2450
      %v2599 = vadd.f32 %v2195, %v2453
      %v2600 = vadd.f32 %v2200, %v2458
      %v2601 = vadd.f32 %v2203, %v2461
      %v2602 = vadd.f32 %v2208, %v2466
      %v2603 = vadd.f32 %v2211, %v2469
      %v2604 = vadd.f32 %v2216, %v2474
      %v2605 = vadd.f32 %v2219, %v2477
      %v2606 = vadd.f32 %v2224, %v2482
      %v2607 = vadd.f32 %v2227, %v2485
      %v2608 = vadd.f32 %v2232, %v2490
      %v2609 = vadd.f32 %v2235, %v2493
      %v2610 = vadd.f32 %v2240, %v2498
      %v2611 = vadd.f32 %v2243, %v2501
      %v2612 = vadd.f32 %v2248, %v2506
      %v2613 = vadd.f32 %v2251, %v2509
      %v2614 = vadd.f32 %v2256, %v2514
      %v2615 = vadd.f32 %v2259, %v2517
      %v2616 = vadd.f32 %v2264, %v2522
      %v2617 = vadd.f32 %v2267, %v2525
      %v2618 = vadd.f32 %v2272, %v2530
      %v2619 = vadd.f32 %v2275, %v2533
      %v2620 = vadd.f32 %v2280, %v2538
      %v2621 = vadd.f32 %v2283, %v2541
      %v2622 = vadd.f32 %v2288, %v2546
      %v2623 = vadd.f32 %v2291, %v2549
      %v2624 = vadd.f32 %v2296, %v2554
      %v2625 = vadd.f32 %v2299, %v2557
      %v2626 = vadd.f32 %v2304, %v2562
      %v2627 = vadd.f32 %v2307, %v2565
      %v2628 = vadd.f32 %v2312, %v2570
      %v2629 = vadd.f32 %v2315, %v2573
      %v2630 = vadd.f32 %v2320, %v2578
      %v2631 = vadd.f32 %v2323, %v2581
      %vm2680 = vcmask 1046528
      %v2681 = vrot.slane %v2584, 1
      %v2682 = vrot.slane %v2585, 1
      %v2683 = vsel %vm2680, %v2681, %v2682
      %v2684 = vrot.slane %v2586, 1
      %v2685 = vsel %vm2680, %v2682, %v2684
      %v2686 = vrot.slane %v2587, 1
      %v2687 = vrot.slane %v2588, 1
      %v2688 = vsel %vm2680, %v2686, %v2687
      %v2689 = vrot.slane %v2589, 1
      %v2690 = vsel %vm2680, %v2687, %v2689
      %v2691 = vrot.slane %v2590, 1
      %v2692 = vrot.slane %v2591, 1
      %v2693 = vsel %vm2680, %v2691, %v2692
      %v2694 = vrot.slane %v2592, 1
      %v2695 = vsel %vm2680, %v2692, %v2694
      %v2696 = vrot.slane %v2593, 1
      %v2697 = vrot.slane %v2594, 1
      %v2698 = vsel %vm2680, %v2696, %v2697
      %v2699 = vrot.slane %v2595, 1
      %v2700 = vsel %vm2680, %v2697, %v2699
      %v2701 = vrot.slane %v2596, 1
      %v2702 = vrot.slane %v2597, 1
      %v2703 = vsel %vm2680, %v2701, %v2702
      %v2704 = vrot.slane %v2598, 1
      %v2705 = vsel %vm2680, %v2702, %v2704
      %v2706 = vrot.slane %v2599, 1
      %v2707 = vrot.slane %v2600, 1
      %v2708 = vsel %vm2680, %v2706, %v2707
      %v2709 = vrot.slane %v2601, 1
      %v2710 = vsel %vm2680, %v2707, %v2709
      %v2711 = vrot.slane %v2602, 1
      %v2712 = vrot.slane %v2603, 1
      %v2713 = vsel %vm2680, %v2711, %v2712
      %v2714 = vrot.slane %v2604, 1
      %v2715 = vsel %vm2680, %v2712, %v2714
      %v2716 = vrot.slane %v2605, 1
      %v2717 = vrot.slane %v2606, 1
      %v2718 = vsel %vm2680, %v2716, %v2717
      %v2719 = vrot.slane %v2607, 1
      %v2720 = vsel %vm2680, %v2717, %v2719
      %v2721 = vrot.slane %v2608, 1
      %v2722 = vrot.slane %v2609, 1
      %v2723 = vsel %vm2680, %v2721, %v2722
      %v2724 = vrot.slane %v2610, 1
      %v2725 = vsel %vm2680, %v2722, %v2724
      %v2726 = vrot.slane %v2611, 1
      %v2727 = vrot.slane %v2612, 1
      %v2728 = vsel %vm2680, %v2726, %v2727
      %v2729 = vrot.slane %v2613, 1
      %v2730 = vsel %vm2680, %v2727, %v2729
      %v2731 = vrot.slane %v2614, 1
      %v2732 = vrot.slane %v2615, 1
      %v2733 = vsel %vm2680, %v2731, %v2732
      %v2734 = vrot.slane %v2616, 1
      %v2735 = vsel %vm2680, %v2732, %v2734
      %v2736 = vrot.slane %v2617, 1
      %v2737 = vrot.slane %v2618, 1
      %v2738 = vsel %vm2680, %v2736, %v2737
      %v2739 = vrot.slane %v2619, 1
      %v2740 = vsel %vm2680, %v2737, %v2739
      %v2741 = vrot.slane %v2620, 1
      %v2742 = vrot.slane %v2621, 1
      %v2743 = vsel %vm2680, %v2741, %v2742
      %v2744 = vrot.slane %v2622, 1
      %v2745 = vsel %vm2680, %v2742, %v2744
      %v2746 = vrot.slane %v2623, 1
      %v2747 = vrot.slane %v2624, 1
      %v2748 = vsel %vm2680, %v2746, %v2747
      %v2749 = vrot.slane %v2625, 1
      %v2750 = vsel %vm2680, %v2747, %v2749
      %v2751 = vrot.slane %v2626, 1
      %v2752 = vrot.slane %v2627, 1
      %v2753 = vsel %vm2680, %v2751, %v2752
      %v2754 = vrot.slane %v2628, 1
      %v2755 = vsel %vm2680, %v2752, %v2754
      %v2756 = vrot.slane %v2629, 1
      %v2757 = vrot.slane %v2630, 1
      %v2758 = vsel %vm2680, %v2756, %v2757
      %v2759 = vrot.slane %v2631, 1
      %v2760 = vsel %vm2680, %v2757, %v2759
      %v2809 = vadd.f32 %v1762, %v2683
      %v2810 = vadd.f32 %v1763, %v2685
      %v2811 = vadd.f32 %v1764, %v2684
      %v2812 = vadd.f32 %v1765, %v2688
      %v2813 = vadd.f32 %v1766, %v2690
      %v2814 = vadd.f32 %v1767, %v2689
      %v2815 = vadd.f32 %v1768, %v2693
      %v2816 = vadd.f32 %v1769, %v2695
      %v2817 = vadd.f32 %v1770, %v2694
      %v2818 = vadd.f32 %v1771, %v2698
      %v2819 = vadd.f32 %v1772, %v2700
      %v2820 = vadd.f32 %v1773, %v2699
      %v2821 = vadd.f32 %v1774, %v2703
      %v2822 = vadd.f32 %v1775, %v2705
      %v2823 = vadd.f32 %v1776, %v2704
      %v2824 = vadd.f32 %v1777, %v2708
      %v2825 = vadd.f32 %v1778, %v2710
      %v2826 = vadd.f32 %v1779, %v2709
      %v2827 = vadd.f32 %v1780, %v2713
      %v2828 = vadd.f32 %v1781, %v2715
      %v2829 = vadd.f32 %v1782, %v2714
      %v2830 = vadd.f32 %v1783, %v2718
      %v2831 = vadd.f32 %v1784, %v2720
      %v2832 = vadd.f32 %v1785, %v2719
      %v2833 = vadd.f32 %v1786, %v2723
      %v2834 = vadd.f32 %v1787, %v2725
      %v2835 = vadd.f32 %v1788, %v2724
      %v2836 = vadd.f32 %v1789, %v2728
      %v2837 = vadd.f32 %v1790, %v2730
      %v2838 = vadd.f32 %v1791, %v2729
      %v2839 = vadd.f32 %v1792, %v2733
      %v2840 = vadd.f32 %v1793, %v2735
      %v2841 = vadd.f32 %v1794, %v2734
      %v2842 = vadd.f32 %v1795, %v2738
      %v2843 = vadd.f32 %v1796, %v2740
      %v2844 = vadd.f32 %v1797, %v2739
      %v2845 = vadd.f32 %v1798, %v2743
      %v2846 = vadd.f32 %v1799, %v2745
      %v2847 = vadd.f32 %v1800, %v2744
      %v2848 = vadd.f32 %v1801, %v2748
      %v2849 = vadd.f32 %v1802, %v2750
      %v2850 = vadd.f32 %v1803, %v2749
      %v2851 = vadd.f32 %v1804, %v2753
      %v2852 = vadd.f32 %v1805, %v2755
      %v2853 = vadd.f32 %v1806, %v2754
      %v2854 = vadd.f32 %v1807, %v2758
      %v2855 = vadd.f32 %v1808, %v2760
      %v2856 = vadd.f32 %v1809, %v2759
      %s2857 = scalar_lea.vmem %s4, 64
      %v2858 = vld [vmem:[%s2857] sm:$0xf]
      %v2859 = vld [vmem:[%s2857 + $0x4] sm:$0xf]
      %v2860 = vld [vmem:[%s2857 + $0x8] sm:$0xf]
      %v2861 = vld [vmem:[%s2857 + $0xc] sm:$0xf]
      %v2862 = vld [vmem:[%s2857 + $0x10] sm:$0xf]
      %v2863 = vld [vmem:[%s2857 + $0x14] sm:$0xf]
      %v2864 = vld [vmem:[%s2857 + $0x18] sm:$0xf]
      %v2865 = vld [vmem:[%s2857 + $0x1c] sm:$0xf]
      %s2866 = scalar_lea.vmem %s4, 160
      %v2867 = vld [vmem:[%s2866] sm:$0xf]
      %v2868 = vld [vmem:[%s2866 + $0x4] sm:$0xf]
      %v2869 = vld [vmem:[%s2866 + $0x8] sm:$0xf]
      %v2870 = vld [vmem:[%s2866 + $0xc] sm:$0xf]
      %v2871 = vld [vmem:[%s2866 + $0x10] sm:$0xf]
      %v2872 = vld [vmem:[%s2866 + $0x14] sm:$0xf]
      %v2873 = vld [vmem:[%s2866 + $0x18] sm:$0xf]
      %v2874 = vld [vmem:[%s2866 + $0x1c] sm:$0xf]
      %v2883 = vunpack.c.l.b16 %v2867
      %v2884 = vunpack.c.l.b16 %v2868
      %v2885 = vunpack.c.l.b16 %v2869
      %v2886 = vunpack.c.l.b16 %v2870
      %v2887 = vunpack.c.l.b16 %v2871
      %v2888 = vunpack.c.l.b16 %v2872
      %v2889 = vunpack.c.l.b16 %v2873
      %v2890 = vunpack.c.l.b16 %v2874
      %v2891 = vpack.c.b16 %v2884, %v2883
      %v2892 = vpack.c.b16 %v2886, %v2885
      %v2893 = vpack.c.b16 %v2888, %v2887
      %v2894 = vpack.c.b16 %v2890, %v2889
      %2899 = vmatprep.subr.bf16.mxu0 0
      %2900 = vmatpush1.bf16.msra.mxu0 %v2891
      %2901 = vmatprep.subr.bf16.mxu0 0
      %2902 = vmatpush1.bf16.msra.mxu0 %v2892
      %2903 = vmatprep.subr.bf16.mxu0 0
      %2904 = vmatpush1.bf16.msra.mxu0 %v2893
      %2905 = vmatprep.subr.bf16.mxu0 0
      %2906 = vmatpush1.bf16.msra.mxu0 %v2894
      %2907 = vmatprep.subr.bf16.mxu0 0
      %2908 = vmatpush1.bf16.msra.mxu0 0
      %2909 = vmatprep.subr.bf16.mxu0 0
      %2910 = vmatpush1.bf16.msra.mxu0 0
      %2911 = vmatprep.subr.bf16.mxu0 0
      %2912 = vmatpush1.bf16.msra.mxu0 0
      %2913 = vmatprep.subr.bf16.mxu0 0
      %2914 = vmatpush1.bf16.msra.mxu0 0
      %2915 = vmatprep.subr.bf16.mxu0 0
      %2916 = vmatpush1.bf16.msra.mxu0 0
      %2917 = vmatprep.subr.bf16.mxu0 0
      %2918 = vmatpush1.bf16.msra.mxu0 0
      %2919 = vmatprep.subr.bf16.mxu0 0
      %2920 = vmatpush1.bf16.msra.mxu0 0
      %2921 = vmatprep.subr.bf16.mxu0 0
      %2922 = vmatpush1.bf16.msra.mxu0 0
      %2923 = vmatprep.subr.bf16.mxu0 0
      %2924 = vmatpush1.bf16.msra.mxu0 0
      %2925 = vmatprep.subr.bf16.mxu0 0
      %2926 = vmatpush1.bf16.msra.mxu0 0
      %2927 = vmatprep.subr.bf16.mxu0 0
      %2928 = vmatpush1.bf16.msra.mxu0 0
      %2929 = vmatprep.subr.bf16.mxu0 0
      %2930 = vmatpush1.bf16.msra.mxu0 0
      %2931 = vmatprep.mubr.bf16.mxu0 0
      %2932 = vmatmul.mubr.bf16.gmra.mrb[0].mxu0 %v830
      %v2933 = vpop.f32.mrb[0].mxu0
      %v2934 = vadd.f32 0.0, %v2933
      %v2935 = vpop.f32.mrb[0].mxu0
      %v2936 = vpop.f32.mrb[0].mxu0
      %v2937 = vadd.f32 0.0, %v2936
      %v2938 = vpop.f32.mrb[0].mxu0
      %2939 = vmatprep.mubr.bf16.mxu0 0
      %2940 = vmatmul.mubr.bf16.gmra.mrb[0].mxu0 %v833
      %v2941 = vpop.f32.mrb[0].mxu0
      %v2942 = vadd.f32 0.0, %v2941
      %v2943 = vpop.f32.mrb[0].mxu0
      %v2944 = vpop.f32.mrb[0].mxu0
      %v2945 = vadd.f32 0.0, %v2944
      %v2946 = vpop.f32.mrb[0].mxu0
      %2947 = vmatprep.mubr.bf16.mxu0 0
      %2948 = vmatmul.mubr.bf16.gmra.mrb[0].mxu0 %v836
      %v2949 = vpop.f32.mrb[0].mxu0
      %v2950 = vadd.f32 0.0, %v2949
      %v2951 = vpop.f32.mrb[0].mxu0
      %v2952 = vpop.f32.mrb[0].mxu0
      %v2953 = vadd.f32 0.0, %v2952
      %v2954 = vpop.f32.mrb[0].mxu0
      %2955 = vmatprep.mubr.bf16.mxu0 0
      %2956 = vmatmul.mubr.bf16.gmra.mrb[0].mxu0 %v839
      %v2957 = vpop.f32.mrb[0].mxu0
      %v2958 = vadd.f32 0.0, %v2957
      %v2959 = vpop.f32.mrb[0].mxu0
      %v2960 = vpop.f32.mrb[0].mxu0
      %v2961 = vadd.f32 0.0, %v2960
      %v2962 = vpop.f32.mrb[0].mxu0
      %2963 = vmatprep.mubr.bf16.mxu0 0
      %2964 = vmatmul.mubr.bf16.gmra.mrb[0].mxu0 %v842
      %v2965 = vpop.f32.mrb[0].mxu0
      %v2966 = vadd.f32 0.0, %v2965
      %v2967 = vpop.f32.mrb[0].mxu0
      %v2968 = vpop.f32.mrb[0].mxu0
      %v2969 = vadd.f32 0.0, %v2968
      %v2970 = vpop.f32.mrb[0].mxu0
      %2971 = vmatprep.mubr.bf16.mxu0 0
      %2972 = vmatmul.mubr.bf16.gmra.mrb[0].mxu0 %v845
      %v2973 = vpop.f32.mrb[0].mxu0
      %v2974 = vadd.f32 0.0, %v2973
      %v2975 = vpop.f32.mrb[0].mxu0
      %v2976 = vpop.f32.mrb[0].mxu0
      %v2977 = vadd.f32 0.0, %v2976
      %v2978 = vpop.f32.mrb[0].mxu0
      %2979 = vmatprep.mubr.bf16.mxu0 0
      %2980 = vmatmul.mubr.bf16.gmra.mrb[0].mxu0 %v848
      %v2981 = vpop.f32.mrb[0].mxu0
      %v2982 = vadd.f32 0.0, %v2981
      %v2983 = vpop.f32.mrb[0].mxu0
      %v2984 = vpop.f32.mrb[0].mxu0
      %v2985 = vadd.f32 0.0, %v2984
      %v2986 = vpop.f32.mrb[0].mxu0
      %2987 = vmatprep.mubr.bf16.mxu0 0
      %2988 = vmatmul.mubr.bf16.gmra.mrb[0].mxu0 %v851
      %v2989 = vpop.f32.mrb[0].mxu0
      %v2990 = vadd.f32 0.0, %v2989
      %v2991 = vpop.f32.mrb[0].mxu0
      %v2992 = vpop.f32.mrb[0].mxu0
      %v2993 = vadd.f32 0.0, %v2992
      %v2994 = vpop.f32.mrb[0].mxu0
      %2995 = vmatprep.mubr.bf16.mxu0 0
      %2996 = vmatmul.mubr.bf16.gmra.mrb[0].mxu0 %v854
      %v2997 = vpop.f32.mrb[0].mxu0
      %v2998 = vadd.f32 0.0, %v2997
      %v2999 = vpop.f32.mrb[0].mxu0
      %v3000 = vpop.f32.mrb[0].mxu0
      %v3001 = vadd.f32 0.0, %v3000
      %v3002 = vpop.f32.mrb[0].mxu0
      %3003 = vmatprep.mubr.bf16.mxu0 0
      %3004 = vmatmul.mubr.bf16.gmra.mrb[0].mxu0 %v857
      %v3005 = vpop.f32.mrb[0].mxu0
      %v3006 = vadd.f32 0.0, %v3005
      %v3007 = vpop.f32.mrb[0].mxu0
      %v3008 = vpop.f32.mrb[0].mxu0
      %v3009 = vadd.f32 0.0, %v3008
      %v3010 = vpop.f32.mrb[0].mxu0
      %3011 = vmatprep.mubr.bf16.mxu0 0
      %3012 = vmatmul.mubr.bf16.gmra.mrb[0].mxu0 %v860
      %v3013 = vpop.f32.mrb[0].mxu0
      %v3014 = vadd.f32 0.0, %v3013
      %v3015 = vpop.f32.mrb[0].mxu0
      %v3016 = vpop.f32.mrb[0].mxu0
      %v3017 = vadd.f32 0.0, %v3016
      %v3018 = vpop.f32.mrb[0].mxu0
      %3019 = vmatprep.mubr.bf16.mxu0 0
      %3020 = vmatmul.mubr.bf16.gmra.mrb[0].mxu0 %v863
      %v3021 = vpop.f32.mrb[0].mxu0
      %v3022 = vadd.f32 0.0, %v3021
      %v3023 = vpop.f32.mrb[0].mxu0
      %v3024 = vpop.f32.mrb[0].mxu0
      %v3025 = vadd.f32 0.0, %v3024
      %v3026 = vpop.f32.mrb[0].mxu0
      %3027 = vmatprep.mubr.bf16.mxu0 0
      %3028 = vmatmul.mubr.bf16.gmra.mrb[0].mxu0 %v866
      %v3029 = vpop.f32.mrb[0].mxu0
      %v3030 = vadd.f32 0.0, %v3029
      %v3031 = vpop.f32.mrb[0].mxu0
      %v3032 = vpop.f32.mrb[0].mxu0
      %v3033 = vadd.f32 0.0, %v3032
      %v3034 = vpop.f32.mrb[0].mxu0
      %3035 = vmatprep.mubr.bf16.mxu0 0
      %3036 = vmatmul.mubr.bf16.gmra.mrb[0].mxu0 %v869
      %v3037 = vpop.f32.mrb[0].mxu0
      %v3038 = vadd.f32 0.0, %v3037
      %v3039 = vpop.f32.mrb[0].mxu0
      %v3040 = vpop.f32.mrb[0].mxu0
      %v3041 = vadd.f32 0.0, %v3040
      %v3042 = vpop.f32.mrb[0].mxu0
      %3043 = vmatprep.mubr.bf16.mxu0 0
      %3044 = vmatmul.mubr.bf16.gmra.mrb[0].mxu0 %v872
      %v3045 = vpop.f32.mrb[0].mxu0
      %v3046 = vadd.f32 0.0, %v3045
      %v3047 = vpop.f32.mrb[0].mxu0
      %v3048 = vpop.f32.mrb[0].mxu0
      %v3049 = vadd.f32 0.0, %v3048
      %v3050 = vpop.f32.mrb[0].mxu0
      %3051 = vmatprep.mubr.bf16.mxu0 0
      %3052 = vmatmul.mubr.bf16.gmra.mrb[0].mxu0 %v875
      %v3053 = vpop.f32.mrb[0].mxu0
      %v3054 = vadd.f32 0.0, %v3053
      %v3055 = vpop.f32.mrb[0].mxu0
      %v3056 = vpop.f32.mrb[0].mxu0
      %v3057 = vadd.f32 0.0, %v3056
      %v3058 = vpop.f32.mrb[0].mxu0
      %3059 = vmatprep.mubr.bf16.mxu0 0
      %3060 = vmatmul.mubr.bf16.gmra.mrb[0].mxu0 %v878
      %v3061 = vpop.f32.mrb[0].mxu0
      %v3062 = vadd.f32 0.0, %v3061
      %v3063 = vpop.f32.mrb[0].mxu0
      %v3064 = vpop.f32.mrb[0].mxu0
      %v3065 = vadd.f32 0.0, %v3064
      %v3066 = vpop.f32.mrb[0].mxu0
      %3067 = vmatprep.mubr.bf16.mxu0 0
      %3068 = vmatmul.mubr.bf16.gmra.mrb[0].mxu0 %v881
      %v3069 = vpop.f32.mrb[0].mxu0
      %v3070 = vadd.f32 0.0, %v3069
      %v3071 = vpop.f32.mrb[0].mxu0
      %v3072 = vpop.f32.mrb[0].mxu0
      %v3073 = vadd.f32 0.0, %v3072
      %v3074 = vpop.f32.mrb[0].mxu0
      %3075 = vmatprep.mubr.bf16.mxu0 0
      %3076 = vmatmul.mubr.bf16.gmra.mrb[0].mxu0 %v884
      %v3077 = vpop.f32.mrb[0].mxu0
      %v3078 = vadd.f32 0.0, %v3077
      %v3079 = vpop.f32.mrb[0].mxu0
      %v3080 = vpop.f32.mrb[0].mxu0
      %v3081 = vadd.f32 0.0, %v3080
      %v3082 = vpop.f32.mrb[0].mxu0
      %3083 = vmatprep.mubr.bf16.mxu0 0
      %3084 = vmatmul.mubr.bf16.gmra.mrb[0].mxu0 %v887
      %v3085 = vpop.f32.mrb[0].mxu0
      %v3086 = vadd.f32 0.0, %v3085
      %v3087 = vpop.f32.mrb[0].mxu0
      %v3088 = vpop.f32.mrb[0].mxu0
      %v3089 = vadd.f32 0.0, %v3088
      %v3090 = vpop.f32.mrb[0].mxu0
      %3091 = vmatprep.mubr.bf16.mxu0 0
      %3092 = vmatmul.mubr.bf16.gmra.mrb[0].mxu0 %v890
      %v3093 = vpop.f32.mrb[0].mxu0
      %v3094 = vadd.f32 0.0, %v3093
      %v3095 = vpop.f32.mrb[0].mxu0
      %v3096 = vpop.f32.mrb[0].mxu0
      %v3097 = vadd.f32 0.0, %v3096
      %v3098 = vpop.f32.mrb[0].mxu0
      %3099 = vmatprep.mubr.bf16.mxu0 0
      %3100 = vmatmul.mubr.bf16.gmra.mrb[0].mxu0 %v893
      %v3101 = vpop.f32.mrb[0].mxu0
      %v3102 = vadd.f32 0.0, %v3101
      %v3103 = vpop.f32.mrb[0].mxu0
      %v3104 = vpop.f32.mrb[0].mxu0
      %v3105 = vadd.f32 0.0, %v3104
      %v3106 = vpop.f32.mrb[0].mxu0
      %3107 = vmatprep.mubr.bf16.mxu0 0
      %3108 = vmatmul.mubr.bf16.gmra.mrb[0].mxu0 %v896
      %v3109 = vpop.f32.mrb[0].mxu0
      %v3110 = vadd.f32 0.0, %v3109
      %v3111 = vpop.f32.mrb[0].mxu0
      %v3112 = vpop.f32.mrb[0].mxu0
      %v3113 = vadd.f32 0.0, %v3112
      %v3114 = vpop.f32.mrb[0].mxu0
      %3115 = vmatprep.mubr.bf16.mxu0 0
      %3116 = vmatmul.mubr.bf16.gmra.mrb[0].mxu0 %v899
      %v3117 = vpop.f32.mrb[0].mxu0
      %v3118 = vadd.f32 0.0, %v3117
      %v3119 = vpop.f32.mrb[0].mxu0
      %v3120 = vpop.f32.mrb[0].mxu0
      %v3121 = vadd.f32 0.0, %v3120
      %v3122 = vpop.f32.mrb[0].mxu0
      %3123 = vdwg.mxu0
      %v3132 = vunpack.c.l.b16 %v2858
      %v3133 = vunpack.c.l.b16 %v2859
      %v3134 = vunpack.c.l.b16 %v2860
      %v3135 = vunpack.c.l.b16 %v2861
      %v3136 = vunpack.c.l.b16 %v2862
      %v3137 = vunpack.c.l.b16 %v2863
      %v3138 = vunpack.c.l.b16 %v2864
      %v3139 = vunpack.c.l.b16 %v2865
      %v3140 = vpack.c.b16 %v3133, %v3132
      %v3141 = vpack.c.b16 %v3135, %v3134
      %v3142 = vpack.c.b16 %v3137, %v3136
      %v3143 = vpack.c.b16 %v3139, %v3138
      %3148 = vmatprep.subr.bf16.mxu0 0
      %3149 = vmatpush1.bf16.msra.mxu0 %v3140
      %3150 = vmatprep.subr.bf16.mxu0 0
      %3151 = vmatpush1.bf16.msra.mxu0 %v3141
      %3152 = vmatprep.subr.bf16.mxu0 0
      %3153 = vmatpush1.bf16.msra.mxu0 %v3142
      %3154 = vmatprep.subr.bf16.mxu0 0
      %3155 = vmatpush1.bf16.msra.mxu0 %v3143
      %3156 = vmatprep.subr.bf16.mxu0 0
      %3157 = vmatpush1.bf16.msra.mxu0 0
      %3158 = vmatprep.subr.bf16.mxu0 0
      %3159 = vmatpush1.bf16.msra.mxu0 0
      %3160 = vmatprep.subr.bf16.mxu0 0
      %3161 = vmatpush1.bf16.msra.mxu0 0
      %3162 = vmatprep.subr.bf16.mxu0 0
      %3163 = vmatpush1.bf16.msra.mxu0 0
      %3164 = vmatprep.subr.bf16.mxu0 0
      %3165 = vmatpush1.bf16.msra.mxu0 0
      %3166 = vmatprep.subr.bf16.mxu0 0
      %3167 = vmatpush1.bf16.msra.mxu0 0
      %3168 = vmatprep.subr.bf16.mxu0 0
      %3169 = vmatpush1.bf16.msra.mxu0 0
      %3170 = vmatprep.subr.bf16.mxu0 0
      %3171 = vmatpush1.bf16.msra.mxu0 0
      %3172 = vmatprep.subr.bf16.mxu0 0
      %3173 = vmatpush1.bf16.msra.mxu0 0
      %3174 = vmatprep.subr.bf16.mxu0 0
      %3175 = vmatpush1.bf16.msra.mxu0 0
      %3176 = vmatprep.subr.bf16.mxu0 0
      %3177 = vmatpush1.bf16.msra.mxu0 0
      %3178 = vmatprep.subr.bf16.mxu0 0
      %3179 = vmatpush1.bf16.msra.mxu0 0
      %3180 = vmatprep.mubr.bf16.mxu0 0
      %3181 = vmatmul.mubr.bf16.gmra.mrb[0].mxu0 %v1151
      %v3182 = vpop.f32.mrb[0].mxu0
      %v3183 = vadd.f32 %v2934, %v3182
      %v3184 = vpop.f32.mrb[0].mxu0
      %v3185 = vpop.f32.mrb[0].mxu0
      %v3186 = vadd.f32 %v2937, %v3185
      %v3187 = vpop.f32.mrb[0].mxu0
      %3188 = vmatprep.mubr.bf16.mxu0 0
      %3189 = vmatmul.mubr.bf16.gmra.mrb[0].mxu0 %v1154
      %v3190 = vpop.f32.mrb[0].mxu0
      %v3191 = vadd.f32 %v2942, %v3190
      %v3192 = vpop.f32.mrb[0].mxu0
      %v3193 = vpop.f32.mrb[0].mxu0
      %v3194 = vadd.f32 %v2945, %v3193
      %v3195 = vpop.f32.mrb[0].mxu0
      %3196 = vmatprep.mubr.bf16.mxu0 0
      %3197 = vmatmul.mubr.bf16.gmra.mrb[0].mxu0 %v1157
      %v3198 = vpop.f32.mrb[0].mxu0
      %v3199 = vadd.f32 %v2950, %v3198
      %v3200 = vpop.f32.mrb[0].mxu0
      %v3201 = vpop.f32.mrb[0].mxu0
      %v3202 = vadd.f32 %v2953, %v3201
      %v3203 = vpop.f32.mrb[0].mxu0
      %3204 = vmatprep.mubr.bf16.mxu0 0
      %3205 = vmatmul.mubr.bf16.gmra.mrb[0].mxu0 %v1160
      %v3206 = vpop.f32.mrb[0].mxu0
      %v3207 = vadd.f32 %v2958, %v3206
      %v3208 = vpop.f32.mrb[0].mxu0
      %v3209 = vpop.f32.mrb[0].mxu0
      %v3210 = vadd.f32 %v2961, %v3209
      %v3211 = vpop.f32.mrb[0].mxu0
      %3212 = vmatprep.mubr.bf16.mxu0 0
      %3213 = vmatmul.mubr.bf16.gmra.mrb[0].mxu0 %v1163
      %v3214 = vpop.f32.mrb[0].mxu0
      %v3215 = vadd.f32 %v2966, %v3214
      %v3216 = vpop.f32.mrb[0].mxu0
      %v3217 = vpop.f32.mrb[0].mxu0
      %v3218 = vadd.f32 %v2969, %v3217
      %v3219 = vpop.f32.mrb[0].mxu0
      %3220 = vmatprep.mubr.bf16.mxu0 0
      %3221 = vmatmul.mubr.bf16.gmra.mrb[0].mxu0 %v1166
      %v3222 = vpop.f32.mrb[0].mxu0
      %v3223 = vadd.f32 %v2974, %v3222
      %v3224 = vpop.f32.mrb[0].mxu0
      %v3225 = vpop.f32.mrb[0].mxu0
      %v3226 = vadd.f32 %v2977, %v3225
      %v3227 = vpop.f32.mrb[0].mxu0
      %3228 = vmatprep.mubr.bf16.mxu0 0
      %3229 = vmatmul.mubr.bf16.gmra.mrb[0].mxu0 %v1169
      %v3230 = vpop.f32.mrb[0].mxu0
      %v3231 = vadd.f32 %v2982, %v3230
      %v3232 = vpop.f32.mrb[0].mxu0
      %v3233 = vpop.f32.mrb[0].mxu0
      %v3234 = vadd.f32 %v2985, %v3233
      %v3235 = vpop.f32.mrb[0].mxu0
      %3236 = vmatprep.mubr.bf16.mxu0 0
      %3237 = vmatmul.mubr.bf16.gmra.mrb[0].mxu0 %v1172
      %v3238 = vpop.f32.mrb[0].mxu0
      %v3239 = vadd.f32 %v2990, %v3238
      %v3240 = vpop.f32.mrb[0].mxu0
      %v3241 = vpop.f32.mrb[0].mxu0
      %v3242 = vadd.f32 %v2993, %v3241
      %v3243 = vpop.f32.mrb[0].mxu0
      %3244 = vmatprep.mubr.bf16.mxu0 0
      %3245 = vmatmul.mubr.bf16.gmra.mrb[0].mxu0 %v1175
      %v3246 = vpop.f32.mrb[0].mxu0
      %v3247 = vadd.f32 %v2998, %v3246
      %v3248 = vpop.f32.mrb[0].mxu0
      %v3249 = vpop.f32.mrb[0].mxu0
      %v3250 = vadd.f32 %v3001, %v3249
      %v3251 = vpop.f32.mrb[0].mxu0
      %3252 = vmatprep.mubr.bf16.mxu0 0
      %3253 = vmatmul.mubr.bf16.gmra.mrb[0].mxu0 %v1178
      %v3254 = vpop.f32.mrb[0].mxu0
      %v3255 = vadd.f32 %v3006, %v3254
      %v3256 = vpop.f32.mrb[0].mxu0
      %v3257 = vpop.f32.mrb[0].mxu0
      %v3258 = vadd.f32 %v3009, %v3257
      %v3259 = vpop.f32.mrb[0].mxu0
      %3260 = vmatprep.mubr.bf16.mxu0 0
      %3261 = vmatmul.mubr.bf16.gmra.mrb[0].mxu0 %v1181
      %v3262 = vpop.f32.mrb[0].mxu0
      %v3263 = vadd.f32 %v3014, %v3262
      %v3264 = vpop.f32.mrb[0].mxu0
      %v3265 = vpop.f32.mrb[0].mxu0
      %v3266 = vadd.f32 %v3017, %v3265
      %v3267 = vpop.f32.mrb[0].mxu0
      %3268 = vmatprep.mubr.bf16.mxu0 0
      %3269 = vmatmul.mubr.bf16.gmra.mrb[0].mxu0 %v1184
      %v3270 = vpop.f32.mrb[0].mxu0
      %v3271 = vadd.f32 %v3022, %v3270
      %v3272 = vpop.f32.mrb[0].mxu0
      %v3273 = vpop.f32.mrb[0].mxu0
      %v3274 = vadd.f32 %v3025, %v3273
      %v3275 = vpop.f32.mrb[0].mxu0
      %3276 = vmatprep.mubr.bf16.mxu0 0
      %3277 = vmatmul.mubr.bf16.gmra.mrb[0].mxu0 %v1187
      %v3278 = vpop.f32.mrb[0].mxu0
      %v3279 = vadd.f32 %v3030, %v3278
      %v3280 = vpop.f32.mrb[0].mxu0
      %v3281 = vpop.f32.mrb[0].mxu0
      %v3282 = vadd.f32 %v3033, %v3281
      %v3283 = vpop.f32.mrb[0].mxu0
      %3284 = vmatprep.mubr.bf16.mxu0 0
      %3285 = vmatmul.mubr.bf16.gmra.mrb[0].mxu0 %v1190
      %v3286 = vpop.f32.mrb[0].mxu0
      %v3287 = vadd.f32 %v3038, %v3286
      %v3288 = vpop.f32.mrb[0].mxu0
      %v3289 = vpop.f32.mrb[0].mxu0
      %v3290 = vadd.f32 %v3041, %v3289
      %v3291 = vpop.f32.mrb[0].mxu0
      %3292 = vmatprep.mubr.bf16.mxu0 0
      %3293 = vmatmul.mubr.bf16.gmra.mrb[0].mxu0 %v1193
      %v3294 = vpop.f32.mrb[0].mxu0
      %v3295 = vadd.f32 %v3046, %v3294
      %v3296 = vpop.f32.mrb[0].mxu0
      %v3297 = vpop.f32.mrb[0].mxu0
      %v3298 = vadd.f32 %v3049, %v3297
      %v3299 = vpop.f32.mrb[0].mxu0
      %3300 = vmatprep.mubr.bf16.mxu0 0
      %3301 = vmatmul.mubr.bf16.gmra.mrb[0].mxu0 %v1196
      %v3302 = vpop.f32.mrb[0].mxu0
      %v3303 = vadd.f32 %v3054, %v3302
      %v3304 = vpop.f32.mrb[0].mxu0
      %v3305 = vpop.f32.mrb[0].mxu0
      %v3306 = vadd.f32 %v3057, %v3305
      %v3307 = vpop.f32.mrb[0].mxu0
      %3308 = vmatprep.mubr.bf16.mxu0 0
      %3309 = vmatmul.mubr.bf16.gmra.mrb[0].mxu0 %v1199
      %v3310 = vpop.f32.mrb[0].mxu0
      %v3311 = vadd.f32 %v3062, %v3310
      %v3312 = vpop.f32.mrb[0].mxu0
      %v3313 = vpop.f32.mrb[0].mxu0
      %v3314 = vadd.f32 %v3065, %v3313
      %v3315 = vpop.f32.mrb[0].mxu0
      %3316 = vmatprep.mubr.bf16.mxu0 0
      %3317 = vmatmul.mubr.bf16.gmra.mrb[0].mxu0 %v1202
      %v3318 = vpop.f32.mrb[0].mxu0
      %v3319 = vadd.f32 %v3070, %v3318
      %v3320 = vpop.f32.mrb[0].mxu0
      %v3321 = vpop.f32.mrb[0].mxu0
      %v3322 = vadd.f32 %v3073, %v3321
      %v3323 = vpop.f32.mrb[0].mxu0
      %3324 = vmatprep.mubr.bf16.mxu0 0
      %3325 = vmatmul.mubr.bf16.gmra.mrb[0].mxu0 %v1205
      %v3326 = vpop.f32.mrb[0].mxu0
      %v3327 = vadd.f32 %v3078, %v3326
      %v3328 = vpop.f32.mrb[0].mxu0
      %v3329 = vpop.f32.mrb[0].mxu0
      %v3330 = vadd.f32 %v3081, %v3329
      %v3331 = vpop.f32.mrb[0].mxu0
      %3332 = vmatprep.mubr.bf16.mxu0 0
      %3333 = vmatmul.mubr.bf16.gmra.mrb[0].mxu0 %v1208
      %v3334 = vpop.f32.mrb[0].mxu0
      %v3335 = vadd.f32 %v3086, %v3334
      %v3336 = vpop.f32.mrb[0].mxu0
      %v3337 = vpop.f32.mrb[0].mxu0
      %v3338 = vadd.f32 %v3089, %v3337
      %v3339 = vpop.f32.mrb[0].mxu0
      %3340 = vmatprep.mubr.bf16.mxu0 0
      %3341 = vmatmul.mubr.bf16.gmra.mrb[0].mxu0 %v1211
      %v3342 = vpop.f32.mrb[0].mxu0
      %v3343 = vadd.f32 %v3094, %v3342
      %v3344 = vpop.f32.mrb[0].mxu0
      %v3345 = vpop.f32.mrb[0].mxu0
      %v3346 = vadd.f32 %v3097, %v3345
      %v3347 = vpop.f32.mrb[0].mxu0
      %3348 = vmatprep.mubr.bf16.mxu0 0
      %3349 = vmatmul.mubr.bf16.gmra.mrb[0].mxu0 %v1214
      %v3350 = vpop.f32.mrb[0].mxu0
      %v3351 = vadd.f32 %v3102, %v3350
      %v3352 = vpop.f32.mrb[0].mxu0
      %v3353 = vpop.f32.mrb[0].mxu0
      %v3354 = vadd.f32 %v3105, %v3353
      %v3355 = vpop.f32.mrb[0].mxu0
      %3356 = vmatprep.mubr.bf16.mxu0 0
      %3357 = vmatmul.mubr.bf16.gmra.mrb[0].mxu0 %v1217
      %v3358 = vpop.f32.mrb[0].mxu0
      %v3359 = vadd.f32 %v3110, %v3358
      %v3360 = vpop.f32.mrb[0].mxu0
      %v3361 = vpop.f32.mrb[0].mxu0
      %v3362 = vadd.f32 %v3113, %v3361
      %v3363 = vpop.f32.mrb[0].mxu0
      %3364 = vmatprep.mubr.bf16.mxu0 0
      %3365 = vmatmul.mubr.bf16.gmra.mrb[0].mxu0 %v1220
      %v3366 = vpop.f32.mrb[0].mxu0
      %v3367 = vadd.f32 %v3118, %v3366
      %v3368 = vpop.f32.mrb[0].mxu0
      %v3369 = vpop.f32.mrb[0].mxu0
      %v3370 = vadd.f32 %v3121, %v3369
      %v3371 = vpop.f32.mrb[0].mxu0
      %3372 = vdwg.mxu0
      %s3373 = scalar_lea.vmem %s4, 256
      %v3374 = vld [vmem:[%s3373] sm:$0xf]
      %v3375 = vld [vmem:[%s3373 + $0x4] sm:$0xf]
      %v3376 = vld [vmem:[%s3373 + $0x8] sm:$0xf]
      %v3377 = vld [vmem:[%s3373 + $0xc] sm:$0xf]
      %v3378 = vld [vmem:[%s3373 + $0x10] sm:$0xf]
      %v3379 = vld [vmem:[%s3373 + $0x14] sm:$0xf]
      %v3380 = vld [vmem:[%s3373 + $0x18] sm:$0xf]
      %v3381 = vld [vmem:[%s3373 + $0x1c] sm:$0xf]
      %v3390 = vunpack.c.l.b16 %v3374
      %v3391 = vunpack.c.l.b16 %v3375
      %v3392 = vunpack.c.l.b16 %v3376
      %v3393 = vunpack.c.l.b16 %v3377
      %v3394 = vunpack.c.l.b16 %v3378
      %v3395 = vunpack.c.l.b16 %v3379
      %v3396 = vunpack.c.l.b16 %v3380
      %v3397 = vunpack.c.l.b16 %v3381
      %v3398 = vpack.c.b16 %v3391, %v3390
      %v3399 = vpack.c.b16 %v3393, %v3392
      %v3400 = vpack.c.b16 %v3395, %v3394
      %v3401 = vpack.c.b16 %v3397, %v3396
      %3406 = vmatprep.subr.bf16.mxu0 0
      %3407 = vmatpush1.bf16.msra.mxu0 %v3398
      %3408 = vmatprep.subr.bf16.mxu0 0
      %3409 = vmatpush1.bf16.msra.mxu0 %v3399
      %3410 = vmatprep.subr.bf16.mxu0 0
      %3411 = vmatpush1.bf16.msra.mxu0 %v3400
      %3412 = vmatprep.subr.bf16.mxu0 0
      %3413 = vmatpush1.bf16.msra.mxu0 %v3401
      %3414 = vmatprep.subr.bf16.mxu0 0
      %3415 = vmatpush1.bf16.msra.mxu0 0
      %3416 = vmatprep.subr.bf16.mxu0 0
      %3417 = vmatpush1.bf16.msra.mxu0 0
      %3418 = vmatprep.subr.bf16.mxu0 0
      %3419 = vmatpush1.bf16.msra.mxu0 0
      %3420 = vmatprep.subr.bf16.mxu0 0
      %3421 = vmatpush1.bf16.msra.mxu0 0
      %3422 = vmatprep.subr.bf16.mxu0 0
      %3423 = vmatpush1.bf16.msra.mxu0 0
      %3424 = vmatprep.subr.bf16.mxu0 0
      %3425 = vmatpush1.bf16.msra.mxu0 0
      %3426 = vmatprep.subr.bf16.mxu0 0
      %3427 = vmatpush1.bf16.msra.mxu0 0
      %3428 = vmatprep.subr.bf16.mxu0 0
      %3429 = vmatpush1.bf16.msra.mxu0 0
      %3430 = vmatprep.subr.bf16.mxu0 0
      %3431 = vmatpush1.bf16.msra.mxu0 0
      %3432 = vmatprep.subr.bf16.mxu0 0
      %3433 = vmatpush1.bf16.msra.mxu0 0
      %3434 = vmatprep.subr.bf16.mxu0 0
      %3435 = vmatpush1.bf16.msra.mxu0 0
      %3436 = vmatprep.subr.bf16.mxu0 0
      %3437 = vmatpush1.bf16.msra.mxu0 0
      %3438 = vmatprep.mubr.bf16.mxu0 0
      %3439 = vmatmul.mubr.bf16.gmra.mrb[0].mxu0 %v1160
      %v3440 = vpop.f32.mrb[0].mxu0
      %v3441 = vadd.f32 0.0, %v3440
      %v3442 = vpop.f32.mrb[0].mxu0
      %v3443 = vpop.f32.mrb[0].mxu0
      %v3444 = vadd.f32 0.0, %v3443
      %v3445 = vpop.f32.mrb[0].mxu0
      %3446 = vmatprep.mubr.bf16.mxu0 0
      %3447 = vmatmul.mubr.bf16.gmra.mrb[0].mxu0 %v1163
      %v3448 = vpop.f32.mrb[0].mxu0
      %v3449 = vadd.f32 0.0, %v3448
      %v3450 = vpop.f32.mrb[0].mxu0
      %v3451 = vpop.f32.mrb[0].mxu0
      %v3452 = vadd.f32 0.0, %v3451
      %v3453 = vpop.f32.mrb[0].mxu0
      %3454 = vmatprep.mubr.bf16.mxu0 0
      %3455 = vmatmul.mubr.bf16.gmra.mrb[0].mxu0 %v1166
      %v3456 = vpop.f32.mrb[0].mxu0
      %v3457 = vadd.f32 0.0, %v3456
      %v3458 = vpop.f32.mrb[0].mxu0
      %v3459 = vpop.f32.mrb[0].mxu0
      %v3460 = vadd.f32 0.0, %v3459
      %v3461 = vpop.f32.mrb[0].mxu0
      %3462 = vmatprep.mubr.bf16.mxu0 0
      %3463 = vmatmul.mubr.bf16.gmra.mrb[0].mxu0 %v1169
      %v3464 = vpop.f32.mrb[0].mxu0
      %v3465 = vadd.f32 0.0, %v3464
      %v3466 = vpop.f32.mrb[0].mxu0
      %v3467 = vpop.f32.mrb[0].mxu0
      %v3468 = vadd.f32 0.0, %v3467
      %v3469 = vpop.f32.mrb[0].mxu0
      %3470 = vmatprep.mubr.bf16.mxu0 0
      %3471 = vmatmul.mubr.bf16.gmra.mrb[0].mxu0 %v1172
      %v3472 = vpop.f32.mrb[0].mxu0
      %v3473 = vadd.f32 0.0, %v3472
      %v3474 = vpop.f32.mrb[0].mxu0
      %v3475 = vpop.f32.mrb[0].mxu0
      %v3476 = vadd.f32 0.0, %v3475
      %v3477 = vpop.f32.mrb[0].mxu0
      %3478 = vmatprep.mubr.bf16.mxu0 0
      %3479 = vmatmul.mubr.bf16.gmra.mrb[0].mxu0 %v1175
      %v3480 = vpop.f32.mrb[0].mxu0
      %v3481 = vadd.f32 0.0, %v3480
      %v3482 = vpop.f32.mrb[0].mxu0
      %v3483 = vpop.f32.mrb[0].mxu0
      %v3484 = vadd.f32 0.0, %v3483
      %v3485 = vpop.f32.mrb[0].mxu0
      %3486 = vmatprep.mubr.bf16.mxu0 0
      %3487 = vmatmul.mubr.bf16.gmra.mrb[0].mxu0 %v1178
      %v3488 = vpop.f32.mrb[0].mxu0
      %v3489 = vadd.f32 0.0, %v3488
      %v3490 = vpop.f32.mrb[0].mxu0
      %v3491 = vpop.f32.mrb[0].mxu0
      %v3492 = vadd.f32 0.0, %v3491
      %v3493 = vpop.f32.mrb[0].mxu0
      %3494 = vmatprep.mubr.bf16.mxu0 0
      %3495 = vmatmul.mubr.bf16.gmra.mrb[0].mxu0 %v1181
      %v3496 = vpop.f32.mrb[0].mxu0
      %v3497 = vadd.f32 0.0, %v3496
      %v3498 = vpop.f32.mrb[0].mxu0
      %v3499 = vpop.f32.mrb[0].mxu0
      %v3500 = vadd.f32 0.0, %v3499
      %v3501 = vpop.f32.mrb[0].mxu0
      %3502 = vmatprep.mubr.bf16.mxu0 0
      %3503 = vmatmul.mubr.bf16.gmra.mrb[0].mxu0 %v1184
      %v3504 = vpop.f32.mrb[0].mxu0
      %v3505 = vadd.f32 0.0, %v3504
      %v3506 = vpop.f32.mrb[0].mxu0
      %v3507 = vpop.f32.mrb[0].mxu0
      %v3508 = vadd.f32 0.0, %v3507
      %v3509 = vpop.f32.mrb[0].mxu0
      %3510 = vmatprep.mubr.bf16.mxu0 0
      %3511 = vmatmul.mubr.bf16.gmra.mrb[0].mxu0 %v1187
      %v3512 = vpop.f32.mrb[0].mxu0
      %v3513 = vadd.f32 0.0, %v3512
      %v3514 = vpop.f32.mrb[0].mxu0
      %v3515 = vpop.f32.mrb[0].mxu0
      %v3516 = vadd.f32 0.0, %v3515
      %v3517 = vpop.f32.mrb[0].mxu0
      %3518 = vmatprep.mubr.bf16.mxu0 0
      %3519 = vmatmul.mubr.bf16.gmra.mrb[0].mxu0 %v1190
      %v3520 = vpop.f32.mrb[0].mxu0
      %v3521 = vadd.f32 0.0, %v3520
      %v3522 = vpop.f32.mrb[0].mxu0
      %v3523 = vpop.f32.mrb[0].mxu0
      %v3524 = vadd.f32 0.0, %v3523
      %v3525 = vpop.f32.mrb[0].mxu0
      %3526 = vmatprep.mubr.bf16.mxu0 0
      %3527 = vmatmul.mubr.bf16.gmra.mrb[0].mxu0 %v1193
      %v3528 = vpop.f32.mrb[0].mxu0
      %v3529 = vadd.f32 0.0, %v3528
      %v3530 = vpop.f32.mrb[0].mxu0
      %v3531 = vpop.f32.mrb[0].mxu0
      %v3532 = vadd.f32 0.0, %v3531
      %v3533 = vpop.f32.mrb[0].mxu0
      %3534 = vmatprep.mubr.bf16.mxu0 0
      %3535 = vmatmul.mubr.bf16.gmra.mrb[0].mxu0 %v1196
      %v3536 = vpop.f32.mrb[0].mxu0
      %v3537 = vadd.f32 0.0, %v3536
      %v3538 = vpop.f32.mrb[0].mxu0
      %v3539 = vpop.f32.mrb[0].mxu0
      %v3540 = vadd.f32 0.0, %v3539
      %v3541 = vpop.f32.mrb[0].mxu0
      %3542 = vmatprep.mubr.bf16.mxu0 0
      %3543 = vmatmul.mubr.bf16.gmra.mrb[0].mxu0 %v1199
      %v3544 = vpop.f32.mrb[0].mxu0
      %v3545 = vadd.f32 0.0, %v3544
      %v3546 = vpop.f32.mrb[0].mxu0
      %v3547 = vpop.f32.mrb[0].mxu0
      %v3548 = vadd.f32 0.0, %v3547
      %v3549 = vpop.f32.mrb[0].mxu0
      %3550 = vmatprep.mubr.bf16.mxu0 0
      %3551 = vmatmul.mubr.bf16.gmra.mrb[0].mxu0 %v1202
      %v3552 = vpop.f32.mrb[0].mxu0
      %v3553 = vadd.f32 0.0, %v3552
      %v3554 = vpop.f32.mrb[0].mxu0
      %v3555 = vpop.f32.mrb[0].mxu0
      %v3556 = vadd.f32 0.0, %v3555
      %v3557 = vpop.f32.mrb[0].mxu0
      %3558 = vmatprep.mubr.bf16.mxu0 0
      %3559 = vmatmul.mubr.bf16.gmra.mrb[0].mxu0 %v1205
      %v3560 = vpop.f32.mrb[0].mxu0
      %v3561 = vadd.f32 0.0, %v3560
      %v3562 = vpop.f32.mrb[0].mxu0
      %v3563 = vpop.f32.mrb[0].mxu0
      %v3564 = vadd.f32 0.0, %v3563
      %v3565 = vpop.f32.mrb[0].mxu0
      %3566 = vmatprep.mubr.bf16.mxu0 0
      %3567 = vmatmul.mubr.bf16.gmra.mrb[0].mxu0 %v1208
      %v3568 = vpop.f32.mrb[0].mxu0
      %v3569 = vadd.f32 0.0, %v3568
      %v3570 = vpop.f32.mrb[0].mxu0
      %v3571 = vpop.f32.mrb[0].mxu0
      %v3572 = vadd.f32 0.0, %v3571
      %v3573 = vpop.f32.mrb[0].mxu0
      %3574 = vmatprep.mubr.bf16.mxu0 0
      %3575 = vmatmul.mubr.bf16.gmra.mrb[0].mxu0 %v1211
      %v3576 = vpop.f32.mrb[0].mxu0
      %v3577 = vadd.f32 0.0, %v3576
      %v3578 = vpop.f32.mrb[0].mxu0
      %v3579 = vpop.f32.mrb[0].mxu0
      %v3580 = vadd.f32 0.0, %v3579
      %v3581 = vpop.f32.mrb[0].mxu0
      %3582 = vmatprep.mubr.bf16.mxu0 0
      %3583 = vmatmul.mubr.bf16.gmra.mrb[0].mxu0 %v1214
      %v3584 = vpop.f32.mrb[0].mxu0
      %v3585 = vadd.f32 0.0, %v3584
      %v3586 = vpop.f32.mrb[0].mxu0
      %v3587 = vpop.f32.mrb[0].mxu0
      %v3588 = vadd.f32 0.0, %v3587
      %v3589 = vpop.f32.mrb[0].mxu0
      %3590 = vmatprep.mubr.bf16.mxu0 0
      %3591 = vmatmul.mubr.bf16.gmra.mrb[0].mxu0 %v1217
      %v3592 = vpop.f32.mrb[0].mxu0
      %v3593 = vadd.f32 0.0, %v3592
      %v3594 = vpop.f32.mrb[0].mxu0
      %v3595 = vpop.f32.mrb[0].mxu0
      %v3596 = vadd.f32 0.0, %v3595
      %v3597 = vpop.f32.mrb[0].mxu0
      %3598 = vmatprep.mubr.bf16.mxu0 0
      %3599 = vmatmul.mubr.bf16.gmra.mrb[0].mxu0 %v1220
      %v3600 = vpop.f32.mrb[0].mxu0
      %v3601 = vadd.f32 0.0, %v3600
      %v3602 = vpop.f32.mrb[0].mxu0
      %v3603 = vpop.f32.mrb[0].mxu0
      %v3604 = vadd.f32 0.0, %v3603
      %v3605 = vpop.f32.mrb[0].mxu0
      %3606 = vmatprep.mubr.bf16.mxu0 0
      %3607 = vmatmul.mubr.bf16.gmra.mrb[0].mxu0 %v1481
      %v3608 = vpop.f32.mrb[0].mxu0
      %v3609 = vadd.f32 0.0, %v3608
      %v3610 = vpop.f32.mrb[0].mxu0
      %v3611 = vpop.f32.mrb[0].mxu0
      %v3612 = vadd.f32 0.0, %v3611
      %v3613 = vpop.f32.mrb[0].mxu0
      %3614 = vmatprep.mubr.bf16.mxu0 0
      %3615 = vmatmul.mubr.bf16.gmra.mrb[0].mxu0 %v1484
      %v3616 = vpop.f32.mrb[0].mxu0
      %v3617 = vadd.f32 0.0, %v3616
      %v3618 = vpop.f32.mrb[0].mxu0
      %v3619 = vpop.f32.mrb[0].mxu0
      %v3620 = vadd.f32 0.0, %v3619
      %v3621 = vpop.f32.mrb[0].mxu0
      %3622 = vmatprep.mubr.bf16.mxu0 0
      %3623 = vmatmul.mubr.bf16.gmra.mrb[0].mxu0 %v1487
      %v3624 = vpop.f32.mrb[0].mxu0
      %v3625 = vadd.f32 0.0, %v3624
      %v3626 = vpop.f32.mrb[0].mxu0
      %v3627 = vpop.f32.mrb[0].mxu0
      %v3628 = vadd.f32 0.0, %v3627
      %v3629 = vpop.f32.mrb[0].mxu0
      %3630 = vdwg.mxu0
      %v3631 = vadd.f32 %v3183, %v3441
      %v3632 = vadd.f32 %v3186, %v3444
      %v3633 = vadd.f32 %v3191, %v3449
      %v3634 = vadd.f32 %v3194, %v3452
      %v3635 = vadd.f32 %v3199, %v3457
      %v3636 = vadd.f32 %v3202, %v3460
      %v3637 = vadd.f32 %v3207, %v3465
      %v3638 = vadd.f32 %v3210, %v3468
      %v3639 = vadd.f32 %v3215, %v3473
      %v3640 = vadd.f32 %v3218, %v3476
      %v3641 = vadd.f32 %v3223, %v3481
      %v3642 = vadd.f32 %v3226, %v3484
      %v3643 = vadd.f32 %v3231, %v3489
      %v3644 = vadd.f32 %v3234, %v3492
      %v3645 = vadd.f32 %v3239, %v3497
      %v3646 = vadd.f32 %v3242, %v3500
      %v3647 = vadd.f32 %v3247, %v3505
      %v3648 = vadd.f32 %v3250, %v3508
      %v3649 = vadd.f32 %v3255, %v3513
      %v3650 = vadd.f32 %v3258, %v3516
      %v3651 = vadd.f32 %v3263, %v3521
      %v3652 = vadd.f32 %v3266, %v3524
      %v3653 = vadd.f32 %v3271, %v3529
      %v3654 = vadd.f32 %v3274, %v3532
      %v3655 = vadd.f32 %v3279, %v3537
      %v3656 = vadd.f32 %v3282, %v3540
      %v3657 = vadd.f32 %v3287, %v3545
      %v3658 = vadd.f32 %v3290, %v3548
      %v3659 = vadd.f32 %v3295, %v3553
      %v3660 = vadd.f32 %v3298, %v3556
      %v3661 = vadd.f32 %v3303, %v3561
      %v3662 = vadd.f32 %v3306, %v3564
      %v3663 = vadd.f32 %v3311, %v3569
      %v3664 = vadd.f32 %v3314, %v3572
      %v3665 = vadd.f32 %v3319, %v3577
      %v3666 = vadd.f32 %v3322, %v3580
      %v3667 = vadd.f32 %v3327, %v3585
      %v3668 = vadd.f32 %v3330, %v3588
      %v3669 = vadd.f32 %v3335, %v3593
      %v3670 = vadd.f32 %v3338, %v3596
      %v3671 = vadd.f32 %v3343, %v3601
      %v3672 = vadd.f32 %v3346, %v3604
      %v3673 = vadd.f32 %v3351, %v3609
      %v3674 = vadd.f32 %v3354, %v3612
      %v3675 = vadd.f32 %v3359, %v3617
      %v3676 = vadd.f32 %v3362, %v3620
      %v3677 = vadd.f32 %v3367, %v3625
      %v3678 = vadd.f32 %v3370, %v3628
      %vm3727 = vcmask 1045504
      %v3728 = vrot.slane %v3631, 2
      %v3729 = vrot.slane %v3632, 2
      %v3730 = vsel %vm3727, %v3728, %v3729
      %v3731 = vrot.slane %v3633, 2
      %v3732 = vsel %vm3727, %v3729, %v3731
      %v3733 = vrot.slane %v3634, 2
      %v3734 = vrot.slane %v3635, 2
      %v3735 = vsel %vm3727, %v3733, %v3734
      %v3736 = vrot.slane %v3636, 2
      %v3737 = vsel %vm3727, %v3734, %v3736
      %v3738 = vrot.slane %v3637, 2
      %v3739 = vrot.slane %v3638, 2
      %v3740 = vsel %vm3727, %v3738, %v3739
      %v3741 = vrot.slane %v3639, 2
      %v3742 = vsel %vm3727, %v3739, %v3741
      %v3743 = vrot.slane %v3640, 2
      %v3744 = vrot.slane %v3641, 2
      %v3745 = vsel %vm3727, %v3743, %v3744
      %v3746 = vrot.slane %v3642, 2
      %v3747 = vsel %vm3727, %v3744, %v3746
      %v3748 = vrot.slane %v3643, 2
      %v3749 = vrot.slane %v3644, 2
      %v3750 = vsel %vm3727, %v3748, %v3749
      %v3751 = vrot.slane %v3645, 2
      %v3752 = vsel %vm3727, %v3749, %v3751
      %v3753 = vrot.slane %v3646, 2
      %v3754 = vrot.slane %v3647, 2
      %v3755 = vsel %vm3727, %v3753, %v3754
      %v3756 = vrot.slane %v3648, 2
      %v3757 = vsel %vm3727, %v3754, %v3756
      %v3758 = vrot.slane %v3649, 2
      %v3759 = vrot.slane %v3650, 2
      %v3760 = vsel %vm3727, %v3758, %v3759
      %v3761 = vrot.slane %v3651, 2
      %v3762 = vsel %vm3727, %v3759, %v3761
      %v3763 = vrot.slane %v3652, 2
      %v3764 = vrot.slane %v3653, 2
      %v3765 = vsel %vm3727, %v3763, %v3764
      %v3766 = vrot.slane %v3654, 2
      %v3767 = vsel %vm3727, %v3764, %v3766
      %v3768 = vrot.slane %v3655, 2
      %v3769 = vrot.slane %v3656, 2
      %v3770 = vsel %vm3727, %v3768, %v3769
      %v3771 = vrot.slane %v3657, 2
      %v3772 = vsel %vm3727, %v3769, %v3771
      %v3773 = vrot.slane %v3658, 2
      %v3774 = vrot.slane %v3659, 2
      %v3775 = vsel %vm3727, %v3773, %v3774
      %v3776 = vrot.slane %v3660, 2
      %v3777 = vsel %vm3727, %v3774, %v3776
      %v3778 = vrot.slane %v3661, 2
      %v3779 = vrot.slane %v3662, 2
      %v3780 = vsel %vm3727, %v3778, %v3779
      %v3781 = vrot.slane %v3663, 2
      %v3782 = vsel %vm3727, %v3779, %v3781
      %v3783 = vrot.slane %v3664, 2
      %v3784 = vrot.slane %v3665, 2
      %v3785 = vsel %vm3727, %v3783, %v3784
      %v3786 = vrot.slane %v3666, 2
      %v3787 = vsel %vm3727, %v3784, %v3786
      %v3788 = vrot.slane %v3667, 2
      %v3789 = vrot.slane %v3668, 2
      %v3790 = vsel %vm3727, %v3788, %v3789
      %v3791 = vrot.slane %v3669, 2
      %v3792 = vsel %vm3727, %v3789, %v3791
      %v3793 = vrot.slane %v3670, 2
      %v3794 = vrot.slane %v3671, 2
      %v3795 = vsel %vm3727, %v3793, %v3794
      %v3796 = vrot.slane %v3672, 2
      %v3797 = vsel %vm3727, %v3794, %v3796
      %v3798 = vrot.slane %v3673, 2
      %v3799 = vrot.slane %v3674, 2
      %v3800 = vsel %vm3727, %v3798, %v3799
      %v3801 = vrot.slane %v3675, 2
      %v3802 = vsel %vm3727, %v3799, %v3801
      %v3803 = vrot.slane %v3676, 2
      %v3804 = vrot.slane %v3677, 2
      %v3805 = vsel %vm3727, %v3803, %v3804
      %v3806 = vrot.slane %v3678, 2
      %v3807 = vsel %vm3727, %v3804, %v3806
      %v3856 = vadd.f32 %v2809, %v3730
      %v3857 = vadd.f32 %v2810, %v3732
      %v3858 = vadd.f32 %v2811, %v3731
      %v3859 = vadd.f32 %v2812, %v3735
      %v3860 = vadd.f32 %v2813, %v3737
      %v3861 = vadd.f32 %v2814, %v3736
      %v3862 = vadd.f32 %v2815, %v3740
      %v3863 = vadd.f32 %v2816, %v3742
      %v3864 = vadd.f32 %v2817, %v3741
      %v3865 = vadd.f32 %v2818, %v3745
      %v3866 = vadd.f32 %v2819, %v3747
      %v3867 = vadd.f32 %v2820, %v3746
      %v3868 = vadd.f32 %v2821, %v3750
      %v3869 = vadd.f32 %v2822, %v3752
      %v3870 = vadd.f32 %v2823, %v3751
      %v3871 = vadd.f32 %v2824, %v3755
      %v3872 = vadd.f32 %v2825, %v3757
      %v3873 = vadd.f32 %v2826, %v3756
      %v3874 = vadd.f32 %v2827, %v3760
      %v3875 = vadd.f32 %v2828, %v3762
      %v3876 = vadd.f32 %v2829, %v3761
      %v3877 = vadd.f32 %v2830, %v3765
      %v3878 = vadd.f32 %v2831, %v3767
      %v3879 = vadd.f32 %v2832, %v3766
      %v3880 = vadd.f32 %v2833, %v3770
      %v3881 = vadd.f32 %v2834, %v3772
      %v3882 = vadd.f32 %v2835, %v3771
      %v3883 = vadd.f32 %v2836, %v3775
      %v3884 = vadd.f32 %v2837, %v3777
      %v3885 = vadd.f32 %v2838, %v3776
      %v3886 = vadd.f32 %v2839, %v3780
      %v3887 = vadd.f32 %v2840, %v3782
      %v3888 = vadd.f32 %v2841, %v3781
      %v3889 = vadd.f32 %v2842, %v3785
      %v3890 = vadd.f32 %v2843, %v3787
      %v3891 = vadd.f32 %v2844, %v3786
      %v3892 = vadd.f32 %v2845, %v3790
      %v3893 = vadd.f32 %v2846, %v3792
      %v3894 = vadd.f32 %v2847, %v3791
      %v3895 = vadd.f32 %v2848, %v3795
      %v3896 = vadd.f32 %v2849, %v3797
      %v3897 = vadd.f32 %v2850, %v3796
      %v3898 = vadd.f32 %v2851, %v3800
      %v3899 = vadd.f32 %v2852, %v3802
      %v3900 = vadd.f32 %v2853, %v3801
      %v3901 = vadd.f32 %v2854, %v3805
      %v3902 = vadd.f32 %v2855, %v3807
      %v3903 = vadd.f32 %v2856, %v3806
      %v3904 = vld [vmem:[%s512] sm:$0xf]
      %v3905 = vld [vmem:[%s512 + $0x4] sm:$0xf]
      %v3906 = vld [vmem:[%s512 + $0x8] sm:$0xf]
      %v3907 = vld [vmem:[%s512 + $0xc] sm:$0xf]
      %v3908 = vld [vmem:[%s512 + $0x10] sm:$0xf]
      %v3909 = vld [vmem:[%s512 + $0x14] sm:$0xf]
      %v3910 = vld [vmem:[%s512 + $0x18] sm:$0xf]
      %v3911 = vld [vmem:[%s512 + $0x1c] sm:$0xf]
      %v3912 = vld [vmem:[%s512 + $0x20] sm:$0xf]
      %v3913 = vld [vmem:[%s512 + $0x24] sm:$0xf]
      %v3914 = vld [vmem:[%s512 + $0x28] sm:$0xf]
      %v3915 = vld [vmem:[%s512 + $0x2c] sm:$0xf]
      %v3916 = vld [vmem:[%s512 + $0x30] sm:$0xf]
      %v3917 = vld [vmem:[%s512 + $0x34] sm:$0xf]
      %v3918 = vld [vmem:[%s512 + $0x38] sm:$0xf]
      %v3919 = vld [vmem:[%s512 + $0x3c] sm:$0xf]
      %v3920 = vld [vmem:[%s512 + $0x40] sm:$0xf]
      %v3921 = vld [vmem:[%s512 + $0x44] sm:$0xf]
      %v3922 = vld [vmem:[%s512 + $0x48] sm:$0xf]
      %v3923 = vld [vmem:[%s512 + $0x4c] sm:$0xf]
      %v3924 = vld [vmem:[%s512 + $0x50] sm:$0xf]
      %v3925 = vld [vmem:[%s512 + $0x54] sm:$0xf]
      %v3926 = vld [vmem:[%s512 + $0x58] sm:$0xf]
      %v3927 = vld [vmem:[%s512 + $0x5c] sm:$0xf]
      %v3928 = vld [vmem:[%s512 + $0x60] sm:$0xf]
      %v3929 = vld [vmem:[%s512 + $0x64] sm:$0xf]
      %v3930 = vld [vmem:[%s512 + $0x68] sm:$0xf]
      %v3931 = vld [vmem:[%s512 + $0x6c] sm:$0xf]
      %v3932 = vld [vmem:[%s512 + $0x70] sm:$0xf]
      %v3933 = vld [vmem:[%s512 + $0x74] sm:$0xf]
      %v3934 = vld [vmem:[%s512 + $0x78] sm:$0xf]
      %v3935 = vld [vmem:[%s512 + $0x7c] sm:$0xf]
      %v3936 = vld [vmem:[%s512 + $0x80] sm:$0xf]
      %v3937 = vld [vmem:[%s512 + $0x84] sm:$0xf]
      %v3938 = vld [vmem:[%s512 + $0x88] sm:$0xf]
      %v3939 = vld [vmem:[%s512 + $0x8c] sm:$0xf]
      %v3940 = vld [vmem:[%s512 + $0x90] sm:$0xf]
      %v3941 = vld [vmem:[%s512 + $0x94] sm:$0xf]
      %v3942 = vld [vmem:[%s512 + $0x98] sm:$0xf]
      %v3943 = vld [vmem:[%s512 + $0x9c] sm:$0xf]
      %v3944 = vld [vmem:[%s512 + $0xa0] sm:$0xf]
      %v3945 = vld [vmem:[%s512 + $0xa4] sm:$0xf]
      %v3946 = vld [vmem:[%s512 + $0xa8] sm:$0xf]
      %v3947 = vld [vmem:[%s512 + $0xac] sm:$0xf]
      %v3948 = vld [vmem:[%s512 + $0xb0] sm:$0xf]
      %v3949 = vld [vmem:[%s512 + $0xb4] sm:$0xf]
      %v3950 = vld [vmem:[%s512 + $0xb8] sm:$0xf]
      %v3951 = vld [vmem:[%s512 + $0xbc] sm:$0xf]
      %v3952 = vld [vmem:[%s530] sm:$0xf]
      %v3953 = vld [vmem:[%s530 + $0x4] sm:$0xf]
      %v3954 = vld [vmem:[%s530 + $0x8] sm:$0xf]
      %v3955 = vld [vmem:[%s530 + $0xc] sm:$0xf]
      %v3956 = vld [vmem:[%s530 + $0x10] sm:$0xf]
      %v3957 = vld [vmem:[%s530 + $0x14] sm:$0xf]
      %v4006 = vunpack.c.l.b16 %v3904
      %v4007 = vunpack.c.l.b16 %v3905
      %v4008 = vunpack.c.l.b16 %v3906
      %v4009 = vunpack.c.l.b16 %v3907
      %v4010 = vunpack.c.l.b16 %v3908
      %v4011 = vunpack.c.l.b16 %v3909
      %v4012 = vunpack.c.l.b16 %v3910
      %v4013 = vunpack.c.l.b16 %v3911
      %v4014 = vunpack.c.l.b16 %v3912
      %v4015 = vunpack.c.l.b16 %v3913
      %v4016 = vunpack.c.l.b16 %v3914
      %v4017 = vunpack.c.l.b16 %v3915
      %v4018 = vunpack.c.l.b16 %v3916
      %v4019 = vunpack.c.l.b16 %v3917
      %v4020 = vunpack.c.l.b16 %v3918
      %v4021 = vunpack.c.l.b16 %v3919
      %v4022 = vunpack.c.l.b16 %v3920
      %v4023 = vunpack.c.l.b16 %v3921
      %v4024 = vunpack.c.l.b16 %v3922
      %v4025 = vunpack.c.l.b16 %v3923
      %v4026 = vunpack.c.l.b16 %v3924
      %v4027 = vunpack.c.l.b16 %v3925
      %v4028 = vunpack.c.l.b16 %v3926
      %v4029 = vunpack.c.l.b16 %v3927
      %v4030 = vunpack.c.l.b16 %v3928
      %v4031 = vunpack.c.l.b16 %v3929
      %v4032 = vunpack.c.l.b16 %v3930
      %v4033 = vunpack.c.l.b16 %v3931
      %v4034 = vunpack.c.l.b16 %v3932
      %v4035 = vunpack.c.l.b16 %v3933
      %v4036 = vunpack.c.l.b16 %v3934
      %v4037 = vunpack.c.l.b16 %v3935
      %v4038 = vunpack.c.l.b16 %v3936
      %v4039 = vunpack.c.l.b16 %v3937
      %v4040 = vunpack.c.l.b16 %v3938
      %v4041 = vunpack.c.l.b16 %v3939
      %v4042 = vunpack.c.l.b16 %v3940
      %v4043 = vunpack.c.l.b16 %v3941
      %v4044 = vunpack.c.l.b16 %v3942
      %v4045 = vunpack.c.l.b16 %v3943
      %v4046 = vunpack.c.l.b16 %v3944
      %v4047 = vunpack.c.l.b16 %v3945
      %v4048 = vunpack.c.l.b16 %v3946
      %v4049 = vunpack.c.l.b16 %v3947
      %v4050 = vunpack.c.l.b16 %v3948
      %v4051 = vunpack.c.l.b16 %v3949
      %v4052 = vunpack.c.l.b16 %v3950
      %v4053 = vunpack.c.l.b16 %v3951
      %v4054 = vpack.c.b16 %v4007, %v4006
      %v4055 = vpack.c.b16 %v4009, %v4008
      %v4056 = vpack.c.b16 %v4011, %v4010
      %v4057 = vpack.c.b16 %v4013, %v4012
      %v4058 = vpack.c.b16 %v4015, %v4014
      %v4059 = vpack.c.b16 %v4017, %v4016
      %v4060 = vpack.c.b16 %v4019, %v4018
      %v4061 = vpack.c.b16 %v4021, %v4020
      %v4062 = vpack.c.b16 %v4023, %v4022
      %v4063 = vpack.c.b16 %v4025, %v4024
      %v4064 = vpack.c.b16 %v4027, %v4026
      %v4065 = vpack.c.b16 %v4029, %v4028
      %v4066 = vpack.c.b16 %v4031, %v4030
      %v4067 = vpack.c.b16 %v4033, %v4032
      %v4068 = vpack.c.b16 %v4035, %v4034
      %v4069 = vpack.c.b16 %v4037, %v4036
      %v4070 = vpack.c.b16 %v4039, %v4038
      %v4071 = vpack.c.b16 %v4041, %v4040
      %v4072 = vpack.c.b16 %v4043, %v4042
      %v4073 = vpack.c.b16 %v4045, %v4044
      %v4074 = vpack.c.b16 %v4047, %v4046
      %v4075 = vpack.c.b16 %v4049, %v4048
      %v4076 = vpack.c.b16 %v4051, %v4050
      %v4077 = vpack.c.b16 %v4053, %v4052
      %v4084 = vunpack.c.l.b16 %v3952
      %v4085 = vunpack.c.l.b16 %v3953
      %v4086 = vunpack.c.l.b16 %v3954
      %v4087 = vunpack.c.l.b16 %v3955
      %v4088 = vunpack.c.l.b16 %v3956
      %v4089 = vunpack.c.l.b16 %v3957
      %v4090 = vpack.c.b16 %v4085, %v4084
      %v4091 = vpack.c.b16 %v4087, %v4086
      %v4092 = vpack.c.b16 %v4089, %v4088
      %v4093 = vld [vmem:[%s5] sm:$0xf]
      %v4094 = vld [vmem:[%s5 + $0x4] sm:$0xf]
      %v4095 = vld [vmem:[%s5 + $0x8] sm:$0xf]
      %v4096 = vld [vmem:[%s5 + $0xc] sm:$0xf]
      %v4097 = vld [vmem:[%s5 + $0x10] sm:$0xf]
      %v4098 = vld [vmem:[%s5 + $0x14] sm:$0xf]
      %v4099 = vld [vmem:[%s5 + $0x18] sm:$0xf]
      %v4100 = vld [vmem:[%s5 + $0x1c] sm:$0xf]
      %s4101 = scalar_lea.vmem %s5, 96
      %v4102 = vld [vmem:[%s4101] sm:$0xf]
      %v4103 = vld [vmem:[%s4101 + $0x4] sm:$0xf]
      %v4104 = vld [vmem:[%s4101 + $0x8] sm:$0xf]
      %v4105 = vld [vmem:[%s4101 + $0xc] sm:$0xf]
      %v4106 = vld [vmem:[%s4101 + $0x10] sm:$0xf]
      %v4107 = vld [vmem:[%s4101 + $0x14] sm:$0xf]
      %v4108 = vld [vmem:[%s4101 + $0x18] sm:$0xf]
      %v4109 = vld [vmem:[%s4101 + $0x1c] sm:$0xf]
      %v4110 = vrot.slane %v4055, 4
      %v4111 = vrot.slane %v4056, 4
      %v4112 = vsel %vm754, %v4110, %v4111
      %v4113 = vrot.slane %v4057, 4
      %v4114 = vsel %vm754, %v4111, %v4113
      %v4115 = vrot.slane %v4058, 4
      %v4116 = vsel %vm754, %v4113, %v4115
      %v4117 = vrot.slane %v4059, 4
      %v4118 = vsel %vm754, %v4115, %v4117
      %v4119 = vrot.slane %v4060, 4
      %v4120 = vsel %vm754, %v4117, %v4119
      %v4121 = vrot.slane %v4061, 4
      %v4122 = vsel %vm754, %v4119, %v4121
      %v4123 = vrot.slane %v4062, 4
      %v4124 = vsel %vm754, %v4121, %v4123
      %v4125 = vrot.slane %v4063, 4
      %v4126 = vsel %vm754, %v4123, %v4125
      %v4127 = vrot.slane %v4064, 4
      %v4128 = vsel %vm754, %v4125, %v4127
      %v4129 = vrot.slane %v4065, 4
      %v4130 = vsel %vm754, %v4127, %v4129
      %v4131 = vrot.slane %v4066, 4
      %v4132 = vsel %vm754, %v4129, %v4131
      %v4133 = vrot.slane %v4067, 4
      %v4134 = vsel %vm754, %v4131, %v4133
      %v4135 = vrot.slane %v4068, 4
      %v4136 = vsel %vm754, %v4133, %v4135
      %v4137 = vrot.slane %v4069, 4
      %v4138 = vsel %vm754, %v4135, %v4137
      %v4139 = vrot.slane %v4070, 4
      %v4140 = vsel %vm754, %v4137, %v4139
      %v4141 = vrot.slane %v4071, 4
      %v4142 = vsel %vm754, %v4139, %v4141
      %v4143 = vrot.slane %v4072, 4
      %v4144 = vsel %vm754, %v4141, %v4143
      %v4145 = vrot.slane %v4073, 4
      %v4146 = vsel %vm754, %v4143, %v4145
      %v4147 = vrot.slane %v4074, 4
      %v4148 = vsel %vm754, %v4145, %v4147
      %v4149 = vrot.slane %v4075, 4
      %v4150 = vsel %vm754, %v4147, %v4149
      %v4151 = vrot.slane %v4076, 4
      %v4152 = vsel %vm754, %v4149, %v4151
      %v4153 = vrot.slane %v4077, 4
      %v4154 = vsel %vm754, %v4151, %v4153
      %v4155 = vrot.slane %v4090, 4
      %v4156 = vsel %vm754, %v4153, %v4155
      %v4157 = vrot.slane %v4091, 4
      %v4158 = vsel %vm754, %v4155, %v4157
      %v4167 = vunpack.c.l.b16 %v4102
      %v4168 = vunpack.c.l.b16 %v4103
      %v4169 = vunpack.c.l.b16 %v4104
      %v4170 = vunpack.c.l.b16 %v4105
      %v4171 = vunpack.c.l.b16 %v4106
      %v4172 = vunpack.c.l.b16 %v4107
      %v4173 = vunpack.c.l.b16 %v4108
      %v4174 = vunpack.c.l.b16 %v4109
      %v4175 = vpack.c.b16 %v4168, %v4167
      %v4176 = vpack.c.b16 %v4170, %v4169
      %v4177 = vpack.c.b16 %v4172, %v4171
      %v4178 = vpack.c.b16 %v4174, %v4173
      %v4184 = vsel %vm828, %v4112, 0
      %v4187 = vsel %vm828, %v4114, 0
      %v4190 = vsel %vm828, %v4116, 0
      %v4193 = vsel %vm828, %v4118, 0
      %v4196 = vsel %vm828, %v4120, 0
      %v4199 = vsel %vm828, %v4122, 0
      %v4202 = vsel %vm828, %v4124, 0
      %v4205 = vsel %vm828, %v4126, 0
      %v4208 = vsel %vm828, %v4128, 0
      %v4211 = vsel %vm828, %v4130, 0
      %v4214 = vsel %vm828, %v4132, 0
      %v4217 = vsel %vm828, %v4134, 0
      %v4220 = vsel %vm828, %v4136, 0
      %v4223 = vsel %vm828, %v4138, 0
      %v4226 = vsel %vm828, %v4140, 0
      %v4229 = vsel %vm828, %v4142, 0
      %v4232 = vsel %vm828, %v4144, 0
      %v4235 = vsel %vm828, %v4146, 0
      %v4238 = vsel %vm828, %v4148, 0
      %v4241 = vsel %vm828, %v4150, 0
      %v4244 = vsel %vm828, %v4152, 0
      %v4247 = vsel %vm828, %v4154, 0
      %v4250 = vsel %vm828, %v4156, 0
      %v4253 = vsel %vm828, %v4158, 0
      %4255 = vmatprep.subr.bf16.mxu0 0
      %4256 = vmatpush1.bf16.msra.mxu0 %v4175
      %4257 = vmatprep.subr.bf16.mxu0 0
      %4258 = vmatpush1.bf16.msra.mxu0 %v4176
      %4259 = vmatprep.subr.bf16.mxu0 0
      %4260 = vmatpush1.bf16.msra.mxu0 %v4177
      %4261 = vmatprep.subr.bf16.mxu0 0
      %4262 = vmatpush1.bf16.msra.mxu0 %v4178
      %4263 = vmatprep.subr.bf16.mxu0 0
      %4264 = vmatpush1.bf16.msra.mxu0 0
      %4265 = vmatprep.subr.bf16.mxu0 0
      %4266 = vmatpush1.bf16.msra.mxu0 0
      %4267 = vmatprep.subr.bf16.mxu0 0
      %4268 = vmatpush1.bf16.msra.mxu0 0
      %4269 = vmatprep.subr.bf16.mxu0 0
      %4270 = vmatpush1.bf16.msra.mxu0 0
      %4271 = vmatprep.subr.bf16.mxu0 0
      %4272 = vmatpush1.bf16.msra.mxu0 0
      %4273 = vmatprep.subr.bf16.mxu0 0
      %4274 = vmatpush1.bf16.msra.mxu0 0
      %4275 = vmatprep.subr.bf16.mxu0 0
      %4276 = vmatpush1.bf16.msra.mxu0 0
      %4277 = vmatprep.subr.bf16.mxu0 0
      %4278 = vmatpush1.bf16.msra.mxu0 0
      %4279 = vmatprep.subr.bf16.mxu0 0
      %4280 = vmatpush1.bf16.msra.mxu0 0
      %4281 = vmatprep.subr.bf16.mxu0 0
      %4282 = vmatpush1.bf16.msra.mxu0 0
      %4283 = vmatprep.subr.bf16.mxu0 0
      %4284 = vmatpush1.bf16.msra.mxu0 0
      %4285 = vmatprep.subr.bf16.mxu0 0
      %4286 = vmatpush1.bf16.msra.mxu0 0
      %4287 = vmatprep.mubr.bf16.mxu0 0
      %4288 = vmatmul.mubr.bf16.gmra.mrb[0].mxu0 %v4184
      %v4289 = vpop.f32.mrb[0].mxu0
      %v4290 = vadd.f32 0.0, %v4289
      %v4291 = vpop.f32.mrb[0].mxu0
      %v4292 = vpop.f32.mrb[0].mxu0
      %v4293 = vadd.f32 0.0, %v4292
      %v4294 = vpop.f32.mrb[0].mxu0
      %4295 = vmatprep.mubr.bf16.mxu0 0
      %4296 = vmatmul.mubr.bf16.gmra.mrb[0].mxu0 %v4187
      %v4297 = vpop.f32.mrb[0].mxu0
      %v4298 = vadd.f32 0.0, %v4297
      %v4299 = vpop.f32.mrb[0].mxu0
      %v4300 = vpop.f32.mrb[0].mxu0
      %v4301 = vadd.f32 0.0, %v4300
      %v4302 = vpop.f32.mrb[0].mxu0
      %4303 = vmatprep.mubr.bf16.mxu0 0
      %4304 = vmatmul.mubr.bf16.gmra.mrb[0].mxu0 %v4190
      %v4305 = vpop.f32.mrb[0].mxu0
      %v4306 = vadd.f32 0.0, %v4305
      %v4307 = vpop.f32.mrb[0].mxu0
      %v4308 = vpop.f32.mrb[0].mxu0
      %v4309 = vadd.f32 0.0, %v4308
      %v4310 = vpop.f32.mrb[0].mxu0
      %4311 = vmatprep.mubr.bf16.mxu0 0
      %4312 = vmatmul.mubr.bf16.gmra.mrb[0].mxu0 %v4193
      %v4313 = vpop.f32.mrb[0].mxu0
      %v4314 = vadd.f32 0.0, %v4313
      %v4315 = vpop.f32.mrb[0].mxu0
      %v4316 = vpop.f32.mrb[0].mxu0
      %v4317 = vadd.f32 0.0, %v4316
      %v4318 = vpop.f32.mrb[0].mxu0
      %4319 = vmatprep.mubr.bf16.mxu0 0
      %4320 = vmatmul.mubr.bf16.gmra.mrb[0].mxu0 %v4196
      %v4321 = vpop.f32.mrb[0].mxu0
      %v4322 = vadd.f32 0.0, %v4321
      %v4323 = vpop.f32.mrb[0].mxu0
      %v4324 = vpop.f32.mrb[0].mxu0
      %v4325 = vadd.f32 0.0, %v4324
      %v4326 = vpop.f32.mrb[0].mxu0
      %4327 = vmatprep.mubr.bf16.mxu0 0
      %4328 = vmatmul.mubr.bf16.gmra.mrb[0].mxu0 %v4199
      %v4329 = vpop.f32.mrb[0].mxu0
      %v4330 = vadd.f32 0.0, %v4329
      %v4331 = vpop.f32.mrb[0].mxu0
      %v4332 = vpop.f32.mrb[0].mxu0
      %v4333 = vadd.f32 0.0, %v4332
      %v4334 = vpop.f32.mrb[0].mxu0
      %4335 = vmatprep.mubr.bf16.mxu0 0
      %4336 = vmatmul.mubr.bf16.gmra.mrb[0].mxu0 %v4202
      %v4337 = vpop.f32.mrb[0].mxu0
      %v4338 = vadd.f32 0.0, %v4337
      %v4339 = vpop.f32.mrb[0].mxu0
      %v4340 = vpop.f32.mrb[0].mxu0
      %v4341 = vadd.f32 0.0, %v4340
      %v4342 = vpop.f32.mrb[0].mxu0
      %4343 = vmatprep.mubr.bf16.mxu0 0
      %4344 = vmatmul.mubr.bf16.gmra.mrb[0].mxu0 %v4205
      %v4345 = vpop.f32.mrb[0].mxu0
      %v4346 = vadd.f32 0.0, %v4345
      %v4347 = vpop.f32.mrb[0].mxu0
      %v4348 = vpop.f32.mrb[0].mxu0
      %v4349 = vadd.f32 0.0, %v4348
      %v4350 = vpop.f32.mrb[0].mxu0
      %4351 = vmatprep.mubr.bf16.mxu0 0
      %4352 = vmatmul.mubr.bf16.gmra.mrb[0].mxu0 %v4208
      %v4353 = vpop.f32.mrb[0].mxu0
      %v4354 = vadd.f32 0.0, %v4353
      %v4355 = vpop.f32.mrb[0].mxu0
      %v4356 = vpop.f32.mrb[0].mxu0
      %v4357 = vadd.f32 0.0, %v4356
      %v4358 = vpop.f32.mrb[0].mxu0
      %4359 = vmatprep.mubr.bf16.mxu0 0
      %4360 = vmatmul.mubr.bf16.gmra.mrb[0].mxu0 %v4211
      %v4361 = vpop.f32.mrb[0].mxu0
      %v4362 = vadd.f32 0.0, %v4361
      %v4363 = vpop.f32.mrb[0].mxu0
      %v4364 = vpop.f32.mrb[0].mxu0
      %v4365 = vadd.f32 0.0, %v4364
      %v4366 = vpop.f32.mrb[0].mxu0
      %4367 = vmatprep.mubr.bf16.mxu0 0
      %4368 = vmatmul.mubr.bf16.gmra.mrb[0].mxu0 %v4214
      %v4369 = vpop.f32.mrb[0].mxu0
      %v4370 = vadd.f32 0.0, %v4369
      %v4371 = vpop.f32.mrb[0].mxu0
      %v4372 = vpop.f32.mrb[0].mxu0
      %v4373 = vadd.f32 0.0, %v4372
      %v4374 = vpop.f32.mrb[0].mxu0
      %4375 = vmatprep.mubr.bf16.mxu0 0
      %4376 = vmatmul.mubr.bf16.gmra.mrb[0].mxu0 %v4217
      %v4377 = vpop.f32.mrb[0].mxu0
      %v4378 = vadd.f32 0.0, %v4377
      %v4379 = vpop.f32.mrb[0].mxu0
      %v4380 = vpop.f32.mrb[0].mxu0
      %v4381 = vadd.f32 0.0, %v4380
      %v4382 = vpop.f32.mrb[0].mxu0
      %4383 = vmatprep.mubr.bf16.mxu0 0
      %4384 = vmatmul.mubr.bf16.gmra.mrb[0].mxu0 %v4220
      %v4385 = vpop.f32.mrb[0].mxu0
      %v4386 = vadd.f32 0.0, %v4385
      %v4387 = vpop.f32.mrb[0].mxu0
      %v4388 = vpop.f32.mrb[0].mxu0
      %v4389 = vadd.f32 0.0, %v4388
      %v4390 = vpop.f32.mrb[0].mxu0
      %4391 = vmatprep.mubr.bf16.mxu0 0
      %4392 = vmatmul.mubr.bf16.gmra.mrb[0].mxu0 %v4223
      %v4393 = vpop.f32.mrb[0].mxu0
      %v4394 = vadd.f32 0.0, %v4393
      %v4395 = vpop.f32.mrb[0].mxu0
      %v4396 = vpop.f32.mrb[0].mxu0
      %v4397 = vadd.f32 0.0, %v4396
      %v4398 = vpop.f32.mrb[0].mxu0
      %4399 = vmatprep.mubr.bf16.mxu0 0
      %4400 = vmatmul.mubr.bf16.gmra.mrb[0].mxu0 %v4226
      %v4401 = vpop.f32.mrb[0].mxu0
      %v4402 = vadd.f32 0.0, %v4401
      %v4403 = vpop.f32.mrb[0].mxu0
      %v4404 = vpop.f32.mrb[0].mxu0
      %v4405 = vadd.f32 0.0, %v4404
      %v4406 = vpop.f32.mrb[0].mxu0
      %4407 = vmatprep.mubr.bf16.mxu0 0
      %4408 = vmatmul.mubr.bf16.gmra.mrb[0].mxu0 %v4229
      %v4409 = vpop.f32.mrb[0].mxu0
      %v4410 = vadd.f32 0.0, %v4409
      %v4411 = vpop.f32.mrb[0].mxu0
      %v4412 = vpop.f32.mrb[0].mxu0
      %v4413 = vadd.f32 0.0, %v4412
      %v4414 = vpop.f32.mrb[0].mxu0
      %4415 = vmatprep.mubr.bf16.mxu0 0
      %4416 = vmatmul.mubr.bf16.gmra.mrb[0].mxu0 %v4232
      %v4417 = vpop.f32.mrb[0].mxu0
      %v4418 = vadd.f32 0.0, %v4417
      %v4419 = vpop.f32.mrb[0].mxu0
      %v4420 = vpop.f32.mrb[0].mxu0
      %v4421 = vadd.f32 0.0, %v4420
      %v4422 = vpop.f32.mrb[0].mxu0
      %4423 = vmatprep.mubr.bf16.mxu0 0
      %4424 = vmatmul.mubr.bf16.gmra.mrb[0].mxu0 %v4235
      %v4425 = vpop.f32.mrb[0].mxu0
      %v4426 = vadd.f32 0.0, %v4425
      %v4427 = vpop.f32.mrb[0].mxu0
      %v4428 = vpop.f32.mrb[0].mxu0
      %v4429 = vadd.f32 0.0, %v4428
      %v4430 = vpop.f32.mrb[0].mxu0
      %4431 = vmatprep.mubr.bf16.mxu0 0
      %4432 = vmatmul.mubr.bf16.gmra.mrb[0].mxu0 %v4238
      %v4433 = vpop.f32.mrb[0].mxu0
      %v4434 = vadd.f32 0.0, %v4433
      %v4435 = vpop.f32.mrb[0].mxu0
      %v4436 = vpop.f32.mrb[0].mxu0
      %v4437 = vadd.f32 0.0, %v4436
      %v4438 = vpop.f32.mrb[0].mxu0
      %4439 = vmatprep.mubr.bf16.mxu0 0
      %4440 = vmatmul.mubr.bf16.gmra.mrb[0].mxu0 %v4241
      %v4441 = vpop.f32.mrb[0].mxu0
      %v4442 = vadd.f32 0.0, %v4441
      %v4443 = vpop.f32.mrb[0].mxu0
      %v4444 = vpop.f32.mrb[0].mxu0
      %v4445 = vadd.f32 0.0, %v4444
      %v4446 = vpop.f32.mrb[0].mxu0
      %4447 = vmatprep.mubr.bf16.mxu0 0
      %4448 = vmatmul.mubr.bf16.gmra.mrb[0].mxu0 %v4244
      %v4449 = vpop.f32.mrb[0].mxu0
      %v4450 = vadd.f32 0.0, %v4449
      %v4451 = vpop.f32.mrb[0].mxu0
      %v4452 = vpop.f32.mrb[0].mxu0
      %v4453 = vadd.f32 0.0, %v4452
      %v4454 = vpop.f32.mrb[0].mxu0
      %4455 = vmatprep.mubr.bf16.mxu0 0
      %4456 = vmatmul.mubr.bf16.gmra.mrb[0].mxu0 %v4247
      %v4457 = vpop.f32.mrb[0].mxu0
      %v4458 = vadd.f32 0.0, %v4457
      %v4459 = vpop.f32.mrb[0].mxu0
      %v4460 = vpop.f32.mrb[0].mxu0
      %v4461 = vadd.f32 0.0, %v4460
      %v4462 = vpop.f32.mrb[0].mxu0
      %4463 = vmatprep.mubr.bf16.mxu0 0
      %4464 = vmatmul.mubr.bf16.gmra.mrb[0].mxu0 %v4250
      %v4465 = vpop.f32.mrb[0].mxu0
      %v4466 = vadd.f32 0.0, %v4465
      %v4467 = vpop.f32.mrb[0].mxu0
      %v4468 = vpop.f32.mrb[0].mxu0
      %v4469 = vadd.f32 0.0, %v4468
      %v4470 = vpop.f32.mrb[0].mxu0
      %4471 = vmatprep.mubr.bf16.mxu0 0
      %4472 = vmatmul.mubr.bf16.gmra.mrb[0].mxu0 %v4253
      %v4473 = vpop.f32.mrb[0].mxu0
      %v4474 = vadd.f32 0.0, %v4473
      %v4475 = vpop.f32.mrb[0].mxu0
      %v4476 = vpop.f32.mrb[0].mxu0
      %v4477 = vadd.f32 0.0, %v4476
      %v4478 = vpop.f32.mrb[0].mxu0
      %4479 = vdwg.mxu0
      %v4488 = vunpack.c.l.b16 %v4093
      %v4489 = vunpack.c.l.b16 %v4094
      %v4490 = vunpack.c.l.b16 %v4095
      %v4491 = vunpack.c.l.b16 %v4096
      %v4492 = vunpack.c.l.b16 %v4097
      %v4493 = vunpack.c.l.b16 %v4098
      %v4494 = vunpack.c.l.b16 %v4099
      %v4495 = vunpack.c.l.b16 %v4100
      %v4496 = vpack.c.b16 %v4489, %v4488
      %v4497 = vpack.c.b16 %v4491, %v4490
      %v4498 = vpack.c.b16 %v4493, %v4492
      %v4499 = vpack.c.b16 %v4495, %v4494
      %v4505 = vsel %vm828, %v4054, 0
      %v4508 = vsel %vm828, %v4055, 0
      %v4511 = vsel %vm828, %v4056, 0
      %v4514 = vsel %vm828, %v4057, 0
      %v4517 = vsel %vm828, %v4058, 0
      %v4520 = vsel %vm828, %v4059, 0
      %v4523 = vsel %vm828, %v4060, 0
      %v4526 = vsel %vm828, %v4061, 0
      %v4529 = vsel %vm828, %v4062, 0
      %v4532 = vsel %vm828, %v4063, 0
      %v4535 = vsel %vm828, %v4064, 0
      %v4538 = vsel %vm828, %v4065, 0
      %v4541 = vsel %vm828, %v4066, 0
      %v4544 = vsel %vm828, %v4067, 0
      %v4547 = vsel %vm828, %v4068, 0
      %v4550 = vsel %vm828, %v4069, 0
      %v4553 = vsel %vm828, %v4070, 0
      %v4556 = vsel %vm828, %v4071, 0
      %v4559 = vsel %vm828, %v4072, 0
      %v4562 = vsel %vm828, %v4073, 0
      %v4565 = vsel %vm828, %v4074, 0
      %v4568 = vsel %vm828, %v4075, 0
      %v4571 = vsel %vm828, %v4076, 0
      %v4574 = vsel %vm828, %v4077, 0
      %4576 = vmatprep.subr.bf16.mxu0 0
      %4577 = vmatpush1.bf16.msra.mxu0 %v4496
      %4578 = vmatprep.subr.bf16.mxu0 0
      %4579 = vmatpush1.bf16.msra.mxu0 %v4497
      %4580 = vmatprep.subr.bf16.mxu0 0
      %4581 = vmatpush1.bf16.msra.mxu0 %v4498
      %4582 = vmatprep.subr.bf16.mxu0 0
      %4583 = vmatpush1.bf16.msra.mxu0 %v4499
      %4584 = vmatprep.subr.bf16.mxu0 0
      %4585 = vmatpush1.bf16.msra.mxu0 0
      %4586 = vmatprep.subr.bf16.mxu0 0
      %4587 = vmatpush1.bf16.msra.mxu0 0
      %4588 = vmatprep.subr.bf16.mxu0 0
      %4589 = vmatpush1.bf16.msra.mxu0 0
      %4590 = vmatprep.subr.bf16.mxu0 0
      %4591 = vmatpush1.bf16.msra.mxu0 0
      %4592 = vmatprep.subr.bf16.mxu0 0
      %4593 = vmatpush1.bf16.msra.mxu0 0
      %4594 = vmatprep.subr.bf16.mxu0 0
      %4595 = vmatpush1.bf16.msra.mxu0 0
      %4596 = vmatprep.subr.bf16.mxu0 0
      %4597 = vmatpush1.bf16.msra.mxu0 0
      %4598 = vmatprep.subr.bf16.mxu0 0
      %4599 = vmatpush1.bf16.msra.mxu0 0
      %4600 = vmatprep.subr.bf16.mxu0 0
      %4601 = vmatpush1.bf16.msra.mxu0 0
      %4602 = vmatprep.subr.bf16.mxu0 0
      %4603 = vmatpush1.bf16.msra.mxu0 0
      %4604 = vmatprep.subr.bf16.mxu0 0
      %4605 = vmatpush1.bf16.msra.mxu0 0
      %4606 = vmatprep.subr.bf16.mxu0 0
      %4607 = vmatpush1.bf16.msra.mxu0 0
      %4608 = vmatprep.mubr.bf16.mxu0 0
      %4609 = vmatmul.mubr.bf16.gmra.mrb[0].mxu0 %v4505
      %v4610 = vpop.f32.mrb[0].mxu0
      %v4611 = vadd.f32 %v4290, %v4610
      %v4612 = vpop.f32.mrb[0].mxu0
      %v4613 = vpop.f32.mrb[0].mxu0
      %v4614 = vadd.f32 %v4293, %v4613
      %v4615 = vpop.f32.mrb[0].mxu0
      %4616 = vmatprep.mubr.bf16.mxu0 0
      %4617 = vmatmul.mubr.bf16.gmra.mrb[0].mxu0 %v4508
      %v4618 = vpop.f32.mrb[0].mxu0
      %v4619 = vadd.f32 %v4298, %v4618
      %v4620 = vpop.f32.mrb[0].mxu0
      %v4621 = vpop.f32.mrb[0].mxu0
      %v4622 = vadd.f32 %v4301, %v4621
      %v4623 = vpop.f32.mrb[0].mxu0
      %4624 = vmatprep.mubr.bf16.mxu0 0
      %4625 = vmatmul.mubr.bf16.gmra.mrb[0].mxu0 %v4511
      %v4626 = vpop.f32.mrb[0].mxu0
      %v4627 = vadd.f32 %v4306, %v4626
      %v4628 = vpop.f32.mrb[0].mxu0
      %v4629 = vpop.f32.mrb[0].mxu0
      %v4630 = vadd.f32 %v4309, %v4629
      %v4631 = vpop.f32.mrb[0].mxu0
      %4632 = vmatprep.mubr.bf16.mxu0 0
      %4633 = vmatmul.mubr.bf16.gmra.mrb[0].mxu0 %v4514
      %v4634 = vpop.f32.mrb[0].mxu0
      %v4635 = vadd.f32 %v4314, %v4634
      %v4636 = vpop.f32.mrb[0].mxu0
      %v4637 = vpop.f32.mrb[0].mxu0
      %v4638 = vadd.f32 %v4317, %v4637
      %v4639 = vpop.f32.mrb[0].mxu0
      %4640 = vmatprep.mubr.bf16.mxu0 0
      %4641 = vmatmul.mubr.bf16.gmra.mrb[0].mxu0 %v4517
      %v4642 = vpop.f32.mrb[0].mxu0
      %v4643 = vadd.f32 %v4322, %v4642
      %v4644 = vpop.f32.mrb[0].mxu0
      %v4645 = vpop.f32.mrb[0].mxu0
      %v4646 = vadd.f32 %v4325, %v4645
      %v4647 = vpop.f32.mrb[0].mxu0
      %4648 = vmatprep.mubr.bf16.mxu0 0
      %4649 = vmatmul.mubr.bf16.gmra.mrb[0].mxu0 %v4520
      %v4650 = vpop.f32.mrb[0].mxu0
      %v4651 = vadd.f32 %v4330, %v4650
      %v4652 = vpop.f32.mrb[0].mxu0
      %v4653 = vpop.f32.mrb[0].mxu0
      %v4654 = vadd.f32 %v4333, %v4653
      %v4655 = vpop.f32.mrb[0].mxu0
      %4656 = vmatprep.mubr.bf16.mxu0 0
      %4657 = vmatmul.mubr.bf16.gmra.mrb[0].mxu0 %v4523
      %v4658 = vpop.f32.mrb[0].mxu0
      %v4659 = vadd.f32 %v4338, %v4658
      %v4660 = vpop.f32.mrb[0].mxu0
      %v4661 = vpop.f32.mrb[0].mxu0
      %v4662 = vadd.f32 %v4341, %v4661
      %v4663 = vpop.f32.mrb[0].mxu0
      %4664 = vmatprep.mubr.bf16.mxu0 0
      %4665 = vmatmul.mubr.bf16.gmra.mrb[0].mxu0 %v4526
      %v4666 = vpop.f32.mrb[0].mxu0
      %v4667 = vadd.f32 %v4346, %v4666
      %v4668 = vpop.f32.mrb[0].mxu0
      %v4669 = vpop.f32.mrb[0].mxu0
      %v4670 = vadd.f32 %v4349, %v4669
      %v4671 = vpop.f32.mrb[0].mxu0
      %4672 = vmatprep.mubr.bf16.mxu0 0
      %4673 = vmatmul.mubr.bf16.gmra.mrb[0].mxu0 %v4529
      %v4674 = vpop.f32.mrb[0].mxu0
      %v4675 = vadd.f32 %v4354, %v4674
      %v4676 = vpop.f32.mrb[0].mxu0
      %v4677 = vpop.f32.mrb[0].mxu0
      %v4678 = vadd.f32 %v4357, %v4677
      %v4679 = vpop.f32.mrb[0].mxu0
      %4680 = vmatprep.mubr.bf16.mxu0 0
      %4681 = vmatmul.mubr.bf16.gmra.mrb[0].mxu0 %v4532
      %v4682 = vpop.f32.mrb[0].mxu0
      %v4683 = vadd.f32 %v4362, %v4682
      %v4684 = vpop.f32.mrb[0].mxu0
      %v4685 = vpop.f32.mrb[0].mxu0
      %v4686 = vadd.f32 %v4365, %v4685
      %v4687 = vpop.f32.mrb[0].mxu0
      %4688 = vmatprep.mubr.bf16.mxu0 0
      %4689 = vmatmul.mubr.bf16.gmra.mrb[0].mxu0 %v4535
      %v4690 = vpop.f32.mrb[0].mxu0
      %v4691 = vadd.f32 %v4370, %v4690
      %v4692 = vpop.f32.mrb[0].mxu0
      %v4693 = vpop.f32.mrb[0].mxu0
      %v4694 = vadd.f32 %v4373, %v4693
      %v4695 = vpop.f32.mrb[0].mxu0
      %4696 = vmatprep.mubr.bf16.mxu0 0
      %4697 = vmatmul.mubr.bf16.gmra.mrb[0].mxu0 %v4538
      %v4698 = vpop.f32.mrb[0].mxu0
      %v4699 = vadd.f32 %v4378, %v4698
      %v4700 = vpop.f32.mrb[0].mxu0
      %v4701 = vpop.f32.mrb[0].mxu0
      %v4702 = vadd.f32 %v4381, %v4701
      %v4703 = vpop.f32.mrb[0].mxu0
      %4704 = vmatprep.mubr.bf16.mxu0 0
      %4705 = vmatmul.mubr.bf16.gmra.mrb[0].mxu0 %v4541
      %v4706 = vpop.f32.mrb[0].mxu0
      %v4707 = vadd.f32 %v4386, %v4706
      %v4708 = vpop.f32.mrb[0].mxu0
      %v4709 = vpop.f32.mrb[0].mxu0
      %v4710 = vadd.f32 %v4389, %v4709
      %v4711 = vpop.f32.mrb[0].mxu0
      %4712 = vmatprep.mubr.bf16.mxu0 0
      %4713 = vmatmul.mubr.bf16.gmra.mrb[0].mxu0 %v4544
      %v4714 = vpop.f32.mrb[0].mxu0
      %v4715 = vadd.f32 %v4394, %v4714
      %v4716 = vpop.f32.mrb[0].mxu0
      %v4717 = vpop.f32.mrb[0].mxu0
      %v4718 = vadd.f32 %v4397, %v4717
      %v4719 = vpop.f32.mrb[0].mxu0
      %4720 = vmatprep.mubr.bf16.mxu0 0
      %4721 = vmatmul.mubr.bf16.gmra.mrb[0].mxu0 %v4547
      %v4722 = vpop.f32.mrb[0].mxu0
      %v4723 = vadd.f32 %v4402, %v4722
      %v4724 = vpop.f32.mrb[0].mxu0
      %v4725 = vpop.f32.mrb[0].mxu0
      %v4726 = vadd.f32 %v4405, %v4725
      %v4727 = vpop.f32.mrb[0].mxu0
      %4728 = vmatprep.mubr.bf16.mxu0 0
      %4729 = vmatmul.mubr.bf16.gmra.mrb[0].mxu0 %v4550
      %v4730 = vpop.f32.mrb[0].mxu0
      %v4731 = vadd.f32 %v4410, %v4730
      %v4732 = vpop.f32.mrb[0].mxu0
      %v4733 = vpop.f32.mrb[0].mxu0
      %v4734 = vadd.f32 %v4413, %v4733
      %v4735 = vpop.f32.mrb[0].mxu0
      %4736 = vmatprep.mubr.bf16.mxu0 0
      %4737 = vmatmul.mubr.bf16.gmra.mrb[0].mxu0 %v4553
      %v4738 = vpop.f32.mrb[0].mxu0
      %v4739 = vadd.f32 %v4418, %v4738
      %v4740 = vpop.f32.mrb[0].mxu0
      %v4741 = vpop.f32.mrb[0].mxu0
      %v4742 = vadd.f32 %v4421, %v4741
      %v4743 = vpop.f32.mrb[0].mxu0
      %4744 = vmatprep.mubr.bf16.mxu0 0
      %4745 = vmatmul.mubr.bf16.gmra.mrb[0].mxu0 %v4556
      %v4746 = vpop.f32.mrb[0].mxu0
      %v4747 = vadd.f32 %v4426, %v4746
      %v4748 = vpop.f32.mrb[0].mxu0
      %v4749 = vpop.f32.mrb[0].mxu0
      %v4750 = vadd.f32 %v4429, %v4749
      %v4751 = vpop.f32.mrb[0].mxu0
      %4752 = vmatprep.mubr.bf16.mxu0 0
      %4753 = vmatmul.mubr.bf16.gmra.mrb[0].mxu0 %v4559
      %v4754 = vpop.f32.mrb[0].mxu0
      %v4755 = vadd.f32 %v4434, %v4754
      %v4756 = vpop.f32.mrb[0].mxu0
      %v4757 = vpop.f32.mrb[0].mxu0
      %v4758 = vadd.f32 %v4437, %v4757
      %v4759 = vpop.f32.mrb[0].mxu0
      %4760 = vmatprep.mubr.bf16.mxu0 0
      %4761 = vmatmul.mubr.bf16.gmra.mrb[0].mxu0 %v4562
      %v4762 = vpop.f32.mrb[0].mxu0
      %v4763 = vadd.f32 %v4442, %v4762
      %v4764 = vpop.f32.mrb[0].mxu0
      %v4765 = vpop.f32.mrb[0].mxu0
      %v4766 = vadd.f32 %v4445, %v4765
      %v4767 = vpop.f32.mrb[0].mxu0
      %4768 = vmatprep.mubr.bf16.mxu0 0
      %4769 = vmatmul.mubr.bf16.gmra.mrb[0].mxu0 %v4565
      %v4770 = vpop.f32.mrb[0].mxu0
      %v4771 = vadd.f32 %v4450, %v4770
      %v4772 = vpop.f32.mrb[0].mxu0
      %v4773 = vpop.f32.mrb[0].mxu0
      %v4774 = vadd.f32 %v4453, %v4773
      %v4775 = vpop.f32.mrb[0].mxu0
      %4776 = vmatprep.mubr.bf16.mxu0 0
      %4777 = vmatmul.mubr.bf16.gmra.mrb[0].mxu0 %v4568
      %v4778 = vpop.f32.mrb[0].mxu0
      %v4779 = vadd.f32 %v4458, %v4778
      %v4780 = vpop.f32.mrb[0].mxu0
      %v4781 = vpop.f32.mrb[0].mxu0
      %v4782 = vadd.f32 %v4461, %v4781
      %v4783 = vpop.f32.mrb[0].mxu0
      %4784 = vmatprep.mubr.bf16.mxu0 0
      %4785 = vmatmul.mubr.bf16.gmra.mrb[0].mxu0 %v4571
      %v4786 = vpop.f32.mrb[0].mxu0
      %v4787 = vadd.f32 %v4466, %v4786
      %v4788 = vpop.f32.mrb[0].mxu0
      %v4789 = vpop.f32.mrb[0].mxu0
      %v4790 = vadd.f32 %v4469, %v4789
      %v4791 = vpop.f32.mrb[0].mxu0
      %4792 = vmatprep.mubr.bf16.mxu0 0
      %4793 = vmatmul.mubr.bf16.gmra.mrb[0].mxu0 %v4574
      %v4794 = vpop.f32.mrb[0].mxu0
      %v4795 = vadd.f32 %v4474, %v4794
      %v4796 = vpop.f32.mrb[0].mxu0
      %v4797 = vpop.f32.mrb[0].mxu0
      %v4798 = vadd.f32 %v4477, %v4797
      %v4799 = vpop.f32.mrb[0].mxu0
      %4800 = vdwg.mxu0
      %s4801 = scalar_lea.vmem %s5, 192
      %v4802 = vld [vmem:[%s4801] sm:$0xf]
      %v4803 = vld [vmem:[%s4801 + $0x4] sm:$0xf]
      %v4804 = vld [vmem:[%s4801 + $0x8] sm:$0xf]
      %v4805 = vld [vmem:[%s4801 + $0xc] sm:$0xf]
      %v4806 = vld [vmem:[%s4801 + $0x10] sm:$0xf]
      %v4807 = vld [vmem:[%s4801 + $0x14] sm:$0xf]
      %v4808 = vld [vmem:[%s4801 + $0x18] sm:$0xf]
      %v4809 = vld [vmem:[%s4801 + $0x1c] sm:$0xf]
      %v4818 = vunpack.c.l.b16 %v4802
      %v4819 = vunpack.c.l.b16 %v4803
      %v4820 = vunpack.c.l.b16 %v4804
      %v4821 = vunpack.c.l.b16 %v4805
      %v4822 = vunpack.c.l.b16 %v4806
      %v4823 = vunpack.c.l.b16 %v4807
      %v4824 = vunpack.c.l.b16 %v4808
      %v4825 = vunpack.c.l.b16 %v4809
      %v4826 = vpack.c.b16 %v4819, %v4818
      %v4827 = vpack.c.b16 %v4821, %v4820
      %v4828 = vpack.c.b16 %v4823, %v4822
      %v4829 = vpack.c.b16 %v4825, %v4824
      %v4835 = vsel %vm828, %v4090, 0
      %v4838 = vsel %vm828, %v4091, 0
      %v4841 = vsel %vm828, %v4092, 0
      %4843 = vmatprep.subr.bf16.mxu0 0
      %4844 = vmatpush1.bf16.msra.mxu0 %v4826
      %4845 = vmatprep.subr.bf16.mxu0 0
      %4846 = vmatpush1.bf16.msra.mxu0 %v4827
      %4847 = vmatprep.subr.bf16.mxu0 0
      %4848 = vmatpush1.bf16.msra.mxu0 %v4828
      %4849 = vmatprep.subr.bf16.mxu0 0
      %4850 = vmatpush1.bf16.msra.mxu0 %v4829
      %4851 = vmatprep.subr.bf16.mxu0 0
      %4852 = vmatpush1.bf16.msra.mxu0 0
      %4853 = vmatprep.subr.bf16.mxu0 0
      %4854 = vmatpush1.bf16.msra.mxu0 0
      %4855 = vmatprep.subr.bf16.mxu0 0
      %4856 = vmatpush1.bf16.msra.mxu0 0
      %4857 = vmatprep.subr.bf16.mxu0 0
      %4858 = vmatpush1.bf16.msra.mxu0 0
      %4859 = vmatprep.subr.bf16.mxu0 0
      %4860 = vmatpush1.bf16.msra.mxu0 0
      %4861 = vmatprep.subr.bf16.mxu0 0
      %4862 = vmatpush1.bf16.msra.mxu0 0
      %4863 = vmatprep.subr.bf16.mxu0 0
      %4864 = vmatpush1.bf16.msra.mxu0 0
      %4865 = vmatprep.subr.bf16.mxu0 0
      %4866 = vmatpush1.bf16.msra.mxu0 0
      %4867 = vmatprep.subr.bf16.mxu0 0
      %4868 = vmatpush1.bf16.msra.mxu0 0
      %4869 = vmatprep.subr.bf16.mxu0 0
      %4870 = vmatpush1.bf16.msra.mxu0 0
      %4871 = vmatprep.subr.bf16.mxu0 0
      %4872 = vmatpush1.bf16.msra.mxu0 0
      %4873 = vmatprep.subr.bf16.mxu0 0
      %4874 = vmatpush1.bf16.msra.mxu0 0
      %4875 = vmatprep.mubr.bf16.mxu0 0
      %4876 = vmatmul.mubr.bf16.gmra.mrb[0].mxu0 %v4514
      %v4877 = vpop.f32.mrb[0].mxu0
      %v4878 = vadd.f32 0.0, %v4877
      %v4879 = vpop.f32.mrb[0].mxu0
      %v4880 = vpop.f32.mrb[0].mxu0
      %v4881 = vadd.f32 0.0, %v4880
      %v4882 = vpop.f32.mrb[0].mxu0
      %4883 = vmatprep.mubr.bf16.mxu0 0
      %4884 = vmatmul.mubr.bf16.gmra.mrb[0].mxu0 %v4517
      %v4885 = vpop.f32.mrb[0].mxu0
      %v4886 = vadd.f32 0.0, %v4885
      %v4887 = vpop.f32.mrb[0].mxu0
      %v4888 = vpop.f32.mrb[0].mxu0
      %v4889 = vadd.f32 0.0, %v4888
      %v4890 = vpop.f32.mrb[0].mxu0
      %4891 = vmatprep.mubr.bf16.mxu0 0
      %4892 = vmatmul.mubr.bf16.gmra.mrb[0].mxu0 %v4520
      %v4893 = vpop.f32.mrb[0].mxu0
      %v4894 = vadd.f32 0.0, %v4893
      %v4895 = vpop.f32.mrb[0].mxu0
      %v4896 = vpop.f32.mrb[0].mxu0
      %v4897 = vadd.f32 0.0, %v4896
      %v4898 = vpop.f32.mrb[0].mxu0
      %4899 = vmatprep.mubr.bf16.mxu0 0
      %4900 = vmatmul.mubr.bf16.gmra.mrb[0].mxu0 %v4523
      %v4901 = vpop.f32.mrb[0].mxu0
      %v4902 = vadd.f32 0.0, %v4901
      %v4903 = vpop.f32.mrb[0].mxu0
      %v4904 = vpop.f32.mrb[0].mxu0
      %v4905 = vadd.f32 0.0, %v4904
      %v4906 = vpop.f32.mrb[0].mxu0
      %4907 = vmatprep.mubr.bf16.mxu0 0
      %4908 = vmatmul.mubr.bf16.gmra.mrb[0].mxu0 %v4526
      %v4909 = vpop.f32.mrb[0].mxu0
      %v4910 = vadd.f32 0.0, %v4909
      %v4911 = vpop.f32.mrb[0].mxu0
      %v4912 = vpop.f32.mrb[0].mxu0
      %v4913 = vadd.f32 0.0, %v4912
      %v4914 = vpop.f32.mrb[0].mxu0
      %4915 = vmatprep.mubr.bf16.mxu0 0
      %4916 = vmatmul.mubr.bf16.gmra.mrb[0].mxu0 %v4529
      %v4917 = vpop.f32.mrb[0].mxu0
      %v4918 = vadd.f32 0.0, %v4917
      %v4919 = vpop.f32.mrb[0].mxu0
      %v4920 = vpop.f32.mrb[0].mxu0
      %v4921 = vadd.f32 0.0, %v4920
      %v4922 = vpop.f32.mrb[0].mxu0
      %4923 = vmatprep.mubr.bf16.mxu0 0
      %4924 = vmatmul.mubr.bf16.gmra.mrb[0].mxu0 %v4532
      %v4925 = vpop.f32.mrb[0].mxu0
      %v4926 = vadd.f32 0.0, %v4925
      %v4927 = vpop.f32.mrb[0].mxu0
      %v4928 = vpop.f32.mrb[0].mxu0
      %v4929 = vadd.f32 0.0, %v4928
      %v4930 = vpop.f32.mrb[0].mxu0
      %4931 = vmatprep.mubr.bf16.mxu0 0
      %4932 = vmatmul.mubr.bf16.gmra.mrb[0].mxu0 %v4535
      %v4933 = vpop.f32.mrb[0].mxu0
      %v4934 = vadd.f32 0.0, %v4933
      %v4935 = vpop.f32.mrb[0].mxu0
      %v4936 = vpop.f32.mrb[0].mxu0
      %v4937 = vadd.f32 0.0, %v4936
      %v4938 = vpop.f32.mrb[0].mxu0
      %4939 = vmatprep.mubr.bf16.mxu0 0
      %4940 = vmatmul.mubr.bf16.gmra.mrb[0].mxu0 %v4538
      %v4941 = vpop.f32.mrb[0].mxu0
      %v4942 = vadd.f32 0.0, %v4941
      %v4943 = vpop.f32.mrb[0].mxu0
      %v4944 = vpop.f32.mrb[0].mxu0
      %v4945 = vadd.f32 0.0, %v4944
      %v4946 = vpop.f32.mrb[0].mxu0
      %4947 = vmatprep.mubr.bf16.mxu0 0
      %4948 = vmatmul.mubr.bf16.gmra.mrb[0].mxu0 %v4541
      %v4949 = vpop.f32.mrb[0].mxu0
      %v4950 = vadd.f32 0.0, %v4949
      %v4951 = vpop.f32.mrb[0].mxu0
      %v4952 = vpop.f32.mrb[0].mxu0
      %v4953 = vadd.f32 0.0, %v4952
      %v4954 = vpop.f32.mrb[0].mxu0
      %4955 = vmatprep.mubr.bf16.mxu0 0
      %4956 = vmatmul.mubr.bf16.gmra.mrb[0].mxu0 %v4544
      %v4957 = vpop.f32.mrb[0].mxu0
      %v4958 = vadd.f32 0.0, %v4957
      %v4959 = vpop.f32.mrb[0].mxu0
      %v4960 = vpop.f32.mrb[0].mxu0
      %v4961 = vadd.f32 0.0, %v4960
      %v4962 = vpop.f32.mrb[0].mxu0
      %4963 = vmatprep.mubr.bf16.mxu0 0
      %4964 = vmatmul.mubr.bf16.gmra.mrb[0].mxu0 %v4547
      %v4965 = vpop.f32.mrb[0].mxu0
      %v4966 = vadd.f32 0.0, %v4965
      %v4967 = vpop.f32.mrb[0].mxu0
      %v4968 = vpop.f32.mrb[0].mxu0
      %v4969 = vadd.f32 0.0, %v4968
      %v4970 = vpop.f32.mrb[0].mxu0
      %4971 = vmatprep.mubr.bf16.mxu0 0
      %4972 = vmatmul.mubr.bf16.gmra.mrb[0].mxu0 %v4550
      %v4973 = vpop.f32.mrb[0].mxu0
      %v4974 = vadd.f32 0.0, %v4973
      %v4975 = vpop.f32.mrb[0].mxu0
      %v4976 = vpop.f32.mrb[0].mxu0
      %v4977 = vadd.f32 0.0, %v4976
      %v4978 = vpop.f32.mrb[0].mxu0
      %4979 = vmatprep.mubr.bf16.mxu0 0
      %4980 = vmatmul.mubr.bf16.gmra.mrb[0].mxu0 %v4553
      %v4981 = vpop.f32.mrb[0].mxu0
      %v4982 = vadd.f32 0.0, %v4981
      %v4983 = vpop.f32.mrb[0].mxu0
      %v4984 = vpop.f32.mrb[0].mxu0
      %v4985 = vadd.f32 0.0, %v4984
      %v4986 = vpop.f32.mrb[0].mxu0
      %4987 = vmatprep.mubr.bf16.mxu0 0
      %4988 = vmatmul.mubr.bf16.gmra.mrb[0].mxu0 %v4556
      %v4989 = vpop.f32.mrb[0].mxu0
      %v4990 = vadd.f32 0.0, %v4989
      %v4991 = vpop.f32.mrb[0].mxu0
      %v4992 = vpop.f32.mrb[0].mxu0
      %v4993 = vadd.f32 0.0, %v4992
      %v4994 = vpop.f32.mrb[0].mxu0
      %4995 = vmatprep.mubr.bf16.mxu0 0
      %4996 = vmatmul.mubr.bf16.gmra.mrb[0].mxu0 %v4559
      %v4997 = vpop.f32.mrb[0].mxu0
      %v4998 = vadd.f32 0.0, %v4997
      %v4999 = vpop.f32.mrb[0].mxu0
      %v5000 = vpop.f32.mrb[0].mxu0
      %v5001 = vadd.f32 0.0, %v5000
      %v5002 = vpop.f32.mrb[0].mxu0
      %5003 = vmatprep.mubr.bf16.mxu0 0
      %5004 = vmatmul.mubr.bf16.gmra.mrb[0].mxu0 %v4562
      %v5005 = vpop.f32.mrb[0].mxu0
      %v5006 = vadd.f32 0.0, %v5005
      %v5007 = vpop.f32.mrb[0].mxu0
      %v5008 = vpop.f32.mrb[0].mxu0
      %v5009 = vadd.f32 0.0, %v5008
      %v5010 = vpop.f32.mrb[0].mxu0
      %5011 = vmatprep.mubr.bf16.mxu0 0
      %5012 = vmatmul.mubr.bf16.gmra.mrb[0].mxu0 %v4565
      %v5013 = vpop.f32.mrb[0].mxu0
      %v5014 = vadd.f32 0.0, %v5013
      %v5015 = vpop.f32.mrb[0].mxu0
      %v5016 = vpop.f32.mrb[0].mxu0
      %v5017 = vadd.f32 0.0, %v5016
      %v5018 = vpop.f32.mrb[0].mxu0
      %5019 = vmatprep.mubr.bf16.mxu0 0
      %5020 = vmatmul.mubr.bf16.gmra.mrb[0].mxu0 %v4568
      %v5021 = vpop.f32.mrb[0].mxu0
      %v5022 = vadd.f32 0.0, %v5021
      %v5023 = vpop.f32.mrb[0].mxu0
      %v5024 = vpop.f32.mrb[0].mxu0
      %v5025 = vadd.f32 0.0, %v5024
      %v5026 = vpop.f32.mrb[0].mxu0
      %5027 = vmatprep.mubr.bf16.mxu0 0
      %5028 = vmatmul.mubr.bf16.gmra.mrb[0].mxu0 %v4571
      %v5029 = vpop.f32.mrb[0].mxu0
      %v5030 = vadd.f32 0.0, %v5029
      %v5031 = vpop.f32.mrb[0].mxu0
      %v5032 = vpop.f32.mrb[0].mxu0
      %v5033 = vadd.f32 0.0, %v5032
      %v5034 = vpop.f32.mrb[0].mxu0
      %5035 = vmatprep.mubr.bf16.mxu0 0
      %5036 = vmatmul.mubr.bf16.gmra.mrb[0].mxu0 %v4574
      %v5037 = vpop.f32.mrb[0].mxu0
      %v5038 = vadd.f32 0.0, %v5037
      %v5039 = vpop.f32.mrb[0].mxu0
      %v5040 = vpop.f32.mrb[0].mxu0
      %v5041 = vadd.f32 0.0, %v5040
      %v5042 = vpop.f32.mrb[0].mxu0
      %5043 = vmatprep.mubr.bf16.mxu0 0
      %5044 = vmatmul.mubr.bf16.gmra.mrb[0].mxu0 %v4835
      %v5045 = vpop.f32.mrb[0].mxu0
      %v5046 = vadd.f32 0.0, %v5045
      %v5047 = vpop.f32.mrb[0].mxu0
      %v5048 = vpop.f32.mrb[0].mxu0
      %v5049 = vadd.f32 0.0, %v5048
      %v5050 = vpop.f32.mrb[0].mxu0
      %5051 = vmatprep.mubr.bf16.mxu0 0
      %5052 = vmatmul.mubr.bf16.gmra.mrb[0].mxu0 %v4838
      %v5053 = vpop.f32.mrb[0].mxu0
      %v5054 = vadd.f32 0.0, %v5053
      %v5055 = vpop.f32.mrb[0].mxu0
      %v5056 = vpop.f32.mrb[0].mxu0
      %v5057 = vadd.f32 0.0, %v5056
      %v5058 = vpop.f32.mrb[0].mxu0
      %5059 = vmatprep.mubr.bf16.mxu0 0
      %5060 = vmatmul.mubr.bf16.gmra.mrb[0].mxu0 %v4841
      %v5061 = vpop.f32.mrb[0].mxu0
      %v5062 = vadd.f32 0.0, %v5061
      %v5063 = vpop.f32.mrb[0].mxu0
      %v5064 = vpop.f32.mrb[0].mxu0
      %v5065 = vadd.f32 0.0, %v5064
      %v5066 = vpop.f32.mrb[0].mxu0
      %5067 = vdwg.mxu0
      %v5068 = vadd.f32 %v4611, %v4878
      %v5069 = vadd.f32 %v4614, %v4881
      %v5070 = vadd.f32 %v4619, %v4886
      %v5071 = vadd.f32 %v4622, %v4889
      %v5072 = vadd.f32 %v4627, %v4894
      %v5073 = vadd.f32 %v4630, %v4897
      %v5074 = vadd.f32 %v4635, %v4902
      %v5075 = vadd.f32 %v4638, %v4905
      %v5076 = vadd.f32 %v4643, %v4910
      %v5077 = vadd.f32 %v4646, %v4913
      %v5078 = vadd.f32 %v4651, %v4918
      %v5079 = vadd.f32 %v4654, %v4921
      %v5080 = vadd.f32 %v4659, %v4926
      %v5081 = vadd.f32 %v4662, %v4929
      %v5082 = vadd.f32 %v4667, %v4934
      %v5083 = vadd.f32 %v4670, %v4937
      %v5084 = vadd.f32 %v4675, %v4942
      %v5085 = vadd.f32 %v4678, %v4945
      %v5086 = vadd.f32 %v4683, %v4950
      %v5087 = vadd.f32 %v4686, %v4953
      %v5088 = vadd.f32 %v4691, %v4958
      %v5089 = vadd.f32 %v4694, %v4961
      %v5090 = vadd.f32 %v4699, %v4966
      %v5091 = vadd.f32 %v4702, %v4969
      %v5092 = vadd.f32 %v4707, %v4974
      %v5093 = vadd.f32 %v4710, %v4977
      %v5094 = vadd.f32 %v4715, %v4982
      %v5095 = vadd.f32 %v4718, %v4985
      %v5096 = vadd.f32 %v4723, %v4990
      %v5097 = vadd.f32 %v4726, %v4993
      %v5098 = vadd.f32 %v4731, %v4998
      %v5099 = vadd.f32 %v4734, %v5001
      %v5100 = vadd.f32 %v4739, %v5006
      %v5101 = vadd.f32 %v4742, %v5009
      %v5102 = vadd.f32 %v4747, %v5014
      %v5103 = vadd.f32 %v4750, %v5017
      %v5104 = vadd.f32 %v4755, %v5022
      %v5105 = vadd.f32 %v4758, %v5025
      %v5106 = vadd.f32 %v4763, %v5030
      %v5107 = vadd.f32 %v4766, %v5033
      %v5108 = vadd.f32 %v4771, %v5038
      %v5109 = vadd.f32 %v4774, %v5041
      %v5110 = vadd.f32 %v4779, %v5046
      %v5111 = vadd.f32 %v4782, %v5049
      %v5112 = vadd.f32 %v4787, %v5054
      %v5113 = vadd.f32 %v4790, %v5057
      %v5114 = vadd.f32 %v4795, %v5062
      %v5115 = vadd.f32 %v4798, %v5065
      %v5116 = vadd.f32 %v3856, %v5068
      %v5117 = vadd.f32 %v3857, %v5069
      %v5118 = vadd.f32 %v3858, %v5070
      %v5119 = vadd.f32 %v3859, %v5071
      %v5120 = vadd.f32 %v3860, %v5072
      %v5121 = vadd.f32 %v3861, %v5073
      %v5122 = vadd.f32 %v3862, %v5074
      %v5123 = vadd.f32 %v3863, %v5075
      %v5124 = vadd.f32 %v3864, %v5076
      %v5125 = vadd.f32 %v3865, %v5077
      %v5126 = vadd.f32 %v3866, %v5078
      %v5127 = vadd.f32 %v3867, %v5079
      %v5128 = vadd.f32 %v3868, %v5080
      %v5129 = vadd.f32 %v3869, %v5081
      %v5130 = vadd.f32 %v3870, %v5082
      %v5131 = vadd.f32 %v3871, %v5083
      %v5132 = vadd.f32 %v3872, %v5084
      %v5133 = vadd.f32 %v3873, %v5085
      %v5134 = vadd.f32 %v3874, %v5086
      %v5135 = vadd.f32 %v3875, %v5087
      %v5136 = vadd.f32 %v3876, %v5088
      %v5137 = vadd.f32 %v3877, %v5089
      %v5138 = vadd.f32 %v3878, %v5090
      %v5139 = vadd.f32 %v3879, %v5091
      %v5140 = vadd.f32 %v3880, %v5092
      %v5141 = vadd.f32 %v3881, %v5093
      %v5142 = vadd.f32 %v3882, %v5094
      %v5143 = vadd.f32 %v3883, %v5095
      %v5144 = vadd.f32 %v3884, %v5096
      %v5145 = vadd.f32 %v3885, %v5097
      %v5146 = vadd.f32 %v3886, %v5098
      %v5147 = vadd.f32 %v3887, %v5099
      %v5148 = vadd.f32 %v3888, %v5100
      %v5149 = vadd.f32 %v3889, %v5101
      %v5150 = vadd.f32 %v3890, %v5102
      %v5151 = vadd.f32 %v3891, %v5103
      %v5152 = vadd.f32 %v3892, %v5104
      %v5153 = vadd.f32 %v3893, %v5105
      %v5154 = vadd.f32 %v3894, %v5106
      %v5155 = vadd.f32 %v3895, %v5107
      %v5156 = vadd.f32 %v3896, %v5108
      %v5157 = vadd.f32 %v3897, %v5109
      %v5158 = vadd.f32 %v3898, %v5110
      %v5159 = vadd.f32 %v3899, %v5111
      %v5160 = vadd.f32 %v3900, %v5112
      %v5161 = vadd.f32 %v3901, %v5113
      %v5162 = vadd.f32 %v3902, %v5114
      %v5163 = vadd.f32 %v3903, %v5115
      %s5164 = scalar_lea.vmem %s5, 32
      %v5165 = vld [vmem:[%s5164] sm:$0xf]
      %v5166 = vld [vmem:[%s5164 + $0x4] sm:$0xf]
      %v5167 = vld [vmem:[%s5164 + $0x8] sm:$0xf]
      %v5168 = vld [vmem:[%s5164 + $0xc] sm:$0xf]
      %v5169 = vld [vmem:[%s5164 + $0x10] sm:$0xf]
      %v5170 = vld [vmem:[%s5164 + $0x14] sm:$0xf]
      %v5171 = vld [vmem:[%s5164 + $0x18] sm:$0xf]
      %v5172 = vld [vmem:[%s5164 + $0x1c] sm:$0xf]
      %s5173 = scalar_lea.vmem %s5, 128
      %v5174 = vld [vmem:[%s5173] sm:$0xf]
      %v5175 = vld [vmem:[%s5173 + $0x4] sm:$0xf]
      %v5176 = vld [vmem:[%s5173 + $0x8] sm:$0xf]
      %v5177 = vld [vmem:[%s5173 + $0xc] sm:$0xf]
      %v5178 = vld [vmem:[%s5173 + $0x10] sm:$0xf]
      %v5179 = vld [vmem:[%s5173 + $0x14] sm:$0xf]
      %v5180 = vld [vmem:[%s5173 + $0x18] sm:$0xf]
      %v5181 = vld [vmem:[%s5173 + $0x1c] sm:$0xf]
      %v5190 = vunpack.c.l.b16 %v5174
      %v5191 = vunpack.c.l.b16 %v5175
      %v5192 = vunpack.c.l.b16 %v5176
      %v5193 = vunpack.c.l.b16 %v5177
      %v5194 = vunpack.c.l.b16 %v5178
      %v5195 = vunpack.c.l.b16 %v5179
      %v5196 = vunpack.c.l.b16 %v5180
      %v5197 = vunpack.c.l.b16 %v5181
      %v5198 = vpack.c.b16 %v5191, %v5190
      %v5199 = vpack.c.b16 %v5193, %v5192
      %v5200 = vpack.c.b16 %v5195, %v5194
      %v5201 = vpack.c.b16 %v5197, %v5196
      %5206 = vmatprep.subr.bf16.mxu0 0
      %5207 = vmatpush1.bf16.msra.mxu0 %v5198
      %5208 = vmatprep.subr.bf16.mxu0 0
      %5209 = vmatpush1.bf16.msra.mxu0 %v5199
      %5210 = vmatprep.subr.bf16.mxu0 0
      %5211 = vmatpush1.bf16.msra.mxu0 %v5200
      %5212 = vmatprep.subr.bf16.mxu0 0
      %5213 = vmatpush1.bf16.msra.mxu0 %v5201
      %5214 = vmatprep.subr.bf16.mxu0 0
      %5215 = vmatpush1.bf16.msra.mxu0 0
      %5216 = vmatprep.subr.bf16.mxu0 0
      %5217 = vmatpush1.bf16.msra.mxu0 0
      %5218 = vmatprep.subr.bf16.mxu0 0
      %5219 = vmatpush1.bf16.msra.mxu0 0
      %5220 = vmatprep.subr.bf16.mxu0 0
      %5221 = vmatpush1.bf16.msra.mxu0 0
      %5222 = vmatprep.subr.bf16.mxu0 0
      %5223 = vmatpush1.bf16.msra.mxu0 0
      %5224 = vmatprep.subr.bf16.mxu0 0
      %5225 = vmatpush1.bf16.msra.mxu0 0
      %5226 = vmatprep.subr.bf16.mxu0 0
      %5227 = vmatpush1.bf16.msra.mxu0 0
      %5228 = vmatprep.subr.bf16.mxu0 0
      %5229 = vmatpush1.bf16.msra.mxu0 0
      %5230 = vmatprep.subr.bf16.mxu0 0
      %5231 = vmatpush1.bf16.msra.mxu0 0
      %5232 = vmatprep.subr.bf16.mxu0 0
      %5233 = vmatpush1.bf16.msra.mxu0 0
      %5234 = vmatprep.subr.bf16.mxu0 0
      %5235 = vmatpush1.bf16.msra.mxu0 0
      %5236 = vmatprep.subr.bf16.mxu0 0
      %5237 = vmatpush1.bf16.msra.mxu0 0
      %5238 = vmatprep.mubr.bf16.mxu0 0
      %5239 = vmatmul.mubr.bf16.gmra.mrb[0].mxu0 %v4184
      %v5240 = vpop.f32.mrb[0].mxu0
      %v5241 = vadd.f32 0.0, %v5240
      %v5242 = vpop.f32.mrb[0].mxu0
      %v5243 = vpop.f32.mrb[0].mxu0
      %v5244 = vadd.f32 0.0, %v5243
      %v5245 = vpop.f32.mrb[0].mxu0
      %5246 = vmatprep.mubr.bf16.mxu0 0
      %5247 = vmatmul.mubr.bf16.gmra.mrb[0].mxu0 %v4187
      %v5248 = vpop.f32.mrb[0].mxu0
      %v5249 = vadd.f32 0.0, %v5248
      %v5250 = vpop.f32.mrb[0].mxu0
      %v5251 = vpop.f32.mrb[0].mxu0
      %v5252 = vadd.f32 0.0, %v5251
      %v5253 = vpop.f32.mrb[0].mxu0
      %5254 = vmatprep.mubr.bf16.mxu0 0
      %5255 = vmatmul.mubr.bf16.gmra.mrb[0].mxu0 %v4190
      %v5256 = vpop.f32.mrb[0].mxu0
      %v5257 = vadd.f32 0.0, %v5256
      %v5258 = vpop.f32.mrb[0].mxu0
      %v5259 = vpop.f32.mrb[0].mxu0
      %v5260 = vadd.f32 0.0, %v5259
      %v5261 = vpop.f32.mrb[0].mxu0
      %5262 = vmatprep.mubr.bf16.mxu0 0
      %5263 = vmatmul.mubr.bf16.gmra.mrb[0].mxu0 %v4193
      %v5264 = vpop.f32.mrb[0].mxu0
      %v5265 = vadd.f32 0.0, %v5264
      %v5266 = vpop.f32.mrb[0].mxu0
      %v5267 = vpop.f32.mrb[0].mxu0
      %v5268 = vadd.f32 0.0, %v5267
      %v5269 = vpop.f32.mrb[0].mxu0
      %5270 = vmatprep.mubr.bf16.mxu0 0
      %5271 = vmatmul.mubr.bf16.gmra.mrb[0].mxu0 %v4196
      %v5272 = vpop.f32.mrb[0].mxu0
      %v5273 = vadd.f32 0.0, %v5272
      %v5274 = vpop.f32.mrb[0].mxu0
      %v5275 = vpop.f32.mrb[0].mxu0
      %v5276 = vadd.f32 0.0, %v5275
      %v5277 = vpop.f32.mrb[0].mxu0
      %5278 = vmatprep.mubr.bf16.mxu0 0
      %5279 = vmatmul.mubr.bf16.gmra.mrb[0].mxu0 %v4199
      %v5280 = vpop.f32.mrb[0].mxu0
      %v5281 = vadd.f32 0.0, %v5280
      %v5282 = vpop.f32.mrb[0].mxu0
      %v5283 = vpop.f32.mrb[0].mxu0
      %v5284 = vadd.f32 0.0, %v5283
      %v5285 = vpop.f32.mrb[0].mxu0
      %5286 = vmatprep.mubr.bf16.mxu0 0
      %5287 = vmatmul.mubr.bf16.gmra.mrb[0].mxu0 %v4202
      %v5288 = vpop.f32.mrb[0].mxu0
      %v5289 = vadd.f32 0.0, %v5288
      %v5290 = vpop.f32.mrb[0].mxu0
      %v5291 = vpop.f32.mrb[0].mxu0
      %v5292 = vadd.f32 0.0, %v5291
      %v5293 = vpop.f32.mrb[0].mxu0
      %5294 = vmatprep.mubr.bf16.mxu0 0
      %5295 = vmatmul.mubr.bf16.gmra.mrb[0].mxu0 %v4205
      %v5296 = vpop.f32.mrb[0].mxu0
      %v5297 = vadd.f32 0.0, %v5296
      %v5298 = vpop.f32.mrb[0].mxu0
      %v5299 = vpop.f32.mrb[0].mxu0
      %v5300 = vadd.f32 0.0, %v5299
      %v5301 = vpop.f32.mrb[0].mxu0
      %5302 = vmatprep.mubr.bf16.mxu0 0
      %5303 = vmatmul.mubr.bf16.gmra.mrb[0].mxu0 %v4208
      %v5304 = vpop.f32.mrb[0].mxu0
      %v5305 = vadd.f32 0.0, %v5304
      %v5306 = vpop.f32.mrb[0].mxu0
      %v5307 = vpop.f32.mrb[0].mxu0
      %v5308 = vadd.f32 0.0, %v5307
      %v5309 = vpop.f32.mrb[0].mxu0
      %5310 = vmatprep.mubr.bf16.mxu0 0
      %5311 = vmatmul.mubr.bf16.gmra.mrb[0].mxu0 %v4211
      %v5312 = vpop.f32.mrb[0].mxu0
      %v5313 = vadd.f32 0.0, %v5312
      %v5314 = vpop.f32.mrb[0].mxu0
      %v5315 = vpop.f32.mrb[0].mxu0
      %v5316 = vadd.f32 0.0, %v5315
      %v5317 = vpop.f32.mrb[0].mxu0
      %5318 = vmatprep.mubr.bf16.mxu0 0
      %5319 = vmatmul.mubr.bf16.gmra.mrb[0].mxu0 %v4214
      %v5320 = vpop.f32.mrb[0].mxu0
      %v5321 = vadd.f32 0.0, %v5320
      %v5322 = vpop.f32.mrb[0].mxu0
      %v5323 = vpop.f32.mrb[0].mxu0
      %v5324 = vadd.f32 0.0, %v5323
      %v5325 = vpop.f32.mrb[0].mxu0
      %5326 = vmatprep.mubr.bf16.mxu0 0
      %5327 = vmatmul.mubr.bf16.gmra.mrb[0].mxu0 %v4217
      %v5328 = vpop.f32.mrb[0].mxu0
      %v5329 = vadd.f32 0.0, %v5328
      %v5330 = vpop.f32.mrb[0].mxu0
      %v5331 = vpop.f32.mrb[0].mxu0
      %v5332 = vadd.f32 0.0, %v5331
      %v5333 = vpop.f32.mrb[0].mxu0
      %5334 = vmatprep.mubr.bf16.mxu0 0
      %5335 = vmatmul.mubr.bf16.gmra.mrb[0].mxu0 %v4220
      %v5336 = vpop.f32.mrb[0].mxu0
      %v5337 = vadd.f32 0.0, %v5336
      %v5338 = vpop.f32.mrb[0].mxu0
      %v5339 = vpop.f32.mrb[0].mxu0
      %v5340 = vadd.f32 0.0, %v5339
      %v5341 = vpop.f32.mrb[0].mxu0
      %5342 = vmatprep.mubr.bf16.mxu0 0
      %5343 = vmatmul.mubr.bf16.gmra.mrb[0].mxu0 %v4223
      %v5344 = vpop.f32.mrb[0].mxu0
      %v5345 = vadd.f32 0.0, %v5344
      %v5346 = vpop.f32.mrb[0].mxu0
      %v5347 = vpop.f32.mrb[0].mxu0
      %v5348 = vadd.f32 0.0, %v5347
      %v5349 = vpop.f32.mrb[0].mxu0
      %5350 = vmatprep.mubr.bf16.mxu0 0
      %5351 = vmatmul.mubr.bf16.gmra.mrb[0].mxu0 %v4226
      %v5352 = vpop.f32.mrb[0].mxu0
      %v5353 = vadd.f32 0.0, %v5352
      %v5354 = vpop.f32.mrb[0].mxu0
      %v5355 = vpop.f32.mrb[0].mxu0
      %v5356 = vadd.f32 0.0, %v5355
      %v5357 = vpop.f32.mrb[0].mxu0
      %5358 = vmatprep.mubr.bf16.mxu0 0
      %5359 = vmatmul.mubr.bf16.gmra.mrb[0].mxu0 %v4229
      %v5360 = vpop.f32.mrb[0].mxu0
      %v5361 = vadd.f32 0.0, %v5360
      %v5362 = vpop.f32.mrb[0].mxu0
      %v5363 = vpop.f32.mrb[0].mxu0
      %v5364 = vadd.f32 0.0, %v5363
      %v5365 = vpop.f32.mrb[0].mxu0
      %5366 = vmatprep.mubr.bf16.mxu0 0
      %5367 = vmatmul.mubr.bf16.gmra.mrb[0].mxu0 %v4232
      %v5368 = vpop.f32.mrb[0].mxu0
      %v5369 = vadd.f32 0.0, %v5368
      %v5370 = vpop.f32.mrb[0].mxu0
      %v5371 = vpop.f32.mrb[0].mxu0
      %v5372 = vadd.f32 0.0, %v5371
      %v5373 = vpop.f32.mrb[0].mxu0
      %5374 = vmatprep.mubr.bf16.mxu0 0
      %5375 = vmatmul.mubr.bf16.gmra.mrb[0].mxu0 %v4235
      %v5376 = vpop.f32.mrb[0].mxu0
      %v5377 = vadd.f32 0.0, %v5376
      %v5378 = vpop.f32.mrb[0].mxu0
      %v5379 = vpop.f32.mrb[0].mxu0
      %v5380 = vadd.f32 0.0, %v5379
      %v5381 = vpop.f32.mrb[0].mxu0
      %5382 = vmatprep.mubr.bf16.mxu0 0
      %5383 = vmatmul.mubr.bf16.gmra.mrb[0].mxu0 %v4238
      %v5384 = vpop.f32.mrb[0].mxu0
      %v5385 = vadd.f32 0.0, %v5384
      %v5386 = vpop.f32.mrb[0].mxu0
      %v5387 = vpop.f32.mrb[0].mxu0
      %v5388 = vadd.f32 0.0, %v5387
      %v5389 = vpop.f32.mrb[0].mxu0
      %5390 = vmatprep.mubr.bf16.mxu0 0
      %5391 = vmatmul.mubr.bf16.gmra.mrb[0].mxu0 %v4241
      %v5392 = vpop.f32.mrb[0].mxu0
      %v5393 = vadd.f32 0.0, %v5392
      %v5394 = vpop.f32.mrb[0].mxu0
      %v5395 = vpop.f32.mrb[0].mxu0
      %v5396 = vadd.f32 0.0, %v5395
      %v5397 = vpop.f32.mrb[0].mxu0
      %5398 = vmatprep.mubr.bf16.mxu0 0
      %5399 = vmatmul.mubr.bf16.gmra.mrb[0].mxu0 %v4244
      %v5400 = vpop.f32.mrb[0].mxu0
      %v5401 = vadd.f32 0.0, %v5400
      %v5402 = vpop.f32.mrb[0].mxu0
      %v5403 = vpop.f32.mrb[0].mxu0
      %v5404 = vadd.f32 0.0, %v5403
      %v5405 = vpop.f32.mrb[0].mxu0
      %5406 = vmatprep.mubr.bf16.mxu0 0
      %5407 = vmatmul.mubr.bf16.gmra.mrb[0].mxu0 %v4247
      %v5408 = vpop.f32.mrb[0].mxu0
      %v5409 = vadd.f32 0.0, %v5408
      %v5410 = vpop.f32.mrb[0].mxu0
      %v5411 = vpop.f32.mrb[0].mxu0
      %v5412 = vadd.f32 0.0, %v5411
      %v5413 = vpop.f32.mrb[0].mxu0
      %5414 = vmatprep.mubr.bf16.mxu0 0
      %5415 = vmatmul.mubr.bf16.gmra.mrb[0].mxu0 %v4250
      %v5416 = vpop.f32.mrb[0].mxu0
      %v5417 = vadd.f32 0.0, %v5416
      %v5418 = vpop.f32.mrb[0].mxu0
      %v5419 = vpop.f32.mrb[0].mxu0
      %v5420 = vadd.f32 0.0, %v5419
      %v5421 = vpop.f32.mrb[0].mxu0
      %5422 = vmatprep.mubr.bf16.mxu0 0
      %5423 = vmatmul.mubr.bf16.gmra.mrb[0].mxu0 %v4253
      %v5424 = vpop.f32.mrb[0].mxu0
      %v5425 = vadd.f32 0.0, %v5424
      %v5426 = vpop.f32.mrb[0].mxu0
      %v5427 = vpop.f32.mrb[0].mxu0
      %v5428 = vadd.f32 0.0, %v5427
      %v5429 = vpop.f32.mrb[0].mxu0
      %5430 = vdwg.mxu0
      %v5439 = vunpack.c.l.b16 %v5165
      %v5440 = vunpack.c.l.b16 %v5166
      %v5441 = vunpack.c.l.b16 %v5167
      %v5442 = vunpack.c.l.b16 %v5168
      %v5443 = vunpack.c.l.b16 %v5169
      %v5444 = vunpack.c.l.b16 %v5170
      %v5445 = vunpack.c.l.b16 %v5171
      %v5446 = vunpack.c.l.b16 %v5172
      %v5447 = vpack.c.b16 %v5440, %v5439
      %v5448 = vpack.c.b16 %v5442, %v5441
      %v5449 = vpack.c.b16 %v5444, %v5443
      %v5450 = vpack.c.b16 %v5446, %v5445
      %5455 = vmatprep.subr.bf16.mxu0 0
      %5456 = vmatpush1.bf16.msra.mxu0 %v5447
      %5457 = vmatprep.subr.bf16.mxu0 0
      %5458 = vmatpush1.bf16.msra.mxu0 %v5448
      %5459 = vmatprep.subr.bf16.mxu0 0
      %5460 = vmatpush1.bf16.msra.mxu0 %v5449
      %5461 = vmatprep.subr.bf16.mxu0 0
      %5462 = vmatpush1.bf16.msra.mxu0 %v5450
      %5463 = vmatprep.subr.bf16.mxu0 0
      %5464 = vmatpush1.bf16.msra.mxu0 0
      %5465 = vmatprep.subr.bf16.mxu0 0
      %5466 = vmatpush1.bf16.msra.mxu0 0
      %5467 = vmatprep.subr.bf16.mxu0 0
      %5468 = vmatpush1.bf16.msra.mxu0 0
      %5469 = vmatprep.subr.bf16.mxu0 0
      %5470 = vmatpush1.bf16.msra.mxu0 0
      %5471 = vmatprep.subr.bf16.mxu0 0
      %5472 = vmatpush1.bf16.msra.mxu0 0
      %5473 = vmatprep.subr.bf16.mxu0 0
      %5474 = vmatpush1.bf16.msra.mxu0 0
      %5475 = vmatprep.subr.bf16.mxu0 0
      %5476 = vmatpush1.bf16.msra.mxu0 0
      %5477 = vmatprep.subr.bf16.mxu0 0
      %5478 = vmatpush1.bf16.msra.mxu0 0
      %5479 = vmatprep.subr.bf16.mxu0 0
      %5480 = vmatpush1.bf16.msra.mxu0 0
      %5481 = vmatprep.subr.bf16.mxu0 0
      %5482 = vmatpush1.bf16.msra.mxu0 0
      %5483 = vmatprep.subr.bf16.mxu0 0
      %5484 = vmatpush1.bf16.msra.mxu0 0
      %5485 = vmatprep.subr.bf16.mxu0 0
      %5486 = vmatpush1.bf16.msra.mxu0 0
      %5487 = vmatprep.mubr.bf16.mxu0 0
      %5488 = vmatmul.mubr.bf16.gmra.mrb[0].mxu0 %v4505
      %v5489 = vpop.f32.mrb[0].mxu0
      %v5490 = vadd.f32 %v5241, %v5489
      %v5491 = vpop.f32.mrb[0].mxu0
      %v5492 = vpop.f32.mrb[0].mxu0
      %v5493 = vadd.f32 %v5244, %v5492
      %v5494 = vpop.f32.mrb[0].mxu0
      %5495 = vmatprep.mubr.bf16.mxu0 0
      %5496 = vmatmul.mubr.bf16.gmra.mrb[0].mxu0 %v4508
      %v5497 = vpop.f32.mrb[0].mxu0
      %v5498 = vadd.f32 %v5249, %v5497
      %v5499 = vpop.f32.mrb[0].mxu0
      %v5500 = vpop.f32.mrb[0].mxu0
      %v5501 = vadd.f32 %v5252, %v5500
      %v5502 = vpop.f32.mrb[0].mxu0
      %5503 = vmatprep.mubr.bf16.mxu0 0
      %5504 = vmatmul.mubr.bf16.gmra.mrb[0].mxu0 %v4511
      %v5505 = vpop.f32.mrb[0].mxu0
      %v5506 = vadd.f32 %v5257, %v5505
      %v5507 = vpop.f32.mrb[0].mxu0
      %v5508 = vpop.f32.mrb[0].mxu0
      %v5509 = vadd.f32 %v5260, %v5508
      %v5510 = vpop.f32.mrb[0].mxu0
      %5511 = vmatprep.mubr.bf16.mxu0 0
      %5512 = vmatmul.mubr.bf16.gmra.mrb[0].mxu0 %v4514
      %v5513 = vpop.f32.mrb[0].mxu0
      %v5514 = vadd.f32 %v5265, %v5513
      %v5515 = vpop.f32.mrb[0].mxu0
      %v5516 = vpop.f32.mrb[0].mxu0
      %v5517 = vadd.f32 %v5268, %v5516
      %v5518 = vpop.f32.mrb[0].mxu0
      %5519 = vmatprep.mubr.bf16.mxu0 0
      %5520 = vmatmul.mubr.bf16.gmra.mrb[0].mxu0 %v4517
      %v5521 = vpop.f32.mrb[0].mxu0
      %v5522 = vadd.f32 %v5273, %v5521
      %v5523 = vpop.f32.mrb[0].mxu0
      %v5524 = vpop.f32.mrb[0].mxu0
      %v5525 = vadd.f32 %v5276, %v5524
      %v5526 = vpop.f32.mrb[0].mxu0
      %5527 = vmatprep.mubr.bf16.mxu0 0
      %5528 = vmatmul.mubr.bf16.gmra.mrb[0].mxu0 %v4520
      %v5529 = vpop.f32.mrb[0].mxu0
      %v5530 = vadd.f32 %v5281, %v5529
      %v5531 = vpop.f32.mrb[0].mxu0
      %v5532 = vpop.f32.mrb[0].mxu0
      %v5533 = vadd.f32 %v5284, %v5532
      %v5534 = vpop.f32.mrb[0].mxu0
      %5535 = vmatprep.mubr.bf16.mxu0 0
      %5536 = vmatmul.mubr.bf16.gmra.mrb[0].mxu0 %v4523
      %v5537 = vpop.f32.mrb[0].mxu0
      %v5538 = vadd.f32 %v5289, %v5537
      %v5539 = vpop.f32.mrb[0].mxu0
      %v5540 = vpop.f32.mrb[0].mxu0
      %v5541 = vadd.f32 %v5292, %v5540
      %v5542 = vpop.f32.mrb[0].mxu0
      %5543 = vmatprep.mubr.bf16.mxu0 0
      %5544 = vmatmul.mubr.bf16.gmra.mrb[0].mxu0 %v4526
      %v5545 = vpop.f32.mrb[0].mxu0
      %v5546 = vadd.f32 %v5297, %v5545
      %v5547 = vpop.f32.mrb[0].mxu0
      %v5548 = vpop.f32.mrb[0].mxu0
      %v5549 = vadd.f32 %v5300, %v5548
      %v5550 = vpop.f32.mrb[0].mxu0
      %5551 = vmatprep.mubr.bf16.mxu0 0
      %5552 = vmatmul.mubr.bf16.gmra.mrb[0].mxu0 %v4529
      %v5553 = vpop.f32.mrb[0].mxu0
      %v5554 = vadd.f32 %v5305, %v5553
      %v5555 = vpop.f32.mrb[0].mxu0
      %v5556 = vpop.f32.mrb[0].mxu0
      %v5557 = vadd.f32 %v5308, %v5556
      %v5558 = vpop.f32.mrb[0].mxu0
      %5559 = vmatprep.mubr.bf16.mxu0 0
      %5560 = vmatmul.mubr.bf16.gmra.mrb[0].mxu0 %v4532
      %v5561 = vpop.f32.mrb[0].mxu0
      %v5562 = vadd.f32 %v5313, %v5561
      %v5563 = vpop.f32.mrb[0].mxu0
      %v5564 = vpop.f32.mrb[0].mxu0
      %v5565 = vadd.f32 %v5316, %v5564
      %v5566 = vpop.f32.mrb[0].mxu0
      %5567 = vmatprep.mubr.bf16.mxu0 0
      %5568 = vmatmul.mubr.bf16.gmra.mrb[0].mxu0 %v4535
      %v5569 = vpop.f32.mrb[0].mxu0
      %v5570 = vadd.f32 %v5321, %v5569
      %v5571 = vpop.f32.mrb[0].mxu0
      %v5572 = vpop.f32.mrb[0].mxu0
      %v5573 = vadd.f32 %v5324, %v5572
      %v5574 = vpop.f32.mrb[0].mxu0
      %5575 = vmatprep.mubr.bf16.mxu0 0
      %5576 = vmatmul.mubr.bf16.gmra.mrb[0].mxu0 %v4538
      %v5577 = vpop.f32.mrb[0].mxu0
      %v5578 = vadd.f32 %v5329, %v5577
      %v5579 = vpop.f32.mrb[0].mxu0
      %v5580 = vpop.f32.mrb[0].mxu0
      %v5581 = vadd.f32 %v5332, %v5580
      %v5582 = vpop.f32.mrb[0].mxu0
      %5583 = vmatprep.mubr.bf16.mxu0 0
      %5584 = vmatmul.mubr.bf16.gmra.mrb[0].mxu0 %v4541
      %v5585 = vpop.f32.mrb[0].mxu0
      %v5586 = vadd.f32 %v5337, %v5585
      %v5587 = vpop.f32.mrb[0].mxu0
      %v5588 = vpop.f32.mrb[0].mxu0
      %v5589 = vadd.f32 %v5340, %v5588
      %v5590 = vpop.f32.mrb[0].mxu0
      %5591 = vmatprep.mubr.bf16.mxu0 0
      %5592 = vmatmul.mubr.bf16.gmra.mrb[0].mxu0 %v4544
      %v5593 = vpop.f32.mrb[0].mxu0
      %v5594 = vadd.f32 %v5345, %v5593
      %v5595 = vpop.f32.mrb[0].mxu0
      %v5596 = vpop.f32.mrb[0].mxu0
      %v5597 = vadd.f32 %v5348, %v5596
      %v5598 = vpop.f32.mrb[0].mxu0
      %5599 = vmatprep.mubr.bf16.mxu0 0
      %5600 = vmatmul.mubr.bf16.gmra.mrb[0].mxu0 %v4547
      %v5601 = vpop.f32.mrb[0].mxu0
      %v5602 = vadd.f32 %v5353, %v5601
      %v5603 = vpop.f32.mrb[0].mxu0
      %v5604 = vpop.f32.mrb[0].mxu0
      %v5605 = vadd.f32 %v5356, %v5604
      %v5606 = vpop.f32.mrb[0].mxu0
      %5607 = vmatprep.mubr.bf16.mxu0 0
      %5608 = vmatmul.mubr.bf16.gmra.mrb[0].mxu0 %v4550
      %v5609 = vpop.f32.mrb[0].mxu0
      %v5610 = vadd.f32 %v5361, %v5609
      %v5611 = vpop.f32.mrb[0].mxu0
      %v5612 = vpop.f32.mrb[0].mxu0
      %v5613 = vadd.f32 %v5364, %v5612
      %v5614 = vpop.f32.mrb[0].mxu0
      %5615 = vmatprep.mubr.bf16.mxu0 0
      %5616 = vmatmul.mubr.bf16.gmra.mrb[0].mxu0 %v4553
      %v5617 = vpop.f32.mrb[0].mxu0
      %v5618 = vadd.f32 %v5369, %v5617
      %v5619 = vpop.f32.mrb[0].mxu0
      %v5620 = vpop.f32.mrb[0].mxu0
      %v5621 = vadd.f32 %v5372, %v5620
      %v5622 = vpop.f32.mrb[0].mxu0
      %5623 = vmatprep.mubr.bf16.mxu0 0
      %5624 = vmatmul.mubr.bf16.gmra.mrb[0].mxu0 %v4556
      %v5625 = vpop.f32.mrb[0].mxu0
      %v5626 = vadd.f32 %v5377, %v5625
      %v5627 = vpop.f32.mrb[0].mxu0
      %v5628 = vpop.f32.mrb[0].mxu0
      %v5629 = vadd.f32 %v5380, %v5628
      %v5630 = vpop.f32.mrb[0].mxu0
      %5631 = vmatprep.mubr.bf16.mxu0 0
      %5632 = vmatmul.mubr.bf16.gmra.mrb[0].mxu0 %v4559
      %v5633 = vpop.f32.mrb[0].mxu0
      %v5634 = vadd.f32 %v5385, %v5633
      %v5635 = vpop.f32.mrb[0].mxu0
      %v5636 = vpop.f32.mrb[0].mxu0
      %v5637 = vadd.f32 %v5388, %v5636
      %v5638 = vpop.f32.mrb[0].mxu0
      %5639 = vmatprep.mubr.bf16.mxu0 0
      %5640 = vmatmul.mubr.bf16.gmra.mrb[0].mxu0 %v4562
      %v5641 = vpop.f32.mrb[0].mxu0
      %v5642 = vadd.f32 %v5393, %v5641
      %v5643 = vpop.f32.mrb[0].mxu0
      %v5644 = vpop.f32.mrb[0].mxu0
      %v5645 = vadd.f32 %v5396, %v5644
      %v5646 = vpop.f32.mrb[0].mxu0
      %5647 = vmatprep.mubr.bf16.mxu0 0
      %5648 = vmatmul.mubr.bf16.gmra.mrb[0].mxu0 %v4565
      %v5649 = vpop.f32.mrb[0].mxu0
      %v5650 = vadd.f32 %v5401, %v5649
      %v5651 = vpop.f32.mrb[0].mxu0
      %v5652 = vpop.f32.mrb[0].mxu0
      %v5653 = vadd.f32 %v5404, %v5652
      %v5654 = vpop.f32.mrb[0].mxu0
      %5655 = vmatprep.mubr.bf16.mxu0 0
      %5656 = vmatmul.mubr.bf16.gmra.mrb[0].mxu0 %v4568
      %v5657 = vpop.f32.mrb[0].mxu0
      %v5658 = vadd.f32 %v5409, %v5657
      %v5659 = vpop.f32.mrb[0].mxu0
      %v5660 = vpop.f32.mrb[0].mxu0
      %v5661 = vadd.f32 %v5412, %v5660
      %v5662 = vpop.f32.mrb[0].mxu0
      %5663 = vmatprep.mubr.bf16.mxu0 0
      %5664 = vmatmul.mubr.bf16.gmra.mrb[0].mxu0 %v4571
      %v5665 = vpop.f32.mrb[0].mxu0
      %v5666 = vadd.f32 %v5417, %v5665
      %v5667 = vpop.f32.mrb[0].mxu0
      %v5668 = vpop.f32.mrb[0].mxu0
      %v5669 = vadd.f32 %v5420, %v5668
      %v5670 = vpop.f32.mrb[0].mxu0
      %5671 = vmatprep.mubr.bf16.mxu0 0
      %5672 = vmatmul.mubr.bf16.gmra.mrb[0].mxu0 %v4574
      %v5673 = vpop.f32.mrb[0].mxu0
      %v5674 = vadd.f32 %v5425, %v5673
      %v5675 = vpop.f32.mrb[0].mxu0
      %v5676 = vpop.f32.mrb[0].mxu0
      %v5677 = vadd.f32 %v5428, %v5676
      %v5678 = vpop.f32.mrb[0].mxu0
      %5679 = vdwg.mxu0
      %s5680 = scalar_lea.vmem %s5, 224
      %v5681 = vld [vmem:[%s5680] sm:$0xf]
      %v5682 = vld [vmem:[%s5680 + $0x4] sm:$0xf]
      %v5683 = vld [vmem:[%s5680 + $0x8] sm:$0xf]
      %v5684 = vld [vmem:[%s5680 + $0xc] sm:$0xf]
      %v5685 = vld [vmem:[%s5680 + $0x10] sm:$0xf]
      %v5686 = vld [vmem:[%s5680 + $0x14] sm:$0xf]
      %v5687 = vld [vmem:[%s5680 + $0x18] sm:$0xf]
      %v5688 = vld [vmem:[%s5680 + $0x1c] sm:$0xf]
      %v5697 = vunpack.c.l.b16 %v5681
      %v5698 = vunpack.c.l.b16 %v5682
      %v5699 = vunpack.c.l.b16 %v5683
      %v5700 = vunpack.c.l.b16 %v5684
      %v5701 = vunpack.c.l.b16 %v5685
      %v5702 = vunpack.c.l.b16 %v5686
      %v5703 = vunpack.c.l.b16 %v5687
      %v5704 = vunpack.c.l.b16 %v5688
      %v5705 = vpack.c.b16 %v5698, %v5697
      %v5706 = vpack.c.b16 %v5700, %v5699
      %v5707 = vpack.c.b16 %v5702, %v5701
      %v5708 = vpack.c.b16 %v5704, %v5703
      %5713 = vmatprep.subr.bf16.mxu0 0
      %5714 = vmatpush1.bf16.msra.mxu0 %v5705
      %5715 = vmatprep.subr.bf16.mxu0 0
      %5716 = vmatpush1.bf16.msra.mxu0 %v5706
      %5717 = vmatprep.subr.bf16.mxu0 0
      %5718 = vmatpush1.bf16.msra.mxu0 %v5707
      %5719 = vmatprep.subr.bf16.mxu0 0
      %5720 = vmatpush1.bf16.msra.mxu0 %v5708
      %5721 = vmatprep.subr.bf16.mxu0 0
      %5722 = vmatpush1.bf16.msra.mxu0 0
      %5723 = vmatprep.subr.bf16.mxu0 0
      %5724 = vmatpush1.bf16.msra.mxu0 0
      %5725 = vmatprep.subr.bf16.mxu0 0
      %5726 = vmatpush1.bf16.msra.mxu0 0
      %5727 = vmatprep.subr.bf16.mxu0 0
      %5728 = vmatpush1.bf16.msra.mxu0 0
      %5729 = vmatprep.subr.bf16.mxu0 0
      %5730 = vmatpush1.bf16.msra.mxu0 0
      %5731 = vmatprep.subr.bf16.mxu0 0
      %5732 = vmatpush1.bf16.msra.mxu0 0
      %5733 = vmatprep.subr.bf16.mxu0 0
      %5734 = vmatpush1.bf16.msra.mxu0 0
      %5735 = vmatprep.subr.bf16.mxu0 0
      %5736 = vmatpush1.bf16.msra.mxu0 0
      %5737 = vmatprep.subr.bf16.mxu0 0
      %5738 = vmatpush1.bf16.msra.mxu0 0
      %5739 = vmatprep.subr.bf16.mxu0 0
      %5740 = vmatpush1.bf16.msra.mxu0 0
      %5741 = vmatprep.subr.bf16.mxu0 0
      %5742 = vmatpush1.bf16.msra.mxu0 0
      %5743 = vmatprep.subr.bf16.mxu0 0
      %5744 = vmatpush1.bf16.msra.mxu0 0
      %5745 = vmatprep.mubr.bf16.mxu0 0
      %5746 = vmatmul.mubr.bf16.gmra.mrb[0].mxu0 %v4514
      %v5747 = vpop.f32.mrb[0].mxu0
      %v5748 = vadd.f32 0.0, %v5747
      %v5749 = vpop.f32.mrb[0].mxu0
      %v5750 = vpop.f32.mrb[0].mxu0
      %v5751 = vadd.f32 0.0, %v5750
      %v5752 = vpop.f32.mrb[0].mxu0
      %5753 = vmatprep.mubr.bf16.mxu0 0
      %5754 = vmatmul.mubr.bf16.gmra.mrb[0].mxu0 %v4517
      %v5755 = vpop.f32.mrb[0].mxu0
      %v5756 = vadd.f32 0.0, %v5755
      %v5757 = vpop.f32.mrb[0].mxu0
      %v5758 = vpop.f32.mrb[0].mxu0
      %v5759 = vadd.f32 0.0, %v5758
      %v5760 = vpop.f32.mrb[0].mxu0
      %5761 = vmatprep.mubr.bf16.mxu0 0
      %5762 = vmatmul.mubr.bf16.gmra.mrb[0].mxu0 %v4520
      %v5763 = vpop.f32.mrb[0].mxu0
      %v5764 = vadd.f32 0.0, %v5763
      %v5765 = vpop.f32.mrb[0].mxu0
      %v5766 = vpop.f32.mrb[0].mxu0
      %v5767 = vadd.f32 0.0, %v5766
      %v5768 = vpop.f32.mrb[0].mxu0
      %5769 = vmatprep.mubr.bf16.mxu0 0
      %5770 = vmatmul.mubr.bf16.gmra.mrb[0].mxu0 %v4523
      %v5771 = vpop.f32.mrb[0].mxu0
      %v5772 = vadd.f32 0.0, %v5771
      %v5773 = vpop.f32.mrb[0].mxu0
      %v5774 = vpop.f32.mrb[0].mxu0
      %v5775 = vadd.f32 0.0, %v5774
      %v5776 = vpop.f32.mrb[0].mxu0
      %5777 = vmatprep.mubr.bf16.mxu0 0
      %5778 = vmatmul.mubr.bf16.gmra.mrb[0].mxu0 %v4526
      %v5779 = vpop.f32.mrb[0].mxu0
      %v5780 = vadd.f32 0.0, %v5779
      %v5781 = vpop.f32.mrb[0].mxu0
      %v5782 = vpop.f32.mrb[0].mxu0
      %v5783 = vadd.f32 0.0, %v5782
      %v5784 = vpop.f32.mrb[0].mxu0
      %5785 = vmatprep.mubr.bf16.mxu0 0
      %5786 = vmatmul.mubr.bf16.gmra.mrb[0].mxu0 %v4529
      %v5787 = vpop.f32.mrb[0].mxu0
      %v5788 = vadd.f32 0.0, %v5787
      %v5789 = vpop.f32.mrb[0].mxu0
      %v5790 = vpop.f32.mrb[0].mxu0
      %v5791 = vadd.f32 0.0, %v5790
      %v5792 = vpop.f32.mrb[0].mxu0
      %5793 = vmatprep.mubr.bf16.mxu0 0
      %5794 = vmatmul.mubr.bf16.gmra.mrb[0].mxu0 %v4532
      %v5795 = vpop.f32.mrb[0].mxu0
      %v5796 = vadd.f32 0.0, %v5795
      %v5797 = vpop.f32.mrb[0].mxu0
      %v5798 = vpop.f32.mrb[0].mxu0
      %v5799 = vadd.f32 0.0, %v5798
      %v5800 = vpop.f32.mrb[0].mxu0
      %5801 = vmatprep.mubr.bf16.mxu0 0
      %5802 = vmatmul.mubr.bf16.gmra.mrb[0].mxu0 %v4535
      %v5803 = vpop.f32.mrb[0].mxu0
      %v5804 = vadd.f32 0.0, %v5803
      %v5805 = vpop.f32.mrb[0].mxu0
      %v5806 = vpop.f32.mrb[0].mxu0
      %v5807 = vadd.f32 0.0, %v5806
      %v5808 = vpop.f32.mrb[0].mxu0
      %5809 = vmatprep.mubr.bf16.mxu0 0
      %5810 = vmatmul.mubr.bf16.gmra.mrb[0].mxu0 %v4538
      %v5811 = vpop.f32.mrb[0].mxu0
      %v5812 = vadd.f32 0.0, %v5811
      %v5813 = vpop.f32.mrb[0].mxu0
      %v5814 = vpop.f32.mrb[0].mxu0
      %v5815 = vadd.f32 0.0, %v5814
      %v5816 = vpop.f32.mrb[0].mxu0
      %5817 = vmatprep.mubr.bf16.mxu0 0
      %5818 = vmatmul.mubr.bf16.gmra.mrb[0].mxu0 %v4541
      %v5819 = vpop.f32.mrb[0].mxu0
      %v5820 = vadd.f32 0.0, %v5819
      %v5821 = vpop.f32.mrb[0].mxu0
      %v5822 = vpop.f32.mrb[0].mxu0
      %v5823 = vadd.f32 0.0, %v5822
      %v5824 = vpop.f32.mrb[0].mxu0
      %5825 = vmatprep.mubr.bf16.mxu0 0
      %5826 = vmatmul.mubr.bf16.gmra.mrb[0].mxu0 %v4544
      %v5827 = vpop.f32.mrb[0].mxu0
      %v5828 = vadd.f32 0.0, %v5827
      %v5829 = vpop.f32.mrb[0].mxu0
      %v5830 = vpop.f32.mrb[0].mxu0
      %v5831 = vadd.f32 0.0, %v5830
      %v5832 = vpop.f32.mrb[0].mxu0
      %5833 = vmatprep.mubr.bf16.mxu0 0
      %5834 = vmatmul.mubr.bf16.gmra.mrb[0].mxu0 %v4547
      %v5835 = vpop.f32.mrb[0].mxu0
      %v5836 = vadd.f32 0.0, %v5835
      %v5837 = vpop.f32.mrb[0].mxu0
      %v5838 = vpop.f32.mrb[0].mxu0
      %v5839 = vadd.f32 0.0, %v5838
      %v5840 = vpop.f32.mrb[0].mxu0
      %5841 = vmatprep.mubr.bf16.mxu0 0
      %5842 = vmatmul.mubr.bf16.gmra.mrb[0].mxu0 %v4550
      %v5843 = vpop.f32.mrb[0].mxu0
      %v5844 = vadd.f32 0.0, %v5843
      %v5845 = vpop.f32.mrb[0].mxu0
      %v5846 = vpop.f32.mrb[0].mxu0
      %v5847 = vadd.f32 0.0, %v5846
      %v5848 = vpop.f32.mrb[0].mxu0
      %5849 = vmatprep.mubr.bf16.mxu0 0
      %5850 = vmatmul.mubr.bf16.gmra.mrb[0].mxu0 %v4553
      %v5851 = vpop.f32.mrb[0].mxu0
      %v5852 = vadd.f32 0.0, %v5851
      %v5853 = vpop.f32.mrb[0].mxu0
      %v5854 = vpop.f32.mrb[0].mxu0
      %v5855 = vadd.f32 0.0, %v5854
      %v5856 = vpop.f32.mrb[0].mxu0
      %5857 = vmatprep.mubr.bf16.mxu0 0
      %5858 = vmatmul.mubr.bf16.gmra.mrb[0].mxu0 %v4556
      %v5859 = vpop.f32.mrb[0].mxu0
      %v5860 = vadd.f32 0.0, %v5859
      %v5861 = vpop.f32.mrb[0].mxu0
      %v5862 = vpop.f32.mrb[0].mxu0
      %v5863 = vadd.f32 0.0, %v5862
      %v5864 = vpop.f32.mrb[0].mxu0
      %5865 = vmatprep.mubr.bf16.mxu0 0
      %5866 = vmatmul.mubr.bf16.gmra.mrb[0].mxu0 %v4559
      %v5867 = vpop.f32.mrb[0].mxu0
      %v5868 = vadd.f32 0.0, %v5867
      %v5869 = vpop.f32.mrb[0].mxu0
      %v5870 = vpop.f32.mrb[0].mxu0
      %v5871 = vadd.f32 0.0, %v5870
      %v5872 = vpop.f32.mrb[0].mxu0
      %5873 = vmatprep.mubr.bf16.mxu0 0
      %5874 = vmatmul.mubr.bf16.gmra.mrb[0].mxu0 %v4562
      %v5875 = vpop.f32.mrb[0].mxu0
      %v5876 = vadd.f32 0.0, %v5875
      %v5877 = vpop.f32.mrb[0].mxu0
      %v5878 = vpop.f32.mrb[0].mxu0
      %v5879 = vadd.f32 0.0, %v5878
      %v5880 = vpop.f32.mrb[0].mxu0
      %5881 = vmatprep.mubr.bf16.mxu0 0
      %5882 = vmatmul.mubr.bf16.gmra.mrb[0].mxu0 %v4565
      %v5883 = vpop.f32.mrb[0].mxu0
      %v5884 = vadd.f32 0.0, %v5883
      %v5885 = vpop.f32.mrb[0].mxu0
      %v5886 = vpop.f32.mrb[0].mxu0
      %v5887 = vadd.f32 0.0, %v5886
      %v5888 = vpop.f32.mrb[0].mxu0
      %5889 = vmatprep.mubr.bf16.mxu0 0
      %5890 = vmatmul.mubr.bf16.gmra.mrb[0].mxu0 %v4568
      %v5891 = vpop.f32.mrb[0].mxu0
      %v5892 = vadd.f32 0.0, %v5891
      %v5893 = vpop.f32.mrb[0].mxu0
      %v5894 = vpop.f32.mrb[0].mxu0
      %v5895 = vadd.f32 0.0, %v5894
      %v5896 = vpop.f32.mrb[0].mxu0
      %5897 = vmatprep.mubr.bf16.mxu0 0
      %5898 = vmatmul.mubr.bf16.gmra.mrb[0].mxu0 %v4571
      %v5899 = vpop.f32.mrb[0].mxu0
      %v5900 = vadd.f32 0.0, %v5899
      %v5901 = vpop.f32.mrb[0].mxu0
      %v5902 = vpop.f32.mrb[0].mxu0
      %v5903 = vadd.f32 0.0, %v5902
      %v5904 = vpop.f32.mrb[0].mxu0
      %5905 = vmatprep.mubr.bf16.mxu0 0
      %5906 = vmatmul.mubr.bf16.gmra.mrb[0].mxu0 %v4574
      %v5907 = vpop.f32.mrb[0].mxu0
      %v5908 = vadd.f32 0.0, %v5907
      %v5909 = vpop.f32.mrb[0].mxu0
      %v5910 = vpop.f32.mrb[0].mxu0
      %v5911 = vadd.f32 0.0, %v5910
      %v5912 = vpop.f32.mrb[0].mxu0
      %5913 = vmatprep.mubr.bf16.mxu0 0
      %5914 = vmatmul.mubr.bf16.gmra.mrb[0].mxu0 %v4835
      %v5915 = vpop.f32.mrb[0].mxu0
      %v5916 = vadd.f32 0.0, %v5915
      %v5917 = vpop.f32.mrb[0].mxu0
      %v5918 = vpop.f32.mrb[0].mxu0
      %v5919 = vadd.f32 0.0, %v5918
      %v5920 = vpop.f32.mrb[0].mxu0
      %5921 = vmatprep.mubr.bf16.mxu0 0
      %5922 = vmatmul.mubr.bf16.gmra.mrb[0].mxu0 %v4838
      %v5923 = vpop.f32.mrb[0].mxu0
      %v5924 = vadd.f32 0.0, %v5923
      %v5925 = vpop.f32.mrb[0].mxu0
      %v5926 = vpop.f32.mrb[0].mxu0
      %v5927 = vadd.f32 0.0, %v5926
      %v5928 = vpop.f32.mrb[0].mxu0
      %5929 = vmatprep.mubr.bf16.mxu0 0
      %5930 = vmatmul.mubr.bf16.gmra.mrb[0].mxu0 %v4841
      %v5931 = vpop.f32.mrb[0].mxu0
      %v5932 = vadd.f32 0.0, %v5931
      %v5933 = vpop.f32.mrb[0].mxu0
      %v5934 = vpop.f32.mrb[0].mxu0
      %v5935 = vadd.f32 0.0, %v5934
      %v5936 = vpop.f32.mrb[0].mxu0
      %5937 = vdwg.mxu0
      %v5938 = vadd.f32 %v5490, %v5748
      %v5939 = vadd.f32 %v5493, %v5751
      %v5940 = vadd.f32 %v5498, %v5756
      %v5941 = vadd.f32 %v5501, %v5759
      %v5942 = vadd.f32 %v5506, %v5764
      %v5943 = vadd.f32 %v5509, %v5767
      %v5944 = vadd.f32 %v5514, %v5772
      %v5945 = vadd.f32 %v5517, %v5775
      %v5946 = vadd.f32 %v5522, %v5780
      %v5947 = vadd.f32 %v5525, %v5783
      %v5948 = vadd.f32 %v5530, %v5788
      %v5949 = vadd.f32 %v5533, %v5791
      %v5950 = vadd.f32 %v5538, %v5796
      %v5951 = vadd.f32 %v5541, %v5799
      %v5952 = vadd.f32 %v5546, %v5804
      %v5953 = vadd.f32 %v5549, %v5807
      %v5954 = vadd.f32 %v5554, %v5812
      %v5955 = vadd.f32 %v5557, %v5815
      %v5956 = vadd.f32 %v5562, %v5820
      %v5957 = vadd.f32 %v5565, %v5823
      %v5958 = vadd.f32 %v5570, %v5828
      %v5959 = vadd.f32 %v5573, %v5831
      %v5960 = vadd.f32 %v5578, %v5836
      %v5961 = vadd.f32 %v5581, %v5839
      %v5962 = vadd.f32 %v5586, %v5844
      %v5963 = vadd.f32 %v5589, %v5847
      %v5964 = vadd.f32 %v5594, %v5852
      %v5965 = vadd.f32 %v5597, %v5855
      %v5966 = vadd.f32 %v5602, %v5860
      %v5967 = vadd.f32 %v5605, %v5863
      %v5968 = vadd.f32 %v5610, %v5868
      %v5969 = vadd.f32 %v5613, %v5871
      %v5970 = vadd.f32 %v5618, %v5876
      %v5971 = vadd.f32 %v5621, %v5879
      %v5972 = vadd.f32 %v5626, %v5884
      %v5973 = vadd.f32 %v5629, %v5887
      %v5974 = vadd.f32 %v5634, %v5892
      %v5975 = vadd.f32 %v5637, %v5895
      %v5976 = vadd.f32 %v5642, %v5900
      %v5977 = vadd.f32 %v5645, %v5903
      %v5978 = vadd.f32 %v5650, %v5908
      %v5979 = vadd.f32 %v5653, %v5911
      %v5980 = vadd.f32 %v5658, %v5916
      %v5981 = vadd.f32 %v5661, %v5919
      %v5982 = vadd.f32 %v5666, %v5924
      %v5983 = vadd.f32 %v5669, %v5927
      %v5984 = vadd.f32 %v5674, %v5932
      %v5985 = vadd.f32 %v5677, %v5935
      %v6034 = vrot.slane %v5938, 1
      %v6035 = vrot.slane %v5939, 1
      %v6036 = vsel %vm2680, %v6034, %v6035
      %v6037 = vrot.slane %v5940, 1
      %v6038 = vsel %vm2680, %v6035, %v6037
      %v6039 = vrot.slane %v5941, 1
      %v6040 = vrot.slane %v5942, 1
      %v6041 = vsel %vm2680, %v6039, %v6040
      %v6042 = vrot.slane %v5943, 1
      %v6043 = vsel %vm2680, %v6040, %v6042
      %v6044 = vrot.slane %v5944, 1
      %v6045 = vrot.slane %v5945, 1
      %v6046 = vsel %vm2680, %v6044, %v6045
      %v6047 = vrot.slane %v5946, 1
      %v6048 = vsel %vm2680, %v6045, %v6047
      %v6049 = vrot.slane %v5947, 1
      %v6050 = vrot.slane %v5948, 1
      %v6051 = vsel %vm2680, %v6049, %v6050
      %v6052 = vrot.slane %v5949, 1
      %v6053 = vsel %vm2680, %v6050, %v6052
      %v6054 = vrot.slane %v5950, 1
      %v6055 = vrot.slane %v5951, 1
      %v6056 = vsel %vm2680, %v6054, %v6055
      %v6057 = vrot.slane %v5952, 1
      %v6058 = vsel %vm2680, %v6055, %v6057
      %v6059 = vrot.slane %v5953, 1
      %v6060 = vrot.slane %v5954, 1
      %v6061 = vsel %vm2680, %v6059, %v6060
      %v6062 = vrot.slane %v5955, 1
      %v6063 = vsel %vm2680, %v6060, %v6062
      %v6064 = vrot.slane %v5956, 1
      %v6065 = vrot.slane %v5957, 1
      %v6066 = vsel %vm2680, %v6064, %v6065
      %v6067 = vrot.slane %v5958, 1
      %v6068 = vsel %vm2680, %v6065, %v6067
      %v6069 = vrot.slane %v5959, 1
      %v6070 = vrot.slane %v5960, 1
      %v6071 = vsel %vm2680, %v6069, %v6070
      %v6072 = vrot.slane %v5961, 1
      %v6073 = vsel %vm2680, %v6070, %v6072
      %v6074 = vrot.slane %v5962, 1
      %v6075 = vrot.slane %v5963, 1
      %v6076 = vsel %vm2680, %v6074, %v6075
      %v6077 = vrot.slane %v5964, 1
      %v6078 = vsel %vm2680, %v6075, %v6077
      %v6079 = vrot.slane %v5965, 1
      %v6080 = vrot.slane %v5966, 1
      %v6081 = vsel %vm2680, %v6079, %v6080
      %v6082 = vrot.slane %v5967, 1
      %v6083 = vsel %vm2680, %v6080, %v6082
      %v6084 = vrot.slane %v5968, 1
      %v6085 = vrot.slane %v5969, 1
      %v6086 = vsel %vm2680, %v6084, %v6085
      %v6087 = vrot.slane %v5970, 1
      %v6088 = vsel %vm2680, %v6085, %v6087
      %v6089 = vrot.slane %v5971, 1
      %v6090 = vrot.slane %v5972, 1
      %v6091 = vsel %vm2680, %v6089, %v6090
      %v6092 = vrot.slane %v5973, 1
      %v6093 = vsel %vm2680, %v6090, %v6092
      %v6094 = vrot.slane %v5974, 1
      %v6095 = vrot.slane %v5975, 1
      %v6096 = vsel %vm2680, %v6094, %v6095
      %v6097 = vrot.slane %v5976, 1
      %v6098 = vsel %vm2680, %v6095, %v6097
      %v6099 = vrot.slane %v5977, 1
      %v6100 = vrot.slane %v5978, 1
      %v6101 = vsel %vm2680, %v6099, %v6100
      %v6102 = vrot.slane %v5979, 1
      %v6103 = vsel %vm2680, %v6100, %v6102
      %v6104 = vrot.slane %v5980, 1
      %v6105 = vrot.slane %v5981, 1
      %v6106 = vsel %vm2680, %v6104, %v6105
      %v6107 = vrot.slane %v5982, 1
      %v6108 = vsel %vm2680, %v6105, %v6107
      %v6109 = vrot.slane %v5983, 1
      %v6110 = vrot.slane %v5984, 1
      %v6111 = vsel %vm2680, %v6109, %v6110
      %v6112 = vrot.slane %v5985, 1
      %v6113 = vsel %vm2680, %v6110, %v6112
      %v6162 = vadd.f32 %v5116, %v6036
      %v6163 = vadd.f32 %v5117, %v6038
      %v6164 = vadd.f32 %v5118, %v6037
      %v6165 = vadd.f32 %v5119, %v6041
      %v6166 = vadd.f32 %v5120, %v6043
      %v6167 = vadd.f32 %v5121, %v6042
      %v6168 = vadd.f32 %v5122, %v6046
      %v6169 = vadd.f32 %v5123, %v6048
      %v6170 = vadd.f32 %v5124, %v6047
      %v6171 = vadd.f32 %v5125, %v6051
      %v6172 = vadd.f32 %v5126, %v6053
      %v6173 = vadd.f32 %v5127, %v6052
      %v6174 = vadd.f32 %v5128, %v6056
      %v6175 = vadd.f32 %v5129, %v6058
      %v6176 = vadd.f32 %v5130, %v6057
      %v6177 = vadd.f32 %v5131, %v6061
      %v6178 = vadd.f32 %v5132, %v6063
      %v6179 = vadd.f32 %v5133, %v6062
      %v6180 = vadd.f32 %v5134, %v6066
      %v6181 = vadd.f32 %v5135, %v6068
      %v6182 = vadd.f32 %v5136, %v6067
      %v6183 = vadd.f32 %v5137, %v6071
      %v6184 = vadd.f32 %v5138, %v6073
      %v6185 = vadd.f32 %v5139, %v6072
      %v6186 = vadd.f32 %v5140, %v6076
      %v6187 = vadd.f32 %v5141, %v6078
      %v6188 = vadd.f32 %v5142, %v6077
      %v6189 = vadd.f32 %v5143, %v6081
      %v6190 = vadd.f32 %v5144, %v6083
      %v6191 = vadd.f32 %v5145, %v6082
      %v6192 = vadd.f32 %v5146, %v6086
      %v6193 = vadd.f32 %v5147, %v6088
      %v6194 = vadd.f32 %v5148, %v6087
      %v6195 = vadd.f32 %v5149, %v6091
      %v6196 = vadd.f32 %v5150, %v6093
      %v6197 = vadd.f32 %v5151, %v6092
      %v6198 = vadd.f32 %v5152, %v6096
      %v6199 = vadd.f32 %v5153, %v6098
      %v6200 = vadd.f32 %v5154, %v6097
      %v6201 = vadd.f32 %v5155, %v6101
      %v6202 = vadd.f32 %v5156, %v6103
      %v6203 = vadd.f32 %v5157, %v6102
      %v6204 = vadd.f32 %v5158, %v6106
      %v6205 = vadd.f32 %v5159, %v6108
      %v6206 = vadd.f32 %v5160, %v6107
      %v6207 = vadd.f32 %v5161, %v6111
      %v6208 = vadd.f32 %v5162, %v6113
      %v6209 = vadd.f32 %v5163, %v6112
      %s6210 = scalar_lea.vmem %s5, 64
      %v6211 = vld [vmem:[%s6210] sm:$0xf]
      %v6212 = vld [vmem:[%s6210 + $0x4] sm:$0xf]
      %v6213 = vld [vmem:[%s6210 + $0x8] sm:$0xf]
      %v6214 = vld [vmem:[%s6210 + $0xc] sm:$0xf]
      %v6215 = vld [vmem:[%s6210 + $0x10] sm:$0xf]
      %v6216 = vld [vmem:[%s6210 + $0x14] sm:$0xf]
      %v6217 = vld [vmem:[%s6210 + $0x18] sm:$0xf]
      %v6218 = vld [vmem:[%s6210 + $0x1c] sm:$0xf]
      %s6219 = scalar_lea.vmem %s5, 160
      %v6220 = vld [vmem:[%s6219] sm:$0xf]
      %v6221 = vld [vmem:[%s6219 + $0x4] sm:$0xf]
      %v6222 = vld [vmem:[%s6219 + $0x8] sm:$0xf]
      %v6223 = vld [vmem:[%s6219 + $0xc] sm:$0xf]
      %v6224 = vld [vmem:[%s6219 + $0x10] sm:$0xf]
      %v6225 = vld [vmem:[%s6219 + $0x14] sm:$0xf]
      %v6226 = vld [vmem:[%s6219 + $0x18] sm:$0xf]
      %v6227 = vld [vmem:[%s6219 + $0x1c] sm:$0xf]
      %v6236 = vunpack.c.l.b16 %v6220
      %v6237 = vunpack.c.l.b16 %v6221
      %v6238 = vunpack.c.l.b16 %v6222
      %v6239 = vunpack.c.l.b16 %v6223
      %v6240 = vunpack.c.l.b16 %v6224
      %v6241 = vunpack.c.l.b16 %v6225
      %v6242 = vunpack.c.l.b16 %v6226
      %v6243 = vunpack.c.l.b16 %v6227
      %v6244 = vpack.c.b16 %v6237, %v6236
      %v6245 = vpack.c.b16 %v6239, %v6238
      %v6246 = vpack.c.b16 %v6241, %v6240
      %v6247 = vpack.c.b16 %v6243, %v6242
      %6252 = vmatprep.subr.bf16.mxu0 0
      %6253 = vmatpush1.bf16.msra.mxu0 %v6244
      %6254 = vmatprep.subr.bf16.mxu0 0
      %6255 = vmatpush1.bf16.msra.mxu0 %v6245
      %6256 = vmatprep.subr.bf16.mxu0 0
      %6257 = vmatpush1.bf16.msra.mxu0 %v6246
      %6258 = vmatprep.subr.bf16.mxu0 0
      %6259 = vmatpush1.bf16.msra.mxu0 %v6247
      %6260 = vmatprep.subr.bf16.mxu0 0
      %6261 = vmatpush1.bf16.msra.mxu0 0
      %6262 = vmatprep.subr.bf16.mxu0 0
      %6263 = vmatpush1.bf16.msra.mxu0 0
      %6264 = vmatprep.subr.bf16.mxu0 0
      %6265 = vmatpush1.bf16.msra.mxu0 0
      %6266 = vmatprep.subr.bf16.mxu0 0
      %6267 = vmatpush1.bf16.msra.mxu0 0
      %6268 = vmatprep.subr.bf16.mxu0 0
      %6269 = vmatpush1.bf16.msra.mxu0 0
      %6270 = vmatprep.subr.bf16.mxu0 0
      %6271 = vmatpush1.bf16.msra.mxu0 0
      %6272 = vmatprep.subr.bf16.mxu0 0
      %6273 = vmatpush1.bf16.msra.mxu0 0
      %6274 = vmatprep.subr.bf16.mxu0 0
      %6275 = vmatpush1.bf16.msra.mxu0 0
      %6276 = vmatprep.subr.bf16.mxu0 0
      %6277 = vmatpush1.bf16.msra.mxu0 0
      %6278 = vmatprep.subr.bf16.mxu0 0
      %6279 = vmatpush1.bf16.msra.mxu0 0
      %6280 = vmatprep.subr.bf16.mxu0 0
      %6281 = vmatpush1.bf16.msra.mxu0 0
      %6282 = vmatprep.subr.bf16.mxu0 0
      %6283 = vmatpush1.bf16.msra.mxu0 0
      %6284 = vmatprep.mubr.bf16.mxu0 0
      %6285 = vmatmul.mubr.bf16.gmra.mrb[0].mxu0 %v4184
      %v6286 = vpop.f32.mrb[0].mxu0
      %v6287 = vadd.f32 0.0, %v6286
      %v6288 = vpop.f32.mrb[0].mxu0
      %v6289 = vpop.f32.mrb[0].mxu0
      %v6290 = vadd.f32 0.0, %v6289
      %v6291 = vpop.f32.mrb[0].mxu0
      %6292 = vmatprep.mubr.bf16.mxu0 0
      %6293 = vmatmul.mubr.bf16.gmra.mrb[0].mxu0 %v4187
      %v6294 = vpop.f32.mrb[0].mxu0
      %v6295 = vadd.f32 0.0, %v6294
      %v6296 = vpop.f32.mrb[0].mxu0
      %v6297 = vpop.f32.mrb[0].mxu0
      %v6298 = vadd.f32 0.0, %v6297
      %v6299 = vpop.f32.mrb[0].mxu0
      %6300 = vmatprep.mubr.bf16.mxu0 0
      %6301 = vmatmul.mubr.bf16.gmra.mrb[0].mxu0 %v4190
      %v6302 = vpop.f32.mrb[0].mxu0
      %v6303 = vadd.f32 0.0, %v6302
      %v6304 = vpop.f32.mrb[0].mxu0
      %v6305 = vpop.f32.mrb[0].mxu0
      %v6306 = vadd.f32 0.0, %v6305
      %v6307 = vpop.f32.mrb[0].mxu0
      %6308 = vmatprep.mubr.bf16.mxu0 0
      %6309 = vmatmul.mubr.bf16.gmra.mrb[0].mxu0 %v4193
      %v6310 = vpop.f32.mrb[0].mxu0
      %v6311 = vadd.f32 0.0, %v6310
      %v6312 = vpop.f32.mrb[0].mxu0
      %v6313 = vpop.f32.mrb[0].mxu0
      %v6314 = vadd.f32 0.0, %v6313
      %v6315 = vpop.f32.mrb[0].mxu0
      %6316 = vmatprep.mubr.bf16.mxu0 0
      %6317 = vmatmul.mubr.bf16.gmra.mrb[0].mxu0 %v4196
      %v6318 = vpop.f32.mrb[0].mxu0
      %v6319 = vadd.f32 0.0, %v6318
      %v6320 = vpop.f32.mrb[0].mxu0
      %v6321 = vpop.f32.mrb[0].mxu0
      %v6322 = vadd.f32 0.0, %v6321
      %v6323 = vpop.f32.mrb[0].mxu0
      %6324 = vmatprep.mubr.bf16.mxu0 0
      %6325 = vmatmul.mubr.bf16.gmra.mrb[0].mxu0 %v4199
      %v6326 = vpop.f32.mrb[0].mxu0
      %v6327 = vadd.f32 0.0, %v6326
      %v6328 = vpop.f32.mrb[0].mxu0
      %v6329 = vpop.f32.mrb[0].mxu0
      %v6330 = vadd.f32 0.0, %v6329
      %v6331 = vpop.f32.mrb[0].mxu0
      %6332 = vmatprep.mubr.bf16.mxu0 0
      %6333 = vmatmul.mubr.bf16.gmra.mrb[0].mxu0 %v4202
      %v6334 = vpop.f32.mrb[0].mxu0
      %v6335 = vadd.f32 0.0, %v6334
      %v6336 = vpop.f32.mrb[0].mxu0
      %v6337 = vpop.f32.mrb[0].mxu0
      %v6338 = vadd.f32 0.0, %v6337
      %v6339 = vpop.f32.mrb[0].mxu0
      %6340 = vmatprep.mubr.bf16.mxu0 0
      %6341 = vmatmul.mubr.bf16.gmra.mrb[0].mxu0 %v4205
      %v6342 = vpop.f32.mrb[0].mxu0
      %v6343 = vadd.f32 0.0, %v6342
      %v6344 = vpop.f32.mrb[0].mxu0
      %v6345 = vpop.f32.mrb[0].mxu0
      %v6346 = vadd.f32 0.0, %v6345
      %v6347 = vpop.f32.mrb[0].mxu0
      %6348 = vmatprep.mubr.bf16.mxu0 0
      %6349 = vmatmul.mubr.bf16.gmra.mrb[0].mxu0 %v4208
      %v6350 = vpop.f32.mrb[0].mxu0
      %v6351 = vadd.f32 0.0, %v6350
      %v6352 = vpop.f32.mrb[0].mxu0
      %v6353 = vpop.f32.mrb[0].mxu0
      %v6354 = vadd.f32 0.0, %v6353
      %v6355 = vpop.f32.mrb[0].mxu0
      %6356 = vmatprep.mubr.bf16.mxu0 0
      %6357 = vmatmul.mubr.bf16.gmra.mrb[0].mxu0 %v4211
      %v6358 = vpop.f32.mrb[0].mxu0
      %v6359 = vadd.f32 0.0, %v6358
      %v6360 = vpop.f32.mrb[0].mxu0
      %v6361 = vpop.f32.mrb[0].mxu0
      %v6362 = vadd.f32 0.0, %v6361
      %v6363 = vpop.f32.mrb[0].mxu0
      %6364 = vmatprep.mubr.bf16.mxu0 0
      %6365 = vmatmul.mubr.bf16.gmra.mrb[0].mxu0 %v4214
      %v6366 = vpop.f32.mrb[0].mxu0
      %v6367 = vadd.f32 0.0, %v6366
      %v6368 = vpop.f32.mrb[0].mxu0
      %v6369 = vpop.f32.mrb[0].mxu0
      %v6370 = vadd.f32 0.0, %v6369
      %v6371 = vpop.f32.mrb[0].mxu0
      %6372 = vmatprep.mubr.bf16.mxu0 0
      %6373 = vmatmul.mubr.bf16.gmra.mrb[0].mxu0 %v4217
      %v6374 = vpop.f32.mrb[0].mxu0
      %v6375 = vadd.f32 0.0, %v6374
      %v6376 = vpop.f32.mrb[0].mxu0
      %v6377 = vpop.f32.mrb[0].mxu0
      %v6378 = vadd.f32 0.0, %v6377
      %v6379 = vpop.f32.mrb[0].mxu0
      %6380 = vmatprep.mubr.bf16.mxu0 0
      %6381 = vmatmul.mubr.bf16.gmra.mrb[0].mxu0 %v4220
      %v6382 = vpop.f32.mrb[0].mxu0
      %v6383 = vadd.f32 0.0, %v6382
      %v6384 = vpop.f32.mrb[0].mxu0
      %v6385 = vpop.f32.mrb[0].mxu0
      %v6386 = vadd.f32 0.0, %v6385
      %v6387 = vpop.f32.mrb[0].mxu0
      %6388 = vmatprep.mubr.bf16.mxu0 0
      %6389 = vmatmul.mubr.bf16.gmra.mrb[0].mxu0 %v4223
      %v6390 = vpop.f32.mrb[0].mxu0
      %v6391 = vadd.f32 0.0, %v6390
      %v6392 = vpop.f32.mrb[0].mxu0
      %v6393 = vpop.f32.mrb[0].mxu0
      %v6394 = vadd.f32 0.0, %v6393
      %v6395 = vpop.f32.mrb[0].mxu0
      %6396 = vmatprep.mubr.bf16.mxu0 0
      %6397 = vmatmul.mubr.bf16.gmra.mrb[0].mxu0 %v4226
      %v6398 = vpop.f32.mrb[0].mxu0
      %v6399 = vadd.f32 0.0, %v6398
      %v6400 = vpop.f32.mrb[0].mxu0
      %v6401 = vpop.f32.mrb[0].mxu0
      %v6402 = vadd.f32 0.0, %v6401
      %v6403 = vpop.f32.mrb[0].mxu0
      %6404 = vmatprep.mubr.bf16.mxu0 0
      %6405 = vmatmul.mubr.bf16.gmra.mrb[0].mxu0 %v4229
      %v6406 = vpop.f32.mrb[0].mxu0
      %v6407 = vadd.f32 0.0, %v6406
      %v6408 = vpop.f32.mrb[0].mxu0
      %v6409 = vpop.f32.mrb[0].mxu0
      %v6410 = vadd.f32 0.0, %v6409
      %v6411 = vpop.f32.mrb[0].mxu0
      %6412 = vmatprep.mubr.bf16.mxu0 0
      %6413 = vmatmul.mubr.bf16.gmra.mrb[0].mxu0 %v4232
      %v6414 = vpop.f32.mrb[0].mxu0
      %v6415 = vadd.f32 0.0, %v6414
      %v6416 = vpop.f32.mrb[0].mxu0
      %v6417 = vpop.f32.mrb[0].mxu0
      %v6418 = vadd.f32 0.0, %v6417
      %v6419 = vpop.f32.mrb[0].mxu0
      %6420 = vmatprep.mubr.bf16.mxu0 0
      %6421 = vmatmul.mubr.bf16.gmra.mrb[0].mxu0 %v4235
      %v6422 = vpop.f32.mrb[0].mxu0
      %v6423 = vadd.f32 0.0, %v6422
      %v6424 = vpop.f32.mrb[0].mxu0
      %v6425 = vpop.f32.mrb[0].mxu0
      %v6426 = vadd.f32 0.0, %v6425
      %v6427 = vpop.f32.mrb[0].mxu0
      %6428 = vmatprep.mubr.bf16.mxu0 0
      %6429 = vmatmul.mubr.bf16.gmra.mrb[0].mxu0 %v4238
      %v6430 = vpop.f32.mrb[0].mxu0
      %v6431 = vadd.f32 0.0, %v6430
      %v6432 = vpop.f32.mrb[0].mxu0
      %v6433 = vpop.f32.mrb[0].mxu0
      %v6434 = vadd.f32 0.0, %v6433
      %v6435 = vpop.f32.mrb[0].mxu0
      %6436 = vmatprep.mubr.bf16.mxu0 0
      %6437 = vmatmul.mubr.bf16.gmra.mrb[0].mxu0 %v4241
      %v6438 = vpop.f32.mrb[0].mxu0
      %v6439 = vadd.f32 0.0, %v6438
      %v6440 = vpop.f32.mrb[0].mxu0
      %v6441 = vpop.f32.mrb[0].mxu0
      %v6442 = vadd.f32 0.0, %v6441
      %v6443 = vpop.f32.mrb[0].mxu0
      %6444 = vmatprep.mubr.bf16.mxu0 0
      %6445 = vmatmul.mubr.bf16.gmra.mrb[0].mxu0 %v4244
      %v6446 = vpop.f32.mrb[0].mxu0
      %v6447 = vadd.f32 0.0, %v6446
      %v6448 = vpop.f32.mrb[0].mxu0
      %v6449 = vpop.f32.mrb[0].mxu0
      %v6450 = vadd.f32 0.0, %v6449
      %v6451 = vpop.f32.mrb[0].mxu0
      %6452 = vmatprep.mubr.bf16.mxu0 0
      %6453 = vmatmul.mubr.bf16.gmra.mrb[0].mxu0 %v4247
      %v6454 = vpop.f32.mrb[0].mxu0
      %v6455 = vadd.f32 0.0, %v6454
      %v6456 = vpop.f32.mrb[0].mxu0
      %v6457 = vpop.f32.mrb[0].mxu0
      %v6458 = vadd.f32 0.0, %v6457
      %v6459 = vpop.f32.mrb[0].mxu0
      %6460 = vmatprep.mubr.bf16.mxu0 0
      %6461 = vmatmul.mubr.bf16.gmra.mrb[0].mxu0 %v4250
      %v6462 = vpop.f32.mrb[0].mxu0
      %v6463 = vadd.f32 0.0, %v6462
      %v6464 = vpop.f32.mrb[0].mxu0
      %v6465 = vpop.f32.mrb[0].mxu0
      %v6466 = vadd.f32 0.0, %v6465
      %v6467 = vpop.f32.mrb[0].mxu0
      %6468 = vmatprep.mubr.bf16.mxu0 0
      %6469 = vmatmul.mubr.bf16.gmra.mrb[0].mxu0 %v4253
      %v6470 = vpop.f32.mrb[0].mxu0
      %v6471 = vadd.f32 0.0, %v6470
      %v6472 = vpop.f32.mrb[0].mxu0
      %v6473 = vpop.f32.mrb[0].mxu0
      %v6474 = vadd.f32 0.0, %v6473
      %v6475 = vpop.f32.mrb[0].mxu0
      %6476 = vdwg.mxu0
      %v6485 = vunpack.c.l.b16 %v6211
      %v6486 = vunpack.c.l.b16 %v6212
      %v6487 = vunpack.c.l.b16 %v6213
      %v6488 = vunpack.c.l.b16 %v6214
      %v6489 = vunpack.c.l.b16 %v6215
      %v6490 = vunpack.c.l.b16 %v6216
      %v6491 = vunpack.c.l.b16 %v6217
      %v6492 = vunpack.c.l.b16 %v6218
      %v6493 = vpack.c.b16 %v6486, %v6485
      %v6494 = vpack.c.b16 %v6488, %v6487
      %v6495 = vpack.c.b16 %v6490, %v6489
      %v6496 = vpack.c.b16 %v6492, %v6491
      %6501 = vmatprep.subr.bf16.mxu0 0
      %6502 = vmatpush1.bf16.msra.mxu0 %v6493
      %6503 = vmatprep.subr.bf16.mxu0 0
      %6504 = vmatpush1.bf16.msra.mxu0 %v6494
      %6505 = vmatprep.subr.bf16.mxu0 0
      %6506 = vmatpush1.bf16.msra.mxu0 %v6495
      %6507 = vmatprep.subr.bf16.mxu0 0
      %6508 = vmatpush1.bf16.msra.mxu0 %v6496
      %6509 = vmatprep.subr.bf16.mxu0 0
      %6510 = vmatpush1.bf16.msra.mxu0 0
      %6511 = vmatprep.subr.bf16.mxu0 0
      %6512 = vmatpush1.bf16.msra.mxu0 0
      %6513 = vmatprep.subr.bf16.mxu0 0
      %6514 = vmatpush1.bf16.msra.mxu0 0
      %6515 = vmatprep.subr.bf16.mxu0 0
      %6516 = vmatpush1.bf16.msra.mxu0 0
      %6517 = vmatprep.subr.bf16.mxu0 0
      %6518 = vmatpush1.bf16.msra.mxu0 0
      %6519 = vmatprep.subr.bf16.mxu0 0
      %6520 = vmatpush1.bf16.msra.mxu0 0
      %6521 = vmatprep.subr.bf16.mxu0 0
      %6522 = vmatpush1.bf16.msra.mxu0 0
      %6523 = vmatprep.subr.bf16.mxu0 0
      %6524 = vmatpush1.bf16.msra.mxu0 0
      %6525 = vmatprep.subr.bf16.mxu0 0
      %6526 = vmatpush1.bf16.msra.mxu0 0
      %6527 = vmatprep.subr.bf16.mxu0 0
      %6528 = vmatpush1.bf16.msra.mxu0 0
      %6529 = vmatprep.subr.bf16.mxu0 0
      %6530 = vmatpush1.bf16.msra.mxu0 0
      %6531 = vmatprep.subr.bf16.mxu0 0
      %6532 = vmatpush1.bf16.msra.mxu0 0
      %6533 = vmatprep.mubr.bf16.mxu0 0
      %6534 = vmatmul.mubr.bf16.gmra.mrb[0].mxu0 %v4505
      %v6535 = vpop.f32.mrb[0].mxu0
      %v6536 = vadd.f32 %v6287, %v6535
      %v6537 = vpop.f32.mrb[0].mxu0
      %v6538 = vpop.f32.mrb[0].mxu0
      %v6539 = vadd.f32 %v6290, %v6538
      %v6540 = vpop.f32.mrb[0].mxu0
      %6541 = vmatprep.mubr.bf16.mxu0 0
      %6542 = vmatmul.mubr.bf16.gmra.mrb[0].mxu0 %v4508
      %v6543 = vpop.f32.mrb[0].mxu0
      %v6544 = vadd.f32 %v6295, %v6543
      %v6545 = vpop.f32.mrb[0].mxu0
      %v6546 = vpop.f32.mrb[0].mxu0
      %v6547 = vadd.f32 %v6298, %v6546
      %v6548 = vpop.f32.mrb[0].mxu0
      %6549 = vmatprep.mubr.bf16.mxu0 0
      %6550 = vmatmul.mubr.bf16.gmra.mrb[0].mxu0 %v4511
      %v6551 = vpop.f32.mrb[0].mxu0
      %v6552 = vadd.f32 %v6303, %v6551
      %v6553 = vpop.f32.mrb[0].mxu0
      %v6554 = vpop.f32.mrb[0].mxu0
      %v6555 = vadd.f32 %v6306, %v6554
      %v6556 = vpop.f32.mrb[0].mxu0
      %6557 = vmatprep.mubr.bf16.mxu0 0
      %6558 = vmatmul.mubr.bf16.gmra.mrb[0].mxu0 %v4514
      %v6559 = vpop.f32.mrb[0].mxu0
      %v6560 = vadd.f32 %v6311, %v6559
      %v6561 = vpop.f32.mrb[0].mxu0
      %v6562 = vpop.f32.mrb[0].mxu0
      %v6563 = vadd.f32 %v6314, %v6562
      %v6564 = vpop.f32.mrb[0].mxu0
      %6565 = vmatprep.mubr.bf16.mxu0 0
      %6566 = vmatmul.mubr.bf16.gmra.mrb[0].mxu0 %v4517
      %v6567 = vpop.f32.mrb[0].mxu0
      %v6568 = vadd.f32 %v6319, %v6567
      %v6569 = vpop.f32.mrb[0].mxu0
      %v6570 = vpop.f32.mrb[0].mxu0
      %v6571 = vadd.f32 %v6322, %v6570
      %v6572 = vpop.f32.mrb[0].mxu0
      %6573 = vmatprep.mubr.bf16.mxu0 0
      %6574 = vmatmul.mubr.bf16.gmra.mrb[0].mxu0 %v4520
      %v6575 = vpop.f32.mrb[0].mxu0
      %v6576 = vadd.f32 %v6327, %v6575
      %v6577 = vpop.f32.mrb[0].mxu0
      %v6578 = vpop.f32.mrb[0].mxu0
      %v6579 = vadd.f32 %v6330, %v6578
      %v6580 = vpop.f32.mrb[0].mxu0
      %6581 = vmatprep.mubr.bf16.mxu0 0
      %6582 = vmatmul.mubr.bf16.gmra.mrb[0].mxu0 %v4523
      %v6583 = vpop.f32.mrb[0].mxu0
      %v6584 = vadd.f32 %v6335, %v6583
      %v6585 = vpop.f32.mrb[0].mxu0
      %v6586 = vpop.f32.mrb[0].mxu0
      %v6587 = vadd.f32 %v6338, %v6586
      %v6588 = vpop.f32.mrb[0].mxu0
      %6589 = vmatprep.mubr.bf16.mxu0 0
      %6590 = vmatmul.mubr.bf16.gmra.mrb[0].mxu0 %v4526
      %v6591 = vpop.f32.mrb[0].mxu0
      %v6592 = vadd.f32 %v6343, %v6591
      %v6593 = vpop.f32.mrb[0].mxu0
      %v6594 = vpop.f32.mrb[0].mxu0
      %v6595 = vadd.f32 %v6346, %v6594
      %v6596 = vpop.f32.mrb[0].mxu0
      %6597 = vmatprep.mubr.bf16.mxu0 0
      %6598 = vmatmul.mubr.bf16.gmra.mrb[0].mxu0 %v4529
      %v6599 = vpop.f32.mrb[0].mxu0
      %v6600 = vadd.f32 %v6351, %v6599
      %v6601 = vpop.f32.mrb[0].mxu0
      %v6602 = vpop.f32.mrb[0].mxu0
      %v6603 = vadd.f32 %v6354, %v6602
      %v6604 = vpop.f32.mrb[0].mxu0
      %6605 = vmatprep.mubr.bf16.mxu0 0
      %6606 = vmatmul.mubr.bf16.gmra.mrb[0].mxu0 %v4532
      %v6607 = vpop.f32.mrb[0].mxu0
      %v6608 = vadd.f32 %v6359, %v6607
      %v6609 = vpop.f32.mrb[0].mxu0
      %v6610 = vpop.f32.mrb[0].mxu0
      %v6611 = vadd.f32 %v6362, %v6610
      %v6612 = vpop.f32.mrb[0].mxu0
      %6613 = vmatprep.mubr.bf16.mxu0 0
      %6614 = vmatmul.mubr.bf16.gmra.mrb[0].mxu0 %v4535
      %v6615 = vpop.f32.mrb[0].mxu0
      %v6616 = vadd.f32 %v6367, %v6615
      %v6617 = vpop.f32.mrb[0].mxu0
      %v6618 = vpop.f32.mrb[0].mxu0
      %v6619 = vadd.f32 %v6370, %v6618
      %v6620 = vpop.f32.mrb[0].mxu0
      %6621 = vmatprep.mubr.bf16.mxu0 0
      %6622 = vmatmul.mubr.bf16.gmra.mrb[0].mxu0 %v4538
      %v6623 = vpop.f32.mrb[0].mxu0
      %v6624 = vadd.f32 %v6375, %v6623
      %v6625 = vpop.f32.mrb[0].mxu0
      %v6626 = vpop.f32.mrb[0].mxu0
      %v6627 = vadd.f32 %v6378, %v6626
      %v6628 = vpop.f32.mrb[0].mxu0
      %6629 = vmatprep.mubr.bf16.mxu0 0
      %6630 = vmatmul.mubr.bf16.gmra.mrb[0].mxu0 %v4541
      %v6631 = vpop.f32.mrb[0].mxu0
      %v6632 = vadd.f32 %v6383, %v6631
      %v6633 = vpop.f32.mrb[0].mxu0
      %v6634 = vpop.f32.mrb[0].mxu0
      %v6635 = vadd.f32 %v6386, %v6634
      %v6636 = vpop.f32.mrb[0].mxu0
      %6637 = vmatprep.mubr.bf16.mxu0 0
      %6638 = vmatmul.mubr.bf16.gmra.mrb[0].mxu0 %v4544
      %v6639 = vpop.f32.mrb[0].mxu0
      %v6640 = vadd.f32 %v6391, %v6639
      %v6641 = vpop.f32.mrb[0].mxu0
      %v6642 = vpop.f32.mrb[0].mxu0
      %v6643 = vadd.f32 %v6394, %v6642
      %v6644 = vpop.f32.mrb[0].mxu0
      %6645 = vmatprep.mubr.bf16.mxu0 0
      %6646 = vmatmul.mubr.bf16.gmra.mrb[0].mxu0 %v4547
      %v6647 = vpop.f32.mrb[0].mxu0
      %v6648 = vadd.f32 %v6399, %v6647
      %v6649 = vpop.f32.mrb[0].mxu0
      %v6650 = vpop.f32.mrb[0].mxu0
      %v6651 = vadd.f32 %v6402, %v6650
      %v6652 = vpop.f32.mrb[0].mxu0
      %6653 = vmatprep.mubr.bf16.mxu0 0
      %6654 = vmatmul.mubr.bf16.gmra.mrb[0].mxu0 %v4550
      %v6655 = vpop.f32.mrb[0].mxu0
      %v6656 = vadd.f32 %v6407, %v6655
      %v6657 = vpop.f32.mrb[0].mxu0
      %v6658 = vpop.f32.mrb[0].mxu0
      %v6659 = vadd.f32 %v6410, %v6658
      %v6660 = vpop.f32.mrb[0].mxu0
      %6661 = vmatprep.mubr.bf16.mxu0 0
      %6662 = vmatmul.mubr.bf16.gmra.mrb[0].mxu0 %v4553
      %v6663 = vpop.f32.mrb[0].mxu0
      %v6664 = vadd.f32 %v6415, %v6663
      %v6665 = vpop.f32.mrb[0].mxu0
      %v6666 = vpop.f32.mrb[0].mxu0
      %v6667 = vadd.f32 %v6418, %v6666
      %v6668 = vpop.f32.mrb[0].mxu0
      %6669 = vmatprep.mubr.bf16.mxu0 0
      %6670 = vmatmul.mubr.bf16.gmra.mrb[0].mxu0 %v4556
      %v6671 = vpop.f32.mrb[0].mxu0
      %v6672 = vadd.f32 %v6423, %v6671
      %v6673 = vpop.f32.mrb[0].mxu0
      %v6674 = vpop.f32.mrb[0].mxu0
      %v6675 = vadd.f32 %v6426, %v6674
      %v6676 = vpop.f32.mrb[0].mxu0
      %6677 = vmatprep.mubr.bf16.mxu0 0
      %6678 = vmatmul.mubr.bf16.gmra.mrb[0].mxu0 %v4559
      %v6679 = vpop.f32.mrb[0].mxu0
      %v6680 = vadd.f32 %v6431, %v6679
      %v6681 = vpop.f32.mrb[0].mxu0
      %v6682 = vpop.f32.mrb[0].mxu0
      %v6683 = vadd.f32 %v6434, %v6682
      %v6684 = vpop.f32.mrb[0].mxu0
      %6685 = vmatprep.mubr.bf16.mxu0 0
      %6686 = vmatmul.mubr.bf16.gmra.mrb[0].mxu0 %v4562
      %v6687 = vpop.f32.mrb[0].mxu0
      %v6688 = vadd.f32 %v6439, %v6687
      %v6689 = vpop.f32.mrb[0].mxu0
      %v6690 = vpop.f32.mrb[0].mxu0
      %v6691 = vadd.f32 %v6442, %v6690
      %v6692 = vpop.f32.mrb[0].mxu0
      %6693 = vmatprep.mubr.bf16.mxu0 0
      %6694 = vmatmul.mubr.bf16.gmra.mrb[0].mxu0 %v4565
      %v6695 = vpop.f32.mrb[0].mxu0
      %v6696 = vadd.f32 %v6447, %v6695
      %v6697 = vpop.f32.mrb[0].mxu0
      %v6698 = vpop.f32.mrb[0].mxu0
      %v6699 = vadd.f32 %v6450, %v6698
      %v6700 = vpop.f32.mrb[0].mxu0
      %6701 = vmatprep.mubr.bf16.mxu0 0
      %6702 = vmatmul.mubr.bf16.gmra.mrb[0].mxu0 %v4568
      %v6703 = vpop.f32.mrb[0].mxu0
      %v6704 = vadd.f32 %v6455, %v6703
      %v6705 = vpop.f32.mrb[0].mxu0
      %v6706 = vpop.f32.mrb[0].mxu0
      %v6707 = vadd.f32 %v6458, %v6706
      %v6708 = vpop.f32.mrb[0].mxu0
      %6709 = vmatprep.mubr.bf16.mxu0 0
      %6710 = vmatmul.mubr.bf16.gmra.mrb[0].mxu0 %v4571
      %v6711 = vpop.f32.mrb[0].mxu0
      %v6712 = vadd.f32 %v6463, %v6711
      %v6713 = vpop.f32.mrb[0].mxu0
      %v6714 = vpop.f32.mrb[0].mxu0
      %v6715 = vadd.f32 %v6466, %v6714
      %v6716 = vpop.f32.mrb[0].mxu0
      %6717 = vmatprep.mubr.bf16.mxu0 0
      %6718 = vmatmul.mubr.bf16.gmra.mrb[0].mxu0 %v4574
      %v6719 = vpop.f32.mrb[0].mxu0
      %v6720 = vadd.f32 %v6471, %v6719
      %v6721 = vpop.f32.mrb[0].mxu0
      %v6722 = vpop.f32.mrb[0].mxu0
      %v6723 = vadd.f32 %v6474, %v6722
      %v6724 = vpop.f32.mrb[0].mxu0
      %6725 = vdwg.mxu0
      %s6726 = scalar_lea.vmem %s5, 256
      %v6727 = vld [vmem:[%s6726] sm:$0xf]
      %v6728 = vld [vmem:[%s6726 + $0x4] sm:$0xf]
      %v6729 = vld [vmem:[%s6726 + $0x8] sm:$0xf]
      %v6730 = vld [vmem:[%s6726 + $0xc] sm:$0xf]
      %v6731 = vld [vmem:[%s6726 + $0x10] sm:$0xf]
      %v6732 = vld [vmem:[%s6726 + $0x14] sm:$0xf]
      %v6733 = vld [vmem:[%s6726 + $0x18] sm:$0xf]
      %v6734 = vld [vmem:[%s6726 + $0x1c] sm:$0xf]
      %v6743 = vunpack.c.l.b16 %v6727
      %v6744 = vunpack.c.l.b16 %v6728
      %v6745 = vunpack.c.l.b16 %v6729
      %v6746 = vunpack.c.l.b16 %v6730
      %v6747 = vunpack.c.l.b16 %v6731
      %v6748 = vunpack.c.l.b16 %v6732
      %v6749 = vunpack.c.l.b16 %v6733
      %v6750 = vunpack.c.l.b16 %v6734
      %v6751 = vpack.c.b16 %v6744, %v6743
      %v6752 = vpack.c.b16 %v6746, %v6745
      %v6753 = vpack.c.b16 %v6748, %v6747
      %v6754 = vpack.c.b16 %v6750, %v6749
      %6759 = vmatprep.subr.bf16.mxu0 0
      %6760 = vmatpush1.bf16.msra.mxu0 %v6751
      %6761 = vmatprep.subr.bf16.mxu0 0
      %6762 = vmatpush1.bf16.msra.mxu0 %v6752
      %6763 = vmatprep.subr.bf16.mxu0 0
      %6764 = vmatpush1.bf16.msra.mxu0 %v6753
      %6765 = vmatprep.subr.bf16.mxu0 0
      %6766 = vmatpush1.bf16.msra.mxu0 %v6754
      %6767 = vmatprep.subr.bf16.mxu0 0
      %6768 = vmatpush1.bf16.msra.mxu0 0
      %6769 = vmatprep.subr.bf16.mxu0 0
      %6770 = vmatpush1.bf16.msra.mxu0 0
      %6771 = vmatprep.subr.bf16.mxu0 0
      %6772 = vmatpush1.bf16.msra.mxu0 0
      %6773 = vmatprep.subr.bf16.mxu0 0
      %6774 = vmatpush1.bf16.msra.mxu0 0
      %6775 = vmatprep.subr.bf16.mxu0 0
      %6776 = vmatpush1.bf16.msra.mxu0 0
      %6777 = vmatprep.subr.bf16.mxu0 0
      %6778 = vmatpush1.bf16.msra.mxu0 0
      %6779 = vmatprep.subr.bf16.mxu0 0
      %6780 = vmatpush1.bf16.msra.mxu0 0
      %6781 = vmatprep.subr.bf16.mxu0 0
      %6782 = vmatpush1.bf16.msra.mxu0 0
      %6783 = vmatprep.subr.bf16.mxu0 0
      %6784 = vmatpush1.bf16.msra.mxu0 0
      %6785 = vmatprep.subr.bf16.mxu0 0
      %6786 = vmatpush1.bf16.msra.mxu0 0
      %6787 = vmatprep.subr.bf16.mxu0 0
      %6788 = vmatpush1.bf16.msra.mxu0 0
      %6789 = vmatprep.subr.bf16.mxu0 0
      %6790 = vmatpush1.bf16.msra.mxu0 0
      %6791 = vmatprep.mubr.bf16.mxu0 0
      %6792 = vmatmul.mubr.bf16.gmra.mrb[0].mxu0 %v4514
      %v6793 = vpop.f32.mrb[0].mxu0
      %v6794 = vadd.f32 0.0, %v6793
      %v6795 = vpop.f32.mrb[0].mxu0
      %v6796 = vpop.f32.mrb[0].mxu0
      %v6797 = vadd.f32 0.0, %v6796
      %v6798 = vpop.f32.mrb[0].mxu0
      %6799 = vmatprep.mubr.bf16.mxu0 0
      %6800 = vmatmul.mubr.bf16.gmra.mrb[0].mxu0 %v4517
      %v6801 = vpop.f32.mrb[0].mxu0
      %v6802 = vadd.f32 0.0, %v6801
      %v6803 = vpop.f32.mrb[0].mxu0
      %v6804 = vpop.f32.mrb[0].mxu0
      %v6805 = vadd.f32 0.0, %v6804
      %v6806 = vpop.f32.mrb[0].mxu0
      %6807 = vmatprep.mubr.bf16.mxu0 0
      %6808 = vmatmul.mubr.bf16.gmra.mrb[0].mxu0 %v4520
      %v6809 = vpop.f32.mrb[0].mxu0
      %v6810 = vadd.f32 0.0, %v6809
      %v6811 = vpop.f32.mrb[0].mxu0
      %v6812 = vpop.f32.mrb[0].mxu0
      %v6813 = vadd.f32 0.0, %v6812
      %v6814 = vpop.f32.mrb[0].mxu0
      %6815 = vmatprep.mubr.bf16.mxu0 0
      %6816 = vmatmul.mubr.bf16.gmra.mrb[0].mxu0 %v4523
      %v6817 = vpop.f32.mrb[0].mxu0
      %v6818 = vadd.f32 0.0, %v6817
      %v6819 = vpop.f32.mrb[0].mxu0
      %v6820 = vpop.f32.mrb[0].mxu0
      %v6821 = vadd.f32 0.0, %v6820
      %v6822 = vpop.f32.mrb[0].mxu0
      %6823 = vmatprep.mubr.bf16.mxu0 0
      %6824 = vmatmul.mubr.bf16.gmra.mrb[0].mxu0 %v4526
      %v6825 = vpop.f32.mrb[0].mxu0
      %v6826 = vadd.f32 0.0, %v6825
      %v6827 = vpop.f32.mrb[0].mxu0
      %v6828 = vpop.f32.mrb[0].mxu0
      %v6829 = vadd.f32 0.0, %v6828
      %v6830 = vpop.f32.mrb[0].mxu0
      %6831 = vmatprep.mubr.bf16.mxu0 0
      %6832 = vmatmul.mubr.bf16.gmra.mrb[0].mxu0 %v4529
      %v6833 = vpop.f32.mrb[0].mxu0
      %v6834 = vadd.f32 0.0, %v6833
      %v6835 = vpop.f32.mrb[0].mxu0
      %v6836 = vpop.f32.mrb[0].mxu0
      %v6837 = vadd.f32 0.0, %v6836
      %v6838 = vpop.f32.mrb[0].mxu0
      %6839 = vmatprep.mubr.bf16.mxu0 0
      %6840 = vmatmul.mubr.bf16.gmra.mrb[0].mxu0 %v4532
      %v6841 = vpop.f32.mrb[0].mxu0
      %v6842 = vadd.f32 0.0, %v6841
      %v6843 = vpop.f32.mrb[0].mxu0
      %v6844 = vpop.f32.mrb[0].mxu0
      %v6845 = vadd.f32 0.0, %v6844
      %v6846 = vpop.f32.mrb[0].mxu0
      %6847 = vmatprep.mubr.bf16.mxu0 0
      %6848 = vmatmul.mubr.bf16.gmra.mrb[0].mxu0 %v4535
      %v6849 = vpop.f32.mrb[0].mxu0
      %v6850 = vadd.f32 0.0, %v6849
      %v6851 = vpop.f32.mrb[0].mxu0
      %v6852 = vpop.f32.mrb[0].mxu0
      %v6853 = vadd.f32 0.0, %v6852
      %v6854 = vpop.f32.mrb[0].mxu0
      %6855 = vmatprep.mubr.bf16.mxu0 0
      %6856 = vmatmul.mubr.bf16.gmra.mrb[0].mxu0 %v4538
      %v6857 = vpop.f32.mrb[0].mxu0
      %v6858 = vadd.f32 0.0, %v6857
      %v6859 = vpop.f32.mrb[0].mxu0
      %v6860 = vpop.f32.mrb[0].mxu0
      %v6861 = vadd.f32 0.0, %v6860
      %v6862 = vpop.f32.mrb[0].mxu0
      %6863 = vmatprep.mubr.bf16.mxu0 0
      %6864 = vmatmul.mubr.bf16.gmra.mrb[0].mxu0 %v4541
      %v6865 = vpop.f32.mrb[0].mxu0
      %v6866 = vadd.f32 0.0, %v6865
      %v6867 = vpop.f32.mrb[0].mxu0
      %v6868 = vpop.f32.mrb[0].mxu0
      %v6869 = vadd.f32 0.0, %v6868
      %v6870 = vpop.f32.mrb[0].mxu0
      %6871 = vmatprep.mubr.bf16.mxu0 0
      %6872 = vmatmul.mubr.bf16.gmra.mrb[0].mxu0 %v4544
      %v6873 = vpop.f32.mrb[0].mxu0
      %v6874 = vadd.f32 0.0, %v6873
      %v6875 = vpop.f32.mrb[0].mxu0
      %v6876 = vpop.f32.mrb[0].mxu0
      %v6877 = vadd.f32 0.0, %v6876
      %v6878 = vpop.f32.mrb[0].mxu0
      %6879 = vmatprep.mubr.bf16.mxu0 0
      %6880 = vmatmul.mubr.bf16.gmra.mrb[0].mxu0 %v4547
      %v6881 = vpop.f32.mrb[0].mxu0
      %v6882 = vadd.f32 0.0, %v6881
      %v6883 = vpop.f32.mrb[0].mxu0
      %v6884 = vpop.f32.mrb[0].mxu0
      %v6885 = vadd.f32 0.0, %v6884
      %v6886 = vpop.f32.mrb[0].mxu0
      %6887 = vmatprep.mubr.bf16.mxu0 0
      %6888 = vmatmul.mubr.bf16.gmra.mrb[0].mxu0 %v4550
      %v6889 = vpop.f32.mrb[0].mxu0
      %v6890 = vadd.f32 0.0, %v6889
      %v6891 = vpop.f32.mrb[0].mxu0
      %v6892 = vpop.f32.mrb[0].mxu0
      %v6893 = vadd.f32 0.0, %v6892
      %v6894 = vpop.f32.mrb[0].mxu0
      %6895 = vmatprep.mubr.bf16.mxu0 0
      %6896 = vmatmul.mubr.bf16.gmra.mrb[0].mxu0 %v4553
      %v6897 = vpop.f32.mrb[0].mxu0
      %v6898 = vadd.f32 0.0, %v6897
      %v6899 = vpop.f32.mrb[0].mxu0
      %v6900 = vpop.f32.mrb[0].mxu0
      %v6901 = vadd.f32 0.0, %v6900
      %v6902 = vpop.f32.mrb[0].mxu0
      %6903 = vmatprep.mubr.bf16.mxu0 0
      %6904 = vmatmul.mubr.bf16.gmra.mrb[0].mxu0 %v4556
      %v6905 = vpop.f32.mrb[0].mxu0
      %v6906 = vadd.f32 0.0, %v6905
      %v6907 = vpop.f32.mrb[0].mxu0
      %v6908 = vpop.f32.mrb[0].mxu0
      %v6909 = vadd.f32 0.0, %v6908
      %v6910 = vpop.f32.mrb[0].mxu0
      %6911 = vmatprep.mubr.bf16.mxu0 0
      %6912 = vmatmul.mubr.bf16.gmra.mrb[0].mxu0 %v4559
      %v6913 = vpop.f32.mrb[0].mxu0
      %v6914 = vadd.f32 0.0, %v6913
      %v6915 = vpop.f32.mrb[0].mxu0
      %v6916 = vpop.f32.mrb[0].mxu0
      %v6917 = vadd.f32 0.0, %v6916
      %v6918 = vpop.f32.mrb[0].mxu0
      %6919 = vmatprep.mubr.bf16.mxu0 0
      %6920 = vmatmul.mubr.bf16.gmra.mrb[0].mxu0 %v4562
      %v6921 = vpop.f32.mrb[0].mxu0
      %v6922 = vadd.f32 0.0, %v6921
      %v6923 = vpop.f32.mrb[0].mxu0
      %v6924 = vpop.f32.mrb[0].mxu0
      %v6925 = vadd.f32 0.0, %v6924
      %v6926 = vpop.f32.mrb[0].mxu0
      %6927 = vmatprep.mubr.bf16.mxu0 0
      %6928 = vmatmul.mubr.bf16.gmra.mrb[0].mxu0 %v4565
      %v6929 = vpop.f32.mrb[0].mxu0
      %v6930 = vadd.f32 0.0, %v6929
      %v6931 = vpop.f32.mrb[0].mxu0
      %v6932 = vpop.f32.mrb[0].mxu0
      %v6933 = vadd.f32 0.0, %v6932
      %v6934 = vpop.f32.mrb[0].mxu0
      %6935 = vmatprep.mubr.bf16.mxu0 0
      %6936 = vmatmul.mubr.bf16.gmra.mrb[0].mxu0 %v4568
      %v6937 = vpop.f32.mrb[0].mxu0
      %v6938 = vadd.f32 0.0, %v6937
      %v6939 = vpop.f32.mrb[0].mxu0
      %v6940 = vpop.f32.mrb[0].mxu0
      %v6941 = vadd.f32 0.0, %v6940
      %v6942 = vpop.f32.mrb[0].mxu0
      %6943 = vmatprep.mubr.bf16.mxu0 0
      %6944 = vmatmul.mubr.bf16.gmra.mrb[0].mxu0 %v4571
      %v6945 = vpop.f32.mrb[0].mxu0
      %v6946 = vadd.f32 0.0, %v6945
      %v6947 = vpop.f32.mrb[0].mxu0
      %v6948 = vpop.f32.mrb[0].mxu0
      %v6949 = vadd.f32 0.0, %v6948
      %v6950 = vpop.f32.mrb[0].mxu0
      %6951 = vmatprep.mubr.bf16.mxu0 0
      %6952 = vmatmul.mubr.bf16.gmra.mrb[0].mxu0 %v4574
      %v6953 = vpop.f32.mrb[0].mxu0
      %v6954 = vadd.f32 0.0, %v6953
      %v6955 = vpop.f32.mrb[0].mxu0
      %v6956 = vpop.f32.mrb[0].mxu0
      %v6957 = vadd.f32 0.0, %v6956
      %v6958 = vpop.f32.mrb[0].mxu0
      %6959 = vmatprep.mubr.bf16.mxu0 0
      %6960 = vmatmul.mubr.bf16.gmra.mrb[0].mxu0 %v4835
      %v6961 = vpop.f32.mrb[0].mxu0
      %v6962 = vadd.f32 0.0, %v6961
      %v6963 = vpop.f32.mrb[0].mxu0
      %v6964 = vpop.f32.mrb[0].mxu0
      %v6965 = vadd.f32 0.0, %v6964
      %v6966 = vpop.f32.mrb[0].mxu0
      %6967 = vmatprep.mubr.bf16.mxu0 0
      %6968 = vmatmul.mubr.bf16.gmra.mrb[0].mxu0 %v4838
      %v6969 = vpop.f32.mrb[0].mxu0
      %v6970 = vadd.f32 0.0, %v6969
      %v6971 = vpop.f32.mrb[0].mxu0
      %v6972 = vpop.f32.mrb[0].mxu0
      %v6973 = vadd.f32 0.0, %v6972
      %v6974 = vpop.f32.mrb[0].mxu0
      %6975 = vmatprep.mubr.bf16.mxu0 0
      %6976 = vmatmul.mubr.bf16.gmra.mrb[0].mxu0 %v4841
      %v6977 = vpop.f32.mrb[0].mxu0
      %v6978 = vadd.f32 0.0, %v6977
      %v6979 = vpop.f32.mrb[0].mxu0
      %v6980 = vpop.f32.mrb[0].mxu0
      %v6981 = vadd.f32 0.0, %v6980
      %v6982 = vpop.f32.mrb[0].mxu0
      %6983 = vdwg.mxu0
      %v6984 = vadd.f32 %v6536, %v6794
      %v6985 = vadd.f32 %v6539, %v6797
      %v6986 = vadd.f32 %v6544, %v6802
      %v6987 = vadd.f32 %v6547, %v6805
      %v6988 = vadd.f32 %v6552, %v6810
      %v6989 = vadd.f32 %v6555, %v6813
      %v6990 = vadd.f32 %v6560, %v6818
      %v6991 = vadd.f32 %v6563, %v6821
      %v6992 = vadd.f32 %v6568, %v6826
      %v6993 = vadd.f32 %v6571, %v6829
      %v6994 = vadd.f32 %v6576, %v6834
      %v6995 = vadd.f32 %v6579, %v6837
      %v6996 = vadd.f32 %v6584, %v6842
      %v6997 = vadd.f32 %v6587, %v6845
      %v6998 = vadd.f32 %v6592, %v6850
      %v6999 = vadd.f32 %v6595, %v6853
      %v7000 = vadd.f32 %v6600, %v6858
      %v7001 = vadd.f32 %v6603, %v6861
      %v7002 = vadd.f32 %v6608, %v6866
      %v7003 = vadd.f32 %v6611, %v6869
      %v7004 = vadd.f32 %v6616, %v6874
      %v7005 = vadd.f32 %v6619, %v6877
      %v7006 = vadd.f32 %v6624, %v6882
      %v7007 = vadd.f32 %v6627, %v6885
      %v7008 = vadd.f32 %v6632, %v6890
      %v7009 = vadd.f32 %v6635, %v6893
      %v7010 = vadd.f32 %v6640, %v6898
      %v7011 = vadd.f32 %v6643, %v6901
      %v7012 = vadd.f32 %v6648, %v6906
      %v7013 = vadd.f32 %v6651, %v6909
      %v7014 = vadd.f32 %v6656, %v6914
      %v7015 = vadd.f32 %v6659, %v6917
      %v7016 = vadd.f32 %v6664, %v6922
      %v7017 = vadd.f32 %v6667, %v6925
      %v7018 = vadd.f32 %v6672, %v6930
      %v7019 = vadd.f32 %v6675, %v6933
      %v7020 = vadd.f32 %v6680, %v6938
      %v7021 = vadd.f32 %v6683, %v6941
      %v7022 = vadd.f32 %v6688, %v6946
      %v7023 = vadd.f32 %v6691, %v6949
      %v7024 = vadd.f32 %v6696, %v6954
      %v7025 = vadd.f32 %v6699, %v6957
      %v7026 = vadd.f32 %v6704, %v6962
      %v7027 = vadd.f32 %v6707, %v6965
      %v7028 = vadd.f32 %v6712, %v6970
      %v7029 = vadd.f32 %v6715, %v6973
      %v7030 = vadd.f32 %v6720, %v6978
      %v7031 = vadd.f32 %v6723, %v6981
      %v7080 = vrot.slane %v6984, 2
      %v7081 = vrot.slane %v6985, 2
      %v7082 = vsel %vm3727, %v7080, %v7081
      %v7083 = vrot.slane %v6986, 2
      %v7084 = vsel %vm3727, %v7081, %v7083
      %v7085 = vrot.slane %v6987, 2
      %v7086 = vrot.slane %v6988, 2
      %v7087 = vsel %vm3727, %v7085, %v7086
      %v7088 = vrot.slane %v6989, 2
      %v7089 = vsel %vm3727, %v7086, %v7088
      %v7090 = vrot.slane %v6990, 2
      %v7091 = vrot.slane %v6991, 2
      %v7092 = vsel %vm3727, %v7090, %v7091
      %v7093 = vrot.slane %v6992, 2
      %v7094 = vsel %vm3727, %v7091, %v7093
      %v7095 = vrot.slane %v6993, 2
      %v7096 = vrot.slane %v6994, 2
      %v7097 = vsel %vm3727, %v7095, %v7096
      %v7098 = vrot.slane %v6995, 2
      %v7099 = vsel %vm3727, %v7096, %v7098
      %v7100 = vrot.slane %v6996, 2
      %v7101 = vrot.slane %v6997, 2
      %v7102 = vsel %vm3727, %v7100, %v7101
      %v7103 = vrot.slane %v6998, 2
      %v7104 = vsel %vm3727, %v7101, %v7103
      %v7105 = vrot.slane %v6999, 2
      %v7106 = vrot.slane %v7000, 2
      %v7107 = vsel %vm3727, %v7105, %v7106
      %v7108 = vrot.slane %v7001, 2
      %v7109 = vsel %vm3727, %v7106, %v7108
      %v7110 = vrot.slane %v7002, 2
      %v7111 = vrot.slane %v7003, 2
      %v7112 = vsel %vm3727, %v7110, %v7111
      %v7113 = vrot.slane %v7004, 2
      %v7114 = vsel %vm3727, %v7111, %v7113
      %v7115 = vrot.slane %v7005, 2
      %v7116 = vrot.slane %v7006, 2
      %v7117 = vsel %vm3727, %v7115, %v7116
      %v7118 = vrot.slane %v7007, 2
      %v7119 = vsel %vm3727, %v7116, %v7118
      %v7120 = vrot.slane %v7008, 2
      %v7121 = vrot.slane %v7009, 2
      %v7122 = vsel %vm3727, %v7120, %v7121
      %v7123 = vrot.slane %v7010, 2
      %v7124 = vsel %vm3727, %v7121, %v7123
      %v7125 = vrot.slane %v7011, 2
      %v7126 = vrot.slane %v7012, 2
      %v7127 = vsel %vm3727, %v7125, %v7126
      %v7128 = vrot.slane %v7013, 2
      %v7129 = vsel %vm3727, %v7126, %v7128
      %v7130 = vrot.slane %v7014, 2
      %v7131 = vrot.slane %v7015, 2
      %v7132 = vsel %vm3727, %v7130, %v7131
      %v7133 = vrot.slane %v7016, 2
      %v7134 = vsel %vm3727, %v7131, %v7133
      %v7135 = vrot.slane %v7017, 2
      %v7136 = vrot.slane %v7018, 2
      %v7137 = vsel %vm3727, %v7135, %v7136
      %v7138 = vrot.slane %v7019, 2
      %v7139 = vsel %vm3727, %v7136, %v7138
      %v7140 = vrot.slane %v7020, 2
      %v7141 = vrot.slane %v7021, 2
      %v7142 = vsel %vm3727, %v7140, %v7141
      %v7143 = vrot.slane %v7022, 2
      %v7144 = vsel %vm3727, %v7141, %v7143
      %v7145 = vrot.slane %v7023, 2
      %v7146 = vrot.slane %v7024, 2
      %v7147 = vsel %vm3727, %v7145, %v7146
      %v7148 = vrot.slane %v7025, 2
      %v7149 = vsel %vm3727, %v7146, %v7148
      %v7150 = vrot.slane %v7026, 2
      %v7151 = vrot.slane %v7027, 2
      %v7152 = vsel %vm3727, %v7150, %v7151
      %v7153 = vrot.slane %v7028, 2
      %v7154 = vsel %vm3727, %v7151, %v7153
      %v7155 = vrot.slane %v7029, 2
      %v7156 = vrot.slane %v7030, 2
      %v7157 = vsel %vm3727, %v7155, %v7156
      %v7158 = vrot.slane %v7031, 2
      %v7159 = vsel %vm3727, %v7156, %v7158
      %v7208 = vadd.f32 %v6162, %v7082
      %v7209 = vadd.f32 %v6163, %v7084
      %v7210 = vadd.f32 %v6164, %v7083
      %v7211 = vadd.f32 %v6165, %v7087
      %v7212 = vadd.f32 %v6166, %v7089
      %v7213 = vadd.f32 %v6167, %v7088
      %v7214 = vadd.f32 %v6168, %v7092
      %v7215 = vadd.f32 %v6169, %v7094
      %v7216 = vadd.f32 %v6170, %v7093
      %v7217 = vadd.f32 %v6171, %v7097
      %v7218 = vadd.f32 %v6172, %v7099
      %v7219 = vadd.f32 %v6173, %v7098
      %v7220 = vadd.f32 %v6174, %v7102
      %v7221 = vadd.f32 %v6175, %v7104
      %v7222 = vadd.f32 %v6176, %v7103
      %v7223 = vadd.f32 %v6177, %v7107
      %v7224 = vadd.f32 %v6178, %v7109
      %v7225 = vadd.f32 %v6179, %v7108
      %v7226 = vadd.f32 %v6180, %v7112
      %v7227 = vadd.f32 %v6181, %v7114
      %v7228 = vadd.f32 %v6182, %v7113
      %v7229 = vadd.f32 %v6183, %v7117
      %v7230 = vadd.f32 %v6184, %v7119
      %v7231 = vadd.f32 %v6185, %v7118
      %v7232 = vadd.f32 %v6186, %v7122
      %v7233 = vadd.f32 %v6187, %v7124
      %v7234 = vadd.f32 %v6188, %v7123
      %v7235 = vadd.f32 %v6189, %v7127
      %v7236 = vadd.f32 %v6190, %v7129
      %v7237 = vadd.f32 %v6191, %v7128
      %v7238 = vadd.f32 %v6192, %v7132
      %v7239 = vadd.f32 %v6193, %v7134
      %v7240 = vadd.f32 %v6194, %v7133
      %v7241 = vadd.f32 %v6195, %v7137
      %v7242 = vadd.f32 %v6196, %v7139
      %v7243 = vadd.f32 %v6197, %v7138
      %v7244 = vadd.f32 %v6198, %v7142
      %v7245 = vadd.f32 %v6199, %v7144
      %v7246 = vadd.f32 %v6200, %v7143
      %v7247 = vadd.f32 %v6201, %v7147
      %v7248 = vadd.f32 %v6202, %v7149
      %v7249 = vadd.f32 %v6203, %v7148
      %v7250 = vadd.f32 %v6204, %v7152
      %v7251 = vadd.f32 %v6205, %v7154
      %v7252 = vadd.f32 %v6206, %v7153
      %v7253 = vadd.f32 %v6207, %v7157
      %v7254 = vadd.f32 %v6208, %v7159
      %v7255 = vadd.f32 %v6209, %v7158
      %v7257 = vlaneseq
      %v7258 = vshrl.u32 %v7257, 7
      %v7259 = vsub.s32 0, %v7258
      %v7260 = vrot.slane %v546, %v7259
      %v7262 = vmul.f32 %v7208, %v7260
      %v7263 = vmul.f32 %v7209, %v7260
      %v7264 = vmul.f32 %v7210, %v7260
      %v7265 = vmul.f32 %v7211, %v7260
      %v7266 = vmul.f32 %v7212, %v7260
      %v7267 = vmul.f32 %v7213, %v7260
      %v7268 = vmul.f32 %v7214, %v7260
      %v7269 = vmul.f32 %v7215, %v7260
      %v7270 = vmul.f32 %v7216, %v7260
      %v7271 = vmul.f32 %v7217, %v7260
      %v7272 = vmul.f32 %v7218, %v7260
      %v7273 = vmul.f32 %v7219, %v7260
      %v7274 = vmul.f32 %v7220, %v7260
      %v7275 = vmul.f32 %v7221, %v7260
      %v7276 = vmul.f32 %v7222, %v7260
      %v7277 = vmul.f32 %v7223, %v7260
      %v7278 = vmul.f32 %v7224, %v7260
      %v7279 = vmul.f32 %v7225, %v7260
      %v7280 = vmul.f32 %v7226, %v7260
      %v7281 = vmul.f32 %v7227, %v7260
      %v7282 = vmul.f32 %v7228, %v7260
      %v7283 = vmul.f32 %v7229, %v7260
      %v7284 = vmul.f32 %v7230, %v7260
      %v7285 = vmul.f32 %v7231, %v7260
      %v7286 = vmul.f32 %v7232, %v7260
      %v7287 = vmul.f32 %v7233, %v7260
      %v7288 = vmul.f32 %v7234, %v7260
      %v7289 = vmul.f32 %v7235, %v7260
      %v7290 = vmul.f32 %v7236, %v7260
      %v7291 = vmul.f32 %v7237, %v7260
      %v7292 = vmul.f32 %v7238, %v7260
      %v7293 = vmul.f32 %v7239, %v7260
      %v7294 = vmul.f32 %v7240, %v7260
      %v7295 = vmul.f32 %v7241, %v7260
      %v7296 = vmul.f32 %v7242, %v7260
      %v7297 = vmul.f32 %v7243, %v7260
      %v7298 = vmul.f32 %v7244, %v7260
      %v7299 = vmul.f32 %v7245, %v7260
      %v7300 = vmul.f32 %v7246, %v7260
      %v7301 = vmul.f32 %v7247, %v7260
      %v7302 = vmul.f32 %v7248, %v7260
      %v7303 = vmul.f32 %v7249, %v7260
      %v7304 = vmul.f32 %v7250, %v7260
      %v7305 = vmul.f32 %v7251, %v7260
      %v7306 = vmul.f32 %v7252, %v7260
      %v7307 = vmul.f32 %v7253, %v7260
      %v7308 = vmul.f32 %v7254, %v7260
      %v7309 = vmul.f32 %v7255, %v7260
      %v7311 = vlaneseq
      %v7312 = vshrl.u32 %v7311, 7
      %v7313 = vsub.s32 0, %v7312
      %v7314 = vrot.slane %v547, %v7313
      %v7316 = vadd.f32 %v7262, %v7314
      %v7317 = vadd.f32 %v7263, %v7314
      %v7318 = vadd.f32 %v7264, %v7314
      %v7319 = vadd.f32 %v7265, %v7314
      %v7320 = vadd.f32 %v7266, %v7314
      %v7321 = vadd.f32 %v7267, %v7314
      %v7322 = vadd.f32 %v7268, %v7314
      %v7323 = vadd.f32 %v7269, %v7314
      %v7324 = vadd.f32 %v7270, %v7314
      %v7325 = vadd.f32 %v7271, %v7314
      %v7326 = vadd.f32 %v7272, %v7314
      %v7327 = vadd.f32 %v7273, %v7314
      %v7328 = vadd.f32 %v7274, %v7314
      %v7329 = vadd.f32 %v7275, %v7314
      %v7330 = vadd.f32 %v7276, %v7314
      %v7331 = vadd.f32 %v7277, %v7314
      %v7332 = vadd.f32 %v7278, %v7314
      %v7333 = vadd.f32 %v7279, %v7314
      %v7334 = vadd.f32 %v7280, %v7314
      %v7335 = vadd.f32 %v7281, %v7314
      %v7336 = vadd.f32 %v7282, %v7314
      %v7337 = vadd.f32 %v7283, %v7314
      %v7338 = vadd.f32 %v7284, %v7314
      %v7339 = vadd.f32 %v7285, %v7314
      %v7340 = vadd.f32 %v7286, %v7314
      %v7341 = vadd.f32 %v7287, %v7314
      %v7342 = vadd.f32 %v7288, %v7314
      %v7343 = vadd.f32 %v7289, %v7314
      %v7344 = vadd.f32 %v7290, %v7314
      %v7345 = vadd.f32 %v7291, %v7314
      %v7346 = vadd.f32 %v7292, %v7314
      %v7347 = vadd.f32 %v7293, %v7314
      %v7348 = vadd.f32 %v7294, %v7314
      %v7349 = vadd.f32 %v7295, %v7314
      %v7350 = vadd.f32 %v7296, %v7314
      %v7351 = vadd.f32 %v7297, %v7314
      %v7352 = vadd.f32 %v7298, %v7314
      %v7353 = vadd.f32 %v7299, %v7314
      %v7354 = vadd.f32 %v7300, %v7314
      %v7355 = vadd.f32 %v7301, %v7314
      %v7356 = vadd.f32 %v7302, %v7314
      %v7357 = vadd.f32 %v7303, %v7314
      %v7358 = vadd.f32 %v7304, %v7314
      %v7359 = vadd.f32 %v7305, %v7314
      %v7360 = vadd.f32 %v7306, %v7314
      %v7361 = vadd.f32 %v7307, %v7314
      %v7362 = vadd.f32 %v7308, %v7314
      %v7363 = vadd.f32 %v7309, %v7314
      %v7364 = vmax.f32 %v7316, 0.0
      %v7365 = vmax.f32 %v7317, 0.0
      %v7366 = vmax.f32 %v7318, 0.0
      %v7367 = vmax.f32 %v7319, 0.0
      %v7368 = vmax.f32 %v7320, 0.0
      %v7369 = vmax.f32 %v7321, 0.0
      %v7370 = vmax.f32 %v7322, 0.0
      %v7371 = vmax.f32 %v7323, 0.0
      %v7372 = vmax.f32 %v7324, 0.0
      %v7373 = vmax.f32 %v7325, 0.0
      %v7374 = vmax.f32 %v7326, 0.0
      %v7375 = vmax.f32 %v7327, 0.0
      %v7376 = vmax.f32 %v7328, 0.0
      %v7377 = vmax.f32 %v7329, 0.0
      %v7378 = vmax.f32 %v7330, 0.0
      %v7379 = vmax.f32 %v7331, 0.0
      %v7380 = vmax.f32 %v7332, 0.0
      %v7381 = vmax.f32 %v7333, 0.0
      %v7382 = vmax.f32 %v7334, 0.0
      %v7383 = vmax.f32 %v7335, 0.0
      %v7384 = vmax.f32 %v7336, 0.0
      %v7385 = vmax.f32 %v7337, 0.0
      %v7386 = vmax.f32 %v7338, 0.0
      %v7387 = vmax.f32 %v7339, 0.0
      %v7388 = vmax.f32 %v7340, 0.0
      %v7389 = vmax.f32 %v7341, 0.0
      %v7390 = vmax.f32 %v7342, 0.0
      %v7391 = vmax.f32 %v7343, 0.0
      %v7392 = vmax.f32 %v7344, 0.0
      %v7393 = vmax.f32 %v7345, 0.0
      %v7394 = vmax.f32 %v7346, 0.0
      %v7395 = vmax.f32 %v7347, 0.0
      %v7396 = vmax.f32 %v7348, 0.0
      %v7397 = vmax.f32 %v7349, 0.0
      %v7398 = vmax.f32 %v7350, 0.0
      %v7399 = vmax.f32 %v7351, 0.0
      %v7400 = vmax.f32 %v7352, 0.0
      %v7401 = vmax.f32 %v7353, 0.0
      %v7402 = vmax.f32 %v7354, 0.0
      %v7403 = vmax.f32 %v7355, 0.0
      %v7404 = vmax.f32 %v7356, 0.0
      %v7405 = vmax.f32 %v7357, 0.0
      %v7406 = vmax.f32 %v7358, 0.0
      %v7407 = vmax.f32 %v7359, 0.0
      %v7408 = vmax.f32 %v7360, 0.0
      %v7409 = vmax.f32 %v7361, 0.0
      %v7410 = vmax.f32 %v7362, 0.0
      %v7411 = vmax.f32 %v7363, 0.0
      %v7412 = vpack.c.bf16 %v7365, %v7364
      %v7413 = vpack.c.bf16 %v7366, %v7366
      %v7414 = vpack.c.bf16 %v7368, %v7367
      %v7415 = vpack.c.bf16 %v7369, %v7369
      %v7416 = vpack.c.bf16 %v7371, %v7370
      %v7417 = vpack.c.bf16 %v7372, %v7372
      %v7418 = vpack.c.bf16 %v7374, %v7373
      %v7419 = vpack.c.bf16 %v7375, %v7375
      %v7420 = vpack.c.bf16 %v7377, %v7376
      %v7421 = vpack.c.bf16 %v7378, %v7378
      %v7422 = vpack.c.bf16 %v7380, %v7379
      %v7423 = vpack.c.bf16 %v7381, %v7381
      %v7424 = vpack.c.bf16 %v7383, %v7382
      %v7425 = vpack.c.bf16 %v7384, %v7384
      %v7426 = vpack.c.bf16 %v7386, %v7385
      %v7427 = vpack.c.bf16 %v7387, %v7387
      %v7428 = vpack.c.bf16 %v7389, %v7388
      %v7429 = vpack.c.bf16 %v7390, %v7390
      %v7430 = vpack.c.bf16 %v7392, %v7391
      %v7431 = vpack.c.bf16 %v7393, %v7393
      %v7432 = vpack.c.bf16 %v7395, %v7394
      %v7433 = vpack.c.bf16 %v7396, %v7396
      %v7434 = vpack.c.bf16 %v7398, %v7397
      %v7435 = vpack.c.bf16 %v7399, %v7399
      %v7436 = vpack.c.bf16 %v7401, %v7400
      %v7437 = vpack.c.bf16 %v7402, %v7402
      %v7438 = vpack.c.bf16 %v7404, %v7403
      %v7439 = vpack.c.bf16 %v7405, %v7405
      %v7440 = vpack.c.bf16 %v7407, %v7406
      %v7441 = vpack.c.bf16 %v7408, %v7408
      %v7442 = vpack.c.bf16 %v7410, %v7409
      %v7443 = vpack.c.bf16 %v7411, %v7411
      %v7476 = vunpack.c.l.b16 %v7412
      %v7477 = vunpack.c.h.b16 %v7412
      %v7478 = vunpack.c.l.b16 %v7413
      %v7479 = vunpack.c.l.b16 %v7414
      %v7480 = vunpack.c.h.b16 %v7414
      %v7481 = vunpack.c.l.b16 %v7415
      %v7482 = vunpack.c.l.b16 %v7416
      %v7483 = vunpack.c.h.b16 %v7416
      %v7484 = vunpack.c.l.b16 %v7417
      %v7485 = vunpack.c.l.b16 %v7418
      %v7486 = vunpack.c.h.b16 %v7418
      %v7487 = vunpack.c.l.b16 %v7419
      %v7488 = vunpack.c.l.b16 %v7420
      %v7489 = vunpack.c.h.b16 %v7420
      %v7490 = vunpack.c.l.b16 %v7421
      %v7491 = vunpack.c.l.b16 %v7422
      %v7492 = vunpack.c.h.b16 %v7422
      %v7493 = vunpack.c.l.b16 %v7423
      %v7494 = vunpack.c.l.b16 %v7424
      %v7495 = vunpack.c.h.b16 %v7424
      %v7496 = vunpack.c.l.b16 %v7425
      %v7497 = vunpack.c.l.b16 %v7426
      %v7498 = vunpack.c.h.b16 %v7426
      %v7499 = vunpack.c.l.b16 %v7427
      %v7500 = vunpack.c.l.b16 %v7428
      %v7501 = vunpack.c.h.b16 %v7428
      %v7502 = vunpack.c.l.b16 %v7429
      %v7503 = vunpack.c.l.b16 %v7430
      %v7504 = vunpack.c.h.b16 %v7430
      %v7505 = vunpack.c.l.b16 %v7431
      %v7506 = vunpack.c.l.b16 %v7432
      %v7507 = vunpack.c.h.b16 %v7432
      %v7508 = vunpack.c.l.b16 %v7433
      %v7509 = vunpack.c.l.b16 %v7434
      %v7510 = vunpack.c.h.b16 %v7434
      %v7511 = vunpack.c.l.b16 %v7435
      %v7512 = vunpack.c.l.b16 %v7436
      %v7513 = vunpack.c.h.b16 %v7436
      %v7514 = vunpack.c.l.b16 %v7437
      %v7515 = vunpack.c.l.b16 %v7438
      %v7516 = vunpack.c.h.b16 %v7438
      %v7517 = vunpack.c.l.b16 %v7439
      %v7518 = vunpack.c.l.b16 %v7440
      %v7519 = vunpack.c.h.b16 %v7440
      %v7520 = vunpack.c.l.b16 %v7441
      %v7521 = vunpack.c.l.b16 %v7442
      %v7522 = vunpack.c.h.b16 %v7442
      %v7523 = vunpack.c.l.b16 %v7443
      %v7524 = vpack.c.b16 %v7476, %v7476
      %v7525 = vpack.c.b16 %v7477, %v7477
      %v7526 = vpack.c.b16 %v7478, %v7478
      %v7527 = vpack.c.b16 %v7479, %v7479
      %v7528 = vpack.c.b16 %v7480, %v7480
      %v7529 = vpack.c.b16 %v7481, %v7481
      %v7530 = vpack.c.b16 %v7482, %v7482
      %v7531 = vpack.c.b16 %v7483, %v7483
      %v7532 = vpack.c.b16 %v7484, %v7484
      %v7533 = vpack.c.b16 %v7485, %v7485
      %v7534 = vpack.c.b16 %v7486, %v7486
      %v7535 = vpack.c.b16 %v7487, %v7487
      %v7536 = vpack.c.b16 %v7488, %v7488
      %v7537 = vpack.c.b16 %v7489, %v7489
      %v7538 = vpack.c.b16 %v7490, %v7490
      %v7539 = vpack.c.b16 %v7491, %v7491
      %v7540 = vpack.c.b16 %v7492, %v7492
      %v7541 = vpack.c.b16 %v7493, %v7493
      %v7542 = vpack.c.b16 %v7494, %v7494
      %v7543 = vpack.c.b16 %v7495, %v7495
      %v7544 = vpack.c.b16 %v7496, %v7496
      %v7545 = vpack.c.b16 %v7497, %v7497
      %v7546 = vpack.c.b16 %v7498, %v7498
      %v7547 = vpack.c.b16 %v7499, %v7499
      %v7548 = vpack.c.b16 %v7500, %v7500
      %v7549 = vpack.c.b16 %v7501, %v7501
      %v7550 = vpack.c.b16 %v7502, %v7502
      %v7551 = vpack.c.b16 %v7503, %v7503
      %v7552 = vpack.c.b16 %v7504, %v7504
      %v7553 = vpack.c.b16 %v7505, %v7505
      %v7554 = vpack.c.b16 %v7506, %v7506
      %v7555 = vpack.c.b16 %v7507, %v7507
      %v7556 = vpack.c.b16 %v7508, %v7508
      %v7557 = vpack.c.b16 %v7509, %v7509
      %v7558 = vpack.c.b16 %v7510, %v7510
      %v7559 = vpack.c.b16 %v7511, %v7511
      %v7560 = vpack.c.b16 %v7512, %v7512
      %v7561 = vpack.c.b16 %v7513, %v7513
      %v7562 = vpack.c.b16 %v7514, %v7514
      %v7563 = vpack.c.b16 %v7515, %v7515
      %v7564 = vpack.c.b16 %v7516, %v7516
      %v7565 = vpack.c.b16 %v7517, %v7517
      %v7566 = vpack.c.b16 %v7518, %v7518
      %v7567 = vpack.c.b16 %v7519, %v7519
      %v7568 = vpack.c.b16 %v7520, %v7520
      %v7569 = vpack.c.b16 %v7521, %v7521
      %v7570 = vpack.c.b16 %v7522, %v7522
      %v7571 = vpack.c.b16 %v7523, %v7523
      %7620 = vst [vmem:[%s543] sm:$0xf] %v7524
      %7621 = vst [vmem:[%s543 + $0x4] sm:$0xf] %v7525
      %7622 = vst [vmem:[%s543 + $0x8] sm:$0x1] %v7526
      %7623 = vst [vmem:[%s543 + $0xc] sm:$0xf] %v7527
      %7624 = vst [vmem:[%s543 + $0x10] sm:$0xf] %v7528
      %7625 = vst [vmem:[%s543 + $0x14] sm:$0x1] %v7529
      %7626 = vst [vmem:[%s543 + $0x18] sm:$0xf] %v7530
      %7627 = vst [vmem:[%s543 + $0x1c] sm:$0xf] %v7531
      %7628 = vst [vmem:[%s543 + $0x20] sm:$0x1] %v7532
      %7629 = vst [vmem:[%s543 + $0x24] sm:$0xf] %v7533
      %7630 = vst [vmem:[%s543 + $0x28] sm:$0xf] %v7534
      %7631 = vst [vmem:[%s543 + $0x2c] sm:$0x1] %v7535
      %7632 = vst [vmem:[%s543 + $0x30] sm:$0xf] %v7536
      %7633 = vst [vmem:[%s543 + $0x34] sm:$0xf] %v7537
      %7634 = vst [vmem:[%s543 + $0x38] sm:$0x1] %v7538
      %7635 = vst [vmem:[%s543 + $0x3c] sm:$0xf] %v7539
      %7636 = vst [vmem:[%s543 + $0x40] sm:$0xf] %v7540
      %7637 = vst [vmem:[%s543 + $0x44] sm:$0x1] %v7541
      %7638 = vst [vmem:[%s543 + $0x48] sm:$0xf] %v7542
      %7639 = vst [vmem:[%s543 + $0x4c] sm:$0xf] %v7543
      %7640 = vst [vmem:[%s543 + $0x50] sm:$0x1] %v7544
      %7641 = vst [vmem:[%s543 + $0x54] sm:$0xf] %v7545
      %7642 = vst [vmem:[%s543 + $0x58] sm:$0xf] %v7546
      %7643 = vst [vmem:[%s543 + $0x5c] sm:$0x1] %v7547
      %7644 = vst [vmem:[%s543 + $0x60] sm:$0xf] %v7548
      %7645 = vst [vmem:[%s543 + $0x64] sm:$0xf] %v7549
      %7646 = vst [vmem:[%s543 + $0x68] sm:$0x1] %v7550
      %7647 = vst [vmem:[%s543 + $0x6c] sm:$0xf] %v7551
      %7648 = vst [vmem:[%s543 + $0x70] sm:$0xf] %v7552
      %7649 = vst [vmem:[%s543 + $0x74] sm:$0x1] %v7553
      %7650 = vst [vmem:[%s543 + $0x78] sm:$0xf] %v7554
      %7651 = vst [vmem:[%s543 + $0x7c] sm:$0xf] %v7555
      %7652 = vst [vmem:[%s543 + $0x80] sm:$0x1] %v7556
      %7653 = vst [vmem:[%s543 + $0x84] sm:$0xf] %v7557
      %7654 = vst [vmem:[%s543 + $0x88] sm:$0xf] %v7558
      %7655 = vst [vmem:[%s543 + $0x8c] sm:$0x1] %v7559
      %7656 = vst [vmem:[%s543 + $0x90] sm:$0xf] %v7560
      %7657 = vst [vmem:[%s543 + $0x94] sm:$0xf] %v7561
      %7658 = vst [vmem:[%s543 + $0x98] sm:$0x1] %v7562
      %7659 = vst [vmem:[%s543 + $0x9c] sm:$0xf] %v7563
      %7660 = vst [vmem:[%s543 + $0xa0] sm:$0xf] %v7564
      %7661 = vst [vmem:[%s543 + $0xa4] sm:$0x1] %v7565
      %7662 = vst [vmem:[%s543 + $0xa8] sm:$0xf] %v7566
      %7663 = vst [vmem:[%s543 + $0xac] sm:$0xf] %v7567
      %7664 = vst [vmem:[%s543 + $0xb0] sm:$0x1] %v7568
      %7665 = vst [vmem:[%s543 + $0xb4] sm:$0xf] %v7569
      %7666 = vst [vmem:[%s543 + $0xb8] sm:$0xf] %v7570
      %7667 = vst [vmem:[%s543 + $0xbc] sm:$0x1] %v7571
      %s7668 = smul.u32 16, %s24
      %p7669 = scmp.lt.s32.totalorder %s23, 1
      %s7670 = scalar_select %p7669, %s23, 1
      %p7671 = scmp.lt.s32.totalorder %s7668, 31
      %s7672 = scalar_select %p7671, %s7668, 31
      %s7673 = smul.addr %s7672, 3
      %s7674 = smul.addr %s7670, 96
      %s7675 = sadd.s32 %s7673, %s7674
      %s7676 = smul.addr %s7675, 4
      %s7677 = scalar_lea.vmem %s8, %s7676
      // Predicated region
      $region53: #{up_forward.4} parent=51 // pred_check
        %p7678 = pneg %p255
      $region54: #{up_forward.4} parent=51 // pred_check_branch
        %7680 = sbr.rel (%p7678) target = $region56
      $region55: #{up_forward.4} parent=51 // pred_region
        %s7681 = smul.u32 16, %s24
      $region56: #{up_forward.4} parent=51 // pred_fallthru
        _
    $region52: #{up_forward.4} parent=5 // pred_fallthru
      _
    %p7682 = scmp.le.s32.totalorder 2, %s14
    // Predicated region
    $region57: #{up_forward.4} parent=5 // pred_check
      %p7683 = pneg %p7682
    $region58: #{up_forward.4} parent=5 // pred_check_branch
      %7685 = sbr.rel (%p7683) target = $region60
    $region59: #{up_forward.4} parent=5 // pred_region
      %s7686 = ssub.s32 %s14, 2
      // Predicated region
      $region61: #{up_forward.4} parent=59 // pred_check
        %p7687 = pneg %p261
      $region62: #{up_forward.4} parent=59 // pred_check_branch
        %7689 = sbr.rel (%p7687) target = $region64
      $region63: #{up_forward.4} parent=59 // pred_region
        %s7690 = smul.u32 16, %s26
        %p7691 = scmp.lt.s32.totalorder %s25, 1
        %s7692 = scalar_select %p7691, %s25, 1
        %p7693 = scmp.lt.s32.totalorder %s7690, 31
        %s7694 = scalar_select %p7693, %s7690, 31
        %s7695 = smul.addr %s7694, 3
        %s7696 = smul.addr %s7692, 96
        %s7697 = sadd.s32 %s7695, %s7696
        %s7698 = smul.addr %s7697, 4
        %s7699 = scalar_lea.vmem %s8, %s7698
      $region64: #{up_forward.4} parent=59 // pred_fallthru
        _
    $region60: #{up_forward.4} parent=5 // pred_fallthru
      _
  $region6: #{up_forward.4} parent=0 // loop_footer
    %s18 = sadd.s32 1, %s14
  $region7: #{up_forward.4} parent=0 // loop_footer_branch
    %13 = sbr.rel target = $region3
  $region8: #{up_forward.4} parent=0 // loop_exit
    _

</llo_original>
